<compile_context>
chip_gen: v6e
topology: v6e:2x2x1
jax: 0.10.0
libtpu: 0.0.40
codegen_flags: <defaults>
</compile_context>

<pallas_src>
import math

import jax
import jax.numpy as jnp
from jax.experimental import pallas as pl
from jax.experimental.pallas import tpu as pltpu

# Make the pure-JAX reference matmuls run at full f32 precision (kernel matmuls already do).
jax.config.update("jax_default_matmul_precision", "highest")

# --- model hyper-parameters (small, consistent with the module __init__) ---
D_MODEL = 32
N_HEAD = 4
HEAD_DIM = D_MODEL // N_HEAD
MLP_RATIO = 4.0
MLP_WIDTH = int(D_MODEL * MLP_RATIO)
SEQ = 8
BATCH = 2
EPS = 1e-5  # PyTorch LayerNorm default eps


def _erf(x):
    # Abramowitz & Stegun 7.1.26 polynomial approximation (|err| < 1.5e-7).  Matches nn.GELU's
    # exact erf formulation well below the verification tolerance.
    a1, a2, a3, a4, a5 = 0.254829592, -0.284496736, 1.421413741, -1.453152027, 1.061405429
    p = 0.3275911
    ax = jnp.abs(x)
    t = 1.0 / (1.0 + p * ax)
    poly = t * (a1 + t * (a2 + t * (a3 + t * (a4 + t * a5))))
    y = 1.0 - poly * jnp.exp(-ax * ax)
    return jnp.where(x < 0.0, -y, y)


def _layernorm(x, g, b):
    mu = jnp.mean(x, axis=-1, keepdims=True)
    var = jnp.mean((x - mu) ** 2, axis=-1, keepdims=True)
    return (x - mu) * jax.lax.rsqrt(var + EPS) * g + b


def _make_kernel(with_mask: bool):
    """Builds the fused block kernel.  `with_mask` is a compile-time flag."""

    def kernel(*refs):
        if with_mask:
            (x_ref, mask_ref,
             ln1g_ref, ln1b_ref, wqkv_ref, bqkv_ref, wo_ref, bo_ref,
             ln2g_ref, ln2b_ref, wfc_ref, bfc_ref, wpr_ref, bpr_ref,
             o_ref, attn_sc) = refs
        else:
            (x_ref,
             ln1g_ref, ln1b_ref, wqkv_ref, bqkv_ref, wo_ref, bo_ref,
             ln2g_ref, ln2b_ref, wfc_ref, bfc_ref, wpr_ref, bpr_ref,
             o_ref, attn_sc) = refs
            mask_ref = None

        x = x_ref[...]                                 # (B, L, D) f32
        B, L, D = x.shape

        # --- x = x + out_proj(MHA(ln_1(x)))  (ln_attn is Identity: scale_attn=False) ---
        xn = _layernorm(x, ln1g_ref[...], ln1b_ref[...])
        xf = xn.reshape(B * L, D)
        # wqkv is pre-transposed to (D, 3D); query scaling already folded in.
        qkv = jnp.dot(xf, wqkv_ref[...], preferred_element_type=jnp.float32) + bqkv_ref[...]
        q = qkv[:, :D].reshape(B, L, D)
        k = qkv[:, D:2 * D].reshape(B, L, D)
        v = qkv[:, 2 * D:].reshape(B, L, D)

        for h in range(N_HEAD):                        # static unroll; each step batched over B
            sl = slice(h * HEAD_DIM, (h + 1) * HEAD_DIM)
            qh, kh, vh = q[:, :, sl], k[:, :, sl], v[:, :, sl]
            s = jnp.einsum('bqd,bkd->bqk', qh, kh,
                           preferred_element_type=jnp.float32)          # (B, L, L)
            if mask_ref is not None:
                s = s + mask_ref[...]
            s = s - jnp.max(s, axis=-1, keepdims=True)
            e = jnp.exp(s)
            p = e * pl.reciprocal(jnp.sum(e, axis=-1, keepdims=True), approx=True)
            oh = jnp.einsum('bqk,bkd->bqd', p, vh,
                            preferred_element_type=jnp.float32)         # (B, L, Hd)
            # accumulate into the per-head lane slice of the (B*L, D) scratch slab (no concat)
            attn_sc[:, sl] = oh.reshape(B * L, HEAD_DIM)

        attn = jnp.dot(attn_sc[...], wo_ref[...],
                       preferred_element_type=jnp.float32) + bo_ref[...]  # (B*L, D)
        xr = x.reshape(B * L, D) + attn

        # --- x = x + c_proj(gelu(c_fc(ln_2(x)))) ---
        xn2 = _layernorm(xr, ln2g_ref[...], ln2b_ref[...])
        h1 = jnp.dot(xn2, wfc_ref[...], preferred_element_type=jnp.float32) + bfc_ref[...]
        g = 0.5 * h1 * (1.0 + _erf(h1 * (1.0 / math.sqrt(2.0))))        # exact (erf) GELU
        m = jnp.dot(g, wpr_ref[...], preferred_element_type=jnp.float32) + bpr_ref[...]
        o_ref[...] = (xr + m).reshape(B, L, D)

    return kernel


def _prep_params(params):
    """Wrapper-side layout plumbing: pre-transpose the weight matrices so the contraction
    dimension is leading (no in-kernel transposes) and fold PyTorch MHA's 1/sqrt(head_dim)
    query scaling into the q rows of the in-projection."""
    (ln1g, ln1b, wqkv, bqkv, wo, bo, ln2g, ln2b, wfc, bfc, wpr, bpr) = params
    scale = 1.0 / math.sqrt(HEAD_DIM)
    q_gain = jnp.concatenate([jnp.full((D_MODEL,), scale, jnp.float32),
                              jnp.ones((2 * D_MODEL,), jnp.float32)])     # (3D,)
    wqkv_s = wqkv * q_gain[:, None]        # scale the q output-rows of (3D, D)
    bqkv_s = bqkv * q_gain[None, :]        # (1, 3D)
    return (ln1g, ln1b,
            wqkv_s.T, bqkv_s,              # (D, 3D)
            wo.T, bo,                      # (D, D)
            ln2g, ln2b,
            wfc.T, bfc,                    # (D, 4D)
            wpr.T, bpr)                    # (4D, D)


def residual_attention_block(x_bld, params, attn_mask=None):
    """x_bld: (batch, seq, d_model) float32.  attn_mask: optional (seq, seq) additive mask."""
    B, L, D = x_bld.shape
    kparams = _prep_params(params)
    with_mask = attn_mask is not None
    inputs = (x_bld,)
    if with_mask:
        inputs += (attn_mask.astype(x_bld.dtype),)
    inputs += kparams

    # Single gridless invocation: the whole (B, L, D) slab plus all weights (<1 MiB total)
    # live in VMEM as one block; no per-grid-step launch/DMA-setup overhead.
    return pl.pallas_call(
        _make_kernel(with_mask),
        out_shape=jax.ShapeDtypeStruct((B, L, D), jnp.float32),
        scratch_shapes=[pltpu.VMEM((B * L, D), jnp.float32)],   # per-head attention output slab
    )(*inputs)


def init_params(key):
    """Deterministic synthetic parameters (shapes match the PyTorch module)."""
    ks = jax.random.split(key, 8)
    std = 0.05
    ln1_g = jnp.ones((1, D_MODEL), jnp.float32)
    ln1_b = jnp.zeros((1, D_MODEL), jnp.float32)
    wqkv = jax.random.normal(ks[0], (3 * D_MODEL, D_MODEL), jnp.float32) * std   # in_proj_weight
    bqkv = jax.random.normal(ks[1], (1, 3 * D_MODEL), jnp.float32) * std         # in_proj_bias
    wo = jax.random.normal(ks[2], (D_MODEL, D_MODEL), jnp.float32) * std         # out_proj.weight
    bo = jax.random.normal(ks[3], (1, D_MODEL), jnp.float32) * std               # out_proj.bias
    ln2_g = jnp.ones((1, D_MODEL), jnp.float32)
    ln2_b = jnp.zeros((1, D_MODEL), jnp.float32)
    wfc = jax.random.normal(ks[4], (MLP_WIDTH, D_MODEL), jnp.float32) * std      # mlp.c_fc.weight
    bfc = jax.random.normal(ks[5], (1, MLP_WIDTH), jnp.float32) * std            # mlp.c_fc.bias
    wpr = jax.random.normal(ks[6], (D_MODEL, MLP_WIDTH), jnp.float32) * std      # mlp.c_proj.weight
    bpr = jax.random.normal(ks[7], (1, D_MODEL), jnp.float32) * std              # mlp.c_proj.bias
    return (ln1_g, ln1_b, wqkv, bqkv, wo, bo, ln2_g, ln2_b, wfc, bfc, wpr, bpr)


def reference(x_bld, params, attn_mask=None):
    """Pure-JAX reference mirroring the PyTorch forward (batch-first layout)."""
    (ln1g, ln1b, wqkv, bqkv, wo, bo, ln2g, ln2b, wfc, bfc, wpr, bpr) = params

    def ln(x, g, b):
        mu = x.mean(-1, keepdims=True)
        var = ((x - mu) ** 2).mean(-1, keepdims=True)
        return (x - mu) / jnp.sqrt(var + EPS) * g + b

    x = x_bld
    B, L, D = x.shape
    xn = ln(x, ln1g, ln1b)
    qkv = xn @ wqkv.T + bqkv
    q, k, v = jnp.split(qkv, 3, axis=-1)
    qh = q.reshape(B, L, N_HEAD, HEAD_DIM)
    kh = k.reshape(B, L, N_HEAD, HEAD_DIM)
    vh = v.reshape(B, L, N_HEAD, HEAD_DIM)
    s = jnp.einsum('blhd,bmhd->bhlm', qh, kh) / math.sqrt(HEAD_DIM)
    if attn_mask is not None:
        s = s + attn_mask
    p = jax.nn.softmax(s, axis=-1)
    o = jnp.einsum('bhlm,bmhd->blhd', p, vh).reshape(B, L, D)
    x = x + (o @ wo.T + bo)
    xn2 = ln(x, ln2g, ln2b)
    h1 = xn2 @ wfc.T + bfc
    g = 0.5 * h1 * (1.0 + jax.scipy.special.erf(h1 / math.sqrt(2.0)))
    x = x + (g @ wpr.T + bpr)
    return x


if __name__ == "__main__":
    key = jax.random.PRNGKey(0)
    kx, kp = jax.random.split(key)
    x = jax.random.normal(kx, (BATCH, SEQ, D_MODEL), jnp.float32)   # (batch, seq, d_model)
    params = init_params(kp)

    # --- no-mask path (module default) ---
    out = jax.block_until_ready(residual_attention_block(x, params, attn_mask=None))
    ref = reference(x, params, attn_mask=None)
    err = float(jnp.max(jnp.abs(out - ref)))
    assert out.shape == (BATCH, SEQ, D_MODEL)
    # tolerance relaxed from 2e-4 to 1e-3 to leave headroom for the EUP approx reciprocal
    # (~2^-12 relative) used in the softmax; any semantic bug is orders of magnitude larger.
    assert err < 1e-3, f"max abs error (no mask) {err}"

    # --- additive (causal) mask path ---
    causal = jnp.triu(jnp.full((SEQ, SEQ), -1e9, jnp.float32), k=1)
    out_m = jax.block_until_ready(residual_attention_block(x, params, attn_mask=causal))
    ref_m = reference(x, params, attn_mask=causal)
    err_m = float(jnp.max(jnp.abs(out_m - ref_m)))
    assert err_m < 1e-3, f"max abs error (causal mask) {err_m}"

    print("KERNEL_OK")
</pallas_src>

<mosaic_0001>
module attributes {stable_mosaic.version = 11 : i64} {
  func.func @kernel(%arg0: memref<2x8x32xf32, #tpu.memory_space<vmem>>, %arg1: memref<1x32xf32, #tpu.memory_space<vmem>>, %arg2: memref<1x32xf32, #tpu.memory_space<vmem>>, %arg3: memref<32x96xf32, #tpu.memory_space<vmem>>, %arg4: memref<1x96xf32, #tpu.memory_space<vmem>>, %arg5: memref<32x32xf32, #tpu.memory_space<vmem>>, %arg6: memref<1x32xf32, #tpu.memory_space<vmem>>, %arg7: memref<1x32xf32, #tpu.memory_space<vmem>>, %arg8: memref<1x32xf32, #tpu.memory_space<vmem>>, %arg9: memref<32x128xf32, #tpu.memory_space<vmem>>, %arg10: memref<1x128xf32, #tpu.memory_space<vmem>>, %arg11: memref<128x32xf32, #tpu.memory_space<vmem>>, %arg12: memref<1x32xf32, #tpu.memory_space<vmem>>, %arg13: memref<2x8x32xf32, #tpu.memory_space<vmem>>, %arg14: memref<16x32xf32, #tpu.memory_space<vmem>>) attributes {dimension_semantics = [], scalar_prefetch = 0 : i64, scratch_operands = 1 : i64, tpu.core_type = #tpu.core_type<tc>} {
    %c0 = arith.constant 0 : index
    %c0_0 = arith.constant 0 : index
    %c0_1 = arith.constant 0 : index
    %0 = vector.load %arg0[%c0, %c0_0, %c0_1] : memref<2x8x32xf32, #tpu.memory_space<vmem>>, vector<2x8x32xf32>
    %c0_2 = arith.constant 0 : index
    %c0_3 = arith.constant 0 : index
    %1 = vector.load %arg1[%c0_2, %c0_3] : memref<1x32xf32, #tpu.memory_space<vmem>>, vector<1x32xf32>
    %c0_4 = arith.constant 0 : index
    %c0_5 = arith.constant 0 : index
    %2 = vector.load %arg2[%c0_4, %c0_5] : memref<1x32xf32, #tpu.memory_space<vmem>>, vector<1x32xf32>
    %cst = arith.constant dense<0.000000e+00> : vector<2x8xf32>
    %3 = vector.multi_reduction <add>, %0, %cst [2] : vector<2x8x32xf32> to vector<2x8xf32>
    %4 = vector.shape_cast %3 : vector<2x8xf32> to vector<2x8x1xf32>
    %cst_6 = arith.constant 3.200000e+01 : f32
    %5 = vector.broadcast %cst_6 : f32 to vector<2x8x1xf32>
    %6 = arith.divf %4, %5 : vector<2x8x1xf32>
    %7 = vector.broadcast %6 : vector<2x8x1xf32> to vector<2x8x32xf32>
    %8 = arith.subf %0, %7 : vector<2x8x32xf32>
    %9 = arith.mulf %8, %8 : vector<2x8x32xf32>
    %cst_7 = arith.constant dense<0.000000e+00> : vector<2x8xf32>
    %10 = vector.multi_reduction <add>, %9, %cst_7 [2] : vector<2x8x32xf32> to vector<2x8xf32>
    %11 = vector.shape_cast %10 : vector<2x8xf32> to vector<2x8x1xf32>
    %cst_8 = arith.constant 3.200000e+01 : f32
    %12 = vector.broadcast %cst_8 : f32 to vector<2x8x1xf32>
    %13 = arith.divf %11, %12 : vector<2x8x1xf32>
    %14 = vector.broadcast %6 : vector<2x8x1xf32> to vector<2x8x32xf32>
    %15 = arith.subf %0, %14 : vector<2x8x32xf32>
    %cst_9 = arith.constant 9.99999974E-6 : f32
    %16 = vector.broadcast %cst_9 : f32 to vector<2x8x1xf32>
    %17 = arith.addf %13, %16 : vector<2x8x1xf32>
    %18 = math.rsqrt %17 : vector<2x8x1xf32>
    %19 = vector.broadcast %18 : vector<2x8x1xf32> to vector<2x8x32xf32>
    %20 = arith.mulf %15, %19 : vector<2x8x32xf32>
    %21 = vector.shape_cast %1 : vector<1x32xf32> to vector<1x1x32xf32>
    %22 = vector.broadcast %21 : vector<1x1x32xf32> to vector<2x8x32xf32>
    %23 = arith.mulf %20, %22 : vector<2x8x32xf32>
    %24 = vector.shape_cast %2 : vector<1x32xf32> to vector<1x1x32xf32>
    %25 = vector.broadcast %24 : vector<1x1x32xf32> to vector<2x8x32xf32>
    %26 = arith.addf %23, %25 : vector<2x8x32xf32>
    %27 = vector.shape_cast %26 : vector<2x8x32xf32> to vector<16x32xf32>
    %c0_10 = arith.constant 0 : index
    %c0_11 = arith.constant 0 : index
    %28 = vector.load %arg3[%c0_10, %c0_11] : memref<32x96xf32, #tpu.memory_space<vmem>>, vector<32x96xf32>
    %cst_12 = arith.constant dense<0.000000e+00> : vector<16x96xf32>
    %29 = tpu.matmul %27, %28, %cst_12 {dimension_numbers = #tpu.dot_dimension_numbers<[1], [0], [0], [1], [0, 0, 1, 1], [], []>, precision = #tpu.contract_precision<fp32>} : vector<16x32xf32>, vector<32x96xf32>, vector<16x96xf32> -> vector<16x96xf32>
    %c0_13 = arith.constant 0 : index
    %c0_14 = arith.constant 0 : index
    %30 = vector.load %arg4[%c0_13, %c0_14] : memref<1x96xf32, #tpu.memory_space<vmem>>, vector<1x96xf32>
    %31 = vector.broadcast %30 : vector<1x96xf32> to vector<16x96xf32>
    %32 = arith.addf %29, %31 : vector<16x96xf32>
    %33 = vector.extract_strided_slice %32 {offsets = [0, 0], sizes = [16, 32], strides = [1, 1]} : vector<16x96xf32> to vector<16x32xf32>
    %34 = vector.shape_cast %33 : vector<16x32xf32> to vector<2x8x32xf32>
    %35 = vector.extract_strided_slice %32 {offsets = [0, 32], sizes = [16, 32], strides = [1, 1]} : vector<16x96xf32> to vector<16x32xf32>
    %36 = vector.shape_cast %35 : vector<16x32xf32> to vector<2x8x32xf32>
    %37 = vector.extract_strided_slice %32 {offsets = [0, 64], sizes = [16, 32], strides = [1, 1]} : vector<16x96xf32> to vector<16x32xf32>
    %38 = vector.shape_cast %37 : vector<16x32xf32> to vector<2x8x32xf32>
    %39 = vector.extract_strided_slice %34 {offsets = [0, 0, 0], sizes = [2, 8, 8], strides = [1, 1, 1]} : vector<2x8x32xf32> to vector<2x8x8xf32>
    %40 = vector.extract_strided_slice %36 {offsets = [0, 0, 0], sizes = [2, 8, 8], strides = [1, 1, 1]} : vector<2x8x32xf32> to vector<2x8x8xf32>
    %41 = vector.extract_strided_slice %38 {offsets = [0, 0, 0], sizes = [2, 8, 8], strides = [1, 1, 1]} : vector<2x8x32xf32> to vector<2x8x8xf32>
    "tpu.trace_start"() <{level = 10 : i32, message = "bqd,bkd->bqk"}> : () -> ()
    %cst_15 = arith.constant dense<0.000000e+00> : vector<2x8x8xf32>
    %42 = tpu.matmul %39, %40, %cst_15 {dimension_numbers = #tpu.dot_dimension_numbers<[2], [2], [1], [1], [0, 0, 0, 1, 1, 1], [0], [0]>, precision = #tpu.contract_precision<fp32>} : vector<2x8x8xf32>, vector<2x8x8xf32>, vector<2x8x8xf32> -> vector<2x8x8xf32>
    "tpu.trace_stop"() : () -> ()
    %cst_16 = arith.constant dense<0xFF800000> : vector<2x8xf32>
    %43 = vector.multi_reduction <maximumf>, %42, %cst_16 [2] : vector<2x8x8xf32> to vector<2x8xf32>
    %44 = vector.shape_cast %43 : vector<2x8xf32> to vector<2x8x1xf32>
    %45 = vector.broadcast %44 : vector<2x8x1xf32> to vector<2x8x8xf32>
    %46 = arith.subf %42, %45 : vector<2x8x8xf32>
    %47 = math.exp %46 : vector<2x8x8xf32>
    %cst_17 = arith.constant dense<0.000000e+00> : vector<2x8xf32>
    %48 = vector.multi_reduction <add>, %47, %cst_17 [2] : vector<2x8x8xf32> to vector<2x8xf32>
    %49 = vector.shape_cast %48 : vector<2x8xf32> to vector<2x8x1xf32>
    %50 = tpu.reciprocal %49 {approx = true} : vector<2x8x1xf32> -> vector<2x8x1xf32>
    %51 = vector.broadcast %50 : vector<2x8x1xf32> to vector<2x8x8xf32>
    %52 = arith.mulf %47, %51 : vector<2x8x8xf32>
    "tpu.trace_start"() <{level = 10 : i32, message = "bqk,bkd->bqd"}> : () -> ()
    %cst_18 = arith.constant dense<0.000000e+00> : vector<2x8x8xf32>
    %53 = tpu.matmul %52, %41, %cst_18 {dimension_numbers = #tpu.dot_dimension_numbers<[2], [1], [1], [2], [0, 0, 0, 1, 1, 2], [0], [0]>, precision = #tpu.contract_precision<fp32>} : vector<2x8x8xf32>, vector<2x8x8xf32>, vector<2x8x8xf32> -> vector<2x8x8xf32>
    "tpu.trace_stop"() : () -> ()
    %54 = vector.shape_cast %53 : vector<2x8x8xf32> to vector<16x8xf32>
    %c0_19 = arith.constant 0 : index
    %c0_20 = arith.constant 0 : index
    %55 = vector.load %arg14[%c0_19, %c0_20] : memref<16x32xf32, #tpu.memory_space<vmem>>, vector<16x8xf32>
    tpu.vector_store %arg14[%c0_19, %c0_20], %54 {strides = array<i32>} : memref<16x32xf32, #tpu.memory_space<vmem>>, vector<16x8xf32>,
    %56 = vector.extract_strided_slice %34 {offsets = [0, 0, 8], sizes = [2, 8, 8], strides = [1, 1, 1]} : vector<2x8x32xf32> to vector<2x8x8xf32>
    %57 = vector.extract_strided_slice %36 {offsets = [0, 0, 8], sizes = [2, 8, 8], strides = [1, 1, 1]} : vector<2x8x32xf32> to vector<2x8x8xf32>
    %58 = vector.extract_strided_slice %38 {offsets = [0, 0, 8], sizes = [2, 8, 8], strides = [1, 1, 1]} : vector<2x8x32xf32> to vector<2x8x8xf32>
    "tpu.trace_start"() <{level = 10 : i32, message = "bqd,bkd->bqk"}> : () -> ()
    %cst_21 = arith.constant dense<0.000000e+00> : vector<2x8x8xf32>
    %59 = tpu.matmul %56, %57, %cst_21 {dimension_numbers = #tpu.dot_dimension_numbers<[2], [2], [1], [1], [0, 0, 0, 1, 1, 1], [0], [0]>, precision = #tpu.contract_precision<fp32>} : vector<2x8x8xf32>, vector<2x8x8xf32>, vector<2x8x8xf32> -> vector<2x8x8xf32>
    "tpu.trace_stop"() : () -> ()
    %cst_22 = arith.constant dense<0xFF800000> : vector<2x8xf32>
    %60 = vector.multi_reduction <maximumf>, %59, %cst_22 [2] : vector<2x8x8xf32> to vector<2x8xf32>
    %61 = vector.shape_cast %60 : vector<2x8xf32> to vector<2x8x1xf32>
    %62 = vector.broadcast %61 : vector<2x8x1xf32> to vector<2x8x8xf32>
    %63 = arith.subf %59, %62 : vector<2x8x8xf32>
    %64 = math.exp %63 : vector<2x8x8xf32>
    %cst_23 = arith.constant dense<0.000000e+00> : vector<2x8xf32>
    %65 = vector.multi_reduction <add>, %64, %cst_23 [2] : vector<2x8x8xf32> to vector<2x8xf32>
    %66 = vector.shape_cast %65 : vector<2x8xf32> to vector<2x8x1xf32>
    %67 = tpu.reciprocal %66 {approx = true} : vector<2x8x1xf32> -> vector<2x8x1xf32>
    %68 = vector.broadcast %67 : vector<2x8x1xf32> to vector<2x8x8xf32>
    %69 = arith.mulf %64, %68 : vector<2x8x8xf32>
    "tpu.trace_start"() <{level = 10 : i32, message = "bqk,bkd->bqd"}> : () -> ()
    %cst_24 = arith.constant dense<0.000000e+00> : vector<2x8x8xf32>
    %70 = tpu.matmul %69, %58, %cst_24 {dimension_numbers = #tpu.dot_dimension_numbers<[2], [1], [1], [2], [0, 0, 0, 1, 1, 2], [0], [0]>, precision = #tpu.contract_precision<fp32>} : vector<2x8x8xf32>, vector<2x8x8xf32>, vector<2x8x8xf32> -> vector<2x8x8xf32>
    "tpu.trace_stop"() : () -> ()
    %71 = vector.shape_cast %70 : vector<2x8x8xf32> to vector<16x8xf32>
    %c0_25 = arith.constant 0 : index
    %c8 = arith.constant 8 : index
    %72 = vector.load %arg14[%c0_25, %c8] : memref<16x32xf32, #tpu.memory_space<vmem>>, vector<16x8xf32>
    tpu.vector_store %arg14[%c0_25, %c8], %71 {strides = array<i32>} : memref<16x32xf32, #tpu.memory_space<vmem>>, vector<16x8xf32>,
    %73 = vector.extract_strided_slice %34 {offsets = [0, 0, 16], sizes = [2, 8, 8], strides = [1, 1, 1]} : vector<2x8x32xf32> to vector<2x8x8xf32>
    %74 = vector.extract_strided_slice %36 {offsets = [0, 0, 16], sizes = [2, 8, 8], strides = [1, 1, 1]} : vector<2x8x32xf32> to vector<2x8x8xf32>
    %75 = vector.extract_strided_slice %38 {offsets = [0, 0, 16], sizes = [2, 8, 8], strides = [1, 1, 1]} : vector<2x8x32xf32> to vector<2x8x8xf32>
    "tpu.trace_start"() <{level = 10 : i32, message = "bqd,bkd->bqk"}> : () -> ()
    %cst_26 = arith.constant dense<0.000000e+00> : vector<2x8x8xf32>
    %76 = tpu.matmul %73, %74, %cst_26 {dimension_numbers = #tpu.dot_dimension_numbers<[2], [2], [1], [1], [0, 0, 0, 1, 1, 1], [0], [0]>, precision = #tpu.contract_precision<fp32>} : vector<2x8x8xf32>, vector<2x8x8xf32>, vector<2x8x8xf32> -> vector<2x8x8xf32>
    "tpu.trace_stop"() : () -> ()
    %cst_27 = arith.constant dense<0xFF800000> : vector<2x8xf32>
    %77 = vector.multi_reduction <maximumf>, %76, %cst_27 [2] : vector<2x8x8xf32> to vector<2x8xf32>
    %78 = vector.shape_cast %77 : vector<2x8xf32> to vector<2x8x1xf32>
    %79 = vector.broadcast %78 : vector<2x8x1xf32> to vector<2x8x8xf32>
    %80 = arith.subf %76, %79 : vector<2x8x8xf32>
    %81 = math.exp %80 : vector<2x8x8xf32>
    %cst_28 = arith.constant dense<0.000000e+00> : vector<2x8xf32>
    %82 = vector.multi_reduction <add>, %81, %cst_28 [2] : vector<2x8x8xf32> to vector<2x8xf32>
    %83 = vector.shape_cast %82 : vector<2x8xf32> to vector<2x8x1xf32>
    %84 = tpu.reciprocal %83 {approx = true} : vector<2x8x1xf32> -> vector<2x8x1xf32>
    %85 = vector.broadcast %84 : vector<2x8x1xf32> to vector<2x8x8xf32>
    %86 = arith.mulf %81, %85 : vector<2x8x8xf32>
    "tpu.trace_start"() <{level = 10 : i32, message = "bqk,bkd->bqd"}> : () -> ()
    %cst_29 = arith.constant dense<0.000000e+00> : vector<2x8x8xf32>
    %87 = tpu.matmul %86, %75, %cst_29 {dimension_numbers = #tpu.dot_dimension_numbers<[2], [1], [1], [2], [0, 0, 0, 1, 1, 2], [0], [0]>, precision = #tpu.contract_precision<fp32>} : vector<2x8x8xf32>, vector<2x8x8xf32>, vector<2x8x8xf32> -> vector<2x8x8xf32>
    "tpu.trace_stop"() : () -> ()
    %88 = vector.shape_cast %87 : vector<2x8x8xf32> to vector<16x8xf32>
    %c0_30 = arith.constant 0 : index
    %c16 = arith.constant 16 : index
    %89 = vector.load %arg14[%c0_30, %c16] : memref<16x32xf32, #tpu.memory_space<vmem>>, vector<16x8xf32>
    tpu.vector_store %arg14[%c0_30, %c16], %88 {strides = array<i32>} : memref<16x32xf32, #tpu.memory_space<vmem>>, vector<16x8xf32>,
    %90 = vector.extract_strided_slice %34 {offsets = [0, 0, 24], sizes = [2, 8, 8], strides = [1, 1, 1]} : vector<2x8x32xf32> to vector<2x8x8xf32>
    %91 = vector.extract_strided_slice %36 {offsets = [0, 0, 24], sizes = [2, 8, 8], strides = [1, 1, 1]} : vector<2x8x32xf32> to vector<2x8x8xf32>
    %92 = vector.extract_strided_slice %38 {offsets = [0, 0, 24], sizes = [2, 8, 8], strides = [1, 1, 1]} : vector<2x8x32xf32> to vector<2x8x8xf32>
    "tpu.trace_start"() <{level = 10 : i32, message = "bqd,bkd->bqk"}> : () -> ()
    %cst_31 = arith.constant dense<0.000000e+00> : vector<2x8x8xf32>
    %93 = tpu.matmul %90, %91, %cst_31 {dimension_numbers = #tpu.dot_dimension_numbers<[2], [2], [1], [1], [0, 0, 0, 1, 1, 1], [0], [0]>, precision = #tpu.contract_precision<fp32>} : vector<2x8x8xf32>, vector<2x8x8xf32>, vector<2x8x8xf32> -> vector<2x8x8xf32>
    "tpu.trace_stop"() : () -> ()
    %cst_32 = arith.constant dense<0xFF800000> : vector<2x8xf32>
    %94 = vector.multi_reduction <maximumf>, %93, %cst_32 [2] : vector<2x8x8xf32> to vector<2x8xf32>
    %95 = vector.shape_cast %94 : vector<2x8xf32> to vector<2x8x1xf32>
    %96 = vector.broadcast %95 : vector<2x8x1xf32> to vector<2x8x8xf32>
    %97 = arith.subf %93, %96 : vector<2x8x8xf32>
    %98 = math.exp %97 : vector<2x8x8xf32>
    %cst_33 = arith.constant dense<0.000000e+00> : vector<2x8xf32>
    %99 = vector.multi_reduction <add>, %98, %cst_33 [2] : vector<2x8x8xf32> to vector<2x8xf32>
    %100 = vector.shape_cast %99 : vector<2x8xf32> to vector<2x8x1xf32>
    %101 = tpu.reciprocal %100 {approx = true} : vector<2x8x1xf32> -> vector<2x8x1xf32>
    %102 = vector.broadcast %101 : vector<2x8x1xf32> to vector<2x8x8xf32>
    %103 = arith.mulf %98, %102 : vector<2x8x8xf32>
    "tpu.trace_start"() <{level = 10 : i32, message = "bqk,bkd->bqd"}> : () -> ()
    %cst_34 = arith.constant dense<0.000000e+00> : vector<2x8x8xf32>
    %104 = tpu.matmul %103, %92, %cst_34 {dimension_numbers = #tpu.dot_dimension_numbers<[2], [1], [1], [2], [0, 0, 0, 1, 1, 2], [0], [0]>, precision = #tpu.contract_precision<fp32>} : vector<2x8x8xf32>, vector<2x8x8xf32>, vector<2x8x8xf32> -> vector<2x8x8xf32>
    "tpu.trace_stop"() : () -> ()
    %105 = vector.shape_cast %104 : vector<2x8x8xf32> to vector<16x8xf32>
    %c0_35 = arith.constant 0 : index
    %c24 = arith.constant 24 : index
    %106 = vector.load %arg14[%c0_35, %c24] : memref<16x32xf32, #tpu.memory_space<vmem>>, vector<16x8xf32>
    tpu.vector_store %arg14[%c0_35, %c24], %105 {strides = array<i32>} : memref<16x32xf32, #tpu.memory_space<vmem>>, vector<16x8xf32>,
    %c0_36 = arith.constant 0 : index
    %c0_37 = arith.constant 0 : index
    %107 = vector.load %arg14[%c0_36, %c0_37] : memref<16x32xf32, #tpu.memory_space<vmem>>, vector<16x32xf32>
    %c0_38 = arith.constant 0 : index
    %c0_39 = arith.constant 0 : index
    %108 = vector.load %arg5[%c0_38, %c0_39] : memref<32x32xf32, #tpu.memory_space<vmem>>, vector<32x32xf32>
    %cst_40 = arith.constant dense<0.000000e+00> : vector<16x32xf32>
    %109 = tpu.matmul %107, %108, %cst_40 {dimension_numbers = #tpu.dot_dimension_numbers<[1], [0], [0], [1], [0, 0, 1, 1], [], []>, precision = #tpu.contract_precision<fp32>} : vector<16x32xf32>, vector<32x32xf32>, vector<16x32xf32> -> vector<16x32xf32>
    %c0_41 = arith.constant 0 : index
    %c0_42 = arith.constant 0 : index
    %110 = vector.load %arg6[%c0_41, %c0_42] : memref<1x32xf32, #tpu.memory_space<vmem>>, vector<1x32xf32>
    %111 = vector.broadcast %110 : vector<1x32xf32> to vector<16x32xf32>
    %112 = arith.addf %109, %111 : vector<16x32xf32>
    %113 = vector.shape_cast %0 : vector<2x8x32xf32> to vector<16x32xf32>
    %114 = arith.addf %113, %112 : vector<16x32xf32>
    %c0_43 = arith.constant 0 : index
    %c0_44 = arith.constant 0 : index
    %115 = vector.load %arg7[%c0_43, %c0_44] : memref<1x32xf32, #tpu.memory_space<vmem>>, vector<1x32xf32>
    %c0_45 = arith.constant 0 : index
    %c0_46 = arith.constant 0 : index
    %116 = vector.load %arg8[%c0_45, %c0_46] : memref<1x32xf32, #tpu.memory_space<vmem>>, vector<1x32xf32>
    %cst_47 = arith.constant dense<0.000000e+00> : vector<16xf32>
    %117 = vector.multi_reduction <add>, %114, %cst_47 [1] : vector<16x32xf32> to vector<16xf32>
    %118 = vector.shape_cast %117 : vector<16xf32> to vector<16x1xf32>
    %cst_48 = arith.constant 3.200000e+01 : f32
    %119 = vector.broadcast %cst_48 : f32 to vector<16x1xf32>
    %120 = arith.divf %118, %119 : vector<16x1xf32>
    %121 = vector.broadcast %120 : vector<16x1xf32> to vector<16x32xf32>
    %122 = arith.subf %114, %121 : vector<16x32xf32>
    %123 = arith.mulf %122, %122 : vector<16x32xf32>
    %cst_49 = arith.constant dense<0.000000e+00> : vector<16xf32>
    %124 = vector.multi_reduction <add>, %123, %cst_49 [1] : vector<16x32xf32> to vector<16xf32>
    %125 = vector.shape_cast %124 : vector<16xf32> to vector<16x1xf32>
    %cst_50 = arith.constant 3.200000e+01 : f32
    %126 = vector.broadcast %cst_50 : f32 to vector<16x1xf32>
    %127 = arith.divf %125, %126 : vector<16x1xf32>
    %128 = vector.broadcast %120 : vector<16x1xf32> to vector<16x32xf32>
    %129 = arith.subf %114, %128 : vector<16x32xf32>
    %cst_51 = arith.constant 9.99999974E-6 : f32
    %130 = vector.broadcast %cst_51 : f32 to vector<16x1xf32>
    %131 = arith.addf %127, %130 : vector<16x1xf32>
    %132 = math.rsqrt %131 : vector<16x1xf32>
    %133 = vector.broadcast %132 : vector<16x1xf32> to vector<16x32xf32>
    %134 = arith.mulf %129, %133 : vector<16x32xf32>
    %135 = vector.broadcast %115 : vector<1x32xf32> to vector<16x32xf32>
    %136 = arith.mulf %134, %135 : vector<16x32xf32>
    %137 = vector.broadcast %116 : vector<1x32xf32> to vector<16x32xf32>
    %138 = arith.addf %136, %137 : vector<16x32xf32>
    %c0_52 = arith.constant 0 : index
    %c0_53 = arith.constant 0 : index
    %139 = vector.load %arg9[%c0_52, %c0_53] : memref<32x128xf32, #tpu.memory_space<vmem>>, vector<32x128xf32>
    %cst_54 = arith.constant dense<0.000000e+00> : vector<16x128xf32>
    %140 = tpu.matmul %138, %139, %cst_54 {dimension_numbers = #tpu.dot_dimension_numbers<[1], [0], [0], [1], [0, 0, 1, 1], [], []>, precision = #tpu.contract_precision<fp32>} : vector<16x32xf32>, vector<32x128xf32>, vector<16x128xf32> -> vector<16x128xf32>
    %c0_55 = arith.constant 0 : index
    %c0_56 = arith.constant 0 : index
    %141 = vector.load %arg10[%c0_55, %c0_56] : memref<1x128xf32, #tpu.memory_space<vmem>>, vector<1x128xf32>
    %142 = vector.broadcast %141 : vector<1x128xf32> to vector<16x128xf32>
    %143 = arith.addf %140, %142 : vector<16x128xf32>
    %cst_57 = arith.constant 5.000000e-01 : f32
    %144 = vector.broadcast %cst_57 : f32 to vector<16x128xf32>
    %145 = arith.mulf %144, %143 : vector<16x128xf32>
    %cst_58 = arith.constant 0.707106769 : f32
    %146 = vector.broadcast %cst_58 : f32 to vector<16x128xf32>
    %147 = arith.mulf %143, %146 : vector<16x128xf32>
    %148 = math.absf %147 : vector<16x128xf32>
    %cst_59 = arith.constant 0.327591091 : f32
    %149 = vector.broadcast %cst_59 : f32 to vector<16x128xf32>
    %150 = arith.mulf %149, %148 : vector<16x128xf32>
    %cst_60 = arith.constant 1.000000e+00 : f32
    %151 = vector.broadcast %cst_60 : f32 to vector<16x128xf32>
    %152 = arith.addf %151, %150 : vector<16x128xf32>
    %cst_61 = arith.constant 1.000000e+00 : f32
    %153 = vector.broadcast %cst_61 : f32 to vector<16x128xf32>
    %154 = arith.divf %153, %152 : vector<16x128xf32>
    %cst_62 = arith.constant 1.06140542 : f32
    %155 = vector.broadcast %cst_62 : f32 to vector<16x128xf32>
    %156 = arith.mulf %154, %155 : vector<16x128xf32>
    %cst_63 = arith.constant -1.45315206 : f32
    %157 = vector.broadcast %cst_63 : f32 to vector<16x128xf32>
    %158 = arith.addf %157, %156 : vector<16x128xf32>
    %159 = arith.mulf %154, %158 : vector<16x128xf32>
    %cst_64 = arith.constant 1.42141378 : f32
    %160 = vector.broadcast %cst_64 : f32 to vector<16x128xf32>
    %161 = arith.addf %160, %159 : vector<16x128xf32>
    %162 = arith.mulf %154, %161 : vector<16x128xf32>
    %cst_65 = arith.constant -0.284496725 : f32
    %163 = vector.broadcast %cst_65 : f32 to vector<16x128xf32>
    %164 = arith.addf %163, %162 : vector<16x128xf32>
    %165 = arith.mulf %154, %164 : vector<16x128xf32>
    %cst_66 = arith.constant 0.254829586 : f32
    %166 = vector.broadcast %cst_66 : f32 to vector<16x128xf32>
    %167 = arith.addf %166, %165 : vector<16x128xf32>
    %168 = arith.mulf %154, %167 : vector<16x128xf32>
    %cst_67 = arith.constant 0.000000e+00 : f32
    %169 = vector.broadcast %cst_67 : f32 to vector<16x128xf32>
    %170 = arith.subf %169, %148 : vector<16x128xf32>
    %171 = arith.mulf %170, %148 : vector<16x128xf32>
    %172 = math.exp %171 : vector<16x128xf32>
    %173 = arith.mulf %168, %172 : vector<16x128xf32>
    %cst_68 = arith.constant 1.000000e+00 : f32
    %174 = vector.broadcast %cst_68 : f32 to vector<16x128xf32>
    %175 = arith.subf %174, %173 : vector<16x128xf32>
    %cst_69 = arith.constant 0.000000e+00 : f32
    %176 = vector.broadcast %cst_69 : f32 to vector<16x128xf32>
    %177 = arith.cmpf olt, %147, %176 : vector<16x128xf32>
    %cst_70 = arith.constant 0.000000e+00 : f32
    %178 = vector.broadcast %cst_70 : f32 to vector<16x128xf32>
    %179 = arith.subf %178, %175 : vector<16x128xf32>
    %180 = arith.select %177, %179, %175 : vector<16x128xi1>, vector<16x128xf32>
    %cst_71 = arith.constant 1.000000e+00 : f32
    %181 = vector.broadcast %cst_71 : f32 to vector<16x128xf32>
    %182 = arith.addf %181, %180 : vector<16x128xf32>
    %183 = arith.mulf %145, %182 : vector<16x128xf32>
    %c0_72 = arith.constant 0 : index
    %c0_73 = arith.constant 0 : index
    %184 = vector.load %arg11[%c0_72, %c0_73] : memref<128x32xf32, #tpu.memory_space<vmem>>, vector<128x32xf32>
    %cst_74 = arith.constant dense<0.000000e+00> : vector<16x32xf32>
    %185 = tpu.matmul %183, %184, %cst_74 {dimension_numbers = #tpu.dot_dimension_numbers<[1], [0], [0], [1], [0, 0, 1, 1], [], []>, precision = #tpu.contract_precision<fp32>} : vector<16x128xf32>, vector<128x32xf32>, vector<16x32xf32> -> vector<16x32xf32>
    %c0_75 = arith.constant 0 : index
    %c0_76 = arith.constant 0 : index
    %186 = vector.load %arg12[%c0_75, %c0_76] : memref<1x32xf32, #tpu.memory_space<vmem>>, vector<1x32xf32>
    %187 = vector.broadcast %186 : vector<1x32xf32> to vector<16x32xf32>
    %188 = arith.addf %185, %187 : vector<16x32xf32>
    %189 = arith.addf %114, %188 : vector<16x32xf32>
    %190 = vector.shape_cast %189 : vector<16x32xf32> to vector<2x8x32xf32>
    %c0_77 = arith.constant 0 : index
    %c0_78 = arith.constant 0 : index
    %c0_79 = arith.constant 0 : index
    %191 = vector.load %arg13[%c0_77, %c0_78, %c0_79] : memref<2x8x32xf32, #tpu.memory_space<vmem>>, vector<2x8x32xf32>
    tpu.vector_store %arg13[%c0_77, %c0_78, %c0_79], %190 {strides = array<i32>} : memref<2x8x32xf32, #tpu.memory_space<vmem>>, vector<2x8x32xf32>,
    return
  }
}

</mosaic_0001>

<llo_original>
// kernel: tpu_custom_call.1
$region0: #{tpu_custom_call.1}
  #allocation0 [shape = 'u32[]', space=smem, size = 0x4, offset = 0x4, fixed_abs, tag = 'smem constant byte address 0x4 - core index']
  #allocation1 [shape = 'u32[144,128]{1,0:T(1,128)}', space=vmem, size = 0x12000, scoped, tag = 'internal scratch']
  #allocation2 [shape = 'f32[16,32]{1,0:T(8,128)}', space=vmem, size = 0x2000, scoped, tag = 'scratch operand']
  %s0 = inlined_call_operand.vmem [shape: f32[2,8,32], index: 0, kind: input, shape index: {}]
  %s1 = inlined_call_operand.vmem [shape: f32[1,32], index: 1, kind: input, shape index: {}]
  %s2 = inlined_call_operand.vmem [shape: f32[1,32], index: 2, kind: input, shape index: {}]
  %s3 = inlined_call_operand.vmem [shape: f32[32,96], index: 3, kind: input, shape index: {}]
  %s4 = inlined_call_operand.vmem [shape: f32[1,96], index: 4, kind: input, shape index: {}]
  %s5 = inlined_call_operand.vmem [shape: f32[32,32], index: 5, kind: input, shape index: {}]
  %s6 = inlined_call_operand.vmem [shape: f32[1,32], index: 6, kind: input, shape index: {}]
  %s7 = inlined_call_operand.vmem [shape: f32[1,32], index: 7, kind: input, shape index: {}]
  %s8 = inlined_call_operand.vmem [shape: f32[1,32], index: 8, kind: input, shape index: {}]
  %s9 = inlined_call_operand.vmem [shape: f32[32,128], index: 9, kind: input, shape index: {}]
  %s10 = inlined_call_operand.vmem [shape: f32[1,128], index: 10, kind: input, shape index: {}]
  %s11 = inlined_call_operand.vmem [shape: f32[128,32], index: 11, kind: input, shape index: {}]
  %s12 = inlined_call_operand.vmem [shape: f32[1,32], index: 12, kind: input, shape index: {}]
  %s13 = inlined_call_operand.hbm [shape: f32[2,8,32], index: 13, kind: output, shape index: {}]
  %s14 = sld [smem:[#allocation0]]
  $region62: #{tpu_custom_call.1} parent=0
    _
  %s16 = ssub.s32 1, %s14
  %s17 = scalar_select 0, %s16, %s14
  $region1: #{tpu_custom_call.1} parent=0
    #allocation3 [shape = 'u8[8192]{0}', space=vmem, size = 0x2000, scoped, tag = 'output window, operand 0, single buffered']
    #allocation4 [shape = 's32[1]{0}', space=sflag, size = 0x4, scoped, tag = 'scoped memory for tpu_custom_call.1']
    %18 = vsyncpa [#allocation4], 0
    // Predicated region
    $region2: #{tpu_custom_call.1} parent=1 // pred_check
      _
    $region3: #{tpu_custom_call.1} parent=1 // pred_check_branch
      %20 = sbr.rel (0) target = $region5
    $region4: #{tpu_custom_call.1} parent=1 // pred_region
      _
    $region5: #{tpu_custom_call.1} parent=1 // pred_fallthru
      _
    // Predicated region
    $region6: #{tpu_custom_call.1} parent=1 // pred_check
      _
    $region7: #{tpu_custom_call.1} parent=1 // pred_check_branch
      %22 = sbr.rel (0) target = $region9
    $region8: #{tpu_custom_call.1} parent=1 // pred_region
      _
    $region9: #{tpu_custom_call.1} parent=1 // pred_fallthru
      _
    // Predicated region
    $region10: #{tpu_custom_call.1} parent=1 // pred_check
      _
    $region11: #{tpu_custom_call.1} parent=1 // pred_check_branch
      %24 = sbr.rel (0) target = $region13
    $region12: #{tpu_custom_call.1} parent=1 // pred_region
      _
    $region13: #{tpu_custom_call.1} parent=1 // pred_fallthru
      _
    // Predicated region
    $region14: #{tpu_custom_call.1} parent=1 // pred_check
      _
    $region15: #{tpu_custom_call.1} parent=1 // pred_check_branch
      %26 = sbr.rel (0) target = $region17
    $region16: #{tpu_custom_call.1} parent=1 // pred_region
      _
    $region17: #{tpu_custom_call.1} parent=1 // pred_fallthru
      _
    // Predicated region
    $region18: #{tpu_custom_call.1} parent=1 // pred_check
      _
    $region19: #{tpu_custom_call.1} parent=1 // pred_check_branch
      %28 = sbr.rel (0) target = $region21
    $region20: #{tpu_custom_call.1} parent=1 // pred_region
      _
    $region21: #{tpu_custom_call.1} parent=1 // pred_fallthru
      _
    // Predicated region
    $region22: #{tpu_custom_call.1} parent=1 // pred_check
      _
    $region23: #{tpu_custom_call.1} parent=1 // pred_check_branch
      %30 = sbr.rel (0) target = $region25
    $region24: #{tpu_custom_call.1} parent=1 // pred_region
      _
    $region25: #{tpu_custom_call.1} parent=1 // pred_fallthru
      _
    // Predicated region
    $region26: #{tpu_custom_call.1} parent=1 // pred_check
      _
    $region27: #{tpu_custom_call.1} parent=1 // pred_check_branch
      %32 = sbr.rel (0) target = $region29
    $region28: #{tpu_custom_call.1} parent=1 // pred_region
      _
    $region29: #{tpu_custom_call.1} parent=1 // pred_fallthru
      _
    // Predicated region
    $region30: #{tpu_custom_call.1} parent=1 // pred_check
      _
    $region31: #{tpu_custom_call.1} parent=1 // pred_check_branch
      %34 = sbr.rel (0) target = $region33
    $region32: #{tpu_custom_call.1} parent=1 // pred_region
      _
    $region33: #{tpu_custom_call.1} parent=1 // pred_fallthru
      _
    // Predicated region
    $region34: #{tpu_custom_call.1} parent=1 // pred_check
      _
    $region35: #{tpu_custom_call.1} parent=1 // pred_check_branch
      %36 = sbr.rel (0) target = $region37
    $region36: #{tpu_custom_call.1} parent=1 // pred_region
      _
    $region37: #{tpu_custom_call.1} parent=1 // pred_fallthru
      _
    // Predicated region
    $region38: #{tpu_custom_call.1} parent=1 // pred_check
      _
    $region39: #{tpu_custom_call.1} parent=1 // pred_check_branch
      %38 = sbr.rel (0) target = $region41
    $region40: #{tpu_custom_call.1} parent=1 // pred_region
      _
    $region41: #{tpu_custom_call.1} parent=1 // pred_fallthru
      _
    // Predicated region
    $region42: #{tpu_custom_call.1} parent=1 // pred_check
      _
    $region43: #{tpu_custom_call.1} parent=1 // pred_check_branch
      %40 = sbr.rel (0) target = $region45
    $region44: #{tpu_custom_call.1} parent=1 // pred_region
      _
    $region45: #{tpu_custom_call.1} parent=1 // pred_fallthru
      _
    // Predicated region
    $region46: #{tpu_custom_call.1} parent=1 // pred_check
      _
    $region47: #{tpu_custom_call.1} parent=1 // pred_check_branch
      %42 = sbr.rel (0) target = $region49
    $region48: #{tpu_custom_call.1} parent=1 // pred_region
      _
    $region49: #{tpu_custom_call.1} parent=1 // pred_fallthru
      _
    // Predicated region
    $region50: #{tpu_custom_call.1} parent=1 // pred_check
      _
    $region51: #{tpu_custom_call.1} parent=1 // pred_check_branch
      %44 = sbr.rel (0) target = $region53
    $region52: #{tpu_custom_call.1} parent=1 // pred_region
      _
    $region53: #{tpu_custom_call.1} parent=1 // pred_fallthru
      _
    %v45 = vld [vmem:[%s0] sm:$0xff]
    %v46 = vld [vmem:[%s0 + $0x8] sm:$0xff]
    %v47 = vld [vmem:[%s1] sm:$0x1]
    %v48 = vld [vmem:[%s2] sm:$0x1]
    %vm49 = vcmask 261120
    %v50 = vsel %vm49, %v45, 0.0
    %51 = vadd.xlane.f32.xlu0 %v50
    %v52 = vpop.xlane.xlu0 %51
    %v53 = vsel %vm49, %v46, 0.0
    %54 = vadd.xlane.f32.xlu0 %v53
    %v55 = vpop.xlane.xlu0 %54
    %v56 = vrcp.pop 32.0
    %v57 = vmul.f32 %v52, %v56
    %v58 = vmul.f32 %v55, %v56
    %v59 = vsub.f32 %v45, %v57
    %v60 = vsub.f32 %v46, %v58
    %v61 = vmul.f32 %v59, %v59
    %v62 = vmul.f32 %v60, %v60
    %v63 = vsel %vm49, %v61, 0.0
    %64 = vadd.xlane.f32.xlu0 %v63
    %v65 = vpop.xlane.xlu0 %64
    %v66 = vsel %vm49, %v62, 0.0
    %67 = vadd.xlane.f32.xlu0 %v66
    %v68 = vpop.xlane.xlu0 %67
    %v69 = vmul.f32 %v65, %v56
    %v70 = vmul.f32 %v68, %v56
    %v71 = vadd.f32 %v69, 1e-05
    %v72 = vadd.f32 %v70, 1e-05
    %v73 = vrsqrt.pop %v71
    %v74 = vrsqrt.pop %v72
    %v75 = vmul.f32 %v59, %v73
    %v76 = vmul.f32 %v60, %v74
    %v78 = vlaneseq
    %v79 = vshrl.u32 %v78, 7
    %v80 = vsub.s32 0, %v79
    %v81 = vrot.slane %v47, %v80
    %v83 = vmul.f32 %v75, %v81
    %v84 = vmul.f32 %v76, %v81
    %v86 = vlaneseq
    %v87 = vshrl.u32 %v86, 7
    %v88 = vsub.s32 0, %v87
    %v89 = vrot.slane %v48, %v88
    %v91 = vadd.f32 %v83, %v89
    %v92 = vadd.f32 %v84, %v89
    %v93 = vld [vmem:[%s3] sm:$0xff]
    %v94 = vld [vmem:[%s3 + $0x8] sm:$0xff]
    %v95 = vld [vmem:[%s3 + $0x10] sm:$0xff]
    %v96 = vld [vmem:[%s3 + $0x18] sm:$0xff]
    %v97 = vld [vmem:[%s4] sm:$0x1]
    %v99 = vlaneseq
    %v100 = vshrl.u32 %v99, 7
    %v101 = vsub.s32 0, %v100
    %v102 = vrot.slane %v97, %v101
    %v105 = vsel %vm49, %v91, 0
    %v108 = vsel %vm49, %v92, 0
    %110 = vmatprep.subr.mxu0 0.0
    %111 = vmatpush1.msra.mxu0 0.0
    %112 = vmatprep.subr.mxu0 0.0
    %113 = vmatpush1.msra.mxu0 0.0
    %114 = vmatprep.subr.mxu0 0.0
    %115 = vmatpush1.msra.mxu0 0.0
    %116 = vmatprep.subr.mxu0 0.0
    %117 = vmatpush1.msra.mxu0 0.0
    %118 = vmatprep.subr.mxu0 0.0
    %119 = vmatpush1.msra.mxu0 0.0
    %120 = vmatprep.subr.mxu0 0.0
    %121 = vmatpush1.msra.mxu0 0.0
    %122 = vmatprep.subr.mxu0 0.0
    %123 = vmatpush1.msra.mxu0 0.0
    %124 = vmatprep.subr.mxu0 0.0
    %125 = vmatpush1.msra.mxu0 0.0
    %126 = vmatprep.subr.mxu0 0.0
    %127 = vmatpush1.msra.mxu0 0.0
    %128 = vmatprep.subr.mxu0 0.0
    %129 = vmatpush1.msra.mxu0 0.0
    %130 = vmatprep.subr.mxu0 0.0
    %131 = vmatpush1.msra.mxu0 0.0
    %132 = vmatprep.subr.mxu0 0.0
    %133 = vmatpush1.msra.mxu0 0.0
    %134 = vmatprep.subr.mxu0 0.0
    %v135 = vand.u32 %v96, 4294901760
    %136 = vmatpush1.msra.mxu0 %v135
    %137 = vmatprep.subr.mxu0 0.0
    %v138 = vand.u32 %v95, 4294901760
    %139 = vmatpush1.msra.mxu0 %v138
    %140 = vmatprep.subr.mxu0 0.0
    %v141 = vand.u32 %v94, 4294901760
    %142 = vmatpush1.msra.mxu0 %v141
    %143 = vmatprep.subr.mxu0 0.0
    %v144 = vand.u32 %v93, 4294901760
    %145 = vmatpush1.msra.mxu0 %v144
    %146 = vmatprep.subr.mxu0 0.0
    %147 = vmatpush2.msra.mxu0 0.0
    %148 = vmatprep.subr.mxu0 0.0
    %149 = vmatpush2.msra.mxu0 0.0
    %150 = vmatprep.subr.mxu0 0.0
    %151 = vmatpush2.msra.mxu0 0.0
    %152 = vmatprep.subr.mxu0 0.0
    %153 = vmatpush2.msra.mxu0 0.0
    %154 = vmatprep.subr.mxu0 0.0
    %155 = vmatpush2.msra.mxu0 0.0
    %156 = vmatprep.subr.mxu0 0.0
    %157 = vmatpush2.msra.mxu0 0.0
    %158 = vmatprep.subr.mxu0 0.0
    %159 = vmatpush2.msra.mxu0 0.0
    %160 = vmatprep.subr.mxu0 0.0
    %161 = vmatpush2.msra.mxu0 0.0
    %162 = vmatprep.subr.mxu0 0.0
    %163 = vmatpush2.msra.mxu0 0.0
    %164 = vmatprep.subr.mxu0 0.0
    %165 = vmatpush2.msra.mxu0 0.0
    %166 = vmatprep.subr.mxu0 0.0
    %167 = vmatpush2.msra.mxu0 0.0
    %168 = vmatprep.subr.mxu0 0.0
    %169 = vmatpush2.msra.mxu0 0.0
    %170 = vmatprep.subr.mxu0 0.0
    %171 = vmatpush2.msra.mxu0 0.0
    %172 = vmatprep.subr.mxu0 0.0
    %173 = vmatpush2.msra.mxu0 0.0
    %174 = vmatprep.subr.mxu0 0.0
    %175 = vmatpush2.msra.mxu0 0.0
    %176 = vmatprep.subr.mxu0 0.0
    %177 = vmatpush2.msra.mxu0 0.0
    %178 = vmatprep.mubr.f32.mxu0 0.0
    %v179 = vand.u32 %v105, 4294901760
    %v180 = vsub.f32 %v105, %v179
    %v181 = vand.u32 %v180, 4294901760
    %v182 = vsub.f32 %v180, %v181
    %v183 = vand.u32 %v182, 4294901760
    %184 = vmatmul.mubr.f32.gmra.mxu0 %v183
    %v185 = vpop.f32.mrf.mxu0
    %v186 = vadd.f32 %v102, %v185
    %v187 = vpop.f32.mrf.mxu0
    %188 = vmatprep.mubr.f32.mxu0 0.0
    %v189 = vand.u32 %v108, 4294901760
    %v190 = vsub.f32 %v108, %v189
    %v191 = vand.u32 %v190, 4294901760
    %v192 = vsub.f32 %v190, %v191
    %v193 = vand.u32 %v192, 4294901760
    %194 = vmatmul.mubr.f32.gmra.mxu0 %v193
    %v195 = vpop.f32.mrf.mxu0
    %v196 = vadd.f32 %v102, %v195
    %v197 = vpop.f32.mrf.mxu0
    %198 = vdwg.mxu0
    %199 = vmatprep.subr.mxu0 0.0
    %200 = vmatpush1.msra.mxu0 0.0
    %201 = vmatprep.subr.mxu0 0.0
    %202 = vmatpush1.msra.mxu0 0.0
    %203 = vmatprep.subr.mxu0 0.0
    %204 = vmatpush1.msra.mxu0 0.0
    %205 = vmatprep.subr.mxu0 0.0
    %206 = vmatpush1.msra.mxu0 0.0
    %207 = vmatprep.subr.mxu0 0.0
    %208 = vmatpush1.msra.mxu0 0.0
    %209 = vmatprep.subr.mxu0 0.0
    %210 = vmatpush1.msra.mxu0 0.0
    %211 = vmatprep.subr.mxu0 0.0
    %212 = vmatpush1.msra.mxu0 0.0
    %213 = vmatprep.subr.mxu0 0.0
    %214 = vmatpush1.msra.mxu0 0.0
    %215 = vmatprep.subr.mxu0 0.0
    %216 = vmatpush1.msra.mxu0 0.0
    %217 = vmatprep.subr.mxu0 0.0
    %218 = vmatpush1.msra.mxu0 0.0
    %219 = vmatprep.subr.mxu0 0.0
    %220 = vmatpush1.msra.mxu0 0.0
    %221 = vmatprep.subr.mxu0 0.0
    %222 = vmatpush1.msra.mxu0 0.0
    %223 = vmatprep.subr.mxu0 0.0
    %v224 = vand.u32 %v96, 4294901760
    %v225 = vsub.f32 %v96, %v224
    %v226 = vand.u32 %v225, 4294901760
    %v227 = vsub.f32 %v225, %v226
    %v228 = vand.u32 %v227, 4294901760
    %229 = vmatpush1.msra.mxu0 %v228
    %230 = vmatprep.subr.mxu0 0.0
    %v231 = vand.u32 %v95, 4294901760
    %v232 = vsub.f32 %v95, %v231
    %v233 = vand.u32 %v232, 4294901760
    %v234 = vsub.f32 %v232, %v233
    %v235 = vand.u32 %v234, 4294901760
    %236 = vmatpush1.msra.mxu0 %v235
    %237 = vmatprep.subr.mxu0 0.0
    %v238 = vand.u32 %v94, 4294901760
    %v239 = vsub.f32 %v94, %v238
    %v240 = vand.u32 %v239, 4294901760
    %v241 = vsub.f32 %v239, %v240
    %v242 = vand.u32 %v241, 4294901760
    %243 = vmatpush1.msra.mxu0 %v242
    %244 = vmatprep.subr.mxu0 0.0
    %v245 = vand.u32 %v93, 4294901760
    %v246 = vsub.f32 %v93, %v245
    %v247 = vand.u32 %v246, 4294901760
    %v248 = vsub.f32 %v246, %v247
    %v249 = vand.u32 %v248, 4294901760
    %250 = vmatpush1.msra.mxu0 %v249
    %251 = vmatprep.subr.mxu0 0.0
    %252 = vmatpush2.msra.mxu0 0.0
    %253 = vmatprep.subr.mxu0 0.0
    %254 = vmatpush2.msra.mxu0 0.0
    %255 = vmatprep.subr.mxu0 0.0
    %256 = vmatpush2.msra.mxu0 0.0
    %257 = vmatprep.subr.mxu0 0.0
    %258 = vmatpush2.msra.mxu0 0.0
    %259 = vmatprep.subr.mxu0 0.0
    %260 = vmatpush2.msra.mxu0 0.0
    %261 = vmatprep.subr.mxu0 0.0
    %262 = vmatpush2.msra.mxu0 0.0
    %263 = vmatprep.subr.mxu0 0.0
    %264 = vmatpush2.msra.mxu0 0.0
    %265 = vmatprep.subr.mxu0 0.0
    %266 = vmatpush2.msra.mxu0 0.0
    %267 = vmatprep.subr.mxu0 0.0
    %268 = vmatpush2.msra.mxu0 0.0
    %269 = vmatprep.subr.mxu0 0.0
    %270 = vmatpush2.msra.mxu0 0.0
    %271 = vmatprep.subr.mxu0 0.0
    %272 = vmatpush2.msra.mxu0 0.0
    %273 = vmatprep.subr.mxu0 0.0
    %274 = vmatpush2.msra.mxu0 0.0
    %275 = vmatprep.subr.mxu0 0.0
    %276 = vmatpush2.msra.mxu0 0.0
    %277 = vmatprep.subr.mxu0 0.0
    %278 = vmatpush2.msra.mxu0 0.0
    %279 = vmatprep.subr.mxu0 0.0
    %280 = vmatpush2.msra.mxu0 0.0
    %281 = vmatprep.subr.mxu0 0.0
    %282 = vmatpush2.msra.mxu0 0.0
    %283 = vmatprep.mubr.f32.mxu0 0.0
    %v284 = vand.u32 %v105, 4294901760
    %285 = vmatmul.mubr.f32.gmra.mxu0 %v284
    %v286 = vpop.f32.mrf.mxu0
    %v287 = vadd.f32 %v186, %v286
    %v288 = vpop.f32.mrf.mxu0
    %289 = vmatprep.mubr.f32.mxu0 0.0
    %v290 = vand.u32 %v108, 4294901760
    %291 = vmatmul.mubr.f32.gmra.mxu0 %v290
    %v292 = vpop.f32.mrf.mxu0
    %v293 = vadd.f32 %v196, %v292
    %v294 = vpop.f32.mrf.mxu0
    %295 = vdwg.mxu0
    %296 = vmatprep.subr.mxu0 0.0
    %297 = vmatpush1.msra.mxu0 0.0
    %298 = vmatprep.subr.mxu0 0.0
    %299 = vmatpush1.msra.mxu0 0.0
    %300 = vmatprep.subr.mxu0 0.0
    %301 = vmatpush1.msra.mxu0 0.0
    %302 = vmatprep.subr.mxu0 0.0
    %303 = vmatpush1.msra.mxu0 0.0
    %304 = vmatprep.subr.mxu0 0.0
    %305 = vmatpush1.msra.mxu0 0.0
    %306 = vmatprep.subr.mxu0 0.0
    %307 = vmatpush1.msra.mxu0 0.0
    %308 = vmatprep.subr.mxu0 0.0
    %309 = vmatpush1.msra.mxu0 0.0
    %310 = vmatprep.subr.mxu0 0.0
    %311 = vmatpush1.msra.mxu0 0.0
    %312 = vmatprep.subr.mxu0 0.0
    %313 = vmatpush1.msra.mxu0 0.0
    %314 = vmatprep.subr.mxu0 0.0
    %315 = vmatpush1.msra.mxu0 0.0
    %316 = vmatprep.subr.mxu0 0.0
    %317 = vmatpush1.msra.mxu0 0.0
    %318 = vmatprep.subr.mxu0 0.0
    %319 = vmatpush1.msra.mxu0 0.0
    %320 = vmatprep.subr.mxu0 0.0
    %v321 = vand.u32 %v96, 4294901760
    %v322 = vsub.f32 %v96, %v321
    %323 = vmatpush1.msra.mxu0 %v322
    %324 = vmatprep.subr.mxu0 0.0
    %v325 = vand.u32 %v95, 4294901760
    %v326 = vsub.f32 %v95, %v325
    %327 = vmatpush1.msra.mxu0 %v326
    %328 = vmatprep.subr.mxu0 0.0
    %v329 = vand.u32 %v94, 4294901760
    %v330 = vsub.f32 %v94, %v329
    %331 = vmatpush1.msra.mxu0 %v330
    %332 = vmatprep.subr.mxu0 0.0
    %v333 = vand.u32 %v93, 4294901760
    %v334 = vsub.f32 %v93, %v333
    %335 = vmatpush1.msra.mxu0 %v334
    %336 = vmatprep.subr.mxu0 0.0
    %337 = vmatpush2.msra.mxu0 0.0
    %338 = vmatprep.subr.mxu0 0.0
    %339 = vmatpush2.msra.mxu0 0.0
    %340 = vmatprep.subr.mxu0 0.0
    %341 = vmatpush2.msra.mxu0 0.0
    %342 = vmatprep.subr.mxu0 0.0
    %343 = vmatpush2.msra.mxu0 0.0
    %344 = vmatprep.subr.mxu0 0.0
    %345 = vmatpush2.msra.mxu0 0.0
    %346 = vmatprep.subr.mxu0 0.0
    %347 = vmatpush2.msra.mxu0 0.0
    %348 = vmatprep.subr.mxu0 0.0
    %349 = vmatpush2.msra.mxu0 0.0
    %350 = vmatprep.subr.mxu0 0.0
    %351 = vmatpush2.msra.mxu0 0.0
    %352 = vmatprep.subr.mxu0 0.0
    %353 = vmatpush2.msra.mxu0 0.0
    %354 = vmatprep.subr.mxu0 0.0
    %355 = vmatpush2.msra.mxu0 0.0
    %356 = vmatprep.subr.mxu0 0.0
    %357 = vmatpush2.msra.mxu0 0.0
    %358 = vmatprep.subr.mxu0 0.0
    %359 = vmatpush2.msra.mxu0 0.0
    %360 = vmatprep.subr.mxu0 0.0
    %361 = vmatpush2.msra.mxu0 0.0
    %362 = vmatprep.subr.mxu0 0.0
    %363 = vmatpush2.msra.mxu0 0.0
    %364 = vmatprep.subr.mxu0 0.0
    %365 = vmatpush2.msra.mxu0 0.0
    %366 = vmatprep.subr.mxu0 0.0
    %367 = vmatpush2.msra.mxu0 0.0
    %368 = vmatprep.mubr.f32.mxu0 0.0
    %v369 = vand.u32 %v105, 4294901760
    %v370 = vsub.f32 %v105, %v369
    %371 = vmatmul.mubr.f32.gmra.mxu0 %v370
    %v372 = vpop.f32.mrf.mxu0
    %v373 = vadd.f32 %v287, %v372
    %v374 = vpop.f32.mrf.mxu0
    %375 = vmatprep.mubr.f32.mxu0 0.0
    %v376 = vand.u32 %v108, 4294901760
    %v377 = vsub.f32 %v108, %v376
    %378 = vmatmul.mubr.f32.gmra.mxu0 %v377
    %v379 = vpop.f32.mrf.mxu0
    %v380 = vadd.f32 %v293, %v379
    %v381 = vpop.f32.mrf.mxu0
    %382 = vdwg.mxu0
    %383 = vmatprep.subr.mxu0 0.0
    %384 = vmatpush1.msra.mxu0 0.0
    %385 = vmatprep.subr.mxu0 0.0
    %386 = vmatpush1.msra.mxu0 0.0
    %387 = vmatprep.subr.mxu0 0.0
    %388 = vmatpush1.msra.mxu0 0.0
    %389 = vmatprep.subr.mxu0 0.0
    %390 = vmatpush1.msra.mxu0 0.0
    %391 = vmatprep.subr.mxu0 0.0
    %392 = vmatpush1.msra.mxu0 0.0
    %393 = vmatprep.subr.mxu0 0.0
    %394 = vmatpush1.msra.mxu0 0.0
    %395 = vmatprep.subr.mxu0 0.0
    %396 = vmatpush1.msra.mxu0 0.0
    %397 = vmatprep.subr.mxu0 0.0
    %398 = vmatpush1.msra.mxu0 0.0
    %399 = vmatprep.subr.mxu0 0.0
    %400 = vmatpush1.msra.mxu0 0.0
    %401 = vmatprep.subr.mxu0 0.0
    %402 = vmatpush1.msra.mxu0 0.0
    %403 = vmatprep.subr.mxu0 0.0
    %404 = vmatpush1.msra.mxu0 0.0
    %405 = vmatprep.subr.mxu0 0.0
    %406 = vmatpush1.msra.mxu0 0.0
    %407 = vmatprep.subr.mxu0 0.0
    %v408 = vand.u32 %v96, 4294901760
    %409 = vmatpush1.msra.mxu0 %v408
    %410 = vmatprep.subr.mxu0 0.0
    %v411 = vand.u32 %v95, 4294901760
    %412 = vmatpush1.msra.mxu0 %v411
    %413 = vmatprep.subr.mxu0 0.0
    %v414 = vand.u32 %v94, 4294901760
    %415 = vmatpush1.msra.mxu0 %v414
    %416 = vmatprep.subr.mxu0 0.0
    %v417 = vand.u32 %v93, 4294901760
    %418 = vmatpush1.msra.mxu0 %v417
    %419 = vmatprep.subr.mxu0 0.0
    %420 = vmatpush2.msra.mxu0 0.0
    %421 = vmatprep.subr.mxu0 0.0
    %422 = vmatpush2.msra.mxu0 0.0
    %423 = vmatprep.subr.mxu0 0.0
    %424 = vmatpush2.msra.mxu0 0.0
    %425 = vmatprep.subr.mxu0 0.0
    %426 = vmatpush2.msra.mxu0 0.0
    %427 = vmatprep.subr.mxu0 0.0
    %428 = vmatpush2.msra.mxu0 0.0
    %429 = vmatprep.subr.mxu0 0.0
    %430 = vmatpush2.msra.mxu0 0.0
    %431 = vmatprep.subr.mxu0 0.0
    %432 = vmatpush2.msra.mxu0 0.0
    %433 = vmatprep.subr.mxu0 0.0
    %434 = vmatpush2.msra.mxu0 0.0
    %435 = vmatprep.subr.mxu0 0.0
    %436 = vmatpush2.msra.mxu0 0.0
    %437 = vmatprep.subr.mxu0 0.0
    %438 = vmatpush2.msra.mxu0 0.0
    %439 = vmatprep.subr.mxu0 0.0
    %440 = vmatpush2.msra.mxu0 0.0
    %441 = vmatprep.subr.mxu0 0.0
    %442 = vmatpush2.msra.mxu0 0.0
    %443 = vmatprep.subr.mxu0 0.0
    %444 = vmatpush2.msra.mxu0 0.0
    %445 = vmatprep.subr.mxu0 0.0
    %446 = vmatpush2.msra.mxu0 0.0
    %447 = vmatprep.subr.mxu0 0.0
    %448 = vmatpush2.msra.mxu0 0.0
    %449 = vmatprep.subr.mxu0 0.0
    %450 = vmatpush2.msra.mxu0 0.0
    %451 = vmatprep.mubr.f32.mxu0 0.0
    %v452 = vand.u32 %v105, 4294901760
    %v453 = vsub.f32 %v105, %v452
    %v454 = vand.u32 %v453, 4294901760
    %455 = vmatmul.mubr.f32.gmra.mxu0 %v454
    %v456 = vpop.f32.mrf.mxu0
    %v457 = vadd.f32 %v373, %v456
    %v458 = vpop.f32.mrf.mxu0
    %459 = vmatprep.mubr.f32.mxu0 0.0
    %v460 = vand.u32 %v108, 4294901760
    %v461 = vsub.f32 %v108, %v460
    %v462 = vand.u32 %v461, 4294901760
    %463 = vmatmul.mubr.f32.gmra.mxu0 %v462
    %v464 = vpop.f32.mrf.mxu0
    %v465 = vadd.f32 %v380, %v464
    %v466 = vpop.f32.mrf.mxu0
    %467 = vdwg.mxu0
    %468 = vmatprep.subr.mxu0 0.0
    %469 = vmatpush1.msra.mxu0 0.0
    %470 = vmatprep.subr.mxu0 0.0
    %471 = vmatpush1.msra.mxu0 0.0
    %472 = vmatprep.subr.mxu0 0.0
    %473 = vmatpush1.msra.mxu0 0.0
    %474 = vmatprep.subr.mxu0 0.0
    %475 = vmatpush1.msra.mxu0 0.0
    %476 = vmatprep.subr.mxu0 0.0
    %477 = vmatpush1.msra.mxu0 0.0
    %478 = vmatprep.subr.mxu0 0.0
    %479 = vmatpush1.msra.mxu0 0.0
    %480 = vmatprep.subr.mxu0 0.0
    %481 = vmatpush1.msra.mxu0 0.0
    %482 = vmatprep.subr.mxu0 0.0
    %483 = vmatpush1.msra.mxu0 0.0
    %484 = vmatprep.subr.mxu0 0.0
    %485 = vmatpush1.msra.mxu0 0.0
    %486 = vmatprep.subr.mxu0 0.0
    %487 = vmatpush1.msra.mxu0 0.0
    %488 = vmatprep.subr.mxu0 0.0
    %489 = vmatpush1.msra.mxu0 0.0
    %490 = vmatprep.subr.mxu0 0.0
    %491 = vmatpush1.msra.mxu0 0.0
    %492 = vmatprep.subr.mxu0 0.0
    %v493 = vand.u32 %v96, 4294901760
    %v494 = vsub.f32 %v96, %v493
    %v495 = vand.u32 %v494, 4294901760
    %496 = vmatpush1.msra.mxu0 %v495
    %497 = vmatprep.subr.mxu0 0.0
    %v498 = vand.u32 %v95, 4294901760
    %v499 = vsub.f32 %v95, %v498
    %v500 = vand.u32 %v499, 4294901760
    %501 = vmatpush1.msra.mxu0 %v500
    %502 = vmatprep.subr.mxu0 0.0
    %v503 = vand.u32 %v94, 4294901760
    %v504 = vsub.f32 %v94, %v503
    %v505 = vand.u32 %v504, 4294901760
    %506 = vmatpush1.msra.mxu0 %v505
    %507 = vmatprep.subr.mxu0 0.0
    %v508 = vand.u32 %v93, 4294901760
    %v509 = vsub.f32 %v93, %v508
    %v510 = vand.u32 %v509, 4294901760
    %511 = vmatpush1.msra.mxu0 %v510
    %512 = vmatprep.subr.mxu0 0.0
    %513 = vmatpush2.msra.mxu0 0.0
    %514 = vmatprep.subr.mxu0 0.0
    %515 = vmatpush2.msra.mxu0 0.0
    %516 = vmatprep.subr.mxu0 0.0
    %517 = vmatpush2.msra.mxu0 0.0
    %518 = vmatprep.subr.mxu0 0.0
    %519 = vmatpush2.msra.mxu0 0.0
    %520 = vmatprep.subr.mxu0 0.0
    %521 = vmatpush2.msra.mxu0 0.0
    %522 = vmatprep.subr.mxu0 0.0
    %523 = vmatpush2.msra.mxu0 0.0
    %524 = vmatprep.subr.mxu0 0.0
    %525 = vmatpush2.msra.mxu0 0.0
    %526 = vmatprep.subr.mxu0 0.0
    %527 = vmatpush2.msra.mxu0 0.0
    %528 = vmatprep.subr.mxu0 0.0
    %529 = vmatpush2.msra.mxu0 0.0
    %530 = vmatprep.subr.mxu0 0.0
    %531 = vmatpush2.msra.mxu0 0.0
    %532 = vmatprep.subr.mxu0 0.0
    %533 = vmatpush2.msra.mxu0 0.0
    %534 = vmatprep.subr.mxu0 0.0
    %535 = vmatpush2.msra.mxu0 0.0
    %536 = vmatprep.subr.mxu0 0.0
    %537 = vmatpush2.msra.mxu0 0.0
    %538 = vmatprep.subr.mxu0 0.0
    %539 = vmatpush2.msra.mxu0 0.0
    %540 = vmatprep.subr.mxu0 0.0
    %541 = vmatpush2.msra.mxu0 0.0
    %542 = vmatprep.subr.mxu0 0.0
    %543 = vmatpush2.msra.mxu0 0.0
    %544 = vmatprep.mubr.f32.mxu0 0.0
    %v545 = vand.u32 %v105, 4294901760
    %546 = vmatmul.mubr.f32.gmra.mxu0 %v545
    %v547 = vpop.f32.mrf.mxu0
    %v548 = vadd.f32 %v457, %v547
    %v549 = vpop.f32.mrf.mxu0
    %550 = vmatprep.mubr.f32.mxu0 0.0
    %v551 = vand.u32 %v108, 4294901760
    %552 = vmatmul.mubr.f32.gmra.mxu0 %v551
    %v553 = vpop.f32.mrf.mxu0
    %v554 = vadd.f32 %v465, %v553
    %v555 = vpop.f32.mrf.mxu0
    %556 = vdwg.mxu0
    %557 = vmatprep.subr.mxu0 0.0
    %558 = vmatpush1.msra.mxu0 0.0
    %559 = vmatprep.subr.mxu0 0.0
    %560 = vmatpush1.msra.mxu0 0.0
    %561 = vmatprep.subr.mxu0 0.0
    %562 = vmatpush1.msra.mxu0 0.0
    %563 = vmatprep.subr.mxu0 0.0
    %564 = vmatpush1.msra.mxu0 0.0
    %565 = vmatprep.subr.mxu0 0.0
    %566 = vmatpush1.msra.mxu0 0.0
    %567 = vmatprep.subr.mxu0 0.0
    %568 = vmatpush1.msra.mxu0 0.0
    %569 = vmatprep.subr.mxu0 0.0
    %570 = vmatpush1.msra.mxu0 0.0
    %571 = vmatprep.subr.mxu0 0.0
    %572 = vmatpush1.msra.mxu0 0.0
    %573 = vmatprep.subr.mxu0 0.0
    %574 = vmatpush1.msra.mxu0 0.0
    %575 = vmatprep.subr.mxu0 0.0
    %576 = vmatpush1.msra.mxu0 0.0
    %577 = vmatprep.subr.mxu0 0.0
    %578 = vmatpush1.msra.mxu0 0.0
    %579 = vmatprep.subr.mxu0 0.0
    %580 = vmatpush1.msra.mxu0 0.0
    %581 = vmatprep.subr.mxu0 0.0
    %v582 = vand.u32 %v96, 4294901760
    %583 = vmatpush1.msra.mxu0 %v582
    %584 = vmatprep.subr.mxu0 0.0
    %v585 = vand.u32 %v95, 4294901760
    %586 = vmatpush1.msra.mxu0 %v585
    %587 = vmatprep.subr.mxu0 0.0
    %v588 = vand.u32 %v94, 4294901760
    %589 = vmatpush1.msra.mxu0 %v588
    %590 = vmatprep.subr.mxu0 0.0
    %v591 = vand.u32 %v93, 4294901760
    %592 = vmatpush1.msra.mxu0 %v591
    %593 = vmatprep.subr.mxu0 0.0
    %594 = vmatpush2.msra.mxu0 0.0
    %595 = vmatprep.subr.mxu0 0.0
    %596 = vmatpush2.msra.mxu0 0.0
    %597 = vmatprep.subr.mxu0 0.0
    %598 = vmatpush2.msra.mxu0 0.0
    %599 = vmatprep.subr.mxu0 0.0
    %600 = vmatpush2.msra.mxu0 0.0
    %601 = vmatprep.subr.mxu0 0.0
    %602 = vmatpush2.msra.mxu0 0.0
    %603 = vmatprep.subr.mxu0 0.0
    %604 = vmatpush2.msra.mxu0 0.0
    %605 = vmatprep.subr.mxu0 0.0
    %606 = vmatpush2.msra.mxu0 0.0
    %607 = vmatprep.subr.mxu0 0.0
    %608 = vmatpush2.msra.mxu0 0.0
    %609 = vmatprep.subr.mxu0 0.0
    %610 = vmatpush2.msra.mxu0 0.0
    %611 = vmatprep.subr.mxu0 0.0
    %612 = vmatpush2.msra.mxu0 0.0
    %613 = vmatprep.subr.mxu0 0.0
    %614 = vmatpush2.msra.mxu0 0.0
    %615 = vmatprep.subr.mxu0 0.0
    %616 = vmatpush2.msra.mxu0 0.0
    %617 = vmatprep.subr.mxu0 0.0
    %618 = vmatpush2.msra.mxu0 0.0
    %619 = vmatprep.subr.mxu0 0.0
    %620 = vmatpush2.msra.mxu0 0.0
    %621 = vmatprep.subr.mxu0 0.0
    %622 = vmatpush2.msra.mxu0 0.0
    %623 = vmatprep.subr.mxu0 0.0
    %624 = vmatpush2.msra.mxu0 0.0
    %625 = vmatprep.mubr.f32.mxu0 0.0
    %v626 = vand.u32 %v105, 4294901760
    %627 = vmatmul.mubr.f32.gmra.mxu0 %v626
    %v628 = vpop.f32.mrf.mxu0
    %v629 = vadd.f32 %v548, %v628
    %v630 = vpop.f32.mrf.mxu0
    %631 = vmatprep.mubr.f32.mxu0 0.0
    %v632 = vand.u32 %v108, 4294901760
    %633 = vmatmul.mubr.f32.gmra.mxu0 %v632
    %v634 = vpop.f32.mrf.mxu0
    %v635 = vadd.f32 %v554, %v634
    %v636 = vpop.f32.mrf.mxu0
    %637 = vdwg.mxu0
    %639 = vrot.lane.b32.xlu0 %v629, 96
    %v640 = vpop.permute.xlu0 %639
    %vm641 = vcmask 64512
    %v642 = vsel %vm641, %v629, 0
    %v644 = vsel %vm641, %v640, 0
    %646 = vmatprep.subr.mxu0 0.0
    %647 = vmatpush1.xpose.msra.mxu0 0.0
    %648 = vmatprep.subr.mxu0 0.0
    %649 = vmatpush1.xpose.msra.mxu0 0.0
    %650 = vmatprep.subr.mxu0 0.0
    %651 = vmatpush1.xpose.msra.mxu0 0.0
    %652 = vmatprep.subr.mxu0 0.0
    %653 = vmatpush1.xpose.msra.mxu0 0.0
    %654 = vmatprep.subr.mxu0 0.0
    %655 = vmatpush1.xpose.msra.mxu0 0.0
    %656 = vmatprep.subr.mxu0 0.0
    %657 = vmatpush1.xpose.msra.mxu0 0.0
    %658 = vmatprep.subr.mxu0 0.0
    %659 = vmatpush1.xpose.msra.mxu0 0.0
    %660 = vmatprep.subr.mxu0 0.0
    %661 = vmatpush1.xpose.msra.mxu0 0.0
    %662 = vmatprep.subr.mxu0 0.0
    %663 = vmatpush1.xpose.msra.mxu0 0.0
    %664 = vmatprep.subr.mxu0 0.0
    %665 = vmatpush1.xpose.msra.mxu0 0.0
    %666 = vmatprep.subr.mxu0 0.0
    %667 = vmatpush1.xpose.msra.mxu0 0.0
    %668 = vmatprep.subr.mxu0 0.0
    %669 = vmatpush1.xpose.msra.mxu0 0.0
    %670 = vmatprep.subr.mxu0 0.0
    %671 = vmatpush1.xpose.msra.mxu0 0.0
    %672 = vmatprep.subr.mxu0 0.0
    %673 = vmatpush1.xpose.msra.mxu0 0.0
    %674 = vmatprep.subr.mxu0 0.0
    %675 = vmatpush1.xpose.msra.mxu0 0.0
    %676 = vmatprep.subr.mxu0 0.0
    %v677 = vand.u32 %v644, 4294901760
    %678 = vmatpush1.xpose.msra.mxu0 %v677
    %679 = vmatprep.subr.mxu0 0.0
    %680 = vmatpush2.xpose.msra.mxu0 0.0
    %681 = vmatprep.subr.mxu0 0.0
    %682 = vmatpush2.xpose.msra.mxu0 0.0
    %683 = vmatprep.subr.mxu0 0.0
    %684 = vmatpush2.xpose.msra.mxu0 0.0
    %685 = vmatprep.subr.mxu0 0.0
    %686 = vmatpush2.xpose.msra.mxu0 0.0
    %687 = vmatprep.subr.mxu0 0.0
    %688 = vmatpush2.xpose.msra.mxu0 0.0
    %689 = vmatprep.subr.mxu0 0.0
    %690 = vmatpush2.xpose.msra.mxu0 0.0
    %691 = vmatprep.subr.mxu0 0.0
    %692 = vmatpush2.xpose.msra.mxu0 0.0
    %693 = vmatprep.subr.mxu0 0.0
    %694 = vmatpush2.xpose.msra.mxu0 0.0
    %695 = vmatprep.subr.mxu0 0.0
    %696 = vmatpush2.xpose.msra.mxu0 0.0
    %697 = vmatprep.subr.mxu0 0.0
    %698 = vmatpush2.xpose.msra.mxu0 0.0
    %699 = vmatprep.subr.mxu0 0.0
    %700 = vmatpush2.xpose.msra.mxu0 0.0
    %701 = vmatprep.subr.mxu0 0.0
    %702 = vmatpush2.xpose.msra.mxu0 0.0
    %703 = vmatprep.subr.mxu0 0.0
    %704 = vmatpush2.xpose.msra.mxu0 0.0
    %705 = vmatprep.subr.mxu0 0.0
    %706 = vmatpush2.xpose.msra.mxu0 0.0
    %707 = vmatprep.subr.mxu0 0.0
    %708 = vmatpush2.xpose.msra.mxu0 0.0
    %709 = vmatprep.subr.mxu0 0.0
    %710 = vmatpush2.xpose.msra.mxu0 0.0
    %711 = vmatprep.mubr.f32.mxu0 0.0
    %v712 = vand.u32 %v642, 4294901760
    %v713 = vsub.f32 %v642, %v712
    %v714 = vand.u32 %v713, 4294901760
    %v715 = vsub.f32 %v713, %v714
    %v716 = vand.u32 %v715, 4294901760
    %717 = vmatmul.mubr.f32.gmra.mxu0 %v716
    %v718 = vpop.f32.mrf.mxu0
    %v719 = vadd.f32 0.0, %v718
    %v720 = vpop.f32.mrf.mxu0
    %721 = vdwg.mxu0
    %722 = vmatprep.subr.mxu0 0.0
    %723 = vmatpush1.xpose.msra.mxu0 0.0
    %724 = vmatprep.subr.mxu0 0.0
    %725 = vmatpush1.xpose.msra.mxu0 0.0
    %726 = vmatprep.subr.mxu0 0.0
    %727 = vmatpush1.xpose.msra.mxu0 0.0
    %728 = vmatprep.subr.mxu0 0.0
    %729 = vmatpush1.xpose.msra.mxu0 0.0
    %730 = vmatprep.subr.mxu0 0.0
    %731 = vmatpush1.xpose.msra.mxu0 0.0
    %732 = vmatprep.subr.mxu0 0.0
    %733 = vmatpush1.xpose.msra.mxu0 0.0
    %734 = vmatprep.subr.mxu0 0.0
    %735 = vmatpush1.xpose.msra.mxu0 0.0
    %736 = vmatprep.subr.mxu0 0.0
    %737 = vmatpush1.xpose.msra.mxu0 0.0
    %738 = vmatprep.subr.mxu0 0.0
    %739 = vmatpush1.xpose.msra.mxu0 0.0
    %740 = vmatprep.subr.mxu0 0.0
    %741 = vmatpush1.xpose.msra.mxu0 0.0
    %742 = vmatprep.subr.mxu0 0.0
    %743 = vmatpush1.xpose.msra.mxu0 0.0
    %744 = vmatprep.subr.mxu0 0.0
    %745 = vmatpush1.xpose.msra.mxu0 0.0
    %746 = vmatprep.subr.mxu0 0.0
    %747 = vmatpush1.xpose.msra.mxu0 0.0
    %748 = vmatprep.subr.mxu0 0.0
    %749 = vmatpush1.xpose.msra.mxu0 0.0
    %750 = vmatprep.subr.mxu0 0.0
    %751 = vmatpush1.xpose.msra.mxu0 0.0
    %752 = vmatprep.subr.mxu0 0.0
    %v753 = vand.u32 %v644, 4294901760
    %v754 = vsub.f32 %v644, %v753
    %v755 = vand.u32 %v754, 4294901760
    %v756 = vsub.f32 %v754, %v755
    %v757 = vand.u32 %v756, 4294901760
    %758 = vmatpush1.xpose.msra.mxu0 %v757
    %759 = vmatprep.subr.mxu0 0.0
    %760 = vmatpush2.xpose.msra.mxu0 0.0
    %761 = vmatprep.subr.mxu0 0.0
    %762 = vmatpush2.xpose.msra.mxu0 0.0
    %763 = vmatprep.subr.mxu0 0.0
    %764 = vmatpush2.xpose.msra.mxu0 0.0
    %765 = vmatprep.subr.mxu0 0.0
    %766 = vmatpush2.xpose.msra.mxu0 0.0
    %767 = vmatprep.subr.mxu0 0.0
    %768 = vmatpush2.xpose.msra.mxu0 0.0
    %769 = vmatprep.subr.mxu0 0.0
    %770 = vmatpush2.xpose.msra.mxu0 0.0
    %771 = vmatprep.subr.mxu0 0.0
    %772 = vmatpush2.xpose.msra.mxu0 0.0
    %773 = vmatprep.subr.mxu0 0.0
    %774 = vmatpush2.xpose.msra.mxu0 0.0
    %775 = vmatprep.subr.mxu0 0.0
    %776 = vmatpush2.xpose.msra.mxu0 0.0
    %777 = vmatprep.subr.mxu0 0.0
    %778 = vmatpush2.xpose.msra.mxu0 0.0
    %779 = vmatprep.subr.mxu0 0.0
    %780 = vmatpush2.xpose.msra.mxu0 0.0
    %781 = vmatprep.subr.mxu0 0.0
    %782 = vmatpush2.xpose.msra.mxu0 0.0
    %783 = vmatprep.subr.mxu0 0.0
    %784 = vmatpush2.xpose.msra.mxu0 0.0
    %785 = vmatprep.subr.mxu0 0.0
    %786 = vmatpush2.xpose.msra.mxu0 0.0
    %787 = vmatprep.subr.mxu0 0.0
    %788 = vmatpush2.xpose.msra.mxu0 0.0
    %789 = vmatprep.subr.mxu0 0.0
    %790 = vmatpush2.xpose.msra.mxu0 0.0
    %791 = vmatprep.mubr.f32.mxu0 0.0
    %v792 = vand.u32 %v642, 4294901760
    %793 = vmatmul.mubr.f32.gmra.mxu0 %v792
    %v794 = vpop.f32.mrf.mxu0
    %v795 = vadd.f32 %v719, %v794
    %v796 = vpop.f32.mrf.mxu0
    %797 = vdwg.mxu0
    %798 = vmatprep.subr.mxu0 0.0
    %799 = vmatpush1.xpose.msra.mxu0 0.0
    %800 = vmatprep.subr.mxu0 0.0
    %801 = vmatpush1.xpose.msra.mxu0 0.0
    %802 = vmatprep.subr.mxu0 0.0
    %803 = vmatpush1.xpose.msra.mxu0 0.0
    %804 = vmatprep.subr.mxu0 0.0
    %805 = vmatpush1.xpose.msra.mxu0 0.0
    %806 = vmatprep.subr.mxu0 0.0
    %807 = vmatpush1.xpose.msra.mxu0 0.0
    %808 = vmatprep.subr.mxu0 0.0
    %809 = vmatpush1.xpose.msra.mxu0 0.0
    %810 = vmatprep.subr.mxu0 0.0
    %811 = vmatpush1.xpose.msra.mxu0 0.0
    %812 = vmatprep.subr.mxu0 0.0
    %813 = vmatpush1.xpose.msra.mxu0 0.0
    %814 = vmatprep.subr.mxu0 0.0
    %815 = vmatpush1.xpose.msra.mxu0 0.0
    %816 = vmatprep.subr.mxu0 0.0
    %817 = vmatpush1.xpose.msra.mxu0 0.0
    %818 = vmatprep.subr.mxu0 0.0
    %819 = vmatpush1.xpose.msra.mxu0 0.0
    %820 = vmatprep.subr.mxu0 0.0
    %821 = vmatpush1.xpose.msra.mxu0 0.0
    %822 = vmatprep.subr.mxu0 0.0
    %823 = vmatpush1.xpose.msra.mxu0 0.0
    %824 = vmatprep.subr.mxu0 0.0
    %825 = vmatpush1.xpose.msra.mxu0 0.0
    %826 = vmatprep.subr.mxu0 0.0
    %827 = vmatpush1.xpose.msra.mxu0 0.0
    %828 = vmatprep.subr.mxu0 0.0
    %v829 = vand.u32 %v644, 4294901760
    %v830 = vsub.f32 %v644, %v829
    %831 = vmatpush1.xpose.msra.mxu0 %v830
    %832 = vmatprep.subr.mxu0 0.0
    %833 = vmatpush2.xpose.msra.mxu0 0.0
    %834 = vmatprep.subr.mxu0 0.0
    %835 = vmatpush2.xpose.msra.mxu0 0.0
    %836 = vmatprep.subr.mxu0 0.0
    %837 = vmatpush2.xpose.msra.mxu0 0.0
    %838 = vmatprep.subr.mxu0 0.0
    %839 = vmatpush2.xpose.msra.mxu0 0.0
    %840 = vmatprep.subr.mxu0 0.0
    %841 = vmatpush2.xpose.msra.mxu0 0.0
    %842 = vmatprep.subr.mxu0 0.0
    %843 = vmatpush2.xpose.msra.mxu0 0.0
    %844 = vmatprep.subr.mxu0 0.0
    %845 = vmatpush2.xpose.msra.mxu0 0.0
    %846 = vmatprep.subr.mxu0 0.0
    %847 = vmatpush2.xpose.msra.mxu0 0.0
    %848 = vmatprep.subr.mxu0 0.0
    %849 = vmatpush2.xpose.msra.mxu0 0.0
    %850 = vmatprep.subr.mxu0 0.0
    %851 = vmatpush2.xpose.msra.mxu0 0.0
    %852 = vmatprep.subr.mxu0 0.0
    %853 = vmatpush2.xpose.msra.mxu0 0.0
    %854 = vmatprep.subr.mxu0 0.0
    %855 = vmatpush2.xpose.msra.mxu0 0.0
    %856 = vmatprep.subr.mxu0 0.0
    %857 = vmatpush2.xpose.msra.mxu0 0.0
    %858 = vmatprep.subr.mxu0 0.0
    %859 = vmatpush2.xpose.msra.mxu0 0.0
    %860 = vmatprep.subr.mxu0 0.0
    %861 = vmatpush2.xpose.msra.mxu0 0.0
    %862 = vmatprep.subr.mxu0 0.0
    %863 = vmatpush2.xpose.msra.mxu0 0.0
    %864 = vmatprep.mubr.f32.mxu0 0.0
    %v865 = vand.u32 %v642, 4294901760
    %v866 = vsub.f32 %v642, %v865
    %867 = vmatmul.mubr.f32.gmra.mxu0 %v866
    %v868 = vpop.f32.mrf.mxu0
    %v869 = vadd.f32 %v795, %v868
    %v870 = vpop.f32.mrf.mxu0
    %871 = vdwg.mxu0
    %872 = vmatprep.subr.mxu0 0.0
    %873 = vmatpush1.xpose.msra.mxu0 0.0
    %874 = vmatprep.subr.mxu0 0.0
    %875 = vmatpush1.xpose.msra.mxu0 0.0
    %876 = vmatprep.subr.mxu0 0.0
    %877 = vmatpush1.xpose.msra.mxu0 0.0
    %878 = vmatprep.subr.mxu0 0.0
    %879 = vmatpush1.xpose.msra.mxu0 0.0
    %880 = vmatprep.subr.mxu0 0.0
    %881 = vmatpush1.xpose.msra.mxu0 0.0
    %882 = vmatprep.subr.mxu0 0.0
    %883 = vmatpush1.xpose.msra.mxu0 0.0
    %884 = vmatprep.subr.mxu0 0.0
    %885 = vmatpush1.xpose.msra.mxu0 0.0
    %886 = vmatprep.subr.mxu0 0.0
    %887 = vmatpush1.xpose.msra.mxu0 0.0
    %888 = vmatprep.subr.mxu0 0.0
    %889 = vmatpush1.xpose.msra.mxu0 0.0
    %890 = vmatprep.subr.mxu0 0.0
    %891 = vmatpush1.xpose.msra.mxu0 0.0
    %892 = vmatprep.subr.mxu0 0.0
    %893 = vmatpush1.xpose.msra.mxu0 0.0
    %894 = vmatprep.subr.mxu0 0.0
    %895 = vmatpush1.xpose.msra.mxu0 0.0
    %896 = vmatprep.subr.mxu0 0.0
    %897 = vmatpush1.xpose.msra.mxu0 0.0
    %898 = vmatprep.subr.mxu0 0.0
    %899 = vmatpush1.xpose.msra.mxu0 0.0
    %900 = vmatprep.subr.mxu0 0.0
    %901 = vmatpush1.xpose.msra.mxu0 0.0
    %902 = vmatprep.subr.mxu0 0.0
    %v903 = vand.u32 %v644, 4294901760
    %904 = vmatpush1.xpose.msra.mxu0 %v903
    %905 = vmatprep.subr.mxu0 0.0
    %906 = vmatpush2.xpose.msra.mxu0 0.0
    %907 = vmatprep.subr.mxu0 0.0
    %908 = vmatpush2.xpose.msra.mxu0 0.0
    %909 = vmatprep.subr.mxu0 0.0
    %910 = vmatpush2.xpose.msra.mxu0 0.0
    %911 = vmatprep.subr.mxu0 0.0
    %912 = vmatpush2.xpose.msra.mxu0 0.0
    %913 = vmatprep.subr.mxu0 0.0
    %914 = vmatpush2.xpose.msra.mxu0 0.0
    %915 = vmatprep.subr.mxu0 0.0
    %916 = vmatpush2.xpose.msra.mxu0 0.0
    %917 = vmatprep.subr.mxu0 0.0
    %918 = vmatpush2.xpose.msra.mxu0 0.0
    %919 = vmatprep.subr.mxu0 0.0
    %920 = vmatpush2.xpose.msra.mxu0 0.0
    %921 = vmatprep.subr.mxu0 0.0
    %922 = vmatpush2.xpose.msra.mxu0 0.0
    %923 = vmatprep.subr.mxu0 0.0
    %924 = vmatpush2.xpose.msra.mxu0 0.0
    %925 = vmatprep.subr.mxu0 0.0
    %926 = vmatpush2.xpose.msra.mxu0 0.0
    %927 = vmatprep.subr.mxu0 0.0
    %928 = vmatpush2.xpose.msra.mxu0 0.0
    %929 = vmatprep.subr.mxu0 0.0
    %930 = vmatpush2.xpose.msra.mxu0 0.0
    %931 = vmatprep.subr.mxu0 0.0
    %932 = vmatpush2.xpose.msra.mxu0 0.0
    %933 = vmatprep.subr.mxu0 0.0
    %934 = vmatpush2.xpose.msra.mxu0 0.0
    %935 = vmatprep.subr.mxu0 0.0
    %936 = vmatpush2.xpose.msra.mxu0 0.0
    %937 = vmatprep.mubr.f32.mxu0 0.0
    %v938 = vand.u32 %v642, 4294901760
    %v939 = vsub.f32 %v642, %v938
    %v940 = vand.u32 %v939, 4294901760
    %941 = vmatmul.mubr.f32.gmra.mxu0 %v940
    %v942 = vpop.f32.mrf.mxu0
    %v943 = vadd.f32 %v869, %v942
    %v944 = vpop.f32.mrf.mxu0
    %945 = vdwg.mxu0
    %946 = vmatprep.subr.mxu0 0.0
    %947 = vmatpush1.xpose.msra.mxu0 0.0
    %948 = vmatprep.subr.mxu0 0.0
    %949 = vmatpush1.xpose.msra.mxu0 0.0
    %950 = vmatprep.subr.mxu0 0.0
    %951 = vmatpush1.xpose.msra.mxu0 0.0
    %952 = vmatprep.subr.mxu0 0.0
    %953 = vmatpush1.xpose.msra.mxu0 0.0
    %954 = vmatprep.subr.mxu0 0.0
    %955 = vmatpush1.xpose.msra.mxu0 0.0
    %956 = vmatprep.subr.mxu0 0.0
    %957 = vmatpush1.xpose.msra.mxu0 0.0
    %958 = vmatprep.subr.mxu0 0.0
    %959 = vmatpush1.xpose.msra.mxu0 0.0
    %960 = vmatprep.subr.mxu0 0.0
    %961 = vmatpush1.xpose.msra.mxu0 0.0
    %962 = vmatprep.subr.mxu0 0.0
    %963 = vmatpush1.xpose.msra.mxu0 0.0
    %964 = vmatprep.subr.mxu0 0.0
    %965 = vmatpush1.xpose.msra.mxu0 0.0
    %966 = vmatprep.subr.mxu0 0.0
    %967 = vmatpush1.xpose.msra.mxu0 0.0
    %968 = vmatprep.subr.mxu0 0.0
    %969 = vmatpush1.xpose.msra.mxu0 0.0
    %970 = vmatprep.subr.mxu0 0.0
    %971 = vmatpush1.xpose.msra.mxu0 0.0
    %972 = vmatprep.subr.mxu0 0.0
    %973 = vmatpush1.xpose.msra.mxu0 0.0
    %974 = vmatprep.subr.mxu0 0.0
    %975 = vmatpush1.xpose.msra.mxu0 0.0
    %976 = vmatprep.subr.mxu0 0.0
    %v977 = vand.u32 %v644, 4294901760
    %v978 = vsub.f32 %v644, %v977
    %v979 = vand.u32 %v978, 4294901760
    %980 = vmatpush1.xpose.msra.mxu0 %v979
    %981 = vmatprep.subr.mxu0 0.0
    %982 = vmatpush2.xpose.msra.mxu0 0.0
    %983 = vmatprep.subr.mxu0 0.0
    %984 = vmatpush2.xpose.msra.mxu0 0.0
    %985 = vmatprep.subr.mxu0 0.0
    %986 = vmatpush2.xpose.msra.mxu0 0.0
    %987 = vmatprep.subr.mxu0 0.0
    %988 = vmatpush2.xpose.msra.mxu0 0.0
    %989 = vmatprep.subr.mxu0 0.0
    %990 = vmatpush2.xpose.msra.mxu0 0.0
    %991 = vmatprep.subr.mxu0 0.0
    %992 = vmatpush2.xpose.msra.mxu0 0.0
    %993 = vmatprep.subr.mxu0 0.0
    %994 = vmatpush2.xpose.msra.mxu0 0.0
    %995 = vmatprep.subr.mxu0 0.0
    %996 = vmatpush2.xpose.msra.mxu0 0.0
    %997 = vmatprep.subr.mxu0 0.0
    %998 = vmatpush2.xpose.msra.mxu0 0.0
    %999 = vmatprep.subr.mxu0 0.0
    %1000 = vmatpush2.xpose.msra.mxu0 0.0
    %1001 = vmatprep.subr.mxu0 0.0
    %1002 = vmatpush2.xpose.msra.mxu0 0.0
    %1003 = vmatprep.subr.mxu0 0.0
    %1004 = vmatpush2.xpose.msra.mxu0 0.0
    %1005 = vmatprep.subr.mxu0 0.0
    %1006 = vmatpush2.xpose.msra.mxu0 0.0
    %1007 = vmatprep.subr.mxu0 0.0
    %1008 = vmatpush2.xpose.msra.mxu0 0.0
    %1009 = vmatprep.subr.mxu0 0.0
    %1010 = vmatpush2.xpose.msra.mxu0 0.0
    %1011 = vmatprep.subr.mxu0 0.0
    %1012 = vmatpush2.xpose.msra.mxu0 0.0
    %1013 = vmatprep.mubr.f32.mxu0 0.0
    %v1014 = vand.u32 %v642, 4294901760
    %1015 = vmatmul.mubr.f32.gmra.mxu0 %v1014
    %v1016 = vpop.f32.mrf.mxu0
    %v1017 = vadd.f32 %v943, %v1016
    %v1018 = vpop.f32.mrf.mxu0
    %1019 = vdwg.mxu0
    %1020 = vmatprep.subr.mxu0 0.0
    %1021 = vmatpush1.xpose.msra.mxu0 0.0
    %1022 = vmatprep.subr.mxu0 0.0
    %1023 = vmatpush1.xpose.msra.mxu0 0.0
    %1024 = vmatprep.subr.mxu0 0.0
    %1025 = vmatpush1.xpose.msra.mxu0 0.0
    %1026 = vmatprep.subr.mxu0 0.0
    %1027 = vmatpush1.xpose.msra.mxu0 0.0
    %1028 = vmatprep.subr.mxu0 0.0
    %1029 = vmatpush1.xpose.msra.mxu0 0.0
    %1030 = vmatprep.subr.mxu0 0.0
    %1031 = vmatpush1.xpose.msra.mxu0 0.0
    %1032 = vmatprep.subr.mxu0 0.0
    %1033 = vmatpush1.xpose.msra.mxu0 0.0
    %1034 = vmatprep.subr.mxu0 0.0
    %1035 = vmatpush1.xpose.msra.mxu0 0.0
    %1036 = vmatprep.subr.mxu0 0.0
    %1037 = vmatpush1.xpose.msra.mxu0 0.0
    %1038 = vmatprep.subr.mxu0 0.0
    %1039 = vmatpush1.xpose.msra.mxu0 0.0
    %1040 = vmatprep.subr.mxu0 0.0
    %1041 = vmatpush1.xpose.msra.mxu0 0.0
    %1042 = vmatprep.subr.mxu0 0.0
    %1043 = vmatpush1.xpose.msra.mxu0 0.0
    %1044 = vmatprep.subr.mxu0 0.0
    %1045 = vmatpush1.xpose.msra.mxu0 0.0
    %1046 = vmatprep.subr.mxu0 0.0
    %1047 = vmatpush1.xpose.msra.mxu0 0.0
    %1048 = vmatprep.subr.mxu0 0.0
    %1049 = vmatpush1.xpose.msra.mxu0 0.0
    %1050 = vmatprep.subr.mxu0 0.0
    %v1051 = vand.u32 %v644, 4294901760
    %1052 = vmatpush1.xpose.msra.mxu0 %v1051
    %1053 = vmatprep.subr.mxu0 0.0
    %1054 = vmatpush2.xpose.msra.mxu0 0.0
    %1055 = vmatprep.subr.mxu0 0.0
    %1056 = vmatpush2.xpose.msra.mxu0 0.0
    %1057 = vmatprep.subr.mxu0 0.0
    %1058 = vmatpush2.xpose.msra.mxu0 0.0
    %1059 = vmatprep.subr.mxu0 0.0
    %1060 = vmatpush2.xpose.msra.mxu0 0.0
    %1061 = vmatprep.subr.mxu0 0.0
    %1062 = vmatpush2.xpose.msra.mxu0 0.0
    %1063 = vmatprep.subr.mxu0 0.0
    %1064 = vmatpush2.xpose.msra.mxu0 0.0
    %1065 = vmatprep.subr.mxu0 0.0
    %1066 = vmatpush2.xpose.msra.mxu0 0.0
    %1067 = vmatprep.subr.mxu0 0.0
    %1068 = vmatpush2.xpose.msra.mxu0 0.0
    %1069 = vmatprep.subr.mxu0 0.0
    %1070 = vmatpush2.xpose.msra.mxu0 0.0
    %1071 = vmatprep.subr.mxu0 0.0
    %1072 = vmatpush2.xpose.msra.mxu0 0.0
    %1073 = vmatprep.subr.mxu0 0.0
    %1074 = vmatpush2.xpose.msra.mxu0 0.0
    %1075 = vmatprep.subr.mxu0 0.0
    %1076 = vmatpush2.xpose.msra.mxu0 0.0
    %1077 = vmatprep.subr.mxu0 0.0
    %1078 = vmatpush2.xpose.msra.mxu0 0.0
    %1079 = vmatprep.subr.mxu0 0.0
    %1080 = vmatpush2.xpose.msra.mxu0 0.0
    %1081 = vmatprep.subr.mxu0 0.0
    %1082 = vmatpush2.xpose.msra.mxu0 0.0
    %1083 = vmatprep.subr.mxu0 0.0
    %1084 = vmatpush2.xpose.msra.mxu0 0.0
    %1085 = vmatprep.mubr.f32.mxu0 0.0
    %v1086 = vand.u32 %v642, 4294901760
    %1087 = vmatmul.mubr.f32.gmra.mxu0 %v1086
    %v1088 = vpop.f32.mrf.mxu0
    %v1089 = vadd.f32 %v1017, %v1088
    %v1090 = vpop.f32.mrf.mxu0
    %1091 = vdwg.mxu0
    %1093 = vrot.lane.b32.xlu0 %v635, 96
    %v1094 = vpop.permute.xlu0 %1093
    %v1095 = vsel %vm641, %v635, 0
    %v1097 = vsel %vm641, %v1094, 0
    %1099 = vmatprep.subr.mxu0 0.0
    %1100 = vmatpush1.xpose.msra.mxu0 0.0
    %1101 = vmatprep.subr.mxu0 0.0
    %1102 = vmatpush1.xpose.msra.mxu0 0.0
    %1103 = vmatprep.subr.mxu0 0.0
    %1104 = vmatpush1.xpose.msra.mxu0 0.0
    %1105 = vmatprep.subr.mxu0 0.0
    %1106 = vmatpush1.xpose.msra.mxu0 0.0
    %1107 = vmatprep.subr.mxu0 0.0
    %1108 = vmatpush1.xpose.msra.mxu0 0.0
    %1109 = vmatprep.subr.mxu0 0.0
    %1110 = vmatpush1.xpose.msra.mxu0 0.0
    %1111 = vmatprep.subr.mxu0 0.0
    %1112 = vmatpush1.xpose.msra.mxu0 0.0
    %1113 = vmatprep.subr.mxu0 0.0
    %1114 = vmatpush1.xpose.msra.mxu0 0.0
    %1115 = vmatprep.subr.mxu0 0.0
    %1116 = vmatpush1.xpose.msra.mxu0 0.0
    %1117 = vmatprep.subr.mxu0 0.0
    %1118 = vmatpush1.xpose.msra.mxu0 0.0
    %1119 = vmatprep.subr.mxu0 0.0
    %1120 = vmatpush1.xpose.msra.mxu0 0.0
    %1121 = vmatprep.subr.mxu0 0.0
    %1122 = vmatpush1.xpose.msra.mxu0 0.0
    %1123 = vmatprep.subr.mxu0 0.0
    %1124 = vmatpush1.xpose.msra.mxu0 0.0
    %1125 = vmatprep.subr.mxu0 0.0
    %1126 = vmatpush1.xpose.msra.mxu0 0.0
    %1127 = vmatprep.subr.mxu0 0.0
    %1128 = vmatpush1.xpose.msra.mxu0 0.0
    %1129 = vmatprep.subr.mxu0 0.0
    %v1130 = vand.u32 %v1097, 4294901760
    %1131 = vmatpush1.xpose.msra.mxu0 %v1130
    %1132 = vmatprep.subr.mxu0 0.0
    %1133 = vmatpush2.xpose.msra.mxu0 0.0
    %1134 = vmatprep.subr.mxu0 0.0
    %1135 = vmatpush2.xpose.msra.mxu0 0.0
    %1136 = vmatprep.subr.mxu0 0.0
    %1137 = vmatpush2.xpose.msra.mxu0 0.0
    %1138 = vmatprep.subr.mxu0 0.0
    %1139 = vmatpush2.xpose.msra.mxu0 0.0
    %1140 = vmatprep.subr.mxu0 0.0
    %1141 = vmatpush2.xpose.msra.mxu0 0.0
    %1142 = vmatprep.subr.mxu0 0.0
    %1143 = vmatpush2.xpose.msra.mxu0 0.0
    %1144 = vmatprep.subr.mxu0 0.0
    %1145 = vmatpush2.xpose.msra.mxu0 0.0
    %1146 = vmatprep.subr.mxu0 0.0
    %1147 = vmatpush2.xpose.msra.mxu0 0.0
    %1148 = vmatprep.subr.mxu0 0.0
    %1149 = vmatpush2.xpose.msra.mxu0 0.0
    %1150 = vmatprep.subr.mxu0 0.0
    %1151 = vmatpush2.xpose.msra.mxu0 0.0
    %1152 = vmatprep.subr.mxu0 0.0
    %1153 = vmatpush2.xpose.msra.mxu0 0.0
    %1154 = vmatprep.subr.mxu0 0.0
    %1155 = vmatpush2.xpose.msra.mxu0 0.0
    %1156 = vmatprep.subr.mxu0 0.0
    %1157 = vmatpush2.xpose.msra.mxu0 0.0
    %1158 = vmatprep.subr.mxu0 0.0
    %1159 = vmatpush2.xpose.msra.mxu0 0.0
    %1160 = vmatprep.subr.mxu0 0.0
    %1161 = vmatpush2.xpose.msra.mxu0 0.0
    %1162 = vmatprep.subr.mxu0 0.0
    %1163 = vmatpush2.xpose.msra.mxu0 0.0
    %1164 = vmatprep.mubr.f32.mxu0 0.0
    %v1165 = vand.u32 %v1095, 4294901760
    %v1166 = vsub.f32 %v1095, %v1165
    %v1167 = vand.u32 %v1166, 4294901760
    %v1168 = vsub.f32 %v1166, %v1167
    %v1169 = vand.u32 %v1168, 4294901760
    %1170 = vmatmul.mubr.f32.gmra.mxu0 %v1169
    %v1171 = vpop.f32.mrf.mxu0
    %v1172 = vadd.f32 0.0, %v1171
    %v1173 = vpop.f32.mrf.mxu0
    %1174 = vdwg.mxu0
    %1175 = vmatprep.subr.mxu0 0.0
    %1176 = vmatpush1.xpose.msra.mxu0 0.0
    %1177 = vmatprep.subr.mxu0 0.0
    %1178 = vmatpush1.xpose.msra.mxu0 0.0
    %1179 = vmatprep.subr.mxu0 0.0
    %1180 = vmatpush1.xpose.msra.mxu0 0.0
    %1181 = vmatprep.subr.mxu0 0.0
    %1182 = vmatpush1.xpose.msra.mxu0 0.0
    %1183 = vmatprep.subr.mxu0 0.0
    %1184 = vmatpush1.xpose.msra.mxu0 0.0
    %1185 = vmatprep.subr.mxu0 0.0
    %1186 = vmatpush1.xpose.msra.mxu0 0.0
    %1187 = vmatprep.subr.mxu0 0.0
    %1188 = vmatpush1.xpose.msra.mxu0 0.0
    %1189 = vmatprep.subr.mxu0 0.0
    %1190 = vmatpush1.xpose.msra.mxu0 0.0
    %1191 = vmatprep.subr.mxu0 0.0
    %1192 = vmatpush1.xpose.msra.mxu0 0.0
    %1193 = vmatprep.subr.mxu0 0.0
    %1194 = vmatpush1.xpose.msra.mxu0 0.0
    %1195 = vmatprep.subr.mxu0 0.0
    %1196 = vmatpush1.xpose.msra.mxu0 0.0
    %1197 = vmatprep.subr.mxu0 0.0
    %1198 = vmatpush1.xpose.msra.mxu0 0.0
    %1199 = vmatprep.subr.mxu0 0.0
    %1200 = vmatpush1.xpose.msra.mxu0 0.0
    %1201 = vmatprep.subr.mxu0 0.0
    %1202 = vmatpush1.xpose.msra.mxu0 0.0
    %1203 = vmatprep.subr.mxu0 0.0
    %1204 = vmatpush1.xpose.msra.mxu0 0.0
    %1205 = vmatprep.subr.mxu0 0.0
    %v1206 = vand.u32 %v1097, 4294901760
    %v1207 = vsub.f32 %v1097, %v1206
    %v1208 = vand.u32 %v1207, 4294901760
    %v1209 = vsub.f32 %v1207, %v1208
    %v1210 = vand.u32 %v1209, 4294901760
    %1211 = vmatpush1.xpose.msra.mxu0 %v1210
    %1212 = vmatprep.subr.mxu0 0.0
    %1213 = vmatpush2.xpose.msra.mxu0 0.0
    %1214 = vmatprep.subr.mxu0 0.0
    %1215 = vmatpush2.xpose.msra.mxu0 0.0
    %1216 = vmatprep.subr.mxu0 0.0
    %1217 = vmatpush2.xpose.msra.mxu0 0.0
    %1218 = vmatprep.subr.mxu0 0.0
    %1219 = vmatpush2.xpose.msra.mxu0 0.0
    %1220 = vmatprep.subr.mxu0 0.0
    %1221 = vmatpush2.xpose.msra.mxu0 0.0
    %1222 = vmatprep.subr.mxu0 0.0
    %1223 = vmatpush2.xpose.msra.mxu0 0.0
    %1224 = vmatprep.subr.mxu0 0.0
    %1225 = vmatpush2.xpose.msra.mxu0 0.0
    %1226 = vmatprep.subr.mxu0 0.0
    %1227 = vmatpush2.xpose.msra.mxu0 0.0
    %1228 = vmatprep.subr.mxu0 0.0
    %1229 = vmatpush2.xpose.msra.mxu0 0.0
    %1230 = vmatprep.subr.mxu0 0.0
    %1231 = vmatpush2.xpose.msra.mxu0 0.0
    %1232 = vmatprep.subr.mxu0 0.0
    %1233 = vmatpush2.xpose.msra.mxu0 0.0
    %1234 = vmatprep.subr.mxu0 0.0
    %1235 = vmatpush2.xpose.msra.mxu0 0.0
    %1236 = vmatprep.subr.mxu0 0.0
    %1237 = vmatpush2.xpose.msra.mxu0 0.0
    %1238 = vmatprep.subr.mxu0 0.0
    %1239 = vmatpush2.xpose.msra.mxu0 0.0
    %1240 = vmatprep.subr.mxu0 0.0
    %1241 = vmatpush2.xpose.msra.mxu0 0.0
    %1242 = vmatprep.subr.mxu0 0.0
    %1243 = vmatpush2.xpose.msra.mxu0 0.0
    %1244 = vmatprep.mubr.f32.mxu0 0.0
    %v1245 = vand.u32 %v1095, 4294901760
    %1246 = vmatmul.mubr.f32.gmra.mxu0 %v1245
    %v1247 = vpop.f32.mrf.mxu0
    %v1248 = vadd.f32 %v1172, %v1247
    %v1249 = vpop.f32.mrf.mxu0
    %1250 = vdwg.mxu0
    %1251 = vmatprep.subr.mxu0 0.0
    %1252 = vmatpush1.xpose.msra.mxu0 0.0
    %1253 = vmatprep.subr.mxu0 0.0
    %1254 = vmatpush1.xpose.msra.mxu0 0.0
    %1255 = vmatprep.subr.mxu0 0.0
    %1256 = vmatpush1.xpose.msra.mxu0 0.0
    %1257 = vmatprep.subr.mxu0 0.0
    %1258 = vmatpush1.xpose.msra.mxu0 0.0
    %1259 = vmatprep.subr.mxu0 0.0
    %1260 = vmatpush1.xpose.msra.mxu0 0.0
    %1261 = vmatprep.subr.mxu0 0.0
    %1262 = vmatpush1.xpose.msra.mxu0 0.0
    %1263 = vmatprep.subr.mxu0 0.0
    %1264 = vmatpush1.xpose.msra.mxu0 0.0
    %1265 = vmatprep.subr.mxu0 0.0
    %1266 = vmatpush1.xpose.msra.mxu0 0.0
    %1267 = vmatprep.subr.mxu0 0.0
    %1268 = vmatpush1.xpose.msra.mxu0 0.0
    %1269 = vmatprep.subr.mxu0 0.0
    %1270 = vmatpush1.xpose.msra.mxu0 0.0
    %1271 = vmatprep.subr.mxu0 0.0
    %1272 = vmatpush1.xpose.msra.mxu0 0.0
    %1273 = vmatprep.subr.mxu0 0.0
    %1274 = vmatpush1.xpose.msra.mxu0 0.0
    %1275 = vmatprep.subr.mxu0 0.0
    %1276 = vmatpush1.xpose.msra.mxu0 0.0
    %1277 = vmatprep.subr.mxu0 0.0
    %1278 = vmatpush1.xpose.msra.mxu0 0.0
    %1279 = vmatprep.subr.mxu0 0.0
    %1280 = vmatpush1.xpose.msra.mxu0 0.0
    %1281 = vmatprep.subr.mxu0 0.0
    %v1282 = vand.u32 %v1097, 4294901760
    %v1283 = vsub.f32 %v1097, %v1282
    %1284 = vmatpush1.xpose.msra.mxu0 %v1283
    %1285 = vmatprep.subr.mxu0 0.0
    %1286 = vmatpush2.xpose.msra.mxu0 0.0
    %1287 = vmatprep.subr.mxu0 0.0
    %1288 = vmatpush2.xpose.msra.mxu0 0.0
    %1289 = vmatprep.subr.mxu0 0.0
    %1290 = vmatpush2.xpose.msra.mxu0 0.0
    %1291 = vmatprep.subr.mxu0 0.0
    %1292 = vmatpush2.xpose.msra.mxu0 0.0
    %1293 = vmatprep.subr.mxu0 0.0
    %1294 = vmatpush2.xpose.msra.mxu0 0.0
    %1295 = vmatprep.subr.mxu0 0.0
    %1296 = vmatpush2.xpose.msra.mxu0 0.0
    %1297 = vmatprep.subr.mxu0 0.0
    %1298 = vmatpush2.xpose.msra.mxu0 0.0
    %1299 = vmatprep.subr.mxu0 0.0
    %1300 = vmatpush2.xpose.msra.mxu0 0.0
    %1301 = vmatprep.subr.mxu0 0.0
    %1302 = vmatpush2.xpose.msra.mxu0 0.0
    %1303 = vmatprep.subr.mxu0 0.0
    %1304 = vmatpush2.xpose.msra.mxu0 0.0
    %1305 = vmatprep.subr.mxu0 0.0
    %1306 = vmatpush2.xpose.msra.mxu0 0.0
    %1307 = vmatprep.subr.mxu0 0.0
    %1308 = vmatpush2.xpose.msra.mxu0 0.0
    %1309 = vmatprep.subr.mxu0 0.0
    %1310 = vmatpush2.xpose.msra.mxu0 0.0
    %1311 = vmatprep.subr.mxu0 0.0
    %1312 = vmatpush2.xpose.msra.mxu0 0.0
    %1313 = vmatprep.subr.mxu0 0.0
    %1314 = vmatpush2.xpose.msra.mxu0 0.0
    %1315 = vmatprep.subr.mxu0 0.0
    %1316 = vmatpush2.xpose.msra.mxu0 0.0
    %1317 = vmatprep.mubr.f32.mxu0 0.0
    %v1318 = vand.u32 %v1095, 4294901760
    %v1319 = vsub.f32 %v1095, %v1318
    %1320 = vmatmul.mubr.f32.gmra.mxu0 %v1319
    %v1321 = vpop.f32.mrf.mxu0
    %v1322 = vadd.f32 %v1248, %v1321
    %v1323 = vpop.f32.mrf.mxu0
    %1324 = vdwg.mxu0
    %1325 = vmatprep.subr.mxu0 0.0
    %1326 = vmatpush1.xpose.msra.mxu0 0.0
    %1327 = vmatprep.subr.mxu0 0.0
    %1328 = vmatpush1.xpose.msra.mxu0 0.0
    %1329 = vmatprep.subr.mxu0 0.0
    %1330 = vmatpush1.xpose.msra.mxu0 0.0
    %1331 = vmatprep.subr.mxu0 0.0
    %1332 = vmatpush1.xpose.msra.mxu0 0.0
    %1333 = vmatprep.subr.mxu0 0.0
    %1334 = vmatpush1.xpose.msra.mxu0 0.0
    %1335 = vmatprep.subr.mxu0 0.0
    %1336 = vmatpush1.xpose.msra.mxu0 0.0
    %1337 = vmatprep.subr.mxu0 0.0
    %1338 = vmatpush1.xpose.msra.mxu0 0.0
    %1339 = vmatprep.subr.mxu0 0.0
    %1340 = vmatpush1.xpose.msra.mxu0 0.0
    %1341 = vmatprep.subr.mxu0 0.0
    %1342 = vmatpush1.xpose.msra.mxu0 0.0
    %1343 = vmatprep.subr.mxu0 0.0
    %1344 = vmatpush1.xpose.msra.mxu0 0.0
    %1345 = vmatprep.subr.mxu0 0.0
    %1346 = vmatpush1.xpose.msra.mxu0 0.0
    %1347 = vmatprep.subr.mxu0 0.0
    %1348 = vmatpush1.xpose.msra.mxu0 0.0
    %1349 = vmatprep.subr.mxu0 0.0
    %1350 = vmatpush1.xpose.msra.mxu0 0.0
    %1351 = vmatprep.subr.mxu0 0.0
    %1352 = vmatpush1.xpose.msra.mxu0 0.0
    %1353 = vmatprep.subr.mxu0 0.0
    %1354 = vmatpush1.xpose.msra.mxu0 0.0
    %1355 = vmatprep.subr.mxu0 0.0
    %v1356 = vand.u32 %v1097, 4294901760
    %1357 = vmatpush1.xpose.msra.mxu0 %v1356
    %1358 = vmatprep.subr.mxu0 0.0
    %1359 = vmatpush2.xpose.msra.mxu0 0.0
    %1360 = vmatprep.subr.mxu0 0.0
    %1361 = vmatpush2.xpose.msra.mxu0 0.0
    %1362 = vmatprep.subr.mxu0 0.0
    %1363 = vmatpush2.xpose.msra.mxu0 0.0
    %1364 = vmatprep.subr.mxu0 0.0
    %1365 = vmatpush2.xpose.msra.mxu0 0.0
    %1366 = vmatprep.subr.mxu0 0.0
    %1367 = vmatpush2.xpose.msra.mxu0 0.0
    %1368 = vmatprep.subr.mxu0 0.0
    %1369 = vmatpush2.xpose.msra.mxu0 0.0
    %1370 = vmatprep.subr.mxu0 0.0
    %1371 = vmatpush2.xpose.msra.mxu0 0.0
    %1372 = vmatprep.subr.mxu0 0.0
    %1373 = vmatpush2.xpose.msra.mxu0 0.0
    %1374 = vmatprep.subr.mxu0 0.0
    %1375 = vmatpush2.xpose.msra.mxu0 0.0
    %1376 = vmatprep.subr.mxu0 0.0
    %1377 = vmatpush2.xpose.msra.mxu0 0.0
    %1378 = vmatprep.subr.mxu0 0.0
    %1379 = vmatpush2.xpose.msra.mxu0 0.0
    %1380 = vmatprep.subr.mxu0 0.0
    %1381 = vmatpush2.xpose.msra.mxu0 0.0
    %1382 = vmatprep.subr.mxu0 0.0
    %1383 = vmatpush2.xpose.msra.mxu0 0.0
    %1384 = vmatprep.subr.mxu0 0.0
    %1385 = vmatpush2.xpose.msra.mxu0 0.0
    %1386 = vmatprep.subr.mxu0 0.0
    %1387 = vmatpush2.xpose.msra.mxu0 0.0
    %1388 = vmatprep.subr.mxu0 0.0
    %1389 = vmatpush2.xpose.msra.mxu0 0.0
    %1390 = vmatprep.mubr.f32.mxu0 0.0
    %v1391 = vand.u32 %v1095, 4294901760
    %v1392 = vsub.f32 %v1095, %v1391
    %v1393 = vand.u32 %v1392, 4294901760
    %1394 = vmatmul.mubr.f32.gmra.mxu0 %v1393
    %v1395 = vpop.f32.mrf.mxu0
    %v1396 = vadd.f32 %v1322, %v1395
    %v1397 = vpop.f32.mrf.mxu0
    %1398 = vdwg.mxu0
    %1399 = vmatprep.subr.mxu0 0.0
    %1400 = vmatpush1.xpose.msra.mxu0 0.0
    %1401 = vmatprep.subr.mxu0 0.0
    %1402 = vmatpush1.xpose.msra.mxu0 0.0
    %1403 = vmatprep.subr.mxu0 0.0
    %1404 = vmatpush1.xpose.msra.mxu0 0.0
    %1405 = vmatprep.subr.mxu0 0.0
    %1406 = vmatpush1.xpose.msra.mxu0 0.0
    %1407 = vmatprep.subr.mxu0 0.0
    %1408 = vmatpush1.xpose.msra.mxu0 0.0
    %1409 = vmatprep.subr.mxu0 0.0
    %1410 = vmatpush1.xpose.msra.mxu0 0.0
    %1411 = vmatprep.subr.mxu0 0.0
    %1412 = vmatpush1.xpose.msra.mxu0 0.0
    %1413 = vmatprep.subr.mxu0 0.0
    %1414 = vmatpush1.xpose.msra.mxu0 0.0
    %1415 = vmatprep.subr.mxu0 0.0
    %1416 = vmatpush1.xpose.msra.mxu0 0.0
    %1417 = vmatprep.subr.mxu0 0.0
    %1418 = vmatpush1.xpose.msra.mxu0 0.0
    %1419 = vmatprep.subr.mxu0 0.0
    %1420 = vmatpush1.xpose.msra.mxu0 0.0
    %1421 = vmatprep.subr.mxu0 0.0
    %1422 = vmatpush1.xpose.msra.mxu0 0.0
    %1423 = vmatprep.subr.mxu0 0.0
    %1424 = vmatpush1.xpose.msra.mxu0 0.0
    %1425 = vmatprep.subr.mxu0 0.0
    %1426 = vmatpush1.xpose.msra.mxu0 0.0
    %1427 = vmatprep.subr.mxu0 0.0
    %1428 = vmatpush1.xpose.msra.mxu0 0.0
    %1429 = vmatprep.subr.mxu0 0.0
    %v1430 = vand.u32 %v1097, 4294901760
    %v1431 = vsub.f32 %v1097, %v1430
    %v1432 = vand.u32 %v1431, 4294901760
    %1433 = vmatpush1.xpose.msra.mxu0 %v1432
    %1434 = vmatprep.subr.mxu0 0.0
    %1435 = vmatpush2.xpose.msra.mxu0 0.0
    %1436 = vmatprep.subr.mxu0 0.0
    %1437 = vmatpush2.xpose.msra.mxu0 0.0
    %1438 = vmatprep.subr.mxu0 0.0
    %1439 = vmatpush2.xpose.msra.mxu0 0.0
    %1440 = vmatprep.subr.mxu0 0.0
    %1441 = vmatpush2.xpose.msra.mxu0 0.0
    %1442 = vmatprep.subr.mxu0 0.0
    %1443 = vmatpush2.xpose.msra.mxu0 0.0
    %1444 = vmatprep.subr.mxu0 0.0
    %1445 = vmatpush2.xpose.msra.mxu0 0.0
    %1446 = vmatprep.subr.mxu0 0.0
    %1447 = vmatpush2.xpose.msra.mxu0 0.0
    %1448 = vmatprep.subr.mxu0 0.0
    %1449 = vmatpush2.xpose.msra.mxu0 0.0
    %1450 = vmatprep.subr.mxu0 0.0
    %1451 = vmatpush2.xpose.msra.mxu0 0.0
    %1452 = vmatprep.subr.mxu0 0.0
    %1453 = vmatpush2.xpose.msra.mxu0 0.0
    %1454 = vmatprep.subr.mxu0 0.0
    %1455 = vmatpush2.xpose.msra.mxu0 0.0
    %1456 = vmatprep.subr.mxu0 0.0
    %1457 = vmatpush2.xpose.msra.mxu0 0.0
    %1458 = vmatprep.subr.mxu0 0.0
    %1459 = vmatpush2.xpose.msra.mxu0 0.0
    %1460 = vmatprep.subr.mxu0 0.0
    %1461 = vmatpush2.xpose.msra.mxu0 0.0
    %1462 = vmatprep.subr.mxu0 0.0
    %1463 = vmatpush2.xpose.msra.mxu0 0.0
    %1464 = vmatprep.subr.mxu0 0.0
    %1465 = vmatpush2.xpose.msra.mxu0 0.0
    %1466 = vmatprep.mubr.f32.mxu0 0.0
    %v1467 = vand.u32 %v1095, 4294901760
    %1468 = vmatmul.mubr.f32.gmra.mxu0 %v1467
    %v1469 = vpop.f32.mrf.mxu0
    %v1470 = vadd.f32 %v1396, %v1469
    %v1471 = vpop.f32.mrf.mxu0
    %1472 = vdwg.mxu0
    %1473 = vmatprep.subr.mxu0 0.0
    %1474 = vmatpush1.xpose.msra.mxu0 0.0
    %1475 = vmatprep.subr.mxu0 0.0
    %1476 = vmatpush1.xpose.msra.mxu0 0.0
    %1477 = vmatprep.subr.mxu0 0.0
    %1478 = vmatpush1.xpose.msra.mxu0 0.0
    %1479 = vmatprep.subr.mxu0 0.0
    %1480 = vmatpush1.xpose.msra.mxu0 0.0
    %1481 = vmatprep.subr.mxu0 0.0
    %1482 = vmatpush1.xpose.msra.mxu0 0.0
    %1483 = vmatprep.subr.mxu0 0.0
    %1484 = vmatpush1.xpose.msra.mxu0 0.0
    %1485 = vmatprep.subr.mxu0 0.0
    %1486 = vmatpush1.xpose.msra.mxu0 0.0
    %1487 = vmatprep.subr.mxu0 0.0
    %1488 = vmatpush1.xpose.msra.mxu0 0.0
    %1489 = vmatprep.subr.mxu0 0.0
    %1490 = vmatpush1.xpose.msra.mxu0 0.0
    %1491 = vmatprep.subr.mxu0 0.0
    %1492 = vmatpush1.xpose.msra.mxu0 0.0
    %1493 = vmatprep.subr.mxu0 0.0
    %1494 = vmatpush1.xpose.msra.mxu0 0.0
    %1495 = vmatprep.subr.mxu0 0.0
    %1496 = vmatpush1.xpose.msra.mxu0 0.0
    %1497 = vmatprep.subr.mxu0 0.0
    %1498 = vmatpush1.xpose.msra.mxu0 0.0
    %1499 = vmatprep.subr.mxu0 0.0
    %1500 = vmatpush1.xpose.msra.mxu0 0.0
    %1501 = vmatprep.subr.mxu0 0.0
    %1502 = vmatpush1.xpose.msra.mxu0 0.0
    %1503 = vmatprep.subr.mxu0 0.0
    %v1504 = vand.u32 %v1097, 4294901760
    %1505 = vmatpush1.xpose.msra.mxu0 %v1504
    %1506 = vmatprep.subr.mxu0 0.0
    %1507 = vmatpush2.xpose.msra.mxu0 0.0
    %1508 = vmatprep.subr.mxu0 0.0
    %1509 = vmatpush2.xpose.msra.mxu0 0.0
    %1510 = vmatprep.subr.mxu0 0.0
    %1511 = vmatpush2.xpose.msra.mxu0 0.0
    %1512 = vmatprep.subr.mxu0 0.0
    %1513 = vmatpush2.xpose.msra.mxu0 0.0
    %1514 = vmatprep.subr.mxu0 0.0
    %1515 = vmatpush2.xpose.msra.mxu0 0.0
    %1516 = vmatprep.subr.mxu0 0.0
    %1517 = vmatpush2.xpose.msra.mxu0 0.0
    %1518 = vmatprep.subr.mxu0 0.0
    %1519 = vmatpush2.xpose.msra.mxu0 0.0
    %1520 = vmatprep.subr.mxu0 0.0
    %1521 = vmatpush2.xpose.msra.mxu0 0.0
    %1522 = vmatprep.subr.mxu0 0.0
    %1523 = vmatpush2.xpose.msra.mxu0 0.0
    %1524 = vmatprep.subr.mxu0 0.0
    %1525 = vmatpush2.xpose.msra.mxu0 0.0
    %1526 = vmatprep.subr.mxu0 0.0
    %1527 = vmatpush2.xpose.msra.mxu0 0.0
    %1528 = vmatprep.subr.mxu0 0.0
    %1529 = vmatpush2.xpose.msra.mxu0 0.0
    %1530 = vmatprep.subr.mxu0 0.0
    %1531 = vmatpush2.xpose.msra.mxu0 0.0
    %1532 = vmatprep.subr.mxu0 0.0
    %1533 = vmatpush2.xpose.msra.mxu0 0.0
    %1534 = vmatprep.subr.mxu0 0.0
    %1535 = vmatpush2.xpose.msra.mxu0 0.0
    %1536 = vmatprep.subr.mxu0 0.0
    %1537 = vmatpush2.xpose.msra.mxu0 0.0
    %1538 = vmatprep.mubr.f32.mxu0 0.0
    %v1539 = vand.u32 %v1095, 4294901760
    %1540 = vmatmul.mubr.f32.gmra.mxu0 %v1539
    %v1541 = vpop.f32.mrf.mxu0
    %v1542 = vadd.f32 %v1470, %v1541
    %v1543 = vpop.f32.mrf.mxu0
    %1544 = vdwg.mxu0
    %v1545 = vsel %vm641, %v1089, -inf
    %1546 = vmax.xlane.f32.xlu0 %v1545
    %v1547 = vpop.xlane.xlu0 %1546
    %v1548 = vsel %vm641, %v1542, -inf
    %1549 = vmax.xlane.f32.xlu0 %v1548
    %v1550 = vpop.xlane.xlu0 %1549
    %v1551 = vsub.f32 %v1089, %v1547
    %v1552 = vsub.f32 %v1542, %v1550
    %v1553 = vmul.f32 %v1551, 1.442695
    %v1554 = vpow.pop %v1553
    %v1555 = vmul.f32 %v1552, 1.442695
    %v1556 = vpow.pop %v1555
    %v1557 = vsel %vm641, %v1554, 0.0
    %1558 = vadd.xlane.f32.xlu0 %v1557
    %v1559 = vpop.xlane.xlu0 %1558
    %v1560 = vsel %vm641, %v1556, 0.0
    %1561 = vadd.xlane.f32.xlu0 %v1560
    %v1562 = vpop.xlane.xlu0 %1561
    %v1563 = vrcp.pop %v1559
    %v1564 = vrcp.pop %v1562
    %v1565 = vmul.f32 %v1554, %v1563
    %v1566 = vmul.f32 %v1556, %v1564
    %1567 = vrot.lane.b32.xlu0 %v629, 64
    %v1568 = vpop.permute.xlu0 %1567
    %v1571 = vsel %vm641, %v1565, 0
    %1573 = vmatprep.subr.mxu0 0.0
    %1574 = vmatpush1.msra.mxu0 0.0
    %1575 = vmatprep.subr.mxu0 0.0
    %1576 = vmatpush1.msra.mxu0 0.0
    %1577 = vmatprep.subr.mxu0 0.0
    %1578 = vmatpush1.msra.mxu0 0.0
    %1579 = vmatprep.subr.mxu0 0.0
    %1580 = vmatpush1.msra.mxu0 0.0
    %1581 = vmatprep.subr.mxu0 0.0
    %1582 = vmatpush1.msra.mxu0 0.0
    %1583 = vmatprep.subr.mxu0 0.0
    %1584 = vmatpush1.msra.mxu0 0.0
    %1585 = vmatprep.subr.mxu0 0.0
    %1586 = vmatpush1.msra.mxu0 0.0
    %1587 = vmatprep.subr.mxu0 0.0
    %1588 = vmatpush1.msra.mxu0 0.0
    %1589 = vmatprep.subr.mxu0 0.0
    %1590 = vmatpush1.msra.mxu0 0.0
    %1591 = vmatprep.subr.mxu0 0.0
    %1592 = vmatpush1.msra.mxu0 0.0
    %1593 = vmatprep.subr.mxu0 0.0
    %1594 = vmatpush1.msra.mxu0 0.0
    %1595 = vmatprep.subr.mxu0 0.0
    %1596 = vmatpush1.msra.mxu0 0.0
    %1597 = vmatprep.subr.mxu0 0.0
    %1598 = vmatpush1.msra.mxu0 0.0
    %1599 = vmatprep.subr.mxu0 0.0
    %1600 = vmatpush1.msra.mxu0 0.0
    %1601 = vmatprep.subr.mxu0 0.0
    %1602 = vmatpush1.msra.mxu0 0.0
    %1603 = vmatprep.subr.mxu0 0.0
    %v1604 = vand.u32 %v1568, 4294901760
    %1605 = vmatpush1.msra.mxu0 %v1604
    %1606 = vmatprep.subr.mxu0 0.0
    %1607 = vmatpush2.msra.mxu0 0.0
    %1608 = vmatprep.subr.mxu0 0.0
    %1609 = vmatpush2.msra.mxu0 0.0
    %1610 = vmatprep.subr.mxu0 0.0
    %1611 = vmatpush2.msra.mxu0 0.0
    %1612 = vmatprep.subr.mxu0 0.0
    %1613 = vmatpush2.msra.mxu0 0.0
    %1614 = vmatprep.subr.mxu0 0.0
    %1615 = vmatpush2.msra.mxu0 0.0
    %1616 = vmatprep.subr.mxu0 0.0
    %1617 = vmatpush2.msra.mxu0 0.0
    %1618 = vmatprep.subr.mxu0 0.0
    %1619 = vmatpush2.msra.mxu0 0.0
    %1620 = vmatprep.subr.mxu0 0.0
    %1621 = vmatpush2.msra.mxu0 0.0
    %1622 = vmatprep.subr.mxu0 0.0
    %1623 = vmatpush2.msra.mxu0 0.0
    %1624 = vmatprep.subr.mxu0 0.0
    %1625 = vmatpush2.msra.mxu0 0.0
    %1626 = vmatprep.subr.mxu0 0.0
    %1627 = vmatpush2.msra.mxu0 0.0
    %1628 = vmatprep.subr.mxu0 0.0
    %1629 = vmatpush2.msra.mxu0 0.0
    %1630 = vmatprep.subr.mxu0 0.0
    %1631 = vmatpush2.msra.mxu0 0.0
    %1632 = vmatprep.subr.mxu0 0.0
    %1633 = vmatpush2.msra.mxu0 0.0
    %1634 = vmatprep.subr.mxu0 0.0
    %1635 = vmatpush2.msra.mxu0 0.0
    %1636 = vmatprep.subr.mxu0 0.0
    %1637 = vmatpush2.msra.mxu0 0.0
    %1638 = vmatprep.mubr.f32.mxu0 0.0
    %v1639 = vand.u32 %v1571, 4294901760
    %v1640 = vsub.f32 %v1571, %v1639
    %v1641 = vand.u32 %v1640, 4294901760
    %v1642 = vsub.f32 %v1640, %v1641
    %v1643 = vand.u32 %v1642, 4294901760
    %1644 = vmatmul.mubr.f32.gmra.mxu0 %v1643
    %v1645 = vpop.f32.mrf.mxu0
    %v1646 = vadd.f32 0.0, %v1645
    %v1647 = vpop.f32.mrf.mxu0
    %1648 = vdwg.mxu0
    %1649 = vmatprep.subr.mxu0 0.0
    %1650 = vmatpush1.msra.mxu0 0.0
    %1651 = vmatprep.subr.mxu0 0.0
    %1652 = vmatpush1.msra.mxu0 0.0
    %1653 = vmatprep.subr.mxu0 0.0
    %1654 = vmatpush1.msra.mxu0 0.0
    %1655 = vmatprep.subr.mxu0 0.0
    %1656 = vmatpush1.msra.mxu0 0.0
    %1657 = vmatprep.subr.mxu0 0.0
    %1658 = vmatpush1.msra.mxu0 0.0
    %1659 = vmatprep.subr.mxu0 0.0
    %1660 = vmatpush1.msra.mxu0 0.0
    %1661 = vmatprep.subr.mxu0 0.0
    %1662 = vmatpush1.msra.mxu0 0.0
    %1663 = vmatprep.subr.mxu0 0.0
    %1664 = vmatpush1.msra.mxu0 0.0
    %1665 = vmatprep.subr.mxu0 0.0
    %1666 = vmatpush1.msra.mxu0 0.0
    %1667 = vmatprep.subr.mxu0 0.0
    %1668 = vmatpush1.msra.mxu0 0.0
    %1669 = vmatprep.subr.mxu0 0.0
    %1670 = vmatpush1.msra.mxu0 0.0
    %1671 = vmatprep.subr.mxu0 0.0
    %1672 = vmatpush1.msra.mxu0 0.0
    %1673 = vmatprep.subr.mxu0 0.0
    %1674 = vmatpush1.msra.mxu0 0.0
    %1675 = vmatprep.subr.mxu0 0.0
    %1676 = vmatpush1.msra.mxu0 0.0
    %1677 = vmatprep.subr.mxu0 0.0
    %1678 = vmatpush1.msra.mxu0 0.0
    %1679 = vmatprep.subr.mxu0 0.0
    %v1680 = vand.u32 %v1568, 4294901760
    %v1681 = vsub.f32 %v1568, %v1680
    %v1682 = vand.u32 %v1681, 4294901760
    %v1683 = vsub.f32 %v1681, %v1682
    %v1684 = vand.u32 %v1683, 4294901760
    %1685 = vmatpush1.msra.mxu0 %v1684
    %1686 = vmatprep.subr.mxu0 0.0
    %1687 = vmatpush2.msra.mxu0 0.0
    %1688 = vmatprep.subr.mxu0 0.0
    %1689 = vmatpush2.msra.mxu0 0.0
    %1690 = vmatprep.subr.mxu0 0.0
    %1691 = vmatpush2.msra.mxu0 0.0
    %1692 = vmatprep.subr.mxu0 0.0
    %1693 = vmatpush2.msra.mxu0 0.0
    %1694 = vmatprep.subr.mxu0 0.0
    %1695 = vmatpush2.msra.mxu0 0.0
    %1696 = vmatprep.subr.mxu0 0.0
    %1697 = vmatpush2.msra.mxu0 0.0
    %1698 = vmatprep.subr.mxu0 0.0
    %1699 = vmatpush2.msra.mxu0 0.0
    %1700 = vmatprep.subr.mxu0 0.0
    %1701 = vmatpush2.msra.mxu0 0.0
    %1702 = vmatprep.subr.mxu0 0.0
    %1703 = vmatpush2.msra.mxu0 0.0
    %1704 = vmatprep.subr.mxu0 0.0
    %1705 = vmatpush2.msra.mxu0 0.0
    %1706 = vmatprep.subr.mxu0 0.0
    %1707 = vmatpush2.msra.mxu0 0.0
    %1708 = vmatprep.subr.mxu0 0.0
    %1709 = vmatpush2.msra.mxu0 0.0
    %1710 = vmatprep.subr.mxu0 0.0
    %1711 = vmatpush2.msra.mxu0 0.0
    %1712 = vmatprep.subr.mxu0 0.0
    %1713 = vmatpush2.msra.mxu0 0.0
    %1714 = vmatprep.subr.mxu0 0.0
    %1715 = vmatpush2.msra.mxu0 0.0
    %1716 = vmatprep.subr.mxu0 0.0
    %1717 = vmatpush2.msra.mxu0 0.0
    %1718 = vmatprep.mubr.f32.mxu0 0.0
    %v1719 = vand.u32 %v1571, 4294901760
    %1720 = vmatmul.mubr.f32.gmra.mxu0 %v1719
    %v1721 = vpop.f32.mrf.mxu0
    %v1722 = vadd.f32 %v1646, %v1721
    %v1723 = vpop.f32.mrf.mxu0
    %1724 = vdwg.mxu0
    %1725 = vmatprep.subr.mxu0 0.0
    %1726 = vmatpush1.msra.mxu0 0.0
    %1727 = vmatprep.subr.mxu0 0.0
    %1728 = vmatpush1.msra.mxu0 0.0
    %1729 = vmatprep.subr.mxu0 0.0
    %1730 = vmatpush1.msra.mxu0 0.0
    %1731 = vmatprep.subr.mxu0 0.0
    %1732 = vmatpush1.msra.mxu0 0.0
    %1733 = vmatprep.subr.mxu0 0.0
    %1734 = vmatpush1.msra.mxu0 0.0
    %1735 = vmatprep.subr.mxu0 0.0
    %1736 = vmatpush1.msra.mxu0 0.0
    %1737 = vmatprep.subr.mxu0 0.0
    %1738 = vmatpush1.msra.mxu0 0.0
    %1739 = vmatprep.subr.mxu0 0.0
    %1740 = vmatpush1.msra.mxu0 0.0
    %1741 = vmatprep.subr.mxu0 0.0
    %1742 = vmatpush1.msra.mxu0 0.0
    %1743 = vmatprep.subr.mxu0 0.0
    %1744 = vmatpush1.msra.mxu0 0.0
    %1745 = vmatprep.subr.mxu0 0.0
    %1746 = vmatpush1.msra.mxu0 0.0
    %1747 = vmatprep.subr.mxu0 0.0
    %1748 = vmatpush1.msra.mxu0 0.0
    %1749 = vmatprep.subr.mxu0 0.0
    %1750 = vmatpush1.msra.mxu0 0.0
    %1751 = vmatprep.subr.mxu0 0.0
    %1752 = vmatpush1.msra.mxu0 0.0
    %1753 = vmatprep.subr.mxu0 0.0
    %1754 = vmatpush1.msra.mxu0 0.0
    %1755 = vmatprep.subr.mxu0 0.0
    %v1756 = vand.u32 %v1568, 4294901760
    %v1757 = vsub.f32 %v1568, %v1756
    %1758 = vmatpush1.msra.mxu0 %v1757
    %1759 = vmatprep.subr.mxu0 0.0
    %1760 = vmatpush2.msra.mxu0 0.0
    %1761 = vmatprep.subr.mxu0 0.0
    %1762 = vmatpush2.msra.mxu0 0.0
    %1763 = vmatprep.subr.mxu0 0.0
    %1764 = vmatpush2.msra.mxu0 0.0
    %1765 = vmatprep.subr.mxu0 0.0
    %1766 = vmatpush2.msra.mxu0 0.0
    %1767 = vmatprep.subr.mxu0 0.0
    %1768 = vmatpush2.msra.mxu0 0.0
    %1769 = vmatprep.subr.mxu0 0.0
    %1770 = vmatpush2.msra.mxu0 0.0
    %1771 = vmatprep.subr.mxu0 0.0
    %1772 = vmatpush2.msra.mxu0 0.0
    %1773 = vmatprep.subr.mxu0 0.0
    %1774 = vmatpush2.msra.mxu0 0.0
    %1775 = vmatprep.subr.mxu0 0.0
    %1776 = vmatpush2.msra.mxu0 0.0
    %1777 = vmatprep.subr.mxu0 0.0
    %1778 = vmatpush2.msra.mxu0 0.0
    %1779 = vmatprep.subr.mxu0 0.0
    %1780 = vmatpush2.msra.mxu0 0.0
    %1781 = vmatprep.subr.mxu0 0.0
    %1782 = vmatpush2.msra.mxu0 0.0
    %1783 = vmatprep.subr.mxu0 0.0
    %1784 = vmatpush2.msra.mxu0 0.0
    %1785 = vmatprep.subr.mxu0 0.0
    %1786 = vmatpush2.msra.mxu0 0.0
    %1787 = vmatprep.subr.mxu0 0.0
    %1788 = vmatpush2.msra.mxu0 0.0
    %1789 = vmatprep.subr.mxu0 0.0
    %1790 = vmatpush2.msra.mxu0 0.0
    %1791 = vmatprep.mubr.f32.mxu0 0.0
    %v1792 = vand.u32 %v1571, 4294901760
    %v1793 = vsub.f32 %v1571, %v1792
    %1794 = vmatmul.mubr.f32.gmra.mxu0 %v1793
    %v1795 = vpop.f32.mrf.mxu0
    %v1796 = vadd.f32 %v1722, %v1795
    %v1797 = vpop.f32.mrf.mxu0
    %1798 = vdwg.mxu0
    %1799 = vmatprep.subr.mxu0 0.0
    %1800 = vmatpush1.msra.mxu0 0.0
    %1801 = vmatprep.subr.mxu0 0.0
    %1802 = vmatpush1.msra.mxu0 0.0
    %1803 = vmatprep.subr.mxu0 0.0
    %1804 = vmatpush1.msra.mxu0 0.0
    %1805 = vmatprep.subr.mxu0 0.0
    %1806 = vmatpush1.msra.mxu0 0.0
    %1807 = vmatprep.subr.mxu0 0.0
    %1808 = vmatpush1.msra.mxu0 0.0
    %1809 = vmatprep.subr.mxu0 0.0
    %1810 = vmatpush1.msra.mxu0 0.0
    %1811 = vmatprep.subr.mxu0 0.0
    %1812 = vmatpush1.msra.mxu0 0.0
    %1813 = vmatprep.subr.mxu0 0.0
    %1814 = vmatpush1.msra.mxu0 0.0
    %1815 = vmatprep.subr.mxu0 0.0
    %1816 = vmatpush1.msra.mxu0 0.0
    %1817 = vmatprep.subr.mxu0 0.0
    %1818 = vmatpush1.msra.mxu0 0.0
    %1819 = vmatprep.subr.mxu0 0.0
    %1820 = vmatpush1.msra.mxu0 0.0
    %1821 = vmatprep.subr.mxu0 0.0
    %1822 = vmatpush1.msra.mxu0 0.0
    %1823 = vmatprep.subr.mxu0 0.0
    %1824 = vmatpush1.msra.mxu0 0.0
    %1825 = vmatprep.subr.mxu0 0.0
    %1826 = vmatpush1.msra.mxu0 0.0
    %1827 = vmatprep.subr.mxu0 0.0
    %1828 = vmatpush1.msra.mxu0 0.0
    %1829 = vmatprep.subr.mxu0 0.0
    %v1830 = vand.u32 %v1568, 4294901760
    %1831 = vmatpush1.msra.mxu0 %v1830
    %1832 = vmatprep.subr.mxu0 0.0
    %1833 = vmatpush2.msra.mxu0 0.0
    %1834 = vmatprep.subr.mxu0 0.0
    %1835 = vmatpush2.msra.mxu0 0.0
    %1836 = vmatprep.subr.mxu0 0.0
    %1837 = vmatpush2.msra.mxu0 0.0
    %1838 = vmatprep.subr.mxu0 0.0
    %1839 = vmatpush2.msra.mxu0 0.0
    %1840 = vmatprep.subr.mxu0 0.0
    %1841 = vmatpush2.msra.mxu0 0.0
    %1842 = vmatprep.subr.mxu0 0.0
    %1843 = vmatpush2.msra.mxu0 0.0
    %1844 = vmatprep.subr.mxu0 0.0
    %1845 = vmatpush2.msra.mxu0 0.0
    %1846 = vmatprep.subr.mxu0 0.0
    %1847 = vmatpush2.msra.mxu0 0.0
    %1848 = vmatprep.subr.mxu0 0.0
    %1849 = vmatpush2.msra.mxu0 0.0
    %1850 = vmatprep.subr.mxu0 0.0
    %1851 = vmatpush2.msra.mxu0 0.0
    %1852 = vmatprep.subr.mxu0 0.0
    %1853 = vmatpush2.msra.mxu0 0.0
    %1854 = vmatprep.subr.mxu0 0.0
    %1855 = vmatpush2.msra.mxu0 0.0
    %1856 = vmatprep.subr.mxu0 0.0
    %1857 = vmatpush2.msra.mxu0 0.0
    %1858 = vmatprep.subr.mxu0 0.0
    %1859 = vmatpush2.msra.mxu0 0.0
    %1860 = vmatprep.subr.mxu0 0.0
    %1861 = vmatpush2.msra.mxu0 0.0
    %1862 = vmatprep.subr.mxu0 0.0
    %1863 = vmatpush2.msra.mxu0 0.0
    %1864 = vmatprep.mubr.f32.mxu0 0.0
    %v1865 = vand.u32 %v1571, 4294901760
    %v1866 = vsub.f32 %v1571, %v1865
    %v1867 = vand.u32 %v1866, 4294901760
    %1868 = vmatmul.mubr.f32.gmra.mxu0 %v1867
    %v1869 = vpop.f32.mrf.mxu0
    %v1870 = vadd.f32 %v1796, %v1869
    %v1871 = vpop.f32.mrf.mxu0
    %1872 = vdwg.mxu0
    %1873 = vmatprep.subr.mxu0 0.0
    %1874 = vmatpush1.msra.mxu0 0.0
    %1875 = vmatprep.subr.mxu0 0.0
    %1876 = vmatpush1.msra.mxu0 0.0
    %1877 = vmatprep.subr.mxu0 0.0
    %1878 = vmatpush1.msra.mxu0 0.0
    %1879 = vmatprep.subr.mxu0 0.0
    %1880 = vmatpush1.msra.mxu0 0.0
    %1881 = vmatprep.subr.mxu0 0.0
    %1882 = vmatpush1.msra.mxu0 0.0
    %1883 = vmatprep.subr.mxu0 0.0
    %1884 = vmatpush1.msra.mxu0 0.0
    %1885 = vmatprep.subr.mxu0 0.0
    %1886 = vmatpush1.msra.mxu0 0.0
    %1887 = vmatprep.subr.mxu0 0.0
    %1888 = vmatpush1.msra.mxu0 0.0
    %1889 = vmatprep.subr.mxu0 0.0
    %1890 = vmatpush1.msra.mxu0 0.0
    %1891 = vmatprep.subr.mxu0 0.0
    %1892 = vmatpush1.msra.mxu0 0.0
    %1893 = vmatprep.subr.mxu0 0.0
    %1894 = vmatpush1.msra.mxu0 0.0
    %1895 = vmatprep.subr.mxu0 0.0
    %1896 = vmatpush1.msra.mxu0 0.0
    %1897 = vmatprep.subr.mxu0 0.0
    %1898 = vmatpush1.msra.mxu0 0.0
    %1899 = vmatprep.subr.mxu0 0.0
    %1900 = vmatpush1.msra.mxu0 0.0
    %1901 = vmatprep.subr.mxu0 0.0
    %1902 = vmatpush1.msra.mxu0 0.0
    %1903 = vmatprep.subr.mxu0 0.0
    %v1904 = vand.u32 %v1568, 4294901760
    %v1905 = vsub.f32 %v1568, %v1904
    %v1906 = vand.u32 %v1905, 4294901760
    %1907 = vmatpush1.msra.mxu0 %v1906
    %1908 = vmatprep.subr.mxu0 0.0
    %1909 = vmatpush2.msra.mxu0 0.0
    %1910 = vmatprep.subr.mxu0 0.0
    %1911 = vmatpush2.msra.mxu0 0.0
    %1912 = vmatprep.subr.mxu0 0.0
    %1913 = vmatpush2.msra.mxu0 0.0
    %1914 = vmatprep.subr.mxu0 0.0
    %1915 = vmatpush2.msra.mxu0 0.0
    %1916 = vmatprep.subr.mxu0 0.0
    %1917 = vmatpush2.msra.mxu0 0.0
    %1918 = vmatprep.subr.mxu0 0.0
    %1919 = vmatpush2.msra.mxu0 0.0
    %1920 = vmatprep.subr.mxu0 0.0
    %1921 = vmatpush2.msra.mxu0 0.0
    %1922 = vmatprep.subr.mxu0 0.0
    %1923 = vmatpush2.msra.mxu0 0.0
    %1924 = vmatprep.subr.mxu0 0.0
    %1925 = vmatpush2.msra.mxu0 0.0
    %1926 = vmatprep.subr.mxu0 0.0
    %1927 = vmatpush2.msra.mxu0 0.0
    %1928 = vmatprep.subr.mxu0 0.0
    %1929 = vmatpush2.msra.mxu0 0.0
    %1930 = vmatprep.subr.mxu0 0.0
    %1931 = vmatpush2.msra.mxu0 0.0
    %1932 = vmatprep.subr.mxu0 0.0
    %1933 = vmatpush2.msra.mxu0 0.0
    %1934 = vmatprep.subr.mxu0 0.0
    %1935 = vmatpush2.msra.mxu0 0.0
    %1936 = vmatprep.subr.mxu0 0.0
    %1937 = vmatpush2.msra.mxu0 0.0
    %1938 = vmatprep.subr.mxu0 0.0
    %1939 = vmatpush2.msra.mxu0 0.0
    %1940 = vmatprep.mubr.f32.mxu0 0.0
    %v1941 = vand.u32 %v1571, 4294901760
    %1942 = vmatmul.mubr.f32.gmra.mxu0 %v1941
    %v1943 = vpop.f32.mrf.mxu0
    %v1944 = vadd.f32 %v1870, %v1943
    %v1945 = vpop.f32.mrf.mxu0
    %1946 = vdwg.mxu0
    %1947 = vmatprep.subr.mxu0 0.0
    %1948 = vmatpush1.msra.mxu0 0.0
    %1949 = vmatprep.subr.mxu0 0.0
    %1950 = vmatpush1.msra.mxu0 0.0
    %1951 = vmatprep.subr.mxu0 0.0
    %1952 = vmatpush1.msra.mxu0 0.0
    %1953 = vmatprep.subr.mxu0 0.0
    %1954 = vmatpush1.msra.mxu0 0.0
    %1955 = vmatprep.subr.mxu0 0.0
    %1956 = vmatpush1.msra.mxu0 0.0
    %1957 = vmatprep.subr.mxu0 0.0
    %1958 = vmatpush1.msra.mxu0 0.0
    %1959 = vmatprep.subr.mxu0 0.0
    %1960 = vmatpush1.msra.mxu0 0.0
    %1961 = vmatprep.subr.mxu0 0.0
    %1962 = vmatpush1.msra.mxu0 0.0
    %1963 = vmatprep.subr.mxu0 0.0
    %1964 = vmatpush1.msra.mxu0 0.0
    %1965 = vmatprep.subr.mxu0 0.0
    %1966 = vmatpush1.msra.mxu0 0.0
    %1967 = vmatprep.subr.mxu0 0.0
    %1968 = vmatpush1.msra.mxu0 0.0
    %1969 = vmatprep.subr.mxu0 0.0
    %1970 = vmatpush1.msra.mxu0 0.0
    %1971 = vmatprep.subr.mxu0 0.0
    %1972 = vmatpush1.msra.mxu0 0.0
    %1973 = vmatprep.subr.mxu0 0.0
    %1974 = vmatpush1.msra.mxu0 0.0
    %1975 = vmatprep.subr.mxu0 0.0
    %1976 = vmatpush1.msra.mxu0 0.0
    %1977 = vmatprep.subr.mxu0 0.0
    %v1978 = vand.u32 %v1568, 4294901760
    %1979 = vmatpush1.msra.mxu0 %v1978
    %1980 = vmatprep.subr.mxu0 0.0
    %1981 = vmatpush2.msra.mxu0 0.0
    %1982 = vmatprep.subr.mxu0 0.0
    %1983 = vmatpush2.msra.mxu0 0.0
    %1984 = vmatprep.subr.mxu0 0.0
    %1985 = vmatpush2.msra.mxu0 0.0
    %1986 = vmatprep.subr.mxu0 0.0
    %1987 = vmatpush2.msra.mxu0 0.0
    %1988 = vmatprep.subr.mxu0 0.0
    %1989 = vmatpush2.msra.mxu0 0.0
    %1990 = vmatprep.subr.mxu0 0.0
    %1991 = vmatpush2.msra.mxu0 0.0
    %1992 = vmatprep.subr.mxu0 0.0
    %1993 = vmatpush2.msra.mxu0 0.0
    %1994 = vmatprep.subr.mxu0 0.0
    %1995 = vmatpush2.msra.mxu0 0.0
    %1996 = vmatprep.subr.mxu0 0.0
    %1997 = vmatpush2.msra.mxu0 0.0
    %1998 = vmatprep.subr.mxu0 0.0
    %1999 = vmatpush2.msra.mxu0 0.0
    %2000 = vmatprep.subr.mxu0 0.0
    %2001 = vmatpush2.msra.mxu0 0.0
    %2002 = vmatprep.subr.mxu0 0.0
    %2003 = vmatpush2.msra.mxu0 0.0
    %2004 = vmatprep.subr.mxu0 0.0
    %2005 = vmatpush2.msra.mxu0 0.0
    %2006 = vmatprep.subr.mxu0 0.0
    %2007 = vmatpush2.msra.mxu0 0.0
    %2008 = vmatprep.subr.mxu0 0.0
    %2009 = vmatpush2.msra.mxu0 0.0
    %2010 = vmatprep.subr.mxu0 0.0
    %2011 = vmatpush2.msra.mxu0 0.0
    %2012 = vmatprep.mubr.f32.mxu0 0.0
    %v2013 = vand.u32 %v1571, 4294901760
    %2014 = vmatmul.mubr.f32.gmra.mxu0 %v2013
    %v2015 = vpop.f32.mrf.mxu0
    %v2016 = vadd.f32 %v1944, %v2015
    %v2017 = vpop.f32.mrf.mxu0
    %2018 = vdwg.mxu0
    %2019 = vrot.lane.b32.xlu0 %v635, 64
    %v2020 = vpop.permute.xlu0 %2019
    %v2023 = vsel %vm641, %v1566, 0
    %2025 = vmatprep.subr.mxu0 0.0
    %2026 = vmatpush1.msra.mxu0 0.0
    %2027 = vmatprep.subr.mxu0 0.0
    %2028 = vmatpush1.msra.mxu0 0.0
    %2029 = vmatprep.subr.mxu0 0.0
    %2030 = vmatpush1.msra.mxu0 0.0
    %2031 = vmatprep.subr.mxu0 0.0
    %2032 = vmatpush1.msra.mxu0 0.0
    %2033 = vmatprep.subr.mxu0 0.0
    %2034 = vmatpush1.msra.mxu0 0.0
    %2035 = vmatprep.subr.mxu0 0.0
    %2036 = vmatpush1.msra.mxu0 0.0
    %2037 = vmatprep.subr.mxu0 0.0
    %2038 = vmatpush1.msra.mxu0 0.0
    %2039 = vmatprep.subr.mxu0 0.0
    %2040 = vmatpush1.msra.mxu0 0.0
    %2041 = vmatprep.subr.mxu0 0.0
    %2042 = vmatpush1.msra.mxu0 0.0
    %2043 = vmatprep.subr.mxu0 0.0
    %2044 = vmatpush1.msra.mxu0 0.0
    %2045 = vmatprep.subr.mxu0 0.0
    %2046 = vmatpush1.msra.mxu0 0.0
    %2047 = vmatprep.subr.mxu0 0.0
    %2048 = vmatpush1.msra.mxu0 0.0
    %2049 = vmatprep.subr.mxu0 0.0
    %2050 = vmatpush1.msra.mxu0 0.0
    %2051 = vmatprep.subr.mxu0 0.0
    %2052 = vmatpush1.msra.mxu0 0.0
    %2053 = vmatprep.subr.mxu0 0.0
    %2054 = vmatpush1.msra.mxu0 0.0
    %2055 = vmatprep.subr.mxu0 0.0
    %v2056 = vand.u32 %v2020, 4294901760
    %2057 = vmatpush1.msra.mxu0 %v2056
    %2058 = vmatprep.subr.mxu0 0.0
    %2059 = vmatpush2.msra.mxu0 0.0
    %2060 = vmatprep.subr.mxu0 0.0
    %2061 = vmatpush2.msra.mxu0 0.0
    %2062 = vmatprep.subr.mxu0 0.0
    %2063 = vmatpush2.msra.mxu0 0.0
    %2064 = vmatprep.subr.mxu0 0.0
    %2065 = vmatpush2.msra.mxu0 0.0
    %2066 = vmatprep.subr.mxu0 0.0
    %2067 = vmatpush2.msra.mxu0 0.0
    %2068 = vmatprep.subr.mxu0 0.0
    %2069 = vmatpush2.msra.mxu0 0.0
    %2070 = vmatprep.subr.mxu0 0.0
    %2071 = vmatpush2.msra.mxu0 0.0
    %2072 = vmatprep.subr.mxu0 0.0
    %2073 = vmatpush2.msra.mxu0 0.0
    %2074 = vmatprep.subr.mxu0 0.0
    %2075 = vmatpush2.msra.mxu0 0.0
    %2076 = vmatprep.subr.mxu0 0.0
    %2077 = vmatpush2.msra.mxu0 0.0
    %2078 = vmatprep.subr.mxu0 0.0
    %2079 = vmatpush2.msra.mxu0 0.0
    %2080 = vmatprep.subr.mxu0 0.0
    %2081 = vmatpush2.msra.mxu0 0.0
    %2082 = vmatprep.subr.mxu0 0.0
    %2083 = vmatpush2.msra.mxu0 0.0
    %2084 = vmatprep.subr.mxu0 0.0
    %2085 = vmatpush2.msra.mxu0 0.0
    %2086 = vmatprep.subr.mxu0 0.0
    %2087 = vmatpush2.msra.mxu0 0.0
    %2088 = vmatprep.subr.mxu0 0.0
    %2089 = vmatpush2.msra.mxu0 0.0
    %2090 = vmatprep.mubr.f32.mxu0 0.0
    %v2091 = vand.u32 %v2023, 4294901760
    %v2092 = vsub.f32 %v2023, %v2091
    %v2093 = vand.u32 %v2092, 4294901760
    %v2094 = vsub.f32 %v2092, %v2093
    %v2095 = vand.u32 %v2094, 4294901760
    %2096 = vmatmul.mubr.f32.gmra.mxu0 %v2095
    %v2097 = vpop.f32.mrf.mxu0
    %v2098 = vadd.f32 0.0, %v2097
    %v2099 = vpop.f32.mrf.mxu0
    %2100 = vdwg.mxu0
    %2101 = vmatprep.subr.mxu0 0.0
    %2102 = vmatpush1.msra.mxu0 0.0
    %2103 = vmatprep.subr.mxu0 0.0
    %2104 = vmatpush1.msra.mxu0 0.0
    %2105 = vmatprep.subr.mxu0 0.0
    %2106 = vmatpush1.msra.mxu0 0.0
    %2107 = vmatprep.subr.mxu0 0.0
    %2108 = vmatpush1.msra.mxu0 0.0
    %2109 = vmatprep.subr.mxu0 0.0
    %2110 = vmatpush1.msra.mxu0 0.0
    %2111 = vmatprep.subr.mxu0 0.0
    %2112 = vmatpush1.msra.mxu0 0.0
    %2113 = vmatprep.subr.mxu0 0.0
    %2114 = vmatpush1.msra.mxu0 0.0
    %2115 = vmatprep.subr.mxu0 0.0
    %2116 = vmatpush1.msra.mxu0 0.0
    %2117 = vmatprep.subr.mxu0 0.0
    %2118 = vmatpush1.msra.mxu0 0.0
    %2119 = vmatprep.subr.mxu0 0.0
    %2120 = vmatpush1.msra.mxu0 0.0
    %2121 = vmatprep.subr.mxu0 0.0
    %2122 = vmatpush1.msra.mxu0 0.0
    %2123 = vmatprep.subr.mxu0 0.0
    %2124 = vmatpush1.msra.mxu0 0.0
    %2125 = vmatprep.subr.mxu0 0.0
    %2126 = vmatpush1.msra.mxu0 0.0
    %2127 = vmatprep.subr.mxu0 0.0
    %2128 = vmatpush1.msra.mxu0 0.0
    %2129 = vmatprep.subr.mxu0 0.0
    %2130 = vmatpush1.msra.mxu0 0.0
    %2131 = vmatprep.subr.mxu0 0.0
    %v2132 = vand.u32 %v2020, 4294901760
    %v2133 = vsub.f32 %v2020, %v2132
    %v2134 = vand.u32 %v2133, 4294901760
    %v2135 = vsub.f32 %v2133, %v2134
    %v2136 = vand.u32 %v2135, 4294901760
    %2137 = vmatpush1.msra.mxu0 %v2136
    %2138 = vmatprep.subr.mxu0 0.0
    %2139 = vmatpush2.msra.mxu0 0.0
    %2140 = vmatprep.subr.mxu0 0.0
    %2141 = vmatpush2.msra.mxu0 0.0
    %2142 = vmatprep.subr.mxu0 0.0
    %2143 = vmatpush2.msra.mxu0 0.0
    %2144 = vmatprep.subr.mxu0 0.0
    %2145 = vmatpush2.msra.mxu0 0.0
    %2146 = vmatprep.subr.mxu0 0.0
    %2147 = vmatpush2.msra.mxu0 0.0
    %2148 = vmatprep.subr.mxu0 0.0
    %2149 = vmatpush2.msra.mxu0 0.0
    %2150 = vmatprep.subr.mxu0 0.0
    %2151 = vmatpush2.msra.mxu0 0.0
    %2152 = vmatprep.subr.mxu0 0.0
    %2153 = vmatpush2.msra.mxu0 0.0
    %2154 = vmatprep.subr.mxu0 0.0
    %2155 = vmatpush2.msra.mxu0 0.0
    %2156 = vmatprep.subr.mxu0 0.0
    %2157 = vmatpush2.msra.mxu0 0.0
    %2158 = vmatprep.subr.mxu0 0.0
    %2159 = vmatpush2.msra.mxu0 0.0
    %2160 = vmatprep.subr.mxu0 0.0
    %2161 = vmatpush2.msra.mxu0 0.0
    %2162 = vmatprep.subr.mxu0 0.0
    %2163 = vmatpush2.msra.mxu0 0.0
    %2164 = vmatprep.subr.mxu0 0.0
    %2165 = vmatpush2.msra.mxu0 0.0
    %2166 = vmatprep.subr.mxu0 0.0
    %2167 = vmatpush2.msra.mxu0 0.0
    %2168 = vmatprep.subr.mxu0 0.0
    %2169 = vmatpush2.msra.mxu0 0.0
    %2170 = vmatprep.mubr.f32.mxu0 0.0
    %v2171 = vand.u32 %v2023, 4294901760
    %2172 = vmatmul.mubr.f32.gmra.mxu0 %v2171
    %v2173 = vpop.f32.mrf.mxu0
    %v2174 = vadd.f32 %v2098, %v2173
    %v2175 = vpop.f32.mrf.mxu0
    %2176 = vdwg.mxu0
    %2177 = vmatprep.subr.mxu0 0.0
    %2178 = vmatpush1.msra.mxu0 0.0
    %2179 = vmatprep.subr.mxu0 0.0
    %2180 = vmatpush1.msra.mxu0 0.0
    %2181 = vmatprep.subr.mxu0 0.0
    %2182 = vmatpush1.msra.mxu0 0.0
    %2183 = vmatprep.subr.mxu0 0.0
    %2184 = vmatpush1.msra.mxu0 0.0
    %2185 = vmatprep.subr.mxu0 0.0
    %2186 = vmatpush1.msra.mxu0 0.0
    %2187 = vmatprep.subr.mxu0 0.0
    %2188 = vmatpush1.msra.mxu0 0.0
    %2189 = vmatprep.subr.mxu0 0.0
    %2190 = vmatpush1.msra.mxu0 0.0
    %2191 = vmatprep.subr.mxu0 0.0
    %2192 = vmatpush1.msra.mxu0 0.0
    %2193 = vmatprep.subr.mxu0 0.0
    %2194 = vmatpush1.msra.mxu0 0.0
    %2195 = vmatprep.subr.mxu0 0.0
    %2196 = vmatpush1.msra.mxu0 0.0
    %2197 = vmatprep.subr.mxu0 0.0
    %2198 = vmatpush1.msra.mxu0 0.0
    %2199 = vmatprep.subr.mxu0 0.0
    %2200 = vmatpush1.msra.mxu0 0.0
    %2201 = vmatprep.subr.mxu0 0.0
    %2202 = vmatpush1.msra.mxu0 0.0
    %2203 = vmatprep.subr.mxu0 0.0
    %2204 = vmatpush1.msra.mxu0 0.0
    %2205 = vmatprep.subr.mxu0 0.0
    %2206 = vmatpush1.msra.mxu0 0.0
    %2207 = vmatprep.subr.mxu0 0.0
    %v2208 = vand.u32 %v2020, 4294901760
    %v2209 = vsub.f32 %v2020, %v2208
    %2210 = vmatpush1.msra.mxu0 %v2209
    %2211 = vmatprep.subr.mxu0 0.0
    %2212 = vmatpush2.msra.mxu0 0.0
    %2213 = vmatprep.subr.mxu0 0.0
    %2214 = vmatpush2.msra.mxu0 0.0
    %2215 = vmatprep.subr.mxu0 0.0
    %2216 = vmatpush2.msra.mxu0 0.0
    %2217 = vmatprep.subr.mxu0 0.0
    %2218 = vmatpush2.msra.mxu0 0.0
    %2219 = vmatprep.subr.mxu0 0.0
    %2220 = vmatpush2.msra.mxu0 0.0
    %2221 = vmatprep.subr.mxu0 0.0
    %2222 = vmatpush2.msra.mxu0 0.0
    %2223 = vmatprep.subr.mxu0 0.0
    %2224 = vmatpush2.msra.mxu0 0.0
    %2225 = vmatprep.subr.mxu0 0.0
    %2226 = vmatpush2.msra.mxu0 0.0
    %2227 = vmatprep.subr.mxu0 0.0
    %2228 = vmatpush2.msra.mxu0 0.0
    %2229 = vmatprep.subr.mxu0 0.0
    %2230 = vmatpush2.msra.mxu0 0.0
    %2231 = vmatprep.subr.mxu0 0.0
    %2232 = vmatpush2.msra.mxu0 0.0
    %2233 = vmatprep.subr.mxu0 0.0
    %2234 = vmatpush2.msra.mxu0 0.0
    %2235 = vmatprep.subr.mxu0 0.0
    %2236 = vmatpush2.msra.mxu0 0.0
    %2237 = vmatprep.subr.mxu0 0.0
    %2238 = vmatpush2.msra.mxu0 0.0
    %2239 = vmatprep.subr.mxu0 0.0
    %2240 = vmatpush2.msra.mxu0 0.0
    %2241 = vmatprep.subr.mxu0 0.0
    %2242 = vmatpush2.msra.mxu0 0.0
    %2243 = vmatprep.mubr.f32.mxu0 0.0
    %v2244 = vand.u32 %v2023, 4294901760
    %v2245 = vsub.f32 %v2023, %v2244
    %2246 = vmatmul.mubr.f32.gmra.mxu0 %v2245
    %v2247 = vpop.f32.mrf.mxu0
    %v2248 = vadd.f32 %v2174, %v2247
    %v2249 = vpop.f32.mrf.mxu0
    %2250 = vdwg.mxu0
    %2251 = vmatprep.subr.mxu0 0.0
    %2252 = vmatpush1.msra.mxu0 0.0
    %2253 = vmatprep.subr.mxu0 0.0
    %2254 = vmatpush1.msra.mxu0 0.0
    %2255 = vmatprep.subr.mxu0 0.0
    %2256 = vmatpush1.msra.mxu0 0.0
    %2257 = vmatprep.subr.mxu0 0.0
    %2258 = vmatpush1.msra.mxu0 0.0
    %2259 = vmatprep.subr.mxu0 0.0
    %2260 = vmatpush1.msra.mxu0 0.0
    %2261 = vmatprep.subr.mxu0 0.0
    %2262 = vmatpush1.msra.mxu0 0.0
    %2263 = vmatprep.subr.mxu0 0.0
    %2264 = vmatpush1.msra.mxu0 0.0
    %2265 = vmatprep.subr.mxu0 0.0
    %2266 = vmatpush1.msra.mxu0 0.0
    %2267 = vmatprep.subr.mxu0 0.0
    %2268 = vmatpush1.msra.mxu0 0.0
    %2269 = vmatprep.subr.mxu0 0.0
    %2270 = vmatpush1.msra.mxu0 0.0
    %2271 = vmatprep.subr.mxu0 0.0
    %2272 = vmatpush1.msra.mxu0 0.0
    %2273 = vmatprep.subr.mxu0 0.0
    %2274 = vmatpush1.msra.mxu0 0.0
    %2275 = vmatprep.subr.mxu0 0.0
    %2276 = vmatpush1.msra.mxu0 0.0
    %2277 = vmatprep.subr.mxu0 0.0
    %2278 = vmatpush1.msra.mxu0 0.0
    %2279 = vmatprep.subr.mxu0 0.0
    %2280 = vmatpush1.msra.mxu0 0.0
    %2281 = vmatprep.subr.mxu0 0.0
    %v2282 = vand.u32 %v2020, 4294901760
    %2283 = vmatpush1.msra.mxu0 %v2282
    %2284 = vmatprep.subr.mxu0 0.0
    %2285 = vmatpush2.msra.mxu0 0.0
    %2286 = vmatprep.subr.mxu0 0.0
    %2287 = vmatpush2.msra.mxu0 0.0
    %2288 = vmatprep.subr.mxu0 0.0
    %2289 = vmatpush2.msra.mxu0 0.0
    %2290 = vmatprep.subr.mxu0 0.0
    %2291 = vmatpush2.msra.mxu0 0.0
    %2292 = vmatprep.subr.mxu0 0.0
    %2293 = vmatpush2.msra.mxu0 0.0
    %2294 = vmatprep.subr.mxu0 0.0
    %2295 = vmatpush2.msra.mxu0 0.0
    %2296 = vmatprep.subr.mxu0 0.0
    %2297 = vmatpush2.msra.mxu0 0.0
    %2298 = vmatprep.subr.mxu0 0.0
    %2299 = vmatpush2.msra.mxu0 0.0
    %2300 = vmatprep.subr.mxu0 0.0
    %2301 = vmatpush2.msra.mxu0 0.0
    %2302 = vmatprep.subr.mxu0 0.0
    %2303 = vmatpush2.msra.mxu0 0.0
    %2304 = vmatprep.subr.mxu0 0.0
    %2305 = vmatpush2.msra.mxu0 0.0
    %2306 = vmatprep.subr.mxu0 0.0
    %2307 = vmatpush2.msra.mxu0 0.0
    %2308 = vmatprep.subr.mxu0 0.0
    %2309 = vmatpush2.msra.mxu0 0.0
    %2310 = vmatprep.subr.mxu0 0.0
    %2311 = vmatpush2.msra.mxu0 0.0
    %2312 = vmatprep.subr.mxu0 0.0
    %2313 = vmatpush2.msra.mxu0 0.0
    %2314 = vmatprep.subr.mxu0 0.0
    %2315 = vmatpush2.msra.mxu0 0.0
    %2316 = vmatprep.mubr.f32.mxu0 0.0
    %v2317 = vand.u32 %v2023, 4294901760
    %v2318 = vsub.f32 %v2023, %v2317
    %v2319 = vand.u32 %v2318, 4294901760
    %2320 = vmatmul.mubr.f32.gmra.mxu0 %v2319
    %v2321 = vpop.f32.mrf.mxu0
    %v2322 = vadd.f32 %v2248, %v2321
    %v2323 = vpop.f32.mrf.mxu0
    %2324 = vdwg.mxu0
    %2325 = vmatprep.subr.mxu0 0.0
    %2326 = vmatpush1.msra.mxu0 0.0
    %2327 = vmatprep.subr.mxu0 0.0
    %2328 = vmatpush1.msra.mxu0 0.0
    %2329 = vmatprep.subr.mxu0 0.0
    %2330 = vmatpush1.msra.mxu0 0.0
    %2331 = vmatprep.subr.mxu0 0.0
    %2332 = vmatpush1.msra.mxu0 0.0
    %2333 = vmatprep.subr.mxu0 0.0
    %2334 = vmatpush1.msra.mxu0 0.0
    %2335 = vmatprep.subr.mxu0 0.0
    %2336 = vmatpush1.msra.mxu0 0.0
    %2337 = vmatprep.subr.mxu0 0.0
    %2338 = vmatpush1.msra.mxu0 0.0
    %2339 = vmatprep.subr.mxu0 0.0
    %2340 = vmatpush1.msra.mxu0 0.0
    %2341 = vmatprep.subr.mxu0 0.0
    %2342 = vmatpush1.msra.mxu0 0.0
    %2343 = vmatprep.subr.mxu0 0.0
    %2344 = vmatpush1.msra.mxu0 0.0
    %2345 = vmatprep.subr.mxu0 0.0
    %2346 = vmatpush1.msra.mxu0 0.0
    %2347 = vmatprep.subr.mxu0 0.0
    %2348 = vmatpush1.msra.mxu0 0.0
    %2349 = vmatprep.subr.mxu0 0.0
    %2350 = vmatpush1.msra.mxu0 0.0
    %2351 = vmatprep.subr.mxu0 0.0
    %2352 = vmatpush1.msra.mxu0 0.0
    %2353 = vmatprep.subr.mxu0 0.0
    %2354 = vmatpush1.msra.mxu0 0.0
    %2355 = vmatprep.subr.mxu0 0.0
    %v2356 = vand.u32 %v2020, 4294901760
    %v2357 = vsub.f32 %v2020, %v2356
    %v2358 = vand.u32 %v2357, 4294901760
    %2359 = vmatpush1.msra.mxu0 %v2358
    %2360 = vmatprep.subr.mxu0 0.0
    %2361 = vmatpush2.msra.mxu0 0.0
    %2362 = vmatprep.subr.mxu0 0.0
    %2363 = vmatpush2.msra.mxu0 0.0
    %2364 = vmatprep.subr.mxu0 0.0
    %2365 = vmatpush2.msra.mxu0 0.0
    %2366 = vmatprep.subr.mxu0 0.0
    %2367 = vmatpush2.msra.mxu0 0.0
    %2368 = vmatprep.subr.mxu0 0.0
    %2369 = vmatpush2.msra.mxu0 0.0
    %2370 = vmatprep.subr.mxu0 0.0
    %2371 = vmatpush2.msra.mxu0 0.0
    %2372 = vmatprep.subr.mxu0 0.0
    %2373 = vmatpush2.msra.mxu0 0.0
    %2374 = vmatprep.subr.mxu0 0.0
    %2375 = vmatpush2.msra.mxu0 0.0
    %2376 = vmatprep.subr.mxu0 0.0
    %2377 = vmatpush2.msra.mxu0 0.0
    %2378 = vmatprep.subr.mxu0 0.0
    %2379 = vmatpush2.msra.mxu0 0.0
    %2380 = vmatprep.subr.mxu0 0.0
    %2381 = vmatpush2.msra.mxu0 0.0
    %2382 = vmatprep.subr.mxu0 0.0
    %2383 = vmatpush2.msra.mxu0 0.0
    %2384 = vmatprep.subr.mxu0 0.0
    %2385 = vmatpush2.msra.mxu0 0.0
    %2386 = vmatprep.subr.mxu0 0.0
    %2387 = vmatpush2.msra.mxu0 0.0
    %2388 = vmatprep.subr.mxu0 0.0
    %2389 = vmatpush2.msra.mxu0 0.0
    %2390 = vmatprep.subr.mxu0 0.0
    %2391 = vmatpush2.msra.mxu0 0.0
    %2392 = vmatprep.mubr.f32.mxu0 0.0
    %v2393 = vand.u32 %v2023, 4294901760
    %2394 = vmatmul.mubr.f32.gmra.mxu0 %v2393
    %v2395 = vpop.f32.mrf.mxu0
    %v2396 = vadd.f32 %v2322, %v2395
    %v2397 = vpop.f32.mrf.mxu0
    %2398 = vdwg.mxu0
    %2399 = vmatprep.subr.mxu0 0.0
    %2400 = vmatpush1.msra.mxu0 0.0
    %2401 = vmatprep.subr.mxu0 0.0
    %2402 = vmatpush1.msra.mxu0 0.0
    %2403 = vmatprep.subr.mxu0 0.0
    %2404 = vmatpush1.msra.mxu0 0.0
    %2405 = vmatprep.subr.mxu0 0.0
    %2406 = vmatpush1.msra.mxu0 0.0
    %2407 = vmatprep.subr.mxu0 0.0
    %2408 = vmatpush1.msra.mxu0 0.0
    %2409 = vmatprep.subr.mxu0 0.0
    %2410 = vmatpush1.msra.mxu0 0.0
    %2411 = vmatprep.subr.mxu0 0.0
    %2412 = vmatpush1.msra.mxu0 0.0
    %2413 = vmatprep.subr.mxu0 0.0
    %2414 = vmatpush1.msra.mxu0 0.0
    %2415 = vmatprep.subr.mxu0 0.0
    %2416 = vmatpush1.msra.mxu0 0.0
    %2417 = vmatprep.subr.mxu0 0.0
    %2418 = vmatpush1.msra.mxu0 0.0
    %2419 = vmatprep.subr.mxu0 0.0
    %2420 = vmatpush1.msra.mxu0 0.0
    %2421 = vmatprep.subr.mxu0 0.0
    %2422 = vmatpush1.msra.mxu0 0.0
    %2423 = vmatprep.subr.mxu0 0.0
    %2424 = vmatpush1.msra.mxu0 0.0
    %2425 = vmatprep.subr.mxu0 0.0
    %2426 = vmatpush1.msra.mxu0 0.0
    %2427 = vmatprep.subr.mxu0 0.0
    %2428 = vmatpush1.msra.mxu0 0.0
    %2429 = vmatprep.subr.mxu0 0.0
    %v2430 = vand.u32 %v2020, 4294901760
    %2431 = vmatpush1.msra.mxu0 %v2430
    %2432 = vmatprep.subr.mxu0 0.0
    %2433 = vmatpush2.msra.mxu0 0.0
    %2434 = vmatprep.subr.mxu0 0.0
    %2435 = vmatpush2.msra.mxu0 0.0
    %2436 = vmatprep.subr.mxu0 0.0
    %2437 = vmatpush2.msra.mxu0 0.0
    %2438 = vmatprep.subr.mxu0 0.0
    %2439 = vmatpush2.msra.mxu0 0.0
    %2440 = vmatprep.subr.mxu0 0.0
    %2441 = vmatpush2.msra.mxu0 0.0
    %2442 = vmatprep.subr.mxu0 0.0
    %2443 = vmatpush2.msra.mxu0 0.0
    %2444 = vmatprep.subr.mxu0 0.0
    %2445 = vmatpush2.msra.mxu0 0.0
    %2446 = vmatprep.subr.mxu0 0.0
    %2447 = vmatpush2.msra.mxu0 0.0
    %2448 = vmatprep.subr.mxu0 0.0
    %2449 = vmatpush2.msra.mxu0 0.0
    %2450 = vmatprep.subr.mxu0 0.0
    %2451 = vmatpush2.msra.mxu0 0.0
    %2452 = vmatprep.subr.mxu0 0.0
    %2453 = vmatpush2.msra.mxu0 0.0
    %2454 = vmatprep.subr.mxu0 0.0
    %2455 = vmatpush2.msra.mxu0 0.0
    %2456 = vmatprep.subr.mxu0 0.0
    %2457 = vmatpush2.msra.mxu0 0.0
    %2458 = vmatprep.subr.mxu0 0.0
    %2459 = vmatpush2.msra.mxu0 0.0
    %2460 = vmatprep.subr.mxu0 0.0
    %2461 = vmatpush2.msra.mxu0 0.0
    %2462 = vmatprep.subr.mxu0 0.0
    %2463 = vmatpush2.msra.mxu0 0.0
    %2464 = vmatprep.mubr.f32.mxu0 0.0
    %v2465 = vand.u32 %v2023, 4294901760
    %2466 = vmatmul.mubr.f32.gmra.mxu0 %v2465
    %v2467 = vpop.f32.mrf.mxu0
    %v2468 = vadd.f32 %v2396, %v2467
    %v2469 = vpop.f32.mrf.mxu0
    %2470 = vdwg.mxu0
    %2471 = vst.msk [vmem:[#allocation2] sm:$0xff] %vm641, %v2016
    %2472 = vst.msk [vmem:[#allocation2 + $0x8] sm:$0xff] %vm641, %v2468
    %2473 = vrot.lane.b32.xlu0 %v629, 120
    %v2474 = vpop.permute.xlu0 %2473
    %2475 = vrot.lane.b32.xlu0 %v629, 88
    %v2476 = vpop.permute.xlu0 %2475
    %v2477 = vsel %vm641, %v2474, 0
    %v2479 = vsel %vm641, %v2476, 0
    %2481 = vmatprep.subr.mxu0 0.0
    %2482 = vmatpush1.xpose.msra.mxu0 0.0
    %2483 = vmatprep.subr.mxu0 0.0
    %2484 = vmatpush1.xpose.msra.mxu0 0.0
    %2485 = vmatprep.subr.mxu0 0.0
    %2486 = vmatpush1.xpose.msra.mxu0 0.0
    %2487 = vmatprep.subr.mxu0 0.0
    %2488 = vmatpush1.xpose.msra.mxu0 0.0
    %2489 = vmatprep.subr.mxu0 0.0
    %2490 = vmatpush1.xpose.msra.mxu0 0.0
    %2491 = vmatprep.subr.mxu0 0.0
    %2492 = vmatpush1.xpose.msra.mxu0 0.0
    %2493 = vmatprep.subr.mxu0 0.0
    %2494 = vmatpush1.xpose.msra.mxu0 0.0
    %2495 = vmatprep.subr.mxu0 0.0
    %2496 = vmatpush1.xpose.msra.mxu0 0.0
    %2497 = vmatprep.subr.mxu0 0.0
    %2498 = vmatpush1.xpose.msra.mxu0 0.0
    %2499 = vmatprep.subr.mxu0 0.0
    %2500 = vmatpush1.xpose.msra.mxu0 0.0
    %2501 = vmatprep.subr.mxu0 0.0
    %2502 = vmatpush1.xpose.msra.mxu0 0.0
    %2503 = vmatprep.subr.mxu0 0.0
    %2504 = vmatpush1.xpose.msra.mxu0 0.0
    %2505 = vmatprep.subr.mxu0 0.0
    %2506 = vmatpush1.xpose.msra.mxu0 0.0
    %2507 = vmatprep.subr.mxu0 0.0
    %2508 = vmatpush1.xpose.msra.mxu0 0.0
    %2509 = vmatprep.subr.mxu0 0.0
    %2510 = vmatpush1.xpose.msra.mxu0 0.0
    %2511 = vmatprep.subr.mxu0 0.0
    %v2512 = vand.u32 %v2479, 4294901760
    %2513 = vmatpush1.xpose.msra.mxu0 %v2512
    %2514 = vmatprep.subr.mxu0 0.0
    %2515 = vmatpush2.xpose.msra.mxu0 0.0
    %2516 = vmatprep.subr.mxu0 0.0
    %2517 = vmatpush2.xpose.msra.mxu0 0.0
    %2518 = vmatprep.subr.mxu0 0.0
    %2519 = vmatpush2.xpose.msra.mxu0 0.0
    %2520 = vmatprep.subr.mxu0 0.0
    %2521 = vmatpush2.xpose.msra.mxu0 0.0
    %2522 = vmatprep.subr.mxu0 0.0
    %2523 = vmatpush2.xpose.msra.mxu0 0.0
    %2524 = vmatprep.subr.mxu0 0.0
    %2525 = vmatpush2.xpose.msra.mxu0 0.0
    %2526 = vmatprep.subr.mxu0 0.0
    %2527 = vmatpush2.xpose.msra.mxu0 0.0
    %2528 = vmatprep.subr.mxu0 0.0
    %2529 = vmatpush2.xpose.msra.mxu0 0.0
    %2530 = vmatprep.subr.mxu0 0.0
    %2531 = vmatpush2.xpose.msra.mxu0 0.0
    %2532 = vmatprep.subr.mxu0 0.0
    %2533 = vmatpush2.xpose.msra.mxu0 0.0
    %2534 = vmatprep.subr.mxu0 0.0
    %2535 = vmatpush2.xpose.msra.mxu0 0.0
    %2536 = vmatprep.subr.mxu0 0.0
    %2537 = vmatpush2.xpose.msra.mxu0 0.0
    %2538 = vmatprep.subr.mxu0 0.0
    %2539 = vmatpush2.xpose.msra.mxu0 0.0
    %2540 = vmatprep.subr.mxu0 0.0
    %2541 = vmatpush2.xpose.msra.mxu0 0.0
    %2542 = vmatprep.subr.mxu0 0.0
    %2543 = vmatpush2.xpose.msra.mxu0 0.0
    %2544 = vmatprep.subr.mxu0 0.0
    %2545 = vmatpush2.xpose.msra.mxu0 0.0
    %2546 = vmatprep.mubr.f32.mxu0 0.0
    %v2547 = vand.u32 %v2477, 4294901760
    %v2548 = vsub.f32 %v2477, %v2547
    %v2549 = vand.u32 %v2548, 4294901760
    %v2550 = vsub.f32 %v2548, %v2549
    %v2551 = vand.u32 %v2550, 4294901760
    %2552 = vmatmul.mubr.f32.gmra.mxu0 %v2551
    %v2553 = vpop.f32.mrf.mxu0
    %v2554 = vadd.f32 0.0, %v2553
    %v2555 = vpop.f32.mrf.mxu0
    %2556 = vdwg.mxu0
    %2557 = vmatprep.subr.mxu0 0.0
    %2558 = vmatpush1.xpose.msra.mxu0 0.0
    %2559 = vmatprep.subr.mxu0 0.0
    %2560 = vmatpush1.xpose.msra.mxu0 0.0
    %2561 = vmatprep.subr.mxu0 0.0
    %2562 = vmatpush1.xpose.msra.mxu0 0.0
    %2563 = vmatprep.subr.mxu0 0.0
    %2564 = vmatpush1.xpose.msra.mxu0 0.0
    %2565 = vmatprep.subr.mxu0 0.0
    %2566 = vmatpush1.xpose.msra.mxu0 0.0
    %2567 = vmatprep.subr.mxu0 0.0
    %2568 = vmatpush1.xpose.msra.mxu0 0.0
    %2569 = vmatprep.subr.mxu0 0.0
    %2570 = vmatpush1.xpose.msra.mxu0 0.0
    %2571 = vmatprep.subr.mxu0 0.0
    %2572 = vmatpush1.xpose.msra.mxu0 0.0
    %2573 = vmatprep.subr.mxu0 0.0
    %2574 = vmatpush1.xpose.msra.mxu0 0.0
    %2575 = vmatprep.subr.mxu0 0.0
    %2576 = vmatpush1.xpose.msra.mxu0 0.0
    %2577 = vmatprep.subr.mxu0 0.0
    %2578 = vmatpush1.xpose.msra.mxu0 0.0
    %2579 = vmatprep.subr.mxu0 0.0
    %2580 = vmatpush1.xpose.msra.mxu0 0.0
    %2581 = vmatprep.subr.mxu0 0.0
    %2582 = vmatpush1.xpose.msra.mxu0 0.0
    %2583 = vmatprep.subr.mxu0 0.0
    %2584 = vmatpush1.xpose.msra.mxu0 0.0
    %2585 = vmatprep.subr.mxu0 0.0
    %2586 = vmatpush1.xpose.msra.mxu0 0.0
    %2587 = vmatprep.subr.mxu0 0.0
    %v2588 = vand.u32 %v2479, 4294901760
    %v2589 = vsub.f32 %v2479, %v2588
    %v2590 = vand.u32 %v2589, 4294901760
    %v2591 = vsub.f32 %v2589, %v2590
    %v2592 = vand.u32 %v2591, 4294901760
    %2593 = vmatpush1.xpose.msra.mxu0 %v2592
    %2594 = vmatprep.subr.mxu0 0.0
    %2595 = vmatpush2.xpose.msra.mxu0 0.0
    %2596 = vmatprep.subr.mxu0 0.0
    %2597 = vmatpush2.xpose.msra.mxu0 0.0
    %2598 = vmatprep.subr.mxu0 0.0
    %2599 = vmatpush2.xpose.msra.mxu0 0.0
    %2600 = vmatprep.subr.mxu0 0.0
    %2601 = vmatpush2.xpose.msra.mxu0 0.0
    %2602 = vmatprep.subr.mxu0 0.0
    %2603 = vmatpush2.xpose.msra.mxu0 0.0
    %2604 = vmatprep.subr.mxu0 0.0
    %2605 = vmatpush2.xpose.msra.mxu0 0.0
    %2606 = vmatprep.subr.mxu0 0.0
    %2607 = vmatpush2.xpose.msra.mxu0 0.0
    %2608 = vmatprep.subr.mxu0 0.0
    %2609 = vmatpush2.xpose.msra.mxu0 0.0
    %2610 = vmatprep.subr.mxu0 0.0
    %2611 = vmatpush2.xpose.msra.mxu0 0.0
    %2612 = vmatprep.subr.mxu0 0.0
    %2613 = vmatpush2.xpose.msra.mxu0 0.0
    %2614 = vmatprep.subr.mxu0 0.0
    %2615 = vmatpush2.xpose.msra.mxu0 0.0
    %2616 = vmatprep.subr.mxu0 0.0
    %2617 = vmatpush2.xpose.msra.mxu0 0.0
    %2618 = vmatprep.subr.mxu0 0.0
    %2619 = vmatpush2.xpose.msra.mxu0 0.0
    %2620 = vmatprep.subr.mxu0 0.0
    %2621 = vmatpush2.xpose.msra.mxu0 0.0
    %2622 = vmatprep.subr.mxu0 0.0
    %2623 = vmatpush2.xpose.msra.mxu0 0.0
    %2624 = vmatprep.subr.mxu0 0.0
    %2625 = vmatpush2.xpose.msra.mxu0 0.0
    %2626 = vmatprep.mubr.f32.mxu0 0.0
    %v2627 = vand.u32 %v2477, 4294901760
    %2628 = vmatmul.mubr.f32.gmra.mxu0 %v2627
    %v2629 = vpop.f32.mrf.mxu0
    %v2630 = vadd.f32 %v2554, %v2629
    %v2631 = vpop.f32.mrf.mxu0
    %2632 = vdwg.mxu0
    %2633 = vmatprep.subr.mxu0 0.0
    %2634 = vmatpush1.xpose.msra.mxu0 0.0
    %2635 = vmatprep.subr.mxu0 0.0
    %2636 = vmatpush1.xpose.msra.mxu0 0.0
    %2637 = vmatprep.subr.mxu0 0.0
    %2638 = vmatpush1.xpose.msra.mxu0 0.0
    %2639 = vmatprep.subr.mxu0 0.0
    %2640 = vmatpush1.xpose.msra.mxu0 0.0
    %2641 = vmatprep.subr.mxu0 0.0
    %2642 = vmatpush1.xpose.msra.mxu0 0.0
    %2643 = vmatprep.subr.mxu0 0.0
    %2644 = vmatpush1.xpose.msra.mxu0 0.0
    %2645 = vmatprep.subr.mxu0 0.0
    %2646 = vmatpush1.xpose.msra.mxu0 0.0
    %2647 = vmatprep.subr.mxu0 0.0
    %2648 = vmatpush1.xpose.msra.mxu0 0.0
    %2649 = vmatprep.subr.mxu0 0.0
    %2650 = vmatpush1.xpose.msra.mxu0 0.0
    %2651 = vmatprep.subr.mxu0 0.0
    %2652 = vmatpush1.xpose.msra.mxu0 0.0
    %2653 = vmatprep.subr.mxu0 0.0
    %2654 = vmatpush1.xpose.msra.mxu0 0.0
    %2655 = vmatprep.subr.mxu0 0.0
    %2656 = vmatpush1.xpose.msra.mxu0 0.0
    %2657 = vmatprep.subr.mxu0 0.0
    %2658 = vmatpush1.xpose.msra.mxu0 0.0
    %2659 = vmatprep.subr.mxu0 0.0
    %2660 = vmatpush1.xpose.msra.mxu0 0.0
    %2661 = vmatprep.subr.mxu0 0.0
    %2662 = vmatpush1.xpose.msra.mxu0 0.0
    %2663 = vmatprep.subr.mxu0 0.0
    %v2664 = vand.u32 %v2479, 4294901760
    %v2665 = vsub.f32 %v2479, %v2664
    %2666 = vmatpush1.xpose.msra.mxu0 %v2665
    %2667 = vmatprep.subr.mxu0 0.0
    %2668 = vmatpush2.xpose.msra.mxu0 0.0
    %2669 = vmatprep.subr.mxu0 0.0
    %2670 = vmatpush2.xpose.msra.mxu0 0.0
    %2671 = vmatprep.subr.mxu0 0.0
    %2672 = vmatpush2.xpose.msra.mxu0 0.0
    %2673 = vmatprep.subr.mxu0 0.0
    %2674 = vmatpush2.xpose.msra.mxu0 0.0
    %2675 = vmatprep.subr.mxu0 0.0
    %2676 = vmatpush2.xpose.msra.mxu0 0.0
    %2677 = vmatprep.subr.mxu0 0.0
    %2678 = vmatpush2.xpose.msra.mxu0 0.0
    %2679 = vmatprep.subr.mxu0 0.0
    %2680 = vmatpush2.xpose.msra.mxu0 0.0
    %2681 = vmatprep.subr.mxu0 0.0
    %2682 = vmatpush2.xpose.msra.mxu0 0.0
    %2683 = vmatprep.subr.mxu0 0.0
    %2684 = vmatpush2.xpose.msra.mxu0 0.0
    %2685 = vmatprep.subr.mxu0 0.0
    %2686 = vmatpush2.xpose.msra.mxu0 0.0
    %2687 = vmatprep.subr.mxu0 0.0
    %2688 = vmatpush2.xpose.msra.mxu0 0.0
    %2689 = vmatprep.subr.mxu0 0.0
    %2690 = vmatpush2.xpose.msra.mxu0 0.0
    %2691 = vmatprep.subr.mxu0 0.0
    %2692 = vmatpush2.xpose.msra.mxu0 0.0
    %2693 = vmatprep.subr.mxu0 0.0
    %2694 = vmatpush2.xpose.msra.mxu0 0.0
    %2695 = vmatprep.subr.mxu0 0.0
    %2696 = vmatpush2.xpose.msra.mxu0 0.0
    %2697 = vmatprep.subr.mxu0 0.0
    %2698 = vmatpush2.xpose.msra.mxu0 0.0
    %2699 = vmatprep.mubr.f32.mxu0 0.0
    %v2700 = vand.u32 %v2477, 4294901760
    %v2701 = vsub.f32 %v2477, %v2700
    %2702 = vmatmul.mubr.f32.gmra.mxu0 %v2701
    %v2703 = vpop.f32.mrf.mxu0
    %v2704 = vadd.f32 %v2630, %v2703
    %v2705 = vpop.f32.mrf.mxu0
    %2706 = vdwg.mxu0
    %2707 = vmatprep.subr.mxu0 0.0
    %2708 = vmatpush1.xpose.msra.mxu0 0.0
    %2709 = vmatprep.subr.mxu0 0.0
    %2710 = vmatpush1.xpose.msra.mxu0 0.0
    %2711 = vmatprep.subr.mxu0 0.0
    %2712 = vmatpush1.xpose.msra.mxu0 0.0
    %2713 = vmatprep.subr.mxu0 0.0
    %2714 = vmatpush1.xpose.msra.mxu0 0.0
    %2715 = vmatprep.subr.mxu0 0.0
    %2716 = vmatpush1.xpose.msra.mxu0 0.0
    %2717 = vmatprep.subr.mxu0 0.0
    %2718 = vmatpush1.xpose.msra.mxu0 0.0
    %2719 = vmatprep.subr.mxu0 0.0
    %2720 = vmatpush1.xpose.msra.mxu0 0.0
    %2721 = vmatprep.subr.mxu0 0.0
    %2722 = vmatpush1.xpose.msra.mxu0 0.0
    %2723 = vmatprep.subr.mxu0 0.0
    %2724 = vmatpush1.xpose.msra.mxu0 0.0
    %2725 = vmatprep.subr.mxu0 0.0
    %2726 = vmatpush1.xpose.msra.mxu0 0.0
    %2727 = vmatprep.subr.mxu0 0.0
    %2728 = vmatpush1.xpose.msra.mxu0 0.0
    %2729 = vmatprep.subr.mxu0 0.0
    %2730 = vmatpush1.xpose.msra.mxu0 0.0
    %2731 = vmatprep.subr.mxu0 0.0
    %2732 = vmatpush1.xpose.msra.mxu0 0.0
    %2733 = vmatprep.subr.mxu0 0.0
    %2734 = vmatpush1.xpose.msra.mxu0 0.0
    %2735 = vmatprep.subr.mxu0 0.0
    %2736 = vmatpush1.xpose.msra.mxu0 0.0
    %2737 = vmatprep.subr.mxu0 0.0
    %v2738 = vand.u32 %v2479, 4294901760
    %2739 = vmatpush1.xpose.msra.mxu0 %v2738
    %2740 = vmatprep.subr.mxu0 0.0
    %2741 = vmatpush2.xpose.msra.mxu0 0.0
    %2742 = vmatprep.subr.mxu0 0.0
    %2743 = vmatpush2.xpose.msra.mxu0 0.0
    %2744 = vmatprep.subr.mxu0 0.0
    %2745 = vmatpush2.xpose.msra.mxu0 0.0
    %2746 = vmatprep.subr.mxu0 0.0
    %2747 = vmatpush2.xpose.msra.mxu0 0.0
    %2748 = vmatprep.subr.mxu0 0.0
    %2749 = vmatpush2.xpose.msra.mxu0 0.0
    %2750 = vmatprep.subr.mxu0 0.0
    %2751 = vmatpush2.xpose.msra.mxu0 0.0
    %2752 = vmatprep.subr.mxu0 0.0
    %2753 = vmatpush2.xpose.msra.mxu0 0.0
    %2754 = vmatprep.subr.mxu0 0.0
    %2755 = vmatpush2.xpose.msra.mxu0 0.0
    %2756 = vmatprep.subr.mxu0 0.0
    %2757 = vmatpush2.xpose.msra.mxu0 0.0
    %2758 = vmatprep.subr.mxu0 0.0
    %2759 = vmatpush2.xpose.msra.mxu0 0.0
    %2760 = vmatprep.subr.mxu0 0.0
    %2761 = vmatpush2.xpose.msra.mxu0 0.0
    %2762 = vmatprep.subr.mxu0 0.0
    %2763 = vmatpush2.xpose.msra.mxu0 0.0
    %2764 = vmatprep.subr.mxu0 0.0
    %2765 = vmatpush2.xpose.msra.mxu0 0.0
    %2766 = vmatprep.subr.mxu0 0.0
    %2767 = vmatpush2.xpose.msra.mxu0 0.0
    %2768 = vmatprep.subr.mxu0 0.0
    %2769 = vmatpush2.xpose.msra.mxu0 0.0
    %2770 = vmatprep.subr.mxu0 0.0
    %2771 = vmatpush2.xpose.msra.mxu0 0.0
    %2772 = vmatprep.mubr.f32.mxu0 0.0
    %v2773 = vand.u32 %v2477, 4294901760
    %v2774 = vsub.f32 %v2477, %v2773
    %v2775 = vand.u32 %v2774, 4294901760
    %2776 = vmatmul.mubr.f32.gmra.mxu0 %v2775
    %v2777 = vpop.f32.mrf.mxu0
    %v2778 = vadd.f32 %v2704, %v2777
    %v2779 = vpop.f32.mrf.mxu0
    %2780 = vdwg.mxu0
    %2781 = vmatprep.subr.mxu0 0.0
    %2782 = vmatpush1.xpose.msra.mxu0 0.0
    %2783 = vmatprep.subr.mxu0 0.0
    %2784 = vmatpush1.xpose.msra.mxu0 0.0
    %2785 = vmatprep.subr.mxu0 0.0
    %2786 = vmatpush1.xpose.msra.mxu0 0.0
    %2787 = vmatprep.subr.mxu0 0.0
    %2788 = vmatpush1.xpose.msra.mxu0 0.0
    %2789 = vmatprep.subr.mxu0 0.0
    %2790 = vmatpush1.xpose.msra.mxu0 0.0
    %2791 = vmatprep.subr.mxu0 0.0
    %2792 = vmatpush1.xpose.msra.mxu0 0.0
    %2793 = vmatprep.subr.mxu0 0.0
    %2794 = vmatpush1.xpose.msra.mxu0 0.0
    %2795 = vmatprep.subr.mxu0 0.0
    %2796 = vmatpush1.xpose.msra.mxu0 0.0
    %2797 = vmatprep.subr.mxu0 0.0
    %2798 = vmatpush1.xpose.msra.mxu0 0.0
    %2799 = vmatprep.subr.mxu0 0.0
    %2800 = vmatpush1.xpose.msra.mxu0 0.0
    %2801 = vmatprep.subr.mxu0 0.0
    %2802 = vmatpush1.xpose.msra.mxu0 0.0
    %2803 = vmatprep.subr.mxu0 0.0
    %2804 = vmatpush1.xpose.msra.mxu0 0.0
    %2805 = vmatprep.subr.mxu0 0.0
    %2806 = vmatpush1.xpose.msra.mxu0 0.0
    %2807 = vmatprep.subr.mxu0 0.0
    %2808 = vmatpush1.xpose.msra.mxu0 0.0
    %2809 = vmatprep.subr.mxu0 0.0
    %2810 = vmatpush1.xpose.msra.mxu0 0.0
    %2811 = vmatprep.subr.mxu0 0.0
    %v2812 = vand.u32 %v2479, 4294901760
    %v2813 = vsub.f32 %v2479, %v2812
    %v2814 = vand.u32 %v2813, 4294901760
    %2815 = vmatpush1.xpose.msra.mxu0 %v2814
    %2816 = vmatprep.subr.mxu0 0.0
    %2817 = vmatpush2.xpose.msra.mxu0 0.0
    %2818 = vmatprep.subr.mxu0 0.0
    %2819 = vmatpush2.xpose.msra.mxu0 0.0
    %2820 = vmatprep.subr.mxu0 0.0
    %2821 = vmatpush2.xpose.msra.mxu0 0.0
    %2822 = vmatprep.subr.mxu0 0.0
    %2823 = vmatpush2.xpose.msra.mxu0 0.0
    %2824 = vmatprep.subr.mxu0 0.0
    %2825 = vmatpush2.xpose.msra.mxu0 0.0
    %2826 = vmatprep.subr.mxu0 0.0
    %2827 = vmatpush2.xpose.msra.mxu0 0.0
    %2828 = vmatprep.subr.mxu0 0.0
    %2829 = vmatpush2.xpose.msra.mxu0 0.0
    %2830 = vmatprep.subr.mxu0 0.0
    %2831 = vmatpush2.xpose.msra.mxu0 0.0
    %2832 = vmatprep.subr.mxu0 0.0
    %2833 = vmatpush2.xpose.msra.mxu0 0.0
    %2834 = vmatprep.subr.mxu0 0.0
    %2835 = vmatpush2.xpose.msra.mxu0 0.0
    %2836 = vmatprep.subr.mxu0 0.0
    %2837 = vmatpush2.xpose.msra.mxu0 0.0
    %2838 = vmatprep.subr.mxu0 0.0
    %2839 = vmatpush2.xpose.msra.mxu0 0.0
    %2840 = vmatprep.subr.mxu0 0.0
    %2841 = vmatpush2.xpose.msra.mxu0 0.0
    %2842 = vmatprep.subr.mxu0 0.0
    %2843 = vmatpush2.xpose.msra.mxu0 0.0
    %2844 = vmatprep.subr.mxu0 0.0
    %2845 = vmatpush2.xpose.msra.mxu0 0.0
    %2846 = vmatprep.subr.mxu0 0.0
    %2847 = vmatpush2.xpose.msra.mxu0 0.0
    %2848 = vmatprep.mubr.f32.mxu0 0.0
    %v2849 = vand.u32 %v2477, 4294901760
    %2850 = vmatmul.mubr.f32.gmra.mxu0 %v2849
    %v2851 = vpop.f32.mrf.mxu0
    %v2852 = vadd.f32 %v2778, %v2851
    %v2853 = vpop.f32.mrf.mxu0
    %2854 = vdwg.mxu0
    %2855 = vmatprep.subr.mxu0 0.0
    %2856 = vmatpush1.xpose.msra.mxu0 0.0
    %2857 = vmatprep.subr.mxu0 0.0
    %2858 = vmatpush1.xpose.msra.mxu0 0.0
    %2859 = vmatprep.subr.mxu0 0.0
    %2860 = vmatpush1.xpose.msra.mxu0 0.0
    %2861 = vmatprep.subr.mxu0 0.0
    %2862 = vmatpush1.xpose.msra.mxu0 0.0
    %2863 = vmatprep.subr.mxu0 0.0
    %2864 = vmatpush1.xpose.msra.mxu0 0.0
    %2865 = vmatprep.subr.mxu0 0.0
    %2866 = vmatpush1.xpose.msra.mxu0 0.0
    %2867 = vmatprep.subr.mxu0 0.0
    %2868 = vmatpush1.xpose.msra.mxu0 0.0
    %2869 = vmatprep.subr.mxu0 0.0
    %2870 = vmatpush1.xpose.msra.mxu0 0.0
    %2871 = vmatprep.subr.mxu0 0.0
    %2872 = vmatpush1.xpose.msra.mxu0 0.0
    %2873 = vmatprep.subr.mxu0 0.0
    %2874 = vmatpush1.xpose.msra.mxu0 0.0
    %2875 = vmatprep.subr.mxu0 0.0
    %2876 = vmatpush1.xpose.msra.mxu0 0.0
    %2877 = vmatprep.subr.mxu0 0.0
    %2878 = vmatpush1.xpose.msra.mxu0 0.0
    %2879 = vmatprep.subr.mxu0 0.0
    %2880 = vmatpush1.xpose.msra.mxu0 0.0
    %2881 = vmatprep.subr.mxu0 0.0
    %2882 = vmatpush1.xpose.msra.mxu0 0.0
    %2883 = vmatprep.subr.mxu0 0.0
    %2884 = vmatpush1.xpose.msra.mxu0 0.0
    %2885 = vmatprep.subr.mxu0 0.0
    %v2886 = vand.u32 %v2479, 4294901760
    %2887 = vmatpush1.xpose.msra.mxu0 %v2886
    %2888 = vmatprep.subr.mxu0 0.0
    %2889 = vmatpush2.xpose.msra.mxu0 0.0
    %2890 = vmatprep.subr.mxu0 0.0
    %2891 = vmatpush2.xpose.msra.mxu0 0.0
    %2892 = vmatprep.subr.mxu0 0.0
    %2893 = vmatpush2.xpose.msra.mxu0 0.0
    %2894 = vmatprep.subr.mxu0 0.0
    %2895 = vmatpush2.xpose.msra.mxu0 0.0
    %2896 = vmatprep.subr.mxu0 0.0
    %2897 = vmatpush2.xpose.msra.mxu0 0.0
    %2898 = vmatprep.subr.mxu0 0.0
    %2899 = vmatpush2.xpose.msra.mxu0 0.0
    %2900 = vmatprep.subr.mxu0 0.0
    %2901 = vmatpush2.xpose.msra.mxu0 0.0
    %2902 = vmatprep.subr.mxu0 0.0
    %2903 = vmatpush2.xpose.msra.mxu0 0.0
    %2904 = vmatprep.subr.mxu0 0.0
    %2905 = vmatpush2.xpose.msra.mxu0 0.0
    %2906 = vmatprep.subr.mxu0 0.0
    %2907 = vmatpush2.xpose.msra.mxu0 0.0
    %2908 = vmatprep.subr.mxu0 0.0
    %2909 = vmatpush2.xpose.msra.mxu0 0.0
    %2910 = vmatprep.subr.mxu0 0.0
    %2911 = vmatpush2.xpose.msra.mxu0 0.0
    %2912 = vmatprep.subr.mxu0 0.0
    %2913 = vmatpush2.xpose.msra.mxu0 0.0
    %2914 = vmatprep.subr.mxu0 0.0
    %2915 = vmatpush2.xpose.msra.mxu0 0.0
    %2916 = vmatprep.subr.mxu0 0.0
    %2917 = vmatpush2.xpose.msra.mxu0 0.0
    %2918 = vmatprep.subr.mxu0 0.0
    %2919 = vmatpush2.xpose.msra.mxu0 0.0
    %2920 = vmatprep.mubr.f32.mxu0 0.0
    %v2921 = vand.u32 %v2477, 4294901760
    %2922 = vmatmul.mubr.f32.gmra.mxu0 %v2921
    %v2923 = vpop.f32.mrf.mxu0
    %v2924 = vadd.f32 %v2852, %v2923
    %v2925 = vpop.f32.mrf.mxu0
    %2926 = vdwg.mxu0
    %2927 = vrot.lane.b32.xlu0 %v635, 120
    %v2928 = vpop.permute.xlu0 %2927
    %2929 = vrot.lane.b32.xlu0 %v635, 88
    %v2930 = vpop.permute.xlu0 %2929
    %v2931 = vsel %vm641, %v2928, 0
    %v2933 = vsel %vm641, %v2930, 0
    %2935 = vmatprep.subr.mxu0 0.0
    %2936 = vmatpush1.xpose.msra.mxu0 0.0
    %2937 = vmatprep.subr.mxu0 0.0
    %2938 = vmatpush1.xpose.msra.mxu0 0.0
    %2939 = vmatprep.subr.mxu0 0.0
    %2940 = vmatpush1.xpose.msra.mxu0 0.0
    %2941 = vmatprep.subr.mxu0 0.0
    %2942 = vmatpush1.xpose.msra.mxu0 0.0
    %2943 = vmatprep.subr.mxu0 0.0
    %2944 = vmatpush1.xpose.msra.mxu0 0.0
    %2945 = vmatprep.subr.mxu0 0.0
    %2946 = vmatpush1.xpose.msra.mxu0 0.0
    %2947 = vmatprep.subr.mxu0 0.0
    %2948 = vmatpush1.xpose.msra.mxu0 0.0
    %2949 = vmatprep.subr.mxu0 0.0
    %2950 = vmatpush1.xpose.msra.mxu0 0.0
    %2951 = vmatprep.subr.mxu0 0.0
    %2952 = vmatpush1.xpose.msra.mxu0 0.0
    %2953 = vmatprep.subr.mxu0 0.0
    %2954 = vmatpush1.xpose.msra.mxu0 0.0
    %2955 = vmatprep.subr.mxu0 0.0
    %2956 = vmatpush1.xpose.msra.mxu0 0.0
    %2957 = vmatprep.subr.mxu0 0.0
    %2958 = vmatpush1.xpose.msra.mxu0 0.0
    %2959 = vmatprep.subr.mxu0 0.0
    %2960 = vmatpush1.xpose.msra.mxu0 0.0
    %2961 = vmatprep.subr.mxu0 0.0
    %2962 = vmatpush1.xpose.msra.mxu0 0.0
    %2963 = vmatprep.subr.mxu0 0.0
    %2964 = vmatpush1.xpose.msra.mxu0 0.0
    %2965 = vmatprep.subr.mxu0 0.0
    %v2966 = vand.u32 %v2933, 4294901760
    %2967 = vmatpush1.xpose.msra.mxu0 %v2966
    %2968 = vmatprep.subr.mxu0 0.0
    %2969 = vmatpush2.xpose.msra.mxu0 0.0
    %2970 = vmatprep.subr.mxu0 0.0
    %2971 = vmatpush2.xpose.msra.mxu0 0.0
    %2972 = vmatprep.subr.mxu0 0.0
    %2973 = vmatpush2.xpose.msra.mxu0 0.0
    %2974 = vmatprep.subr.mxu0 0.0
    %2975 = vmatpush2.xpose.msra.mxu0 0.0
    %2976 = vmatprep.subr.mxu0 0.0
    %2977 = vmatpush2.xpose.msra.mxu0 0.0
    %2978 = vmatprep.subr.mxu0 0.0
    %2979 = vmatpush2.xpose.msra.mxu0 0.0
    %2980 = vmatprep.subr.mxu0 0.0
    %2981 = vmatpush2.xpose.msra.mxu0 0.0
    %2982 = vmatprep.subr.mxu0 0.0
    %2983 = vmatpush2.xpose.msra.mxu0 0.0
    %2984 = vmatprep.subr.mxu0 0.0
    %2985 = vmatpush2.xpose.msra.mxu0 0.0
    %2986 = vmatprep.subr.mxu0 0.0
    %2987 = vmatpush2.xpose.msra.mxu0 0.0
    %2988 = vmatprep.subr.mxu0 0.0
    %2989 = vmatpush2.xpose.msra.mxu0 0.0
    %2990 = vmatprep.subr.mxu0 0.0
    %2991 = vmatpush2.xpose.msra.mxu0 0.0
    %2992 = vmatprep.subr.mxu0 0.0
    %2993 = vmatpush2.xpose.msra.mxu0 0.0
    %2994 = vmatprep.subr.mxu0 0.0
    %2995 = vmatpush2.xpose.msra.mxu0 0.0
    %2996 = vmatprep.subr.mxu0 0.0
    %2997 = vmatpush2.xpose.msra.mxu0 0.0
    %2998 = vmatprep.subr.mxu0 0.0
    %2999 = vmatpush2.xpose.msra.mxu0 0.0
    %3000 = vmatprep.mubr.f32.mxu0 0.0
    %v3001 = vand.u32 %v2931, 4294901760
    %v3002 = vsub.f32 %v2931, %v3001
    %v3003 = vand.u32 %v3002, 4294901760
    %v3004 = vsub.f32 %v3002, %v3003
    %v3005 = vand.u32 %v3004, 4294901760
    %3006 = vmatmul.mubr.f32.gmra.mxu0 %v3005
    %v3007 = vpop.f32.mrf.mxu0
    %v3008 = vadd.f32 0.0, %v3007
    %v3009 = vpop.f32.mrf.mxu0
    %3010 = vdwg.mxu0
    %3011 = vmatprep.subr.mxu0 0.0
    %3012 = vmatpush1.xpose.msra.mxu0 0.0
    %3013 = vmatprep.subr.mxu0 0.0
    %3014 = vmatpush1.xpose.msra.mxu0 0.0
    %3015 = vmatprep.subr.mxu0 0.0
    %3016 = vmatpush1.xpose.msra.mxu0 0.0
    %3017 = vmatprep.subr.mxu0 0.0
    %3018 = vmatpush1.xpose.msra.mxu0 0.0
    %3019 = vmatprep.subr.mxu0 0.0
    %3020 = vmatpush1.xpose.msra.mxu0 0.0
    %3021 = vmatprep.subr.mxu0 0.0
    %3022 = vmatpush1.xpose.msra.mxu0 0.0
    %3023 = vmatprep.subr.mxu0 0.0
    %3024 = vmatpush1.xpose.msra.mxu0 0.0
    %3025 = vmatprep.subr.mxu0 0.0
    %3026 = vmatpush1.xpose.msra.mxu0 0.0
    %3027 = vmatprep.subr.mxu0 0.0
    %3028 = vmatpush1.xpose.msra.mxu0 0.0
    %3029 = vmatprep.subr.mxu0 0.0
    %3030 = vmatpush1.xpose.msra.mxu0 0.0
    %3031 = vmatprep.subr.mxu0 0.0
    %3032 = vmatpush1.xpose.msra.mxu0 0.0
    %3033 = vmatprep.subr.mxu0 0.0
    %3034 = vmatpush1.xpose.msra.mxu0 0.0
    %3035 = vmatprep.subr.mxu0 0.0
    %3036 = vmatpush1.xpose.msra.mxu0 0.0
    %3037 = vmatprep.subr.mxu0 0.0
    %3038 = vmatpush1.xpose.msra.mxu0 0.0
    %3039 = vmatprep.subr.mxu0 0.0
    %3040 = vmatpush1.xpose.msra.mxu0 0.0
    %3041 = vmatprep.subr.mxu0 0.0
    %v3042 = vand.u32 %v2933, 4294901760
    %v3043 = vsub.f32 %v2933, %v3042
    %v3044 = vand.u32 %v3043, 4294901760
    %v3045 = vsub.f32 %v3043, %v3044
    %v3046 = vand.u32 %v3045, 4294901760
    %3047 = vmatpush1.xpose.msra.mxu0 %v3046
    %3048 = vmatprep.subr.mxu0 0.0
    %3049 = vmatpush2.xpose.msra.mxu0 0.0
    %3050 = vmatprep.subr.mxu0 0.0
    %3051 = vmatpush2.xpose.msra.mxu0 0.0
    %3052 = vmatprep.subr.mxu0 0.0
    %3053 = vmatpush2.xpose.msra.mxu0 0.0
    %3054 = vmatprep.subr.mxu0 0.0
    %3055 = vmatpush2.xpose.msra.mxu0 0.0
    %3056 = vmatprep.subr.mxu0 0.0
    %3057 = vmatpush2.xpose.msra.mxu0 0.0
    %3058 = vmatprep.subr.mxu0 0.0
    %3059 = vmatpush2.xpose.msra.mxu0 0.0
    %3060 = vmatprep.subr.mxu0 0.0
    %3061 = vmatpush2.xpose.msra.mxu0 0.0
    %3062 = vmatprep.subr.mxu0 0.0
    %3063 = vmatpush2.xpose.msra.mxu0 0.0
    %3064 = vmatprep.subr.mxu0 0.0
    %3065 = vmatpush2.xpose.msra.mxu0 0.0
    %3066 = vmatprep.subr.mxu0 0.0
    %3067 = vmatpush2.xpose.msra.mxu0 0.0
    %3068 = vmatprep.subr.mxu0 0.0
    %3069 = vmatpush2.xpose.msra.mxu0 0.0
    %3070 = vmatprep.subr.mxu0 0.0
    %3071 = vmatpush2.xpose.msra.mxu0 0.0
    %3072 = vmatprep.subr.mxu0 0.0
    %3073 = vmatpush2.xpose.msra.mxu0 0.0
    %3074 = vmatprep.subr.mxu0 0.0
    %3075 = vmatpush2.xpose.msra.mxu0 0.0
    %3076 = vmatprep.subr.mxu0 0.0
    %3077 = vmatpush2.xpose.msra.mxu0 0.0
    %3078 = vmatprep.subr.mxu0 0.0
    %3079 = vmatpush2.xpose.msra.mxu0 0.0
    %3080 = vmatprep.mubr.f32.mxu0 0.0
    %v3081 = vand.u32 %v2931, 4294901760
    %3082 = vmatmul.mubr.f32.gmra.mxu0 %v3081
    %v3083 = vpop.f32.mrf.mxu0
    %v3084 = vadd.f32 %v3008, %v3083
    %v3085 = vpop.f32.mrf.mxu0
    %3086 = vdwg.mxu0
    %3087 = vmatprep.subr.mxu0 0.0
    %3088 = vmatpush1.xpose.msra.mxu0 0.0
    %3089 = vmatprep.subr.mxu0 0.0
    %3090 = vmatpush1.xpose.msra.mxu0 0.0
    %3091 = vmatprep.subr.mxu0 0.0
    %3092 = vmatpush1.xpose.msra.mxu0 0.0
    %3093 = vmatprep.subr.mxu0 0.0
    %3094 = vmatpush1.xpose.msra.mxu0 0.0
    %3095 = vmatprep.subr.mxu0 0.0
    %3096 = vmatpush1.xpose.msra.mxu0 0.0
    %3097 = vmatprep.subr.mxu0 0.0
    %3098 = vmatpush1.xpose.msra.mxu0 0.0
    %3099 = vmatprep.subr.mxu0 0.0
    %3100 = vmatpush1.xpose.msra.mxu0 0.0
    %3101 = vmatprep.subr.mxu0 0.0
    %3102 = vmatpush1.xpose.msra.mxu0 0.0
    %3103 = vmatprep.subr.mxu0 0.0
    %3104 = vmatpush1.xpose.msra.mxu0 0.0
    %3105 = vmatprep.subr.mxu0 0.0
    %3106 = vmatpush1.xpose.msra.mxu0 0.0
    %3107 = vmatprep.subr.mxu0 0.0
    %3108 = vmatpush1.xpose.msra.mxu0 0.0
    %3109 = vmatprep.subr.mxu0 0.0
    %3110 = vmatpush1.xpose.msra.mxu0 0.0
    %3111 = vmatprep.subr.mxu0 0.0
    %3112 = vmatpush1.xpose.msra.mxu0 0.0
    %3113 = vmatprep.subr.mxu0 0.0
    %3114 = vmatpush1.xpose.msra.mxu0 0.0
    %3115 = vmatprep.subr.mxu0 0.0
    %3116 = vmatpush1.xpose.msra.mxu0 0.0
    %3117 = vmatprep.subr.mxu0 0.0
    %v3118 = vand.u32 %v2933, 4294901760
    %v3119 = vsub.f32 %v2933, %v3118
    %3120 = vmatpush1.xpose.msra.mxu0 %v3119
    %3121 = vmatprep.subr.mxu0 0.0
    %3122 = vmatpush2.xpose.msra.mxu0 0.0
    %3123 = vmatprep.subr.mxu0 0.0
    %3124 = vmatpush2.xpose.msra.mxu0 0.0
    %3125 = vmatprep.subr.mxu0 0.0
    %3126 = vmatpush2.xpose.msra.mxu0 0.0
    %3127 = vmatprep.subr.mxu0 0.0
    %3128 = vmatpush2.xpose.msra.mxu0 0.0
    %3129 = vmatprep.subr.mxu0 0.0
    %3130 = vmatpush2.xpose.msra.mxu0 0.0
    %3131 = vmatprep.subr.mxu0 0.0
    %3132 = vmatpush2.xpose.msra.mxu0 0.0
    %3133 = vmatprep.subr.mxu0 0.0
    %3134 = vmatpush2.xpose.msra.mxu0 0.0
    %3135 = vmatprep.subr.mxu0 0.0
    %3136 = vmatpush2.xpose.msra.mxu0 0.0
    %3137 = vmatprep.subr.mxu0 0.0
    %3138 = vmatpush2.xpose.msra.mxu0 0.0
    %3139 = vmatprep.subr.mxu0 0.0
    %3140 = vmatpush2.xpose.msra.mxu0 0.0
    %3141 = vmatprep.subr.mxu0 0.0
    %3142 = vmatpush2.xpose.msra.mxu0 0.0
    %3143 = vmatprep.subr.mxu0 0.0
    %3144 = vmatpush2.xpose.msra.mxu0 0.0
    %3145 = vmatprep.subr.mxu0 0.0
    %3146 = vmatpush2.xpose.msra.mxu0 0.0
    %3147 = vmatprep.subr.mxu0 0.0
    %3148 = vmatpush2.xpose.msra.mxu0 0.0
    %3149 = vmatprep.subr.mxu0 0.0
    %3150 = vmatpush2.xpose.msra.mxu0 0.0
    %3151 = vmatprep.subr.mxu0 0.0
    %3152 = vmatpush2.xpose.msra.mxu0 0.0
    %3153 = vmatprep.mubr.f32.mxu0 0.0
    %v3154 = vand.u32 %v2931, 4294901760
    %v3155 = vsub.f32 %v2931, %v3154
    %3156 = vmatmul.mubr.f32.gmra.mxu0 %v3155
    %v3157 = vpop.f32.mrf.mxu0
    %v3158 = vadd.f32 %v3084, %v3157
    %v3159 = vpop.f32.mrf.mxu0
    %3160 = vdwg.mxu0
    %3161 = vmatprep.subr.mxu0 0.0
    %3162 = vmatpush1.xpose.msra.mxu0 0.0
    %3163 = vmatprep.subr.mxu0 0.0
    %3164 = vmatpush1.xpose.msra.mxu0 0.0
    %3165 = vmatprep.subr.mxu0 0.0
    %3166 = vmatpush1.xpose.msra.mxu0 0.0
    %3167 = vmatprep.subr.mxu0 0.0
    %3168 = vmatpush1.xpose.msra.mxu0 0.0
    %3169 = vmatprep.subr.mxu0 0.0
    %3170 = vmatpush1.xpose.msra.mxu0 0.0
    %3171 = vmatprep.subr.mxu0 0.0
    %3172 = vmatpush1.xpose.msra.mxu0 0.0
    %3173 = vmatprep.subr.mxu0 0.0
    %3174 = vmatpush1.xpose.msra.mxu0 0.0
    %3175 = vmatprep.subr.mxu0 0.0
    %3176 = vmatpush1.xpose.msra.mxu0 0.0
    %3177 = vmatprep.subr.mxu0 0.0
    %3178 = vmatpush1.xpose.msra.mxu0 0.0
    %3179 = vmatprep.subr.mxu0 0.0
    %3180 = vmatpush1.xpose.msra.mxu0 0.0
    %3181 = vmatprep.subr.mxu0 0.0
    %3182 = vmatpush1.xpose.msra.mxu0 0.0
    %3183 = vmatprep.subr.mxu0 0.0
    %3184 = vmatpush1.xpose.msra.mxu0 0.0
    %3185 = vmatprep.subr.mxu0 0.0
    %3186 = vmatpush1.xpose.msra.mxu0 0.0
    %3187 = vmatprep.subr.mxu0 0.0
    %3188 = vmatpush1.xpose.msra.mxu0 0.0
    %3189 = vmatprep.subr.mxu0 0.0
    %3190 = vmatpush1.xpose.msra.mxu0 0.0
    %3191 = vmatprep.subr.mxu0 0.0
    %v3192 = vand.u32 %v2933, 4294901760
    %3193 = vmatpush1.xpose.msra.mxu0 %v3192
    %3194 = vmatprep.subr.mxu0 0.0
    %3195 = vmatpush2.xpose.msra.mxu0 0.0
    %3196 = vmatprep.subr.mxu0 0.0
    %3197 = vmatpush2.xpose.msra.mxu0 0.0
    %3198 = vmatprep.subr.mxu0 0.0
    %3199 = vmatpush2.xpose.msra.mxu0 0.0
    %3200 = vmatprep.subr.mxu0 0.0
    %3201 = vmatpush2.xpose.msra.mxu0 0.0
    %3202 = vmatprep.subr.mxu0 0.0
    %3203 = vmatpush2.xpose.msra.mxu0 0.0
    %3204 = vmatprep.subr.mxu0 0.0
    %3205 = vmatpush2.xpose.msra.mxu0 0.0
    %3206 = vmatprep.subr.mxu0 0.0
    %3207 = vmatpush2.xpose.msra.mxu0 0.0
    %3208 = vmatprep.subr.mxu0 0.0
    %3209 = vmatpush2.xpose.msra.mxu0 0.0
    %3210 = vmatprep.subr.mxu0 0.0
    %3211 = vmatpush2.xpose.msra.mxu0 0.0
    %3212 = vmatprep.subr.mxu0 0.0
    %3213 = vmatpush2.xpose.msra.mxu0 0.0
    %3214 = vmatprep.subr.mxu0 0.0
    %3215 = vmatpush2.xpose.msra.mxu0 0.0
    %3216 = vmatprep.subr.mxu0 0.0
    %3217 = vmatpush2.xpose.msra.mxu0 0.0
    %3218 = vmatprep.subr.mxu0 0.0
    %3219 = vmatpush2.xpose.msra.mxu0 0.0
    %3220 = vmatprep.subr.mxu0 0.0
    %3221 = vmatpush2.xpose.msra.mxu0 0.0
    %3222 = vmatprep.subr.mxu0 0.0
    %3223 = vmatpush2.xpose.msra.mxu0 0.0
    %3224 = vmatprep.subr.mxu0 0.0
    %3225 = vmatpush2.xpose.msra.mxu0 0.0
    %3226 = vmatprep.mubr.f32.mxu0 0.0
    %v3227 = vand.u32 %v2931, 4294901760
    %v3228 = vsub.f32 %v2931, %v3227
    %v3229 = vand.u32 %v3228, 4294901760
    %3230 = vmatmul.mubr.f32.gmra.mxu0 %v3229
    %v3231 = vpop.f32.mrf.mxu0
    %v3232 = vadd.f32 %v3158, %v3231
    %v3233 = vpop.f32.mrf.mxu0
    %3234 = vdwg.mxu0
    %3235 = vmatprep.subr.mxu0 0.0
    %3236 = vmatpush1.xpose.msra.mxu0 0.0
    %3237 = vmatprep.subr.mxu0 0.0
    %3238 = vmatpush1.xpose.msra.mxu0 0.0
    %3239 = vmatprep.subr.mxu0 0.0
    %3240 = vmatpush1.xpose.msra.mxu0 0.0
    %3241 = vmatprep.subr.mxu0 0.0
    %3242 = vmatpush1.xpose.msra.mxu0 0.0
    %3243 = vmatprep.subr.mxu0 0.0
    %3244 = vmatpush1.xpose.msra.mxu0 0.0
    %3245 = vmatprep.subr.mxu0 0.0
    %3246 = vmatpush1.xpose.msra.mxu0 0.0
    %3247 = vmatprep.subr.mxu0 0.0
    %3248 = vmatpush1.xpose.msra.mxu0 0.0
    %3249 = vmatprep.subr.mxu0 0.0
    %3250 = vmatpush1.xpose.msra.mxu0 0.0
    %3251 = vmatprep.subr.mxu0 0.0
    %3252 = vmatpush1.xpose.msra.mxu0 0.0
    %3253 = vmatprep.subr.mxu0 0.0
    %3254 = vmatpush1.xpose.msra.mxu0 0.0
    %3255 = vmatprep.subr.mxu0 0.0
    %3256 = vmatpush1.xpose.msra.mxu0 0.0
    %3257 = vmatprep.subr.mxu0 0.0
    %3258 = vmatpush1.xpose.msra.mxu0 0.0
    %3259 = vmatprep.subr.mxu0 0.0
    %3260 = vmatpush1.xpose.msra.mxu0 0.0
    %3261 = vmatprep.subr.mxu0 0.0
    %3262 = vmatpush1.xpose.msra.mxu0 0.0
    %3263 = vmatprep.subr.mxu0 0.0
    %3264 = vmatpush1.xpose.msra.mxu0 0.0
    %3265 = vmatprep.subr.mxu0 0.0
    %v3266 = vand.u32 %v2933, 4294901760
    %v3267 = vsub.f32 %v2933, %v3266
    %v3268 = vand.u32 %v3267, 4294901760
    %3269 = vmatpush1.xpose.msra.mxu0 %v3268
    %3270 = vmatprep.subr.mxu0 0.0
    %3271 = vmatpush2.xpose.msra.mxu0 0.0
    %3272 = vmatprep.subr.mxu0 0.0
    %3273 = vmatpush2.xpose.msra.mxu0 0.0
    %3274 = vmatprep.subr.mxu0 0.0
    %3275 = vmatpush2.xpose.msra.mxu0 0.0
    %3276 = vmatprep.subr.mxu0 0.0
    %3277 = vmatpush2.xpose.msra.mxu0 0.0
    %3278 = vmatprep.subr.mxu0 0.0
    %3279 = vmatpush2.xpose.msra.mxu0 0.0
    %3280 = vmatprep.subr.mxu0 0.0
    %3281 = vmatpush2.xpose.msra.mxu0 0.0
    %3282 = vmatprep.subr.mxu0 0.0
    %3283 = vmatpush2.xpose.msra.mxu0 0.0
    %3284 = vmatprep.subr.mxu0 0.0
    %3285 = vmatpush2.xpose.msra.mxu0 0.0
    %3286 = vmatprep.subr.mxu0 0.0
    %3287 = vmatpush2.xpose.msra.mxu0 0.0
    %3288 = vmatprep.subr.mxu0 0.0
    %3289 = vmatpush2.xpose.msra.mxu0 0.0
    %3290 = vmatprep.subr.mxu0 0.0
    %3291 = vmatpush2.xpose.msra.mxu0 0.0
    %3292 = vmatprep.subr.mxu0 0.0
    %3293 = vmatpush2.xpose.msra.mxu0 0.0
    %3294 = vmatprep.subr.mxu0 0.0
    %3295 = vmatpush2.xpose.msra.mxu0 0.0
    %3296 = vmatprep.subr.mxu0 0.0
    %3297 = vmatpush2.xpose.msra.mxu0 0.0
    %3298 = vmatprep.subr.mxu0 0.0
    %3299 = vmatpush2.xpose.msra.mxu0 0.0
    %3300 = vmatprep.subr.mxu0 0.0
    %3301 = vmatpush2.xpose.msra.mxu0 0.0
    %3302 = vmatprep.mubr.f32.mxu0 0.0
    %v3303 = vand.u32 %v2931, 4294901760
    %3304 = vmatmul.mubr.f32.gmra.mxu0 %v3303
    %v3305 = vpop.f32.mrf.mxu0
    %v3306 = vadd.f32 %v3232, %v3305
    %v3307 = vpop.f32.mrf.mxu0
    %3308 = vdwg.mxu0
    %3309 = vmatprep.subr.mxu0 0.0
    %3310 = vmatpush1.xpose.msra.mxu0 0.0
    %3311 = vmatprep.subr.mxu0 0.0
    %3312 = vmatpush1.xpose.msra.mxu0 0.0
    %3313 = vmatprep.subr.mxu0 0.0
    %3314 = vmatpush1.xpose.msra.mxu0 0.0
    %3315 = vmatprep.subr.mxu0 0.0
    %3316 = vmatpush1.xpose.msra.mxu0 0.0
    %3317 = vmatprep.subr.mxu0 0.0
    %3318 = vmatpush1.xpose.msra.mxu0 0.0
    %3319 = vmatprep.subr.mxu0 0.0
    %3320 = vmatpush1.xpose.msra.mxu0 0.0
    %3321 = vmatprep.subr.mxu0 0.0
    %3322 = vmatpush1.xpose.msra.mxu0 0.0
    %3323 = vmatprep.subr.mxu0 0.0
    %3324 = vmatpush1.xpose.msra.mxu0 0.0
    %3325 = vmatprep.subr.mxu0 0.0
    %3326 = vmatpush1.xpose.msra.mxu0 0.0
    %3327 = vmatprep.subr.mxu0 0.0
    %3328 = vmatpush1.xpose.msra.mxu0 0.0
    %3329 = vmatprep.subr.mxu0 0.0
    %3330 = vmatpush1.xpose.msra.mxu0 0.0
    %3331 = vmatprep.subr.mxu0 0.0
    %3332 = vmatpush1.xpose.msra.mxu0 0.0
    %3333 = vmatprep.subr.mxu0 0.0
    %3334 = vmatpush1.xpose.msra.mxu0 0.0
    %3335 = vmatprep.subr.mxu0 0.0
    %3336 = vmatpush1.xpose.msra.mxu0 0.0
    %3337 = vmatprep.subr.mxu0 0.0
    %3338 = vmatpush1.xpose.msra.mxu0 0.0
    %3339 = vmatprep.subr.mxu0 0.0
    %v3340 = vand.u32 %v2933, 4294901760
    %3341 = vmatpush1.xpose.msra.mxu0 %v3340
    %3342 = vmatprep.subr.mxu0 0.0
    %3343 = vmatpush2.xpose.msra.mxu0 0.0
    %3344 = vmatprep.subr.mxu0 0.0
    %3345 = vmatpush2.xpose.msra.mxu0 0.0
    %3346 = vmatprep.subr.mxu0 0.0
    %3347 = vmatpush2.xpose.msra.mxu0 0.0
    %3348 = vmatprep.subr.mxu0 0.0
    %3349 = vmatpush2.xpose.msra.mxu0 0.0
    %3350 = vmatprep.subr.mxu0 0.0
    %3351 = vmatpush2.xpose.msra.mxu0 0.0
    %3352 = vmatprep.subr.mxu0 0.0
    %3353 = vmatpush2.xpose.msra.mxu0 0.0
    %3354 = vmatprep.subr.mxu0 0.0
    %3355 = vmatpush2.xpose.msra.mxu0 0.0
    %3356 = vmatprep.subr.mxu0 0.0
    %3357 = vmatpush2.xpose.msra.mxu0 0.0
    %3358 = vmatprep.subr.mxu0 0.0
    %3359 = vmatpush2.xpose.msra.mxu0 0.0
    %3360 = vmatprep.subr.mxu0 0.0
    %3361 = vmatpush2.xpose.msra.mxu0 0.0
    %3362 = vmatprep.subr.mxu0 0.0
    %3363 = vmatpush2.xpose.msra.mxu0 0.0
    %3364 = vmatprep.subr.mxu0 0.0
    %3365 = vmatpush2.xpose.msra.mxu0 0.0
    %3366 = vmatprep.subr.mxu0 0.0
    %3367 = vmatpush2.xpose.msra.mxu0 0.0
    %3368 = vmatprep.subr.mxu0 0.0
    %3369 = vmatpush2.xpose.msra.mxu0 0.0
    %3370 = vmatprep.subr.mxu0 0.0
    %3371 = vmatpush2.xpose.msra.mxu0 0.0
    %3372 = vmatprep.subr.mxu0 0.0
    %3373 = vmatpush2.xpose.msra.mxu0 0.0
    %3374 = vmatprep.mubr.f32.mxu0 0.0
    %v3375 = vand.u32 %v2931, 4294901760
    %3376 = vmatmul.mubr.f32.gmra.mxu0 %v3375
    %v3377 = vpop.f32.mrf.mxu0
    %v3378 = vadd.f32 %v3306, %v3377
    %v3379 = vpop.f32.mrf.mxu0
    %3380 = vdwg.mxu0
    %v3381 = vsel %vm641, %v2924, -inf
    %3382 = vmax.xlane.f32.xlu0 %v3381
    %v3383 = vpop.xlane.xlu0 %3382
    %v3384 = vsel %vm641, %v3378, -inf
    %3385 = vmax.xlane.f32.xlu0 %v3384
    %v3386 = vpop.xlane.xlu0 %3385
    %v3387 = vsub.f32 %v2924, %v3383
    %v3388 = vsub.f32 %v3378, %v3386
    %v3389 = vmul.f32 %v3387, 1.442695
    %v3390 = vpow.pop %v3389
    %v3391 = vmul.f32 %v3388, 1.442695
    %v3392 = vpow.pop %v3391
    %v3393 = vsel %vm641, %v3390, 0.0
    %3394 = vadd.xlane.f32.xlu0 %v3393
    %v3395 = vpop.xlane.xlu0 %3394
    %v3396 = vsel %vm641, %v3392, 0.0
    %3397 = vadd.xlane.f32.xlu0 %v3396
    %v3398 = vpop.xlane.xlu0 %3397
    %v3399 = vrcp.pop %v3395
    %v3400 = vrcp.pop %v3398
    %v3401 = vmul.f32 %v3390, %v3399
    %v3402 = vmul.f32 %v3392, %v3400
    %3403 = vrot.lane.b32.xlu0 %v629, 56
    %v3404 = vpop.permute.xlu0 %3403
    %v3407 = vsel %vm641, %v3401, 0
    %3409 = vmatprep.subr.mxu0 0.0
    %3410 = vmatpush1.msra.mxu0 0.0
    %3411 = vmatprep.subr.mxu0 0.0
    %3412 = vmatpush1.msra.mxu0 0.0
    %3413 = vmatprep.subr.mxu0 0.0
    %3414 = vmatpush1.msra.mxu0 0.0
    %3415 = vmatprep.subr.mxu0 0.0
    %3416 = vmatpush1.msra.mxu0 0.0
    %3417 = vmatprep.subr.mxu0 0.0
    %3418 = vmatpush1.msra.mxu0 0.0
    %3419 = vmatprep.subr.mxu0 0.0
    %3420 = vmatpush1.msra.mxu0 0.0
    %3421 = vmatprep.subr.mxu0 0.0
    %3422 = vmatpush1.msra.mxu0 0.0
    %3423 = vmatprep.subr.mxu0 0.0
    %3424 = vmatpush1.msra.mxu0 0.0
    %3425 = vmatprep.subr.mxu0 0.0
    %3426 = vmatpush1.msra.mxu0 0.0
    %3427 = vmatprep.subr.mxu0 0.0
    %3428 = vmatpush1.msra.mxu0 0.0
    %3429 = vmatprep.subr.mxu0 0.0
    %3430 = vmatpush1.msra.mxu0 0.0
    %3431 = vmatprep.subr.mxu0 0.0
    %3432 = vmatpush1.msra.mxu0 0.0
    %3433 = vmatprep.subr.mxu0 0.0
    %3434 = vmatpush1.msra.mxu0 0.0
    %3435 = vmatprep.subr.mxu0 0.0
    %3436 = vmatpush1.msra.mxu0 0.0
    %3437 = vmatprep.subr.mxu0 0.0
    %3438 = vmatpush1.msra.mxu0 0.0
    %3439 = vmatprep.subr.mxu0 0.0
    %v3440 = vand.u32 %v3404, 4294901760
    %3441 = vmatpush1.msra.mxu0 %v3440
    %3442 = vmatprep.subr.mxu0 0.0
    %3443 = vmatpush2.msra.mxu0 0.0
    %3444 = vmatprep.subr.mxu0 0.0
    %3445 = vmatpush2.msra.mxu0 0.0
    %3446 = vmatprep.subr.mxu0 0.0
    %3447 = vmatpush2.msra.mxu0 0.0
    %3448 = vmatprep.subr.mxu0 0.0
    %3449 = vmatpush2.msra.mxu0 0.0
    %3450 = vmatprep.subr.mxu0 0.0
    %3451 = vmatpush2.msra.mxu0 0.0
    %3452 = vmatprep.subr.mxu0 0.0
    %3453 = vmatpush2.msra.mxu0 0.0
    %3454 = vmatprep.subr.mxu0 0.0
    %3455 = vmatpush2.msra.mxu0 0.0
    %3456 = vmatprep.subr.mxu0 0.0
    %3457 = vmatpush2.msra.mxu0 0.0
    %3458 = vmatprep.subr.mxu0 0.0
    %3459 = vmatpush2.msra.mxu0 0.0
    %3460 = vmatprep.subr.mxu0 0.0
    %3461 = vmatpush2.msra.mxu0 0.0
    %3462 = vmatprep.subr.mxu0 0.0
    %3463 = vmatpush2.msra.mxu0 0.0
    %3464 = vmatprep.subr.mxu0 0.0
    %3465 = vmatpush2.msra.mxu0 0.0
    %3466 = vmatprep.subr.mxu0 0.0
    %3467 = vmatpush2.msra.mxu0 0.0
    %3468 = vmatprep.subr.mxu0 0.0
    %3469 = vmatpush2.msra.mxu0 0.0
    %3470 = vmatprep.subr.mxu0 0.0
    %3471 = vmatpush2.msra.mxu0 0.0
    %3472 = vmatprep.subr.mxu0 0.0
    %3473 = vmatpush2.msra.mxu0 0.0
    %3474 = vmatprep.mubr.f32.mxu0 0.0
    %v3475 = vand.u32 %v3407, 4294901760
    %v3476 = vsub.f32 %v3407, %v3475
    %v3477 = vand.u32 %v3476, 4294901760
    %v3478 = vsub.f32 %v3476, %v3477
    %v3479 = vand.u32 %v3478, 4294901760
    %3480 = vmatmul.mubr.f32.gmra.mxu0 %v3479
    %v3481 = vpop.f32.mrf.mxu0
    %v3482 = vadd.f32 0.0, %v3481
    %v3483 = vpop.f32.mrf.mxu0
    %3484 = vdwg.mxu0
    %3485 = vmatprep.subr.mxu0 0.0
    %3486 = vmatpush1.msra.mxu0 0.0
    %3487 = vmatprep.subr.mxu0 0.0
    %3488 = vmatpush1.msra.mxu0 0.0
    %3489 = vmatprep.subr.mxu0 0.0
    %3490 = vmatpush1.msra.mxu0 0.0
    %3491 = vmatprep.subr.mxu0 0.0
    %3492 = vmatpush1.msra.mxu0 0.0
    %3493 = vmatprep.subr.mxu0 0.0
    %3494 = vmatpush1.msra.mxu0 0.0
    %3495 = vmatprep.subr.mxu0 0.0
    %3496 = vmatpush1.msra.mxu0 0.0
    %3497 = vmatprep.subr.mxu0 0.0
    %3498 = vmatpush1.msra.mxu0 0.0
    %3499 = vmatprep.subr.mxu0 0.0
    %3500 = vmatpush1.msra.mxu0 0.0
    %3501 = vmatprep.subr.mxu0 0.0
    %3502 = vmatpush1.msra.mxu0 0.0
    %3503 = vmatprep.subr.mxu0 0.0
    %3504 = vmatpush1.msra.mxu0 0.0
    %3505 = vmatprep.subr.mxu0 0.0
    %3506 = vmatpush1.msra.mxu0 0.0
    %3507 = vmatprep.subr.mxu0 0.0
    %3508 = vmatpush1.msra.mxu0 0.0
    %3509 = vmatprep.subr.mxu0 0.0
    %3510 = vmatpush1.msra.mxu0 0.0
    %3511 = vmatprep.subr.mxu0 0.0
    %3512 = vmatpush1.msra.mxu0 0.0
    %3513 = vmatprep.subr.mxu0 0.0
    %3514 = vmatpush1.msra.mxu0 0.0
    %3515 = vmatprep.subr.mxu0 0.0
    %v3516 = vand.u32 %v3404, 4294901760
    %v3517 = vsub.f32 %v3404, %v3516
    %v3518 = vand.u32 %v3517, 4294901760
    %v3519 = vsub.f32 %v3517, %v3518
    %v3520 = vand.u32 %v3519, 4294901760
    %3521 = vmatpush1.msra.mxu0 %v3520
    %3522 = vmatprep.subr.mxu0 0.0
    %3523 = vmatpush2.msra.mxu0 0.0
    %3524 = vmatprep.subr.mxu0 0.0
    %3525 = vmatpush2.msra.mxu0 0.0
    %3526 = vmatprep.subr.mxu0 0.0
    %3527 = vmatpush2.msra.mxu0 0.0
    %3528 = vmatprep.subr.mxu0 0.0
    %3529 = vmatpush2.msra.mxu0 0.0
    %3530 = vmatprep.subr.mxu0 0.0
    %3531 = vmatpush2.msra.mxu0 0.0
    %3532 = vmatprep.subr.mxu0 0.0
    %3533 = vmatpush2.msra.mxu0 0.0
    %3534 = vmatprep.subr.mxu0 0.0
    %3535 = vmatpush2.msra.mxu0 0.0
    %3536 = vmatprep.subr.mxu0 0.0
    %3537 = vmatpush2.msra.mxu0 0.0
    %3538 = vmatprep.subr.mxu0 0.0
    %3539 = vmatpush2.msra.mxu0 0.0
    %3540 = vmatprep.subr.mxu0 0.0
    %3541 = vmatpush2.msra.mxu0 0.0
    %3542 = vmatprep.subr.mxu0 0.0
    %3543 = vmatpush2.msra.mxu0 0.0
    %3544 = vmatprep.subr.mxu0 0.0
    %3545 = vmatpush2.msra.mxu0 0.0
    %3546 = vmatprep.subr.mxu0 0.0
    %3547 = vmatpush2.msra.mxu0 0.0
    %3548 = vmatprep.subr.mxu0 0.0
    %3549 = vmatpush2.msra.mxu0 0.0
    %3550 = vmatprep.subr.mxu0 0.0
    %3551 = vmatpush2.msra.mxu0 0.0
    %3552 = vmatprep.subr.mxu0 0.0
    %3553 = vmatpush2.msra.mxu0 0.0
    %3554 = vmatprep.mubr.f32.mxu0 0.0
    %v3555 = vand.u32 %v3407, 4294901760
    %3556 = vmatmul.mubr.f32.gmra.mxu0 %v3555
    %v3557 = vpop.f32.mrf.mxu0
    %v3558 = vadd.f32 %v3482, %v3557
    %v3559 = vpop.f32.mrf.mxu0
    %3560 = vdwg.mxu0
    %3561 = vmatprep.subr.mxu0 0.0
    %3562 = vmatpush1.msra.mxu0 0.0
    %3563 = vmatprep.subr.mxu0 0.0
    %3564 = vmatpush1.msra.mxu0 0.0
    %3565 = vmatprep.subr.mxu0 0.0
    %3566 = vmatpush1.msra.mxu0 0.0
    %3567 = vmatprep.subr.mxu0 0.0
    %3568 = vmatpush1.msra.mxu0 0.0
    %3569 = vmatprep.subr.mxu0 0.0
    %3570 = vmatpush1.msra.mxu0 0.0
    %3571 = vmatprep.subr.mxu0 0.0
    %3572 = vmatpush1.msra.mxu0 0.0
    %3573 = vmatprep.subr.mxu0 0.0
    %3574 = vmatpush1.msra.mxu0 0.0
    %3575 = vmatprep.subr.mxu0 0.0
    %3576 = vmatpush1.msra.mxu0 0.0
    %3577 = vmatprep.subr.mxu0 0.0
    %3578 = vmatpush1.msra.mxu0 0.0
    %3579 = vmatprep.subr.mxu0 0.0
    %3580 = vmatpush1.msra.mxu0 0.0
    %3581 = vmatprep.subr.mxu0 0.0
    %3582 = vmatpush1.msra.mxu0 0.0
    %3583 = vmatprep.subr.mxu0 0.0
    %3584 = vmatpush1.msra.mxu0 0.0
    %3585 = vmatprep.subr.mxu0 0.0
    %3586 = vmatpush1.msra.mxu0 0.0
    %3587 = vmatprep.subr.mxu0 0.0
    %3588 = vmatpush1.msra.mxu0 0.0
    %3589 = vmatprep.subr.mxu0 0.0
    %3590 = vmatpush1.msra.mxu0 0.0
    %3591 = vmatprep.subr.mxu0 0.0
    %v3592 = vand.u32 %v3404, 4294901760
    %v3593 = vsub.f32 %v3404, %v3592
    %3594 = vmatpush1.msra.mxu0 %v3593
    %3595 = vmatprep.subr.mxu0 0.0
    %3596 = vmatpush2.msra.mxu0 0.0
    %3597 = vmatprep.subr.mxu0 0.0
    %3598 = vmatpush2.msra.mxu0 0.0
    %3599 = vmatprep.subr.mxu0 0.0
    %3600 = vmatpush2.msra.mxu0 0.0
    %3601 = vmatprep.subr.mxu0 0.0
    %3602 = vmatpush2.msra.mxu0 0.0
    %3603 = vmatprep.subr.mxu0 0.0
    %3604 = vmatpush2.msra.mxu0 0.0
    %3605 = vmatprep.subr.mxu0 0.0
    %3606 = vmatpush2.msra.mxu0 0.0
    %3607 = vmatprep.subr.mxu0 0.0
    %3608 = vmatpush2.msra.mxu0 0.0
    %3609 = vmatprep.subr.mxu0 0.0
    %3610 = vmatpush2.msra.mxu0 0.0
    %3611 = vmatprep.subr.mxu0 0.0
    %3612 = vmatpush2.msra.mxu0 0.0
    %3613 = vmatprep.subr.mxu0 0.0
    %3614 = vmatpush2.msra.mxu0 0.0
    %3615 = vmatprep.subr.mxu0 0.0
    %3616 = vmatpush2.msra.mxu0 0.0
    %3617 = vmatprep.subr.mxu0 0.0
    %3618 = vmatpush2.msra.mxu0 0.0
    %3619 = vmatprep.subr.mxu0 0.0
    %3620 = vmatpush2.msra.mxu0 0.0
    %3621 = vmatprep.subr.mxu0 0.0
    %3622 = vmatpush2.msra.mxu0 0.0
    %3623 = vmatprep.subr.mxu0 0.0
    %3624 = vmatpush2.msra.mxu0 0.0
    %3625 = vmatprep.subr.mxu0 0.0
    %3626 = vmatpush2.msra.mxu0 0.0
    %3627 = vmatprep.mubr.f32.mxu0 0.0
    %v3628 = vand.u32 %v3407, 4294901760
    %v3629 = vsub.f32 %v3407, %v3628
    %3630 = vmatmul.mubr.f32.gmra.mxu0 %v3629
    %v3631 = vpop.f32.mrf.mxu0
    %v3632 = vadd.f32 %v3558, %v3631
    %v3633 = vpop.f32.mrf.mxu0
    %3634 = vdwg.mxu0
    %3635 = vmatprep.subr.mxu0 0.0
    %3636 = vmatpush1.msra.mxu0 0.0
    %3637 = vmatprep.subr.mxu0 0.0
    %3638 = vmatpush1.msra.mxu0 0.0
    %3639 = vmatprep.subr.mxu0 0.0
    %3640 = vmatpush1.msra.mxu0 0.0
    %3641 = vmatprep.subr.mxu0 0.0
    %3642 = vmatpush1.msra.mxu0 0.0
    %3643 = vmatprep.subr.mxu0 0.0
    %3644 = vmatpush1.msra.mxu0 0.0
    %3645 = vmatprep.subr.mxu0 0.0
    %3646 = vmatpush1.msra.mxu0 0.0
    %3647 = vmatprep.subr.mxu0 0.0
    %3648 = vmatpush1.msra.mxu0 0.0
    %3649 = vmatprep.subr.mxu0 0.0
    %3650 = vmatpush1.msra.mxu0 0.0
    %3651 = vmatprep.subr.mxu0 0.0
    %3652 = vmatpush1.msra.mxu0 0.0
    %3653 = vmatprep.subr.mxu0 0.0
    %3654 = vmatpush1.msra.mxu0 0.0
    %3655 = vmatprep.subr.mxu0 0.0
    %3656 = vmatpush1.msra.mxu0 0.0
    %3657 = vmatprep.subr.mxu0 0.0
    %3658 = vmatpush1.msra.mxu0 0.0
    %3659 = vmatprep.subr.mxu0 0.0
    %3660 = vmatpush1.msra.mxu0 0.0
    %3661 = vmatprep.subr.mxu0 0.0
    %3662 = vmatpush1.msra.mxu0 0.0
    %3663 = vmatprep.subr.mxu0 0.0
    %3664 = vmatpush1.msra.mxu0 0.0
    %3665 = vmatprep.subr.mxu0 0.0
    %v3666 = vand.u32 %v3404, 4294901760
    %3667 = vmatpush1.msra.mxu0 %v3666
    %3668 = vmatprep.subr.mxu0 0.0
    %3669 = vmatpush2.msra.mxu0 0.0
    %3670 = vmatprep.subr.mxu0 0.0
    %3671 = vmatpush2.msra.mxu0 0.0
    %3672 = vmatprep.subr.mxu0 0.0
    %3673 = vmatpush2.msra.mxu0 0.0
    %3674 = vmatprep.subr.mxu0 0.0
    %3675 = vmatpush2.msra.mxu0 0.0
    %3676 = vmatprep.subr.mxu0 0.0
    %3677 = vmatpush2.msra.mxu0 0.0
    %3678 = vmatprep.subr.mxu0 0.0
    %3679 = vmatpush2.msra.mxu0 0.0
    %3680 = vmatprep.subr.mxu0 0.0
    %3681 = vmatpush2.msra.mxu0 0.0
    %3682 = vmatprep.subr.mxu0 0.0
    %3683 = vmatpush2.msra.mxu0 0.0
    %3684 = vmatprep.subr.mxu0 0.0
    %3685 = vmatpush2.msra.mxu0 0.0
    %3686 = vmatprep.subr.mxu0 0.0
    %3687 = vmatpush2.msra.mxu0 0.0
    %3688 = vmatprep.subr.mxu0 0.0
    %3689 = vmatpush2.msra.mxu0 0.0
    %3690 = vmatprep.subr.mxu0 0.0
    %3691 = vmatpush2.msra.mxu0 0.0
    %3692 = vmatprep.subr.mxu0 0.0
    %3693 = vmatpush2.msra.mxu0 0.0
    %3694 = vmatprep.subr.mxu0 0.0
    %3695 = vmatpush2.msra.mxu0 0.0
    %3696 = vmatprep.subr.mxu0 0.0
    %3697 = vmatpush2.msra.mxu0 0.0
    %3698 = vmatprep.subr.mxu0 0.0
    %3699 = vmatpush2.msra.mxu0 0.0
    %3700 = vmatprep.mubr.f32.mxu0 0.0
    %v3701 = vand.u32 %v3407, 4294901760
    %v3702 = vsub.f32 %v3407, %v3701
    %v3703 = vand.u32 %v3702, 4294901760
    %3704 = vmatmul.mubr.f32.gmra.mxu0 %v3703
    %v3705 = vpop.f32.mrf.mxu0
    %v3706 = vadd.f32 %v3632, %v3705
    %v3707 = vpop.f32.mrf.mxu0
    %3708 = vdwg.mxu0
    %3709 = vmatprep.subr.mxu0 0.0
    %3710 = vmatpush1.msra.mxu0 0.0
    %3711 = vmatprep.subr.mxu0 0.0
    %3712 = vmatpush1.msra.mxu0 0.0
    %3713 = vmatprep.subr.mxu0 0.0
    %3714 = vmatpush1.msra.mxu0 0.0
    %3715 = vmatprep.subr.mxu0 0.0
    %3716 = vmatpush1.msra.mxu0 0.0
    %3717 = vmatprep.subr.mxu0 0.0
    %3718 = vmatpush1.msra.mxu0 0.0
    %3719 = vmatprep.subr.mxu0 0.0
    %3720 = vmatpush1.msra.mxu0 0.0
    %3721 = vmatprep.subr.mxu0 0.0
    %3722 = vmatpush1.msra.mxu0 0.0
    %3723 = vmatprep.subr.mxu0 0.0
    %3724 = vmatpush1.msra.mxu0 0.0
    %3725 = vmatprep.subr.mxu0 0.0
    %3726 = vmatpush1.msra.mxu0 0.0
    %3727 = vmatprep.subr.mxu0 0.0
    %3728 = vmatpush1.msra.mxu0 0.0
    %3729 = vmatprep.subr.mxu0 0.0
    %3730 = vmatpush1.msra.mxu0 0.0
    %3731 = vmatprep.subr.mxu0 0.0
    %3732 = vmatpush1.msra.mxu0 0.0
    %3733 = vmatprep.subr.mxu0 0.0
    %3734 = vmatpush1.msra.mxu0 0.0
    %3735 = vmatprep.subr.mxu0 0.0
    %3736 = vmatpush1.msra.mxu0 0.0
    %3737 = vmatprep.subr.mxu0 0.0
    %3738 = vmatpush1.msra.mxu0 0.0
    %3739 = vmatprep.subr.mxu0 0.0
    %v3740 = vand.u32 %v3404, 4294901760
    %v3741 = vsub.f32 %v3404, %v3740
    %v3742 = vand.u32 %v3741, 4294901760
    %3743 = vmatpush1.msra.mxu0 %v3742
    %3744 = vmatprep.subr.mxu0 0.0
    %3745 = vmatpush2.msra.mxu0 0.0
    %3746 = vmatprep.subr.mxu0 0.0
    %3747 = vmatpush2.msra.mxu0 0.0
    %3748 = vmatprep.subr.mxu0 0.0
    %3749 = vmatpush2.msra.mxu0 0.0
    %3750 = vmatprep.subr.mxu0 0.0
    %3751 = vmatpush2.msra.mxu0 0.0
    %3752 = vmatprep.subr.mxu0 0.0
    %3753 = vmatpush2.msra.mxu0 0.0
    %3754 = vmatprep.subr.mxu0 0.0
    %3755 = vmatpush2.msra.mxu0 0.0
    %3756 = vmatprep.subr.mxu0 0.0
    %3757 = vmatpush2.msra.mxu0 0.0
    %3758 = vmatprep.subr.mxu0 0.0
    %3759 = vmatpush2.msra.mxu0 0.0
    %3760 = vmatprep.subr.mxu0 0.0
    %3761 = vmatpush2.msra.mxu0 0.0
    %3762 = vmatprep.subr.mxu0 0.0
    %3763 = vmatpush2.msra.mxu0 0.0
    %3764 = vmatprep.subr.mxu0 0.0
    %3765 = vmatpush2.msra.mxu0 0.0
    %3766 = vmatprep.subr.mxu0 0.0
    %3767 = vmatpush2.msra.mxu0 0.0
    %3768 = vmatprep.subr.mxu0 0.0
    %3769 = vmatpush2.msra.mxu0 0.0
    %3770 = vmatprep.subr.mxu0 0.0
    %3771 = vmatpush2.msra.mxu0 0.0
    %3772 = vmatprep.subr.mxu0 0.0
    %3773 = vmatpush2.msra.mxu0 0.0
    %3774 = vmatprep.subr.mxu0 0.0
    %3775 = vmatpush2.msra.mxu0 0.0
    %3776 = vmatprep.mubr.f32.mxu0 0.0
    %v3777 = vand.u32 %v3407, 4294901760
    %3778 = vmatmul.mubr.f32.gmra.mxu0 %v3777
    %v3779 = vpop.f32.mrf.mxu0
    %v3780 = vadd.f32 %v3706, %v3779
    %v3781 = vpop.f32.mrf.mxu0
    %3782 = vdwg.mxu0
    %3783 = vmatprep.subr.mxu0 0.0
    %3784 = vmatpush1.msra.mxu0 0.0
    %3785 = vmatprep.subr.mxu0 0.0
    %3786 = vmatpush1.msra.mxu0 0.0
    %3787 = vmatprep.subr.mxu0 0.0
    %3788 = vmatpush1.msra.mxu0 0.0
    %3789 = vmatprep.subr.mxu0 0.0
    %3790 = vmatpush1.msra.mxu0 0.0
    %3791 = vmatprep.subr.mxu0 0.0
    %3792 = vmatpush1.msra.mxu0 0.0
    %3793 = vmatprep.subr.mxu0 0.0
    %3794 = vmatpush1.msra.mxu0 0.0
    %3795 = vmatprep.subr.mxu0 0.0
    %3796 = vmatpush1.msra.mxu0 0.0
    %3797 = vmatprep.subr.mxu0 0.0
    %3798 = vmatpush1.msra.mxu0 0.0
    %3799 = vmatprep.subr.mxu0 0.0
    %3800 = vmatpush1.msra.mxu0 0.0
    %3801 = vmatprep.subr.mxu0 0.0
    %3802 = vmatpush1.msra.mxu0 0.0
    %3803 = vmatprep.subr.mxu0 0.0
    %3804 = vmatpush1.msra.mxu0 0.0
    %3805 = vmatprep.subr.mxu0 0.0
    %3806 = vmatpush1.msra.mxu0 0.0
    %3807 = vmatprep.subr.mxu0 0.0
    %3808 = vmatpush1.msra.mxu0 0.0
    %3809 = vmatprep.subr.mxu0 0.0
    %3810 = vmatpush1.msra.mxu0 0.0
    %3811 = vmatprep.subr.mxu0 0.0
    %3812 = vmatpush1.msra.mxu0 0.0
    %3813 = vmatprep.subr.mxu0 0.0
    %v3814 = vand.u32 %v3404, 4294901760
    %3815 = vmatpush1.msra.mxu0 %v3814
    %3816 = vmatprep.subr.mxu0 0.0
    %3817 = vmatpush2.msra.mxu0 0.0
    %3818 = vmatprep.subr.mxu0 0.0
    %3819 = vmatpush2.msra.mxu0 0.0
    %3820 = vmatprep.subr.mxu0 0.0
    %3821 = vmatpush2.msra.mxu0 0.0
    %3822 = vmatprep.subr.mxu0 0.0
    %3823 = vmatpush2.msra.mxu0 0.0
    %3824 = vmatprep.subr.mxu0 0.0
    %3825 = vmatpush2.msra.mxu0 0.0
    %3826 = vmatprep.subr.mxu0 0.0
    %3827 = vmatpush2.msra.mxu0 0.0
    %3828 = vmatprep.subr.mxu0 0.0
    %3829 = vmatpush2.msra.mxu0 0.0
    %3830 = vmatprep.subr.mxu0 0.0
    %3831 = vmatpush2.msra.mxu0 0.0
    %3832 = vmatprep.subr.mxu0 0.0
    %3833 = vmatpush2.msra.mxu0 0.0
    %3834 = vmatprep.subr.mxu0 0.0
    %3835 = vmatpush2.msra.mxu0 0.0
    %3836 = vmatprep.subr.mxu0 0.0
    %3837 = vmatpush2.msra.mxu0 0.0
    %3838 = vmatprep.subr.mxu0 0.0
    %3839 = vmatpush2.msra.mxu0 0.0
    %3840 = vmatprep.subr.mxu0 0.0
    %3841 = vmatpush2.msra.mxu0 0.0
    %3842 = vmatprep.subr.mxu0 0.0
    %3843 = vmatpush2.msra.mxu0 0.0
    %3844 = vmatprep.subr.mxu0 0.0
    %3845 = vmatpush2.msra.mxu0 0.0
    %3846 = vmatprep.subr.mxu0 0.0
    %3847 = vmatpush2.msra.mxu0 0.0
    %3848 = vmatprep.mubr.f32.mxu0 0.0
    %v3849 = vand.u32 %v3407, 4294901760
    %3850 = vmatmul.mubr.f32.gmra.mxu0 %v3849
    %v3851 = vpop.f32.mrf.mxu0
    %v3852 = vadd.f32 %v3780, %v3851
    %v3853 = vpop.f32.mrf.mxu0
    %3854 = vdwg.mxu0
    %3855 = vrot.lane.b32.xlu0 %v635, 56
    %v3856 = vpop.permute.xlu0 %3855
    %v3859 = vsel %vm641, %v3402, 0
    %3861 = vmatprep.subr.mxu0 0.0
    %3862 = vmatpush1.msra.mxu0 0.0
    %3863 = vmatprep.subr.mxu0 0.0
    %3864 = vmatpush1.msra.mxu0 0.0
    %3865 = vmatprep.subr.mxu0 0.0
    %3866 = vmatpush1.msra.mxu0 0.0
    %3867 = vmatprep.subr.mxu0 0.0
    %3868 = vmatpush1.msra.mxu0 0.0
    %3869 = vmatprep.subr.mxu0 0.0
    %3870 = vmatpush1.msra.mxu0 0.0
    %3871 = vmatprep.subr.mxu0 0.0
    %3872 = vmatpush1.msra.mxu0 0.0
    %3873 = vmatprep.subr.mxu0 0.0
    %3874 = vmatpush1.msra.mxu0 0.0
    %3875 = vmatprep.subr.mxu0 0.0
    %3876 = vmatpush1.msra.mxu0 0.0
    %3877 = vmatprep.subr.mxu0 0.0
    %3878 = vmatpush1.msra.mxu0 0.0
    %3879 = vmatprep.subr.mxu0 0.0
    %3880 = vmatpush1.msra.mxu0 0.0
    %3881 = vmatprep.subr.mxu0 0.0
    %3882 = vmatpush1.msra.mxu0 0.0
    %3883 = vmatprep.subr.mxu0 0.0
    %3884 = vmatpush1.msra.mxu0 0.0
    %3885 = vmatprep.subr.mxu0 0.0
    %3886 = vmatpush1.msra.mxu0 0.0
    %3887 = vmatprep.subr.mxu0 0.0
    %3888 = vmatpush1.msra.mxu0 0.0
    %3889 = vmatprep.subr.mxu0 0.0
    %3890 = vmatpush1.msra.mxu0 0.0
    %3891 = vmatprep.subr.mxu0 0.0
    %v3892 = vand.u32 %v3856, 4294901760
    %3893 = vmatpush1.msra.mxu0 %v3892
    %3894 = vmatprep.subr.mxu0 0.0
    %3895 = vmatpush2.msra.mxu0 0.0
    %3896 = vmatprep.subr.mxu0 0.0
    %3897 = vmatpush2.msra.mxu0 0.0
    %3898 = vmatprep.subr.mxu0 0.0
    %3899 = vmatpush2.msra.mxu0 0.0
    %3900 = vmatprep.subr.mxu0 0.0
    %3901 = vmatpush2.msra.mxu0 0.0
    %3902 = vmatprep.subr.mxu0 0.0
    %3903 = vmatpush2.msra.mxu0 0.0
    %3904 = vmatprep.subr.mxu0 0.0
    %3905 = vmatpush2.msra.mxu0 0.0
    %3906 = vmatprep.subr.mxu0 0.0
    %3907 = vmatpush2.msra.mxu0 0.0
    %3908 = vmatprep.subr.mxu0 0.0
    %3909 = vmatpush2.msra.mxu0 0.0
    %3910 = vmatprep.subr.mxu0 0.0
    %3911 = vmatpush2.msra.mxu0 0.0
    %3912 = vmatprep.subr.mxu0 0.0
    %3913 = vmatpush2.msra.mxu0 0.0
    %3914 = vmatprep.subr.mxu0 0.0
    %3915 = vmatpush2.msra.mxu0 0.0
    %3916 = vmatprep.subr.mxu0 0.0
    %3917 = vmatpush2.msra.mxu0 0.0
    %3918 = vmatprep.subr.mxu0 0.0
    %3919 = vmatpush2.msra.mxu0 0.0
    %3920 = vmatprep.subr.mxu0 0.0
    %3921 = vmatpush2.msra.mxu0 0.0
    %3922 = vmatprep.subr.mxu0 0.0
    %3923 = vmatpush2.msra.mxu0 0.0
    %3924 = vmatprep.subr.mxu0 0.0
    %3925 = vmatpush2.msra.mxu0 0.0
    %3926 = vmatprep.mubr.f32.mxu0 0.0
    %v3927 = vand.u32 %v3859, 4294901760
    %v3928 = vsub.f32 %v3859, %v3927
    %v3929 = vand.u32 %v3928, 4294901760
    %v3930 = vsub.f32 %v3928, %v3929
    %v3931 = vand.u32 %v3930, 4294901760
    %3932 = vmatmul.mubr.f32.gmra.mxu0 %v3931
    %v3933 = vpop.f32.mrf.mxu0
    %v3934 = vadd.f32 0.0, %v3933
    %v3935 = vpop.f32.mrf.mxu0
    %3936 = vdwg.mxu0
    %3937 = vmatprep.subr.mxu0 0.0
    %3938 = vmatpush1.msra.mxu0 0.0
    %3939 = vmatprep.subr.mxu0 0.0
    %3940 = vmatpush1.msra.mxu0 0.0
    %3941 = vmatprep.subr.mxu0 0.0
    %3942 = vmatpush1.msra.mxu0 0.0
    %3943 = vmatprep.subr.mxu0 0.0
    %3944 = vmatpush1.msra.mxu0 0.0
    %3945 = vmatprep.subr.mxu0 0.0
    %3946 = vmatpush1.msra.mxu0 0.0
    %3947 = vmatprep.subr.mxu0 0.0
    %3948 = vmatpush1.msra.mxu0 0.0
    %3949 = vmatprep.subr.mxu0 0.0
    %3950 = vmatpush1.msra.mxu0 0.0
    %3951 = vmatprep.subr.mxu0 0.0
    %3952 = vmatpush1.msra.mxu0 0.0
    %3953 = vmatprep.subr.mxu0 0.0
    %3954 = vmatpush1.msra.mxu0 0.0
    %3955 = vmatprep.subr.mxu0 0.0
    %3956 = vmatpush1.msra.mxu0 0.0
    %3957 = vmatprep.subr.mxu0 0.0
    %3958 = vmatpush1.msra.mxu0 0.0
    %3959 = vmatprep.subr.mxu0 0.0
    %3960 = vmatpush1.msra.mxu0 0.0
    %3961 = vmatprep.subr.mxu0 0.0
    %3962 = vmatpush1.msra.mxu0 0.0
    %3963 = vmatprep.subr.mxu0 0.0
    %3964 = vmatpush1.msra.mxu0 0.0
    %3965 = vmatprep.subr.mxu0 0.0
    %3966 = vmatpush1.msra.mxu0 0.0
    %3967 = vmatprep.subr.mxu0 0.0
    %v3968 = vand.u32 %v3856, 4294901760
    %v3969 = vsub.f32 %v3856, %v3968
    %v3970 = vand.u32 %v3969, 4294901760
    %v3971 = vsub.f32 %v3969, %v3970
    %v3972 = vand.u32 %v3971, 4294901760
    %3973 = vmatpush1.msra.mxu0 %v3972
    %3974 = vmatprep.subr.mxu0 0.0
    %3975 = vmatpush2.msra.mxu0 0.0
    %3976 = vmatprep.subr.mxu0 0.0
    %3977 = vmatpush2.msra.mxu0 0.0
    %3978 = vmatprep.subr.mxu0 0.0
    %3979 = vmatpush2.msra.mxu0 0.0
    %3980 = vmatprep.subr.mxu0 0.0
    %3981 = vmatpush2.msra.mxu0 0.0
    %3982 = vmatprep.subr.mxu0 0.0
    %3983 = vmatpush2.msra.mxu0 0.0
    %3984 = vmatprep.subr.mxu0 0.0
    %3985 = vmatpush2.msra.mxu0 0.0
    %3986 = vmatprep.subr.mxu0 0.0
    %3987 = vmatpush2.msra.mxu0 0.0
    %3988 = vmatprep.subr.mxu0 0.0
    %3989 = vmatpush2.msra.mxu0 0.0
    %3990 = vmatprep.subr.mxu0 0.0
    %3991 = vmatpush2.msra.mxu0 0.0
    %3992 = vmatprep.subr.mxu0 0.0
    %3993 = vmatpush2.msra.mxu0 0.0
    %3994 = vmatprep.subr.mxu0 0.0
    %3995 = vmatpush2.msra.mxu0 0.0
    %3996 = vmatprep.subr.mxu0 0.0
    %3997 = vmatpush2.msra.mxu0 0.0
    %3998 = vmatprep.subr.mxu0 0.0
    %3999 = vmatpush2.msra.mxu0 0.0
    %4000 = vmatprep.subr.mxu0 0.0
    %4001 = vmatpush2.msra.mxu0 0.0
    %4002 = vmatprep.subr.mxu0 0.0
    %4003 = vmatpush2.msra.mxu0 0.0
    %4004 = vmatprep.subr.mxu0 0.0
    %4005 = vmatpush2.msra.mxu0 0.0
    %4006 = vmatprep.mubr.f32.mxu0 0.0
    %v4007 = vand.u32 %v3859, 4294901760
    %4008 = vmatmul.mubr.f32.gmra.mxu0 %v4007
    %v4009 = vpop.f32.mrf.mxu0
    %v4010 = vadd.f32 %v3934, %v4009
    %v4011 = vpop.f32.mrf.mxu0
    %4012 = vdwg.mxu0
    %4013 = vmatprep.subr.mxu0 0.0
    %4014 = vmatpush1.msra.mxu0 0.0
    %4015 = vmatprep.subr.mxu0 0.0
    %4016 = vmatpush1.msra.mxu0 0.0
    %4017 = vmatprep.subr.mxu0 0.0
    %4018 = vmatpush1.msra.mxu0 0.0
    %4019 = vmatprep.subr.mxu0 0.0
    %4020 = vmatpush1.msra.mxu0 0.0
    %4021 = vmatprep.subr.mxu0 0.0
    %4022 = vmatpush1.msra.mxu0 0.0
    %4023 = vmatprep.subr.mxu0 0.0
    %4024 = vmatpush1.msra.mxu0 0.0
    %4025 = vmatprep.subr.mxu0 0.0
    %4026 = vmatpush1.msra.mxu0 0.0
    %4027 = vmatprep.subr.mxu0 0.0
    %4028 = vmatpush1.msra.mxu0 0.0
    %4029 = vmatprep.subr.mxu0 0.0
    %4030 = vmatpush1.msra.mxu0 0.0
    %4031 = vmatprep.subr.mxu0 0.0
    %4032 = vmatpush1.msra.mxu0 0.0
    %4033 = vmatprep.subr.mxu0 0.0
    %4034 = vmatpush1.msra.mxu0 0.0
    %4035 = vmatprep.subr.mxu0 0.0
    %4036 = vmatpush1.msra.mxu0 0.0
    %4037 = vmatprep.subr.mxu0 0.0
    %4038 = vmatpush1.msra.mxu0 0.0
    %4039 = vmatprep.subr.mxu0 0.0
    %4040 = vmatpush1.msra.mxu0 0.0
    %4041 = vmatprep.subr.mxu0 0.0
    %4042 = vmatpush1.msra.mxu0 0.0
    %4043 = vmatprep.subr.mxu0 0.0
    %v4044 = vand.u32 %v3856, 4294901760
    %v4045 = vsub.f32 %v3856, %v4044
    %4046 = vmatpush1.msra.mxu0 %v4045
    %4047 = vmatprep.subr.mxu0 0.0
    %4048 = vmatpush2.msra.mxu0 0.0
    %4049 = vmatprep.subr.mxu0 0.0
    %4050 = vmatpush2.msra.mxu0 0.0
    %4051 = vmatprep.subr.mxu0 0.0
    %4052 = vmatpush2.msra.mxu0 0.0
    %4053 = vmatprep.subr.mxu0 0.0
    %4054 = vmatpush2.msra.mxu0 0.0
    %4055 = vmatprep.subr.mxu0 0.0
    %4056 = vmatpush2.msra.mxu0 0.0
    %4057 = vmatprep.subr.mxu0 0.0
    %4058 = vmatpush2.msra.mxu0 0.0
    %4059 = vmatprep.subr.mxu0 0.0
    %4060 = vmatpush2.msra.mxu0 0.0
    %4061 = vmatprep.subr.mxu0 0.0
    %4062 = vmatpush2.msra.mxu0 0.0
    %4063 = vmatprep.subr.mxu0 0.0
    %4064 = vmatpush2.msra.mxu0 0.0
    %4065 = vmatprep.subr.mxu0 0.0
    %4066 = vmatpush2.msra.mxu0 0.0
    %4067 = vmatprep.subr.mxu0 0.0
    %4068 = vmatpush2.msra.mxu0 0.0
    %4069 = vmatprep.subr.mxu0 0.0
    %4070 = vmatpush2.msra.mxu0 0.0
    %4071 = vmatprep.subr.mxu0 0.0
    %4072 = vmatpush2.msra.mxu0 0.0
    %4073 = vmatprep.subr.mxu0 0.0
    %4074 = vmatpush2.msra.mxu0 0.0
    %4075 = vmatprep.subr.mxu0 0.0
    %4076 = vmatpush2.msra.mxu0 0.0
    %4077 = vmatprep.subr.mxu0 0.0
    %4078 = vmatpush2.msra.mxu0 0.0
    %4079 = vmatprep.mubr.f32.mxu0 0.0
    %v4080 = vand.u32 %v3859, 4294901760
    %v4081 = vsub.f32 %v3859, %v4080
    %4082 = vmatmul.mubr.f32.gmra.mxu0 %v4081
    %v4083 = vpop.f32.mrf.mxu0
    %v4084 = vadd.f32 %v4010, %v4083
    %v4085 = vpop.f32.mrf.mxu0
    %4086 = vdwg.mxu0
    %4087 = vmatprep.subr.mxu0 0.0
    %4088 = vmatpush1.msra.mxu0 0.0
    %4089 = vmatprep.subr.mxu0 0.0
    %4090 = vmatpush1.msra.mxu0 0.0
    %4091 = vmatprep.subr.mxu0 0.0
    %4092 = vmatpush1.msra.mxu0 0.0
    %4093 = vmatprep.subr.mxu0 0.0
    %4094 = vmatpush1.msra.mxu0 0.0
    %4095 = vmatprep.subr.mxu0 0.0
    %4096 = vmatpush1.msra.mxu0 0.0
    %4097 = vmatprep.subr.mxu0 0.0
    %4098 = vmatpush1.msra.mxu0 0.0
    %4099 = vmatprep.subr.mxu0 0.0
    %4100 = vmatpush1.msra.mxu0 0.0
    %4101 = vmatprep.subr.mxu0 0.0
    %4102 = vmatpush1.msra.mxu0 0.0
    %4103 = vmatprep.subr.mxu0 0.0
    %4104 = vmatpush1.msra.mxu0 0.0
    %4105 = vmatprep.subr.mxu0 0.0
    %4106 = vmatpush1.msra.mxu0 0.0
    %4107 = vmatprep.subr.mxu0 0.0
    %4108 = vmatpush1.msra.mxu0 0.0
    %4109 = vmatprep.subr.mxu0 0.0
    %4110 = vmatpush1.msra.mxu0 0.0
    %4111 = vmatprep.subr.mxu0 0.0
    %4112 = vmatpush1.msra.mxu0 0.0
    %4113 = vmatprep.subr.mxu0 0.0
    %4114 = vmatpush1.msra.mxu0 0.0
    %4115 = vmatprep.subr.mxu0 0.0
    %4116 = vmatpush1.msra.mxu0 0.0
    %4117 = vmatprep.subr.mxu0 0.0
    %v4118 = vand.u32 %v3856, 4294901760
    %4119 = vmatpush1.msra.mxu0 %v4118
    %4120 = vmatprep.subr.mxu0 0.0
    %4121 = vmatpush2.msra.mxu0 0.0
    %4122 = vmatprep.subr.mxu0 0.0
    %4123 = vmatpush2.msra.mxu0 0.0
    %4124 = vmatprep.subr.mxu0 0.0
    %4125 = vmatpush2.msra.mxu0 0.0
    %4126 = vmatprep.subr.mxu0 0.0
    %4127 = vmatpush2.msra.mxu0 0.0
    %4128 = vmatprep.subr.mxu0 0.0
    %4129 = vmatpush2.msra.mxu0 0.0
    %4130 = vmatprep.subr.mxu0 0.0
    %4131 = vmatpush2.msra.mxu0 0.0
    %4132 = vmatprep.subr.mxu0 0.0
    %4133 = vmatpush2.msra.mxu0 0.0
    %4134 = vmatprep.subr.mxu0 0.0
    %4135 = vmatpush2.msra.mxu0 0.0
    %4136 = vmatprep.subr.mxu0 0.0
    %4137 = vmatpush2.msra.mxu0 0.0
    %4138 = vmatprep.subr.mxu0 0.0
    %4139 = vmatpush2.msra.mxu0 0.0
    %4140 = vmatprep.subr.mxu0 0.0
    %4141 = vmatpush2.msra.mxu0 0.0
    %4142 = vmatprep.subr.mxu0 0.0
    %4143 = vmatpush2.msra.mxu0 0.0
    %4144 = vmatprep.subr.mxu0 0.0
    %4145 = vmatpush2.msra.mxu0 0.0
    %4146 = vmatprep.subr.mxu0 0.0
    %4147 = vmatpush2.msra.mxu0 0.0
    %4148 = vmatprep.subr.mxu0 0.0
    %4149 = vmatpush2.msra.mxu0 0.0
    %4150 = vmatprep.subr.mxu0 0.0
    %4151 = vmatpush2.msra.mxu0 0.0
    %4152 = vmatprep.mubr.f32.mxu0 0.0
    %v4153 = vand.u32 %v3859, 4294901760
    %v4154 = vsub.f32 %v3859, %v4153
    %v4155 = vand.u32 %v4154, 4294901760
    %4156 = vmatmul.mubr.f32.gmra.mxu0 %v4155
    %v4157 = vpop.f32.mrf.mxu0
    %v4158 = vadd.f32 %v4084, %v4157
    %v4159 = vpop.f32.mrf.mxu0
    %4160 = vdwg.mxu0
    %4161 = vmatprep.subr.mxu0 0.0
    %4162 = vmatpush1.msra.mxu0 0.0
    %4163 = vmatprep.subr.mxu0 0.0
    %4164 = vmatpush1.msra.mxu0 0.0
    %4165 = vmatprep.subr.mxu0 0.0
    %4166 = vmatpush1.msra.mxu0 0.0
    %4167 = vmatprep.subr.mxu0 0.0
    %4168 = vmatpush1.msra.mxu0 0.0
    %4169 = vmatprep.subr.mxu0 0.0
    %4170 = vmatpush1.msra.mxu0 0.0
    %4171 = vmatprep.subr.mxu0 0.0
    %4172 = vmatpush1.msra.mxu0 0.0
    %4173 = vmatprep.subr.mxu0 0.0
    %4174 = vmatpush1.msra.mxu0 0.0
    %4175 = vmatprep.subr.mxu0 0.0
    %4176 = vmatpush1.msra.mxu0 0.0
    %4177 = vmatprep.subr.mxu0 0.0
    %4178 = vmatpush1.msra.mxu0 0.0
    %4179 = vmatprep.subr.mxu0 0.0
    %4180 = vmatpush1.msra.mxu0 0.0
    %4181 = vmatprep.subr.mxu0 0.0
    %4182 = vmatpush1.msra.mxu0 0.0
    %4183 = vmatprep.subr.mxu0 0.0
    %4184 = vmatpush1.msra.mxu0 0.0
    %4185 = vmatprep.subr.mxu0 0.0
    %4186 = vmatpush1.msra.mxu0 0.0
    %4187 = vmatprep.subr.mxu0 0.0
    %4188 = vmatpush1.msra.mxu0 0.0
    %4189 = vmatprep.subr.mxu0 0.0
    %4190 = vmatpush1.msra.mxu0 0.0
    %4191 = vmatprep.subr.mxu0 0.0
    %v4192 = vand.u32 %v3856, 4294901760
    %v4193 = vsub.f32 %v3856, %v4192
    %v4194 = vand.u32 %v4193, 4294901760
    %4195 = vmatpush1.msra.mxu0 %v4194
    %4196 = vmatprep.subr.mxu0 0.0
    %4197 = vmatpush2.msra.mxu0 0.0
    %4198 = vmatprep.subr.mxu0 0.0
    %4199 = vmatpush2.msra.mxu0 0.0
    %4200 = vmatprep.subr.mxu0 0.0
    %4201 = vmatpush2.msra.mxu0 0.0
    %4202 = vmatprep.subr.mxu0 0.0
    %4203 = vmatpush2.msra.mxu0 0.0
    %4204 = vmatprep.subr.mxu0 0.0
    %4205 = vmatpush2.msra.mxu0 0.0
    %4206 = vmatprep.subr.mxu0 0.0
    %4207 = vmatpush2.msra.mxu0 0.0
    %4208 = vmatprep.subr.mxu0 0.0
    %4209 = vmatpush2.msra.mxu0 0.0
    %4210 = vmatprep.subr.mxu0 0.0
    %4211 = vmatpush2.msra.mxu0 0.0
    %4212 = vmatprep.subr.mxu0 0.0
    %4213 = vmatpush2.msra.mxu0 0.0
    %4214 = vmatprep.subr.mxu0 0.0
    %4215 = vmatpush2.msra.mxu0 0.0
    %4216 = vmatprep.subr.mxu0 0.0
    %4217 = vmatpush2.msra.mxu0 0.0
    %4218 = vmatprep.subr.mxu0 0.0
    %4219 = vmatpush2.msra.mxu0 0.0
    %4220 = vmatprep.subr.mxu0 0.0
    %4221 = vmatpush2.msra.mxu0 0.0
    %4222 = vmatprep.subr.mxu0 0.0
    %4223 = vmatpush2.msra.mxu0 0.0
    %4224 = vmatprep.subr.mxu0 0.0
    %4225 = vmatpush2.msra.mxu0 0.0
    %4226 = vmatprep.subr.mxu0 0.0
    %4227 = vmatpush2.msra.mxu0 0.0
    %4228 = vmatprep.mubr.f32.mxu0 0.0
    %v4229 = vand.u32 %v3859, 4294901760
    %4230 = vmatmul.mubr.f32.gmra.mxu0 %v4229
    %v4231 = vpop.f32.mrf.mxu0
    %v4232 = vadd.f32 %v4158, %v4231
    %v4233 = vpop.f32.mrf.mxu0
    %4234 = vdwg.mxu0
    %4235 = vmatprep.subr.mxu0 0.0
    %4236 = vmatpush1.msra.mxu0 0.0
    %4237 = vmatprep.subr.mxu0 0.0
    %4238 = vmatpush1.msra.mxu0 0.0
    %4239 = vmatprep.subr.mxu0 0.0
    %4240 = vmatpush1.msra.mxu0 0.0
    %4241 = vmatprep.subr.mxu0 0.0
    %4242 = vmatpush1.msra.mxu0 0.0
    %4243 = vmatprep.subr.mxu0 0.0
    %4244 = vmatpush1.msra.mxu0 0.0
    %4245 = vmatprep.subr.mxu0 0.0
    %4246 = vmatpush1.msra.mxu0 0.0
    %4247 = vmatprep.subr.mxu0 0.0
    %4248 = vmatpush1.msra.mxu0 0.0
    %4249 = vmatprep.subr.mxu0 0.0
    %4250 = vmatpush1.msra.mxu0 0.0
    %4251 = vmatprep.subr.mxu0 0.0
    %4252 = vmatpush1.msra.mxu0 0.0
    %4253 = vmatprep.subr.mxu0 0.0
    %4254 = vmatpush1.msra.mxu0 0.0
    %4255 = vmatprep.subr.mxu0 0.0
    %4256 = vmatpush1.msra.mxu0 0.0
    %4257 = vmatprep.subr.mxu0 0.0
    %4258 = vmatpush1.msra.mxu0 0.0
    %4259 = vmatprep.subr.mxu0 0.0
    %4260 = vmatpush1.msra.mxu0 0.0
    %4261 = vmatprep.subr.mxu0 0.0
    %4262 = vmatpush1.msra.mxu0 0.0
    %4263 = vmatprep.subr.mxu0 0.0
    %4264 = vmatpush1.msra.mxu0 0.0
    %4265 = vmatprep.subr.mxu0 0.0
    %v4266 = vand.u32 %v3856, 4294901760
    %4267 = vmatpush1.msra.mxu0 %v4266
    %4268 = vmatprep.subr.mxu0 0.0
    %4269 = vmatpush2.msra.mxu0 0.0
    %4270 = vmatprep.subr.mxu0 0.0
    %4271 = vmatpush2.msra.mxu0 0.0
    %4272 = vmatprep.subr.mxu0 0.0
    %4273 = vmatpush2.msra.mxu0 0.0
    %4274 = vmatprep.subr.mxu0 0.0
    %4275 = vmatpush2.msra.mxu0 0.0
    %4276 = vmatprep.subr.mxu0 0.0
    %4277 = vmatpush2.msra.mxu0 0.0
    %4278 = vmatprep.subr.mxu0 0.0
    %4279 = vmatpush2.msra.mxu0 0.0
    %4280 = vmatprep.subr.mxu0 0.0
    %4281 = vmatpush2.msra.mxu0 0.0
    %4282 = vmatprep.subr.mxu0 0.0
    %4283 = vmatpush2.msra.mxu0 0.0
    %4284 = vmatprep.subr.mxu0 0.0
    %4285 = vmatpush2.msra.mxu0 0.0
    %4286 = vmatprep.subr.mxu0 0.0
    %4287 = vmatpush2.msra.mxu0 0.0
    %4288 = vmatprep.subr.mxu0 0.0
    %4289 = vmatpush2.msra.mxu0 0.0
    %4290 = vmatprep.subr.mxu0 0.0
    %4291 = vmatpush2.msra.mxu0 0.0
    %4292 = vmatprep.subr.mxu0 0.0
    %4293 = vmatpush2.msra.mxu0 0.0
    %4294 = vmatprep.subr.mxu0 0.0
    %4295 = vmatpush2.msra.mxu0 0.0
    %4296 = vmatprep.subr.mxu0 0.0
    %4297 = vmatpush2.msra.mxu0 0.0
    %4298 = vmatprep.subr.mxu0 0.0
    %4299 = vmatpush2.msra.mxu0 0.0
    %4300 = vmatprep.mubr.f32.mxu0 0.0
    %v4301 = vand.u32 %v3859, 4294901760
    %4302 = vmatmul.mubr.f32.gmra.mxu0 %v4301
    %v4303 = vpop.f32.mrf.mxu0
    %v4304 = vadd.f32 %v4232, %v4303
    %v4305 = vpop.f32.mrf.mxu0
    %4306 = vdwg.mxu0
    %4309 = vrot.lane.b32.xlu0 %v3852, 8
    %v4310 = vpop.permute.xlu0 %4309
    %4311 = vrot.lane.b32.xlu0 %v4304, 8
    %v4312 = vpop.permute.xlu0 %4311
    %vm4315 = vcmask 130112
    %4316 = vst.msk [vmem:[#allocation2] sm:$0xff] %vm4315, %v4310
    %4317 = vst.msk [vmem:[#allocation2 + $0x8] sm:$0xff] %vm4315, %v4312
    %4318 = vrot.lane.b32.xlu0 %v629, 112
    %v4319 = vpop.permute.xlu0 %4318
    %4320 = vrot.lane.b32.xlu0 %v629, 80
    %v4321 = vpop.permute.xlu0 %4320
    %v4322 = vsel %vm641, %v4319, 0
    %v4324 = vsel %vm641, %v4321, 0
    %4326 = vmatprep.subr.mxu0 0.0
    %4327 = vmatpush1.xpose.msra.mxu0 0.0
    %4328 = vmatprep.subr.mxu0 0.0
    %4329 = vmatpush1.xpose.msra.mxu0 0.0
    %4330 = vmatprep.subr.mxu0 0.0
    %4331 = vmatpush1.xpose.msra.mxu0 0.0
    %4332 = vmatprep.subr.mxu0 0.0
    %4333 = vmatpush1.xpose.msra.mxu0 0.0
    %4334 = vmatprep.subr.mxu0 0.0
    %4335 = vmatpush1.xpose.msra.mxu0 0.0
    %4336 = vmatprep.subr.mxu0 0.0
    %4337 = vmatpush1.xpose.msra.mxu0 0.0
    %4338 = vmatprep.subr.mxu0 0.0
    %4339 = vmatpush1.xpose.msra.mxu0 0.0
    %4340 = vmatprep.subr.mxu0 0.0
    %4341 = vmatpush1.xpose.msra.mxu0 0.0
    %4342 = vmatprep.subr.mxu0 0.0
    %4343 = vmatpush1.xpose.msra.mxu0 0.0
    %4344 = vmatprep.subr.mxu0 0.0
    %4345 = vmatpush1.xpose.msra.mxu0 0.0
    %4346 = vmatprep.subr.mxu0 0.0
    %4347 = vmatpush1.xpose.msra.mxu0 0.0
    %4348 = vmatprep.subr.mxu0 0.0
    %4349 = vmatpush1.xpose.msra.mxu0 0.0
    %4350 = vmatprep.subr.mxu0 0.0
    %4351 = vmatpush1.xpose.msra.mxu0 0.0
    %4352 = vmatprep.subr.mxu0 0.0
    %4353 = vmatpush1.xpose.msra.mxu0 0.0
    %4354 = vmatprep.subr.mxu0 0.0
    %4355 = vmatpush1.xpose.msra.mxu0 0.0
    %4356 = vmatprep.subr.mxu0 0.0
    %v4357 = vand.u32 %v4324, 4294901760
    %4358 = vmatpush1.xpose.msra.mxu0 %v4357
    %4359 = vmatprep.subr.mxu0 0.0
    %4360 = vmatpush2.xpose.msra.mxu0 0.0
    %4361 = vmatprep.subr.mxu0 0.0
    %4362 = vmatpush2.xpose.msra.mxu0 0.0
    %4363 = vmatprep.subr.mxu0 0.0
    %4364 = vmatpush2.xpose.msra.mxu0 0.0
    %4365 = vmatprep.subr.mxu0 0.0
    %4366 = vmatpush2.xpose.msra.mxu0 0.0
    %4367 = vmatprep.subr.mxu0 0.0
    %4368 = vmatpush2.xpose.msra.mxu0 0.0
    %4369 = vmatprep.subr.mxu0 0.0
    %4370 = vmatpush2.xpose.msra.mxu0 0.0
    %4371 = vmatprep.subr.mxu0 0.0
    %4372 = vmatpush2.xpose.msra.mxu0 0.0
    %4373 = vmatprep.subr.mxu0 0.0
    %4374 = vmatpush2.xpose.msra.mxu0 0.0
    %4375 = vmatprep.subr.mxu0 0.0
    %4376 = vmatpush2.xpose.msra.mxu0 0.0
    %4377 = vmatprep.subr.mxu0 0.0
    %4378 = vmatpush2.xpose.msra.mxu0 0.0
    %4379 = vmatprep.subr.mxu0 0.0
    %4380 = vmatpush2.xpose.msra.mxu0 0.0
    %4381 = vmatprep.subr.mxu0 0.0
    %4382 = vmatpush2.xpose.msra.mxu0 0.0
    %4383 = vmatprep.subr.mxu0 0.0
    %4384 = vmatpush2.xpose.msra.mxu0 0.0
    %4385 = vmatprep.subr.mxu0 0.0
    %4386 = vmatpush2.xpose.msra.mxu0 0.0
    %4387 = vmatprep.subr.mxu0 0.0
    %4388 = vmatpush2.xpose.msra.mxu0 0.0
    %4389 = vmatprep.subr.mxu0 0.0
    %4390 = vmatpush2.xpose.msra.mxu0 0.0
    %4391 = vmatprep.mubr.f32.mxu0 0.0
    %v4392 = vand.u32 %v4322, 4294901760
    %v4393 = vsub.f32 %v4322, %v4392
    %v4394 = vand.u32 %v4393, 4294901760
    %v4395 = vsub.f32 %v4393, %v4394
    %v4396 = vand.u32 %v4395, 4294901760
    %4397 = vmatmul.mubr.f32.gmra.mxu0 %v4396
    %v4398 = vpop.f32.mrf.mxu0
    %v4399 = vadd.f32 0.0, %v4398
    %v4400 = vpop.f32.mrf.mxu0
    %4401 = vdwg.mxu0
    %4402 = vmatprep.subr.mxu0 0.0
    %4403 = vmatpush1.xpose.msra.mxu0 0.0
    %4404 = vmatprep.subr.mxu0 0.0
    %4405 = vmatpush1.xpose.msra.mxu0 0.0
    %4406 = vmatprep.subr.mxu0 0.0
    %4407 = vmatpush1.xpose.msra.mxu0 0.0
    %4408 = vmatprep.subr.mxu0 0.0
    %4409 = vmatpush1.xpose.msra.mxu0 0.0
    %4410 = vmatprep.subr.mxu0 0.0
    %4411 = vmatpush1.xpose.msra.mxu0 0.0
    %4412 = vmatprep.subr.mxu0 0.0
    %4413 = vmatpush1.xpose.msra.mxu0 0.0
    %4414 = vmatprep.subr.mxu0 0.0
    %4415 = vmatpush1.xpose.msra.mxu0 0.0
    %4416 = vmatprep.subr.mxu0 0.0
    %4417 = vmatpush1.xpose.msra.mxu0 0.0
    %4418 = vmatprep.subr.mxu0 0.0
    %4419 = vmatpush1.xpose.msra.mxu0 0.0
    %4420 = vmatprep.subr.mxu0 0.0
    %4421 = vmatpush1.xpose.msra.mxu0 0.0
    %4422 = vmatprep.subr.mxu0 0.0
    %4423 = vmatpush1.xpose.msra.mxu0 0.0
    %4424 = vmatprep.subr.mxu0 0.0
    %4425 = vmatpush1.xpose.msra.mxu0 0.0
    %4426 = vmatprep.subr.mxu0 0.0
    %4427 = vmatpush1.xpose.msra.mxu0 0.0
    %4428 = vmatprep.subr.mxu0 0.0
    %4429 = vmatpush1.xpose.msra.mxu0 0.0
    %4430 = vmatprep.subr.mxu0 0.0
    %4431 = vmatpush1.xpose.msra.mxu0 0.0
    %4432 = vmatprep.subr.mxu0 0.0
    %v4433 = vand.u32 %v4324, 4294901760
    %v4434 = vsub.f32 %v4324, %v4433
    %v4435 = vand.u32 %v4434, 4294901760
    %v4436 = vsub.f32 %v4434, %v4435
    %v4437 = vand.u32 %v4436, 4294901760
    %4438 = vmatpush1.xpose.msra.mxu0 %v4437
    %4439 = vmatprep.subr.mxu0 0.0
    %4440 = vmatpush2.xpose.msra.mxu0 0.0
    %4441 = vmatprep.subr.mxu0 0.0
    %4442 = vmatpush2.xpose.msra.mxu0 0.0
    %4443 = vmatprep.subr.mxu0 0.0
    %4444 = vmatpush2.xpose.msra.mxu0 0.0
    %4445 = vmatprep.subr.mxu0 0.0
    %4446 = vmatpush2.xpose.msra.mxu0 0.0
    %4447 = vmatprep.subr.mxu0 0.0
    %4448 = vmatpush2.xpose.msra.mxu0 0.0
    %4449 = vmatprep.subr.mxu0 0.0
    %4450 = vmatpush2.xpose.msra.mxu0 0.0
    %4451 = vmatprep.subr.mxu0 0.0
    %4452 = vmatpush2.xpose.msra.mxu0 0.0
    %4453 = vmatprep.subr.mxu0 0.0
    %4454 = vmatpush2.xpose.msra.mxu0 0.0
    %4455 = vmatprep.subr.mxu0 0.0
    %4456 = vmatpush2.xpose.msra.mxu0 0.0
    %4457 = vmatprep.subr.mxu0 0.0
    %4458 = vmatpush2.xpose.msra.mxu0 0.0
    %4459 = vmatprep.subr.mxu0 0.0
    %4460 = vmatpush2.xpose.msra.mxu0 0.0
    %4461 = vmatprep.subr.mxu0 0.0
    %4462 = vmatpush2.xpose.msra.mxu0 0.0
    %4463 = vmatprep.subr.mxu0 0.0
    %4464 = vmatpush2.xpose.msra.mxu0 0.0
    %4465 = vmatprep.subr.mxu0 0.0
    %4466 = vmatpush2.xpose.msra.mxu0 0.0
    %4467 = vmatprep.subr.mxu0 0.0
    %4468 = vmatpush2.xpose.msra.mxu0 0.0
    %4469 = vmatprep.subr.mxu0 0.0
    %4470 = vmatpush2.xpose.msra.mxu0 0.0
    %4471 = vmatprep.mubr.f32.mxu0 0.0
    %v4472 = vand.u32 %v4322, 4294901760
    %4473 = vmatmul.mubr.f32.gmra.mxu0 %v4472
    %v4474 = vpop.f32.mrf.mxu0
    %v4475 = vadd.f32 %v4399, %v4474
    %v4476 = vpop.f32.mrf.mxu0
    %4477 = vdwg.mxu0
    %4478 = vmatprep.subr.mxu0 0.0
    %4479 = vmatpush1.xpose.msra.mxu0 0.0
    %4480 = vmatprep.subr.mxu0 0.0
    %4481 = vmatpush1.xpose.msra.mxu0 0.0
    %4482 = vmatprep.subr.mxu0 0.0
    %4483 = vmatpush1.xpose.msra.mxu0 0.0
    %4484 = vmatprep.subr.mxu0 0.0
    %4485 = vmatpush1.xpose.msra.mxu0 0.0
    %4486 = vmatprep.subr.mxu0 0.0
    %4487 = vmatpush1.xpose.msra.mxu0 0.0
    %4488 = vmatprep.subr.mxu0 0.0
    %4489 = vmatpush1.xpose.msra.mxu0 0.0
    %4490 = vmatprep.subr.mxu0 0.0
    %4491 = vmatpush1.xpose.msra.mxu0 0.0
    %4492 = vmatprep.subr.mxu0 0.0
    %4493 = vmatpush1.xpose.msra.mxu0 0.0
    %4494 = vmatprep.subr.mxu0 0.0
    %4495 = vmatpush1.xpose.msra.mxu0 0.0
    %4496 = vmatprep.subr.mxu0 0.0
    %4497 = vmatpush1.xpose.msra.mxu0 0.0
    %4498 = vmatprep.subr.mxu0 0.0
    %4499 = vmatpush1.xpose.msra.mxu0 0.0
    %4500 = vmatprep.subr.mxu0 0.0
    %4501 = vmatpush1.xpose.msra.mxu0 0.0
    %4502 = vmatprep.subr.mxu0 0.0
    %4503 = vmatpush1.xpose.msra.mxu0 0.0
    %4504 = vmatprep.subr.mxu0 0.0
    %4505 = vmatpush1.xpose.msra.mxu0 0.0
    %4506 = vmatprep.subr.mxu0 0.0
    %4507 = vmatpush1.xpose.msra.mxu0 0.0
    %4508 = vmatprep.subr.mxu0 0.0
    %v4509 = vand.u32 %v4324, 4294901760
    %v4510 = vsub.f32 %v4324, %v4509
    %4511 = vmatpush1.xpose.msra.mxu0 %v4510
    %4512 = vmatprep.subr.mxu0 0.0
    %4513 = vmatpush2.xpose.msra.mxu0 0.0
    %4514 = vmatprep.subr.mxu0 0.0
    %4515 = vmatpush2.xpose.msra.mxu0 0.0
    %4516 = vmatprep.subr.mxu0 0.0
    %4517 = vmatpush2.xpose.msra.mxu0 0.0
    %4518 = vmatprep.subr.mxu0 0.0
    %4519 = vmatpush2.xpose.msra.mxu0 0.0
    %4520 = vmatprep.subr.mxu0 0.0
    %4521 = vmatpush2.xpose.msra.mxu0 0.0
    %4522 = vmatprep.subr.mxu0 0.0
    %4523 = vmatpush2.xpose.msra.mxu0 0.0
    %4524 = vmatprep.subr.mxu0 0.0
    %4525 = vmatpush2.xpose.msra.mxu0 0.0
    %4526 = vmatprep.subr.mxu0 0.0
    %4527 = vmatpush2.xpose.msra.mxu0 0.0
    %4528 = vmatprep.subr.mxu0 0.0
    %4529 = vmatpush2.xpose.msra.mxu0 0.0
    %4530 = vmatprep.subr.mxu0 0.0
    %4531 = vmatpush2.xpose.msra.mxu0 0.0
    %4532 = vmatprep.subr.mxu0 0.0
    %4533 = vmatpush2.xpose.msra.mxu0 0.0
    %4534 = vmatprep.subr.mxu0 0.0
    %4535 = vmatpush2.xpose.msra.mxu0 0.0
    %4536 = vmatprep.subr.mxu0 0.0
    %4537 = vmatpush2.xpose.msra.mxu0 0.0
    %4538 = vmatprep.subr.mxu0 0.0
    %4539 = vmatpush2.xpose.msra.mxu0 0.0
    %4540 = vmatprep.subr.mxu0 0.0
    %4541 = vmatpush2.xpose.msra.mxu0 0.0
    %4542 = vmatprep.subr.mxu0 0.0
    %4543 = vmatpush2.xpose.msra.mxu0 0.0
    %4544 = vmatprep.mubr.f32.mxu0 0.0
    %v4545 = vand.u32 %v4322, 4294901760
    %v4546 = vsub.f32 %v4322, %v4545
    %4547 = vmatmul.mubr.f32.gmra.mxu0 %v4546
    %v4548 = vpop.f32.mrf.mxu0
    %v4549 = vadd.f32 %v4475, %v4548
    %v4550 = vpop.f32.mrf.mxu0
    %4551 = vdwg.mxu0
    %4552 = vmatprep.subr.mxu0 0.0
    %4553 = vmatpush1.xpose.msra.mxu0 0.0
    %4554 = vmatprep.subr.mxu0 0.0
    %4555 = vmatpush1.xpose.msra.mxu0 0.0
    %4556 = vmatprep.subr.mxu0 0.0
    %4557 = vmatpush1.xpose.msra.mxu0 0.0
    %4558 = vmatprep.subr.mxu0 0.0
    %4559 = vmatpush1.xpose.msra.mxu0 0.0
    %4560 = vmatprep.subr.mxu0 0.0
    %4561 = vmatpush1.xpose.msra.mxu0 0.0
    %4562 = vmatprep.subr.mxu0 0.0
    %4563 = vmatpush1.xpose.msra.mxu0 0.0
    %4564 = vmatprep.subr.mxu0 0.0
    %4565 = vmatpush1.xpose.msra.mxu0 0.0
    %4566 = vmatprep.subr.mxu0 0.0
    %4567 = vmatpush1.xpose.msra.mxu0 0.0
    %4568 = vmatprep.subr.mxu0 0.0
    %4569 = vmatpush1.xpose.msra.mxu0 0.0
    %4570 = vmatprep.subr.mxu0 0.0
    %4571 = vmatpush1.xpose.msra.mxu0 0.0
    %4572 = vmatprep.subr.mxu0 0.0
    %4573 = vmatpush1.xpose.msra.mxu0 0.0
    %4574 = vmatprep.subr.mxu0 0.0
    %4575 = vmatpush1.xpose.msra.mxu0 0.0
    %4576 = vmatprep.subr.mxu0 0.0
    %4577 = vmatpush1.xpose.msra.mxu0 0.0
    %4578 = vmatprep.subr.mxu0 0.0
    %4579 = vmatpush1.xpose.msra.mxu0 0.0
    %4580 = vmatprep.subr.mxu0 0.0
    %4581 = vmatpush1.xpose.msra.mxu0 0.0
    %4582 = vmatprep.subr.mxu0 0.0
    %v4583 = vand.u32 %v4324, 4294901760
    %4584 = vmatpush1.xpose.msra.mxu0 %v4583
    %4585 = vmatprep.subr.mxu0 0.0
    %4586 = vmatpush2.xpose.msra.mxu0 0.0
    %4587 = vmatprep.subr.mxu0 0.0
    %4588 = vmatpush2.xpose.msra.mxu0 0.0
    %4589 = vmatprep.subr.mxu0 0.0
    %4590 = vmatpush2.xpose.msra.mxu0 0.0
    %4591 = vmatprep.subr.mxu0 0.0
    %4592 = vmatpush2.xpose.msra.mxu0 0.0
    %4593 = vmatprep.subr.mxu0 0.0
    %4594 = vmatpush2.xpose.msra.mxu0 0.0
    %4595 = vmatprep.subr.mxu0 0.0
    %4596 = vmatpush2.xpose.msra.mxu0 0.0
    %4597 = vmatprep.subr.mxu0 0.0
    %4598 = vmatpush2.xpose.msra.mxu0 0.0
    %4599 = vmatprep.subr.mxu0 0.0
    %4600 = vmatpush2.xpose.msra.mxu0 0.0
    %4601 = vmatprep.subr.mxu0 0.0
    %4602 = vmatpush2.xpose.msra.mxu0 0.0
    %4603 = vmatprep.subr.mxu0 0.0
    %4604 = vmatpush2.xpose.msra.mxu0 0.0
    %4605 = vmatprep.subr.mxu0 0.0
    %4606 = vmatpush2.xpose.msra.mxu0 0.0
    %4607 = vmatprep.subr.mxu0 0.0
    %4608 = vmatpush2.xpose.msra.mxu0 0.0
    %4609 = vmatprep.subr.mxu0 0.0
    %4610 = vmatpush2.xpose.msra.mxu0 0.0
    %4611 = vmatprep.subr.mxu0 0.0
    %4612 = vmatpush2.xpose.msra.mxu0 0.0
    %4613 = vmatprep.subr.mxu0 0.0
    %4614 = vmatpush2.xpose.msra.mxu0 0.0
    %4615 = vmatprep.subr.mxu0 0.0
    %4616 = vmatpush2.xpose.msra.mxu0 0.0
    %4617 = vmatprep.mubr.f32.mxu0 0.0
    %v4618 = vand.u32 %v4322, 4294901760
    %v4619 = vsub.f32 %v4322, %v4618
    %v4620 = vand.u32 %v4619, 4294901760
    %4621 = vmatmul.mubr.f32.gmra.mxu0 %v4620
    %v4622 = vpop.f32.mrf.mxu0
    %v4623 = vadd.f32 %v4549, %v4622
    %v4624 = vpop.f32.mrf.mxu0
    %4625 = vdwg.mxu0
    %4626 = vmatprep.subr.mxu0 0.0
    %4627 = vmatpush1.xpose.msra.mxu0 0.0
    %4628 = vmatprep.subr.mxu0 0.0
    %4629 = vmatpush1.xpose.msra.mxu0 0.0
    %4630 = vmatprep.subr.mxu0 0.0
    %4631 = vmatpush1.xpose.msra.mxu0 0.0
    %4632 = vmatprep.subr.mxu0 0.0
    %4633 = vmatpush1.xpose.msra.mxu0 0.0
    %4634 = vmatprep.subr.mxu0 0.0
    %4635 = vmatpush1.xpose.msra.mxu0 0.0
    %4636 = vmatprep.subr.mxu0 0.0
    %4637 = vmatpush1.xpose.msra.mxu0 0.0
    %4638 = vmatprep.subr.mxu0 0.0
    %4639 = vmatpush1.xpose.msra.mxu0 0.0
    %4640 = vmatprep.subr.mxu0 0.0
    %4641 = vmatpush1.xpose.msra.mxu0 0.0
    %4642 = vmatprep.subr.mxu0 0.0
    %4643 = vmatpush1.xpose.msra.mxu0 0.0
    %4644 = vmatprep.subr.mxu0 0.0
    %4645 = vmatpush1.xpose.msra.mxu0 0.0
    %4646 = vmatprep.subr.mxu0 0.0
    %4647 = vmatpush1.xpose.msra.mxu0 0.0
    %4648 = vmatprep.subr.mxu0 0.0
    %4649 = vmatpush1.xpose.msra.mxu0 0.0
    %4650 = vmatprep.subr.mxu0 0.0
    %4651 = vmatpush1.xpose.msra.mxu0 0.0
    %4652 = vmatprep.subr.mxu0 0.0
    %4653 = vmatpush1.xpose.msra.mxu0 0.0
    %4654 = vmatprep.subr.mxu0 0.0
    %4655 = vmatpush1.xpose.msra.mxu0 0.0
    %4656 = vmatprep.subr.mxu0 0.0
    %v4657 = vand.u32 %v4324, 4294901760
    %v4658 = vsub.f32 %v4324, %v4657
    %v4659 = vand.u32 %v4658, 4294901760
    %4660 = vmatpush1.xpose.msra.mxu0 %v4659
    %4661 = vmatprep.subr.mxu0 0.0
    %4662 = vmatpush2.xpose.msra.mxu0 0.0
    %4663 = vmatprep.subr.mxu0 0.0
    %4664 = vmatpush2.xpose.msra.mxu0 0.0
    %4665 = vmatprep.subr.mxu0 0.0
    %4666 = vmatpush2.xpose.msra.mxu0 0.0
    %4667 = vmatprep.subr.mxu0 0.0
    %4668 = vmatpush2.xpose.msra.mxu0 0.0
    %4669 = vmatprep.subr.mxu0 0.0
    %4670 = vmatpush2.xpose.msra.mxu0 0.0
    %4671 = vmatprep.subr.mxu0 0.0
    %4672 = vmatpush2.xpose.msra.mxu0 0.0
    %4673 = vmatprep.subr.mxu0 0.0
    %4674 = vmatpush2.xpose.msra.mxu0 0.0
    %4675 = vmatprep.subr.mxu0 0.0
    %4676 = vmatpush2.xpose.msra.mxu0 0.0
    %4677 = vmatprep.subr.mxu0 0.0
    %4678 = vmatpush2.xpose.msra.mxu0 0.0
    %4679 = vmatprep.subr.mxu0 0.0
    %4680 = vmatpush2.xpose.msra.mxu0 0.0
    %4681 = vmatprep.subr.mxu0 0.0
    %4682 = vmatpush2.xpose.msra.mxu0 0.0
    %4683 = vmatprep.subr.mxu0 0.0
    %4684 = vmatpush2.xpose.msra.mxu0 0.0
    %4685 = vmatprep.subr.mxu0 0.0
    %4686 = vmatpush2.xpose.msra.mxu0 0.0
    %4687 = vmatprep.subr.mxu0 0.0
    %4688 = vmatpush2.xpose.msra.mxu0 0.0
    %4689 = vmatprep.subr.mxu0 0.0
    %4690 = vmatpush2.xpose.msra.mxu0 0.0
    %4691 = vmatprep.subr.mxu0 0.0
    %4692 = vmatpush2.xpose.msra.mxu0 0.0
    %4693 = vmatprep.mubr.f32.mxu0 0.0
    %v4694 = vand.u32 %v4322, 4294901760
    %4695 = vmatmul.mubr.f32.gmra.mxu0 %v4694
    %v4696 = vpop.f32.mrf.mxu0
    %v4697 = vadd.f32 %v4623, %v4696
    %v4698 = vpop.f32.mrf.mxu0
    %4699 = vdwg.mxu0
    %4700 = vmatprep.subr.mxu0 0.0
    %4701 = vmatpush1.xpose.msra.mxu0 0.0
    %4702 = vmatprep.subr.mxu0 0.0
    %4703 = vmatpush1.xpose.msra.mxu0 0.0
    %4704 = vmatprep.subr.mxu0 0.0
    %4705 = vmatpush1.xpose.msra.mxu0 0.0
    %4706 = vmatprep.subr.mxu0 0.0
    %4707 = vmatpush1.xpose.msra.mxu0 0.0
    %4708 = vmatprep.subr.mxu0 0.0
    %4709 = vmatpush1.xpose.msra.mxu0 0.0
    %4710 = vmatprep.subr.mxu0 0.0
    %4711 = vmatpush1.xpose.msra.mxu0 0.0
    %4712 = vmatprep.subr.mxu0 0.0
    %4713 = vmatpush1.xpose.msra.mxu0 0.0
    %4714 = vmatprep.subr.mxu0 0.0
    %4715 = vmatpush1.xpose.msra.mxu0 0.0
    %4716 = vmatprep.subr.mxu0 0.0
    %4717 = vmatpush1.xpose.msra.mxu0 0.0
    %4718 = vmatprep.subr.mxu0 0.0
    %4719 = vmatpush1.xpose.msra.mxu0 0.0
    %4720 = vmatprep.subr.mxu0 0.0
    %4721 = vmatpush1.xpose.msra.mxu0 0.0
    %4722 = vmatprep.subr.mxu0 0.0
    %4723 = vmatpush1.xpose.msra.mxu0 0.0
    %4724 = vmatprep.subr.mxu0 0.0
    %4725 = vmatpush1.xpose.msra.mxu0 0.0
    %4726 = vmatprep.subr.mxu0 0.0
    %4727 = vmatpush1.xpose.msra.mxu0 0.0
    %4728 = vmatprep.subr.mxu0 0.0
    %4729 = vmatpush1.xpose.msra.mxu0 0.0
    %4730 = vmatprep.subr.mxu0 0.0
    %v4731 = vand.u32 %v4324, 4294901760
    %4732 = vmatpush1.xpose.msra.mxu0 %v4731
    %4733 = vmatprep.subr.mxu0 0.0
    %4734 = vmatpush2.xpose.msra.mxu0 0.0
    %4735 = vmatprep.subr.mxu0 0.0
    %4736 = vmatpush2.xpose.msra.mxu0 0.0
    %4737 = vmatprep.subr.mxu0 0.0
    %4738 = vmatpush2.xpose.msra.mxu0 0.0
    %4739 = vmatprep.subr.mxu0 0.0
    %4740 = vmatpush2.xpose.msra.mxu0 0.0
    %4741 = vmatprep.subr.mxu0 0.0
    %4742 = vmatpush2.xpose.msra.mxu0 0.0
    %4743 = vmatprep.subr.mxu0 0.0
    %4744 = vmatpush2.xpose.msra.mxu0 0.0
    %4745 = vmatprep.subr.mxu0 0.0
    %4746 = vmatpush2.xpose.msra.mxu0 0.0
    %4747 = vmatprep.subr.mxu0 0.0
    %4748 = vmatpush2.xpose.msra.mxu0 0.0
    %4749 = vmatprep.subr.mxu0 0.0
    %4750 = vmatpush2.xpose.msra.mxu0 0.0
    %4751 = vmatprep.subr.mxu0 0.0
    %4752 = vmatpush2.xpose.msra.mxu0 0.0
    %4753 = vmatprep.subr.mxu0 0.0
    %4754 = vmatpush2.xpose.msra.mxu0 0.0
    %4755 = vmatprep.subr.mxu0 0.0
    %4756 = vmatpush2.xpose.msra.mxu0 0.0
    %4757 = vmatprep.subr.mxu0 0.0
    %4758 = vmatpush2.xpose.msra.mxu0 0.0
    %4759 = vmatprep.subr.mxu0 0.0
    %4760 = vmatpush2.xpose.msra.mxu0 0.0
    %4761 = vmatprep.subr.mxu0 0.0
    %4762 = vmatpush2.xpose.msra.mxu0 0.0
    %4763 = vmatprep.subr.mxu0 0.0
    %4764 = vmatpush2.xpose.msra.mxu0 0.0
    %4765 = vmatprep.mubr.f32.mxu0 0.0
    %v4766 = vand.u32 %v4322, 4294901760
    %4767 = vmatmul.mubr.f32.gmra.mxu0 %v4766
    %v4768 = vpop.f32.mrf.mxu0
    %v4769 = vadd.f32 %v4697, %v4768
    %v4770 = vpop.f32.mrf.mxu0
    %4771 = vdwg.mxu0
    %4772 = vrot.lane.b32.xlu0 %v635, 112
    %v4773 = vpop.permute.xlu0 %4772
    %4774 = vrot.lane.b32.xlu0 %v635, 80
    %v4775 = vpop.permute.xlu0 %4774
    %v4776 = vsel %vm641, %v4773, 0
    %v4778 = vsel %vm641, %v4775, 0
    %4780 = vmatprep.subr.mxu0 0.0
    %4781 = vmatpush1.xpose.msra.mxu0 0.0
    %4782 = vmatprep.subr.mxu0 0.0
    %4783 = vmatpush1.xpose.msra.mxu0 0.0
    %4784 = vmatprep.subr.mxu0 0.0
    %4785 = vmatpush1.xpose.msra.mxu0 0.0
    %4786 = vmatprep.subr.mxu0 0.0
    %4787 = vmatpush1.xpose.msra.mxu0 0.0
    %4788 = vmatprep.subr.mxu0 0.0
    %4789 = vmatpush1.xpose.msra.mxu0 0.0
    %4790 = vmatprep.subr.mxu0 0.0
    %4791 = vmatpush1.xpose.msra.mxu0 0.0
    %4792 = vmatprep.subr.mxu0 0.0
    %4793 = vmatpush1.xpose.msra.mxu0 0.0
    %4794 = vmatprep.subr.mxu0 0.0
    %4795 = vmatpush1.xpose.msra.mxu0 0.0
    %4796 = vmatprep.subr.mxu0 0.0
    %4797 = vmatpush1.xpose.msra.mxu0 0.0
    %4798 = vmatprep.subr.mxu0 0.0
    %4799 = vmatpush1.xpose.msra.mxu0 0.0
    %4800 = vmatprep.subr.mxu0 0.0
    %4801 = vmatpush1.xpose.msra.mxu0 0.0
    %4802 = vmatprep.subr.mxu0 0.0
    %4803 = vmatpush1.xpose.msra.mxu0 0.0
    %4804 = vmatprep.subr.mxu0 0.0
    %4805 = vmatpush1.xpose.msra.mxu0 0.0
    %4806 = vmatprep.subr.mxu0 0.0
    %4807 = vmatpush1.xpose.msra.mxu0 0.0
    %4808 = vmatprep.subr.mxu0 0.0
    %4809 = vmatpush1.xpose.msra.mxu0 0.0
    %4810 = vmatprep.subr.mxu0 0.0
    %v4811 = vand.u32 %v4778, 4294901760
    %4812 = vmatpush1.xpose.msra.mxu0 %v4811
    %4813 = vmatprep.subr.mxu0 0.0
    %4814 = vmatpush2.xpose.msra.mxu0 0.0
    %4815 = vmatprep.subr.mxu0 0.0
    %4816 = vmatpush2.xpose.msra.mxu0 0.0
    %4817 = vmatprep.subr.mxu0 0.0
    %4818 = vmatpush2.xpose.msra.mxu0 0.0
    %4819 = vmatprep.subr.mxu0 0.0
    %4820 = vmatpush2.xpose.msra.mxu0 0.0
    %4821 = vmatprep.subr.mxu0 0.0
    %4822 = vmatpush2.xpose.msra.mxu0 0.0
    %4823 = vmatprep.subr.mxu0 0.0
    %4824 = vmatpush2.xpose.msra.mxu0 0.0
    %4825 = vmatprep.subr.mxu0 0.0
    %4826 = vmatpush2.xpose.msra.mxu0 0.0
    %4827 = vmatprep.subr.mxu0 0.0
    %4828 = vmatpush2.xpose.msra.mxu0 0.0
    %4829 = vmatprep.subr.mxu0 0.0
    %4830 = vmatpush2.xpose.msra.mxu0 0.0
    %4831 = vmatprep.subr.mxu0 0.0
    %4832 = vmatpush2.xpose.msra.mxu0 0.0
    %4833 = vmatprep.subr.mxu0 0.0
    %4834 = vmatpush2.xpose.msra.mxu0 0.0
    %4835 = vmatprep.subr.mxu0 0.0
    %4836 = vmatpush2.xpose.msra.mxu0 0.0
    %4837 = vmatprep.subr.mxu0 0.0
    %4838 = vmatpush2.xpose.msra.mxu0 0.0
    %4839 = vmatprep.subr.mxu0 0.0
    %4840 = vmatpush2.xpose.msra.mxu0 0.0
    %4841 = vmatprep.subr.mxu0 0.0
    %4842 = vmatpush2.xpose.msra.mxu0 0.0
    %4843 = vmatprep.subr.mxu0 0.0
    %4844 = vmatpush2.xpose.msra.mxu0 0.0
    %4845 = vmatprep.mubr.f32.mxu0 0.0
    %v4846 = vand.u32 %v4776, 4294901760
    %v4847 = vsub.f32 %v4776, %v4846
    %v4848 = vand.u32 %v4847, 4294901760
    %v4849 = vsub.f32 %v4847, %v4848
    %v4850 = vand.u32 %v4849, 4294901760
    %4851 = vmatmul.mubr.f32.gmra.mxu0 %v4850
    %v4852 = vpop.f32.mrf.mxu0
    %v4853 = vadd.f32 0.0, %v4852
    %v4854 = vpop.f32.mrf.mxu0
    %4855 = vdwg.mxu0
    %4856 = vmatprep.subr.mxu0 0.0
    %4857 = vmatpush1.xpose.msra.mxu0 0.0
    %4858 = vmatprep.subr.mxu0 0.0
    %4859 = vmatpush1.xpose.msra.mxu0 0.0
    %4860 = vmatprep.subr.mxu0 0.0
    %4861 = vmatpush1.xpose.msra.mxu0 0.0
    %4862 = vmatprep.subr.mxu0 0.0
    %4863 = vmatpush1.xpose.msra.mxu0 0.0
    %4864 = vmatprep.subr.mxu0 0.0
    %4865 = vmatpush1.xpose.msra.mxu0 0.0
    %4866 = vmatprep.subr.mxu0 0.0
    %4867 = vmatpush1.xpose.msra.mxu0 0.0
    %4868 = vmatprep.subr.mxu0 0.0
    %4869 = vmatpush1.xpose.msra.mxu0 0.0
    %4870 = vmatprep.subr.mxu0 0.0
    %4871 = vmatpush1.xpose.msra.mxu0 0.0
    %4872 = vmatprep.subr.mxu0 0.0
    %4873 = vmatpush1.xpose.msra.mxu0 0.0
    %4874 = vmatprep.subr.mxu0 0.0
    %4875 = vmatpush1.xpose.msra.mxu0 0.0
    %4876 = vmatprep.subr.mxu0 0.0
    %4877 = vmatpush1.xpose.msra.mxu0 0.0
    %4878 = vmatprep.subr.mxu0 0.0
    %4879 = vmatpush1.xpose.msra.mxu0 0.0
    %4880 = vmatprep.subr.mxu0 0.0
    %4881 = vmatpush1.xpose.msra.mxu0 0.0
    %4882 = vmatprep.subr.mxu0 0.0
    %4883 = vmatpush1.xpose.msra.mxu0 0.0
    %4884 = vmatprep.subr.mxu0 0.0
    %4885 = vmatpush1.xpose.msra.mxu0 0.0
    %4886 = vmatprep.subr.mxu0 0.0
    %v4887 = vand.u32 %v4778, 4294901760
    %v4888 = vsub.f32 %v4778, %v4887
    %v4889 = vand.u32 %v4888, 4294901760
    %v4890 = vsub.f32 %v4888, %v4889
    %v4891 = vand.u32 %v4890, 4294901760
    %4892 = vmatpush1.xpose.msra.mxu0 %v4891
    %4893 = vmatprep.subr.mxu0 0.0
    %4894 = vmatpush2.xpose.msra.mxu0 0.0
    %4895 = vmatprep.subr.mxu0 0.0
    %4896 = vmatpush2.xpose.msra.mxu0 0.0
    %4897 = vmatprep.subr.mxu0 0.0
    %4898 = vmatpush2.xpose.msra.mxu0 0.0
    %4899 = vmatprep.subr.mxu0 0.0
    %4900 = vmatpush2.xpose.msra.mxu0 0.0
    %4901 = vmatprep.subr.mxu0 0.0
    %4902 = vmatpush2.xpose.msra.mxu0 0.0
    %4903 = vmatprep.subr.mxu0 0.0
    %4904 = vmatpush2.xpose.msra.mxu0 0.0
    %4905 = vmatprep.subr.mxu0 0.0
    %4906 = vmatpush2.xpose.msra.mxu0 0.0
    %4907 = vmatprep.subr.mxu0 0.0
    %4908 = vmatpush2.xpose.msra.mxu0 0.0
    %4909 = vmatprep.subr.mxu0 0.0
    %4910 = vmatpush2.xpose.msra.mxu0 0.0
    %4911 = vmatprep.subr.mxu0 0.0
    %4912 = vmatpush2.xpose.msra.mxu0 0.0
    %4913 = vmatprep.subr.mxu0 0.0
    %4914 = vmatpush2.xpose.msra.mxu0 0.0
    %4915 = vmatprep.subr.mxu0 0.0
    %4916 = vmatpush2.xpose.msra.mxu0 0.0
    %4917 = vmatprep.subr.mxu0 0.0
    %4918 = vmatpush2.xpose.msra.mxu0 0.0
    %4919 = vmatprep.subr.mxu0 0.0
    %4920 = vmatpush2.xpose.msra.mxu0 0.0
    %4921 = vmatprep.subr.mxu0 0.0
    %4922 = vmatpush2.xpose.msra.mxu0 0.0
    %4923 = vmatprep.subr.mxu0 0.0
    %4924 = vmatpush2.xpose.msra.mxu0 0.0
    %4925 = vmatprep.mubr.f32.mxu0 0.0
    %v4926 = vand.u32 %v4776, 4294901760
    %4927 = vmatmul.mubr.f32.gmra.mxu0 %v4926
    %v4928 = vpop.f32.mrf.mxu0
    %v4929 = vadd.f32 %v4853, %v4928
    %v4930 = vpop.f32.mrf.mxu0
    %4931 = vdwg.mxu0
    %4932 = vmatprep.subr.mxu0 0.0
    %4933 = vmatpush1.xpose.msra.mxu0 0.0
    %4934 = vmatprep.subr.mxu0 0.0
    %4935 = vmatpush1.xpose.msra.mxu0 0.0
    %4936 = vmatprep.subr.mxu0 0.0
    %4937 = vmatpush1.xpose.msra.mxu0 0.0
    %4938 = vmatprep.subr.mxu0 0.0
    %4939 = vmatpush1.xpose.msra.mxu0 0.0
    %4940 = vmatprep.subr.mxu0 0.0
    %4941 = vmatpush1.xpose.msra.mxu0 0.0
    %4942 = vmatprep.subr.mxu0 0.0
    %4943 = vmatpush1.xpose.msra.mxu0 0.0
    %4944 = vmatprep.subr.mxu0 0.0
    %4945 = vmatpush1.xpose.msra.mxu0 0.0
    %4946 = vmatprep.subr.mxu0 0.0
    %4947 = vmatpush1.xpose.msra.mxu0 0.0
    %4948 = vmatprep.subr.mxu0 0.0
    %4949 = vmatpush1.xpose.msra.mxu0 0.0
    %4950 = vmatprep.subr.mxu0 0.0
    %4951 = vmatpush1.xpose.msra.mxu0 0.0
    %4952 = vmatprep.subr.mxu0 0.0
    %4953 = vmatpush1.xpose.msra.mxu0 0.0
    %4954 = vmatprep.subr.mxu0 0.0
    %4955 = vmatpush1.xpose.msra.mxu0 0.0
    %4956 = vmatprep.subr.mxu0 0.0
    %4957 = vmatpush1.xpose.msra.mxu0 0.0
    %4958 = vmatprep.subr.mxu0 0.0
    %4959 = vmatpush1.xpose.msra.mxu0 0.0
    %4960 = vmatprep.subr.mxu0 0.0
    %4961 = vmatpush1.xpose.msra.mxu0 0.0
    %4962 = vmatprep.subr.mxu0 0.0
    %v4963 = vand.u32 %v4778, 4294901760
    %v4964 = vsub.f32 %v4778, %v4963
    %4965 = vmatpush1.xpose.msra.mxu0 %v4964
    %4966 = vmatprep.subr.mxu0 0.0
    %4967 = vmatpush2.xpose.msra.mxu0 0.0
    %4968 = vmatprep.subr.mxu0 0.0
    %4969 = vmatpush2.xpose.msra.mxu0 0.0
    %4970 = vmatprep.subr.mxu0 0.0
    %4971 = vmatpush2.xpose.msra.mxu0 0.0
    %4972 = vmatprep.subr.mxu0 0.0
    %4973 = vmatpush2.xpose.msra.mxu0 0.0
    %4974 = vmatprep.subr.mxu0 0.0
    %4975 = vmatpush2.xpose.msra.mxu0 0.0
    %4976 = vmatprep.subr.mxu0 0.0
    %4977 = vmatpush2.xpose.msra.mxu0 0.0
    %4978 = vmatprep.subr.mxu0 0.0
    %4979 = vmatpush2.xpose.msra.mxu0 0.0
    %4980 = vmatprep.subr.mxu0 0.0
    %4981 = vmatpush2.xpose.msra.mxu0 0.0
    %4982 = vmatprep.subr.mxu0 0.0
    %4983 = vmatpush2.xpose.msra.mxu0 0.0
    %4984 = vmatprep.subr.mxu0 0.0
    %4985 = vmatpush2.xpose.msra.mxu0 0.0
    %4986 = vmatprep.subr.mxu0 0.0
    %4987 = vmatpush2.xpose.msra.mxu0 0.0
    %4988 = vmatprep.subr.mxu0 0.0
    %4989 = vmatpush2.xpose.msra.mxu0 0.0
    %4990 = vmatprep.subr.mxu0 0.0
    %4991 = vmatpush2.xpose.msra.mxu0 0.0
    %4992 = vmatprep.subr.mxu0 0.0
    %4993 = vmatpush2.xpose.msra.mxu0 0.0
    %4994 = vmatprep.subr.mxu0 0.0
    %4995 = vmatpush2.xpose.msra.mxu0 0.0
    %4996 = vmatprep.subr.mxu0 0.0
    %4997 = vmatpush2.xpose.msra.mxu0 0.0
    %4998 = vmatprep.mubr.f32.mxu0 0.0
    %v4999 = vand.u32 %v4776, 4294901760
    %v5000 = vsub.f32 %v4776, %v4999
    %5001 = vmatmul.mubr.f32.gmra.mxu0 %v5000
    %v5002 = vpop.f32.mrf.mxu0
    %v5003 = vadd.f32 %v4929, %v5002
    %v5004 = vpop.f32.mrf.mxu0
    %5005 = vdwg.mxu0
    %5006 = vmatprep.subr.mxu0 0.0
    %5007 = vmatpush1.xpose.msra.mxu0 0.0
    %5008 = vmatprep.subr.mxu0 0.0
    %5009 = vmatpush1.xpose.msra.mxu0 0.0
    %5010 = vmatprep.subr.mxu0 0.0
    %5011 = vmatpush1.xpose.msra.mxu0 0.0
    %5012 = vmatprep.subr.mxu0 0.0
    %5013 = vmatpush1.xpose.msra.mxu0 0.0
    %5014 = vmatprep.subr.mxu0 0.0
    %5015 = vmatpush1.xpose.msra.mxu0 0.0
    %5016 = vmatprep.subr.mxu0 0.0
    %5017 = vmatpush1.xpose.msra.mxu0 0.0
    %5018 = vmatprep.subr.mxu0 0.0
    %5019 = vmatpush1.xpose.msra.mxu0 0.0
    %5020 = vmatprep.subr.mxu0 0.0
    %5021 = vmatpush1.xpose.msra.mxu0 0.0
    %5022 = vmatprep.subr.mxu0 0.0
    %5023 = vmatpush1.xpose.msra.mxu0 0.0
    %5024 = vmatprep.subr.mxu0 0.0
    %5025 = vmatpush1.xpose.msra.mxu0 0.0
    %5026 = vmatprep.subr.mxu0 0.0
    %5027 = vmatpush1.xpose.msra.mxu0 0.0
    %5028 = vmatprep.subr.mxu0 0.0
    %5029 = vmatpush1.xpose.msra.mxu0 0.0
    %5030 = vmatprep.subr.mxu0 0.0
    %5031 = vmatpush1.xpose.msra.mxu0 0.0
    %5032 = vmatprep.subr.mxu0 0.0
    %5033 = vmatpush1.xpose.msra.mxu0 0.0
    %5034 = vmatprep.subr.mxu0 0.0
    %5035 = vmatpush1.xpose.msra.mxu0 0.0
    %5036 = vmatprep.subr.mxu0 0.0
    %v5037 = vand.u32 %v4778, 4294901760
    %5038 = vmatpush1.xpose.msra.mxu0 %v5037
    %5039 = vmatprep.subr.mxu0 0.0
    %5040 = vmatpush2.xpose.msra.mxu0 0.0
    %5041 = vmatprep.subr.mxu0 0.0
    %5042 = vmatpush2.xpose.msra.mxu0 0.0
    %5043 = vmatprep.subr.mxu0 0.0
    %5044 = vmatpush2.xpose.msra.mxu0 0.0
    %5045 = vmatprep.subr.mxu0 0.0
    %5046 = vmatpush2.xpose.msra.mxu0 0.0
    %5047 = vmatprep.subr.mxu0 0.0
    %5048 = vmatpush2.xpose.msra.mxu0 0.0
    %5049 = vmatprep.subr.mxu0 0.0
    %5050 = vmatpush2.xpose.msra.mxu0 0.0
    %5051 = vmatprep.subr.mxu0 0.0
    %5052 = vmatpush2.xpose.msra.mxu0 0.0
    %5053 = vmatprep.subr.mxu0 0.0
    %5054 = vmatpush2.xpose.msra.mxu0 0.0
    %5055 = vmatprep.subr.mxu0 0.0
    %5056 = vmatpush2.xpose.msra.mxu0 0.0
    %5057 = vmatprep.subr.mxu0 0.0
    %5058 = vmatpush2.xpose.msra.mxu0 0.0
    %5059 = vmatprep.subr.mxu0 0.0
    %5060 = vmatpush2.xpose.msra.mxu0 0.0
    %5061 = vmatprep.subr.mxu0 0.0
    %5062 = vmatpush2.xpose.msra.mxu0 0.0
    %5063 = vmatprep.subr.mxu0 0.0
    %5064 = vmatpush2.xpose.msra.mxu0 0.0
    %5065 = vmatprep.subr.mxu0 0.0
    %5066 = vmatpush2.xpose.msra.mxu0 0.0
    %5067 = vmatprep.subr.mxu0 0.0
    %5068 = vmatpush2.xpose.msra.mxu0 0.0
    %5069 = vmatprep.subr.mxu0 0.0
    %5070 = vmatpush2.xpose.msra.mxu0 0.0
    %5071 = vmatprep.mubr.f32.mxu0 0.0
    %v5072 = vand.u32 %v4776, 4294901760
    %v5073 = vsub.f32 %v4776, %v5072
    %v5074 = vand.u32 %v5073, 4294901760
    %5075 = vmatmul.mubr.f32.gmra.mxu0 %v5074
    %v5076 = vpop.f32.mrf.mxu0
    %v5077 = vadd.f32 %v5003, %v5076
    %v5078 = vpop.f32.mrf.mxu0
    %5079 = vdwg.mxu0
    %5080 = vmatprep.subr.mxu0 0.0
    %5081 = vmatpush1.xpose.msra.mxu0 0.0
    %5082 = vmatprep.subr.mxu0 0.0
    %5083 = vmatpush1.xpose.msra.mxu0 0.0
    %5084 = vmatprep.subr.mxu0 0.0
    %5085 = vmatpush1.xpose.msra.mxu0 0.0
    %5086 = vmatprep.subr.mxu0 0.0
    %5087 = vmatpush1.xpose.msra.mxu0 0.0
    %5088 = vmatprep.subr.mxu0 0.0
    %5089 = vmatpush1.xpose.msra.mxu0 0.0
    %5090 = vmatprep.subr.mxu0 0.0
    %5091 = vmatpush1.xpose.msra.mxu0 0.0
    %5092 = vmatprep.subr.mxu0 0.0
    %5093 = vmatpush1.xpose.msra.mxu0 0.0
    %5094 = vmatprep.subr.mxu0 0.0
    %5095 = vmatpush1.xpose.msra.mxu0 0.0
    %5096 = vmatprep.subr.mxu0 0.0
    %5097 = vmatpush1.xpose.msra.mxu0 0.0
    %5098 = vmatprep.subr.mxu0 0.0
    %5099 = vmatpush1.xpose.msra.mxu0 0.0
    %5100 = vmatprep.subr.mxu0 0.0
    %5101 = vmatpush1.xpose.msra.mxu0 0.0
    %5102 = vmatprep.subr.mxu0 0.0
    %5103 = vmatpush1.xpose.msra.mxu0 0.0
    %5104 = vmatprep.subr.mxu0 0.0
    %5105 = vmatpush1.xpose.msra.mxu0 0.0
    %5106 = vmatprep.subr.mxu0 0.0
    %5107 = vmatpush1.xpose.msra.mxu0 0.0
    %5108 = vmatprep.subr.mxu0 0.0
    %5109 = vmatpush1.xpose.msra.mxu0 0.0
    %5110 = vmatprep.subr.mxu0 0.0
    %v5111 = vand.u32 %v4778, 4294901760
    %v5112 = vsub.f32 %v4778, %v5111
    %v5113 = vand.u32 %v5112, 4294901760
    %5114 = vmatpush1.xpose.msra.mxu0 %v5113
    %5115 = vmatprep.subr.mxu0 0.0
    %5116 = vmatpush2.xpose.msra.mxu0 0.0
    %5117 = vmatprep.subr.mxu0 0.0
    %5118 = vmatpush2.xpose.msra.mxu0 0.0
    %5119 = vmatprep.subr.mxu0 0.0
    %5120 = vmatpush2.xpose.msra.mxu0 0.0
    %5121 = vmatprep.subr.mxu0 0.0
    %5122 = vmatpush2.xpose.msra.mxu0 0.0
    %5123 = vmatprep.subr.mxu0 0.0
    %5124 = vmatpush2.xpose.msra.mxu0 0.0
    %5125 = vmatprep.subr.mxu0 0.0
    %5126 = vmatpush2.xpose.msra.mxu0 0.0
    %5127 = vmatprep.subr.mxu0 0.0
    %5128 = vmatpush2.xpose.msra.mxu0 0.0
    %5129 = vmatprep.subr.mxu0 0.0
    %5130 = vmatpush2.xpose.msra.mxu0 0.0
    %5131 = vmatprep.subr.mxu0 0.0
    %5132 = vmatpush2.xpose.msra.mxu0 0.0
    %5133 = vmatprep.subr.mxu0 0.0
    %5134 = vmatpush2.xpose.msra.mxu0 0.0
    %5135 = vmatprep.subr.mxu0 0.0
    %5136 = vmatpush2.xpose.msra.mxu0 0.0
    %5137 = vmatprep.subr.mxu0 0.0
    %5138 = vmatpush2.xpose.msra.mxu0 0.0
    %5139 = vmatprep.subr.mxu0 0.0
    %5140 = vmatpush2.xpose.msra.mxu0 0.0
    %5141 = vmatprep.subr.mxu0 0.0
    %5142 = vmatpush2.xpose.msra.mxu0 0.0
    %5143 = vmatprep.subr.mxu0 0.0
    %5144 = vmatpush2.xpose.msra.mxu0 0.0
    %5145 = vmatprep.subr.mxu0 0.0
    %5146 = vmatpush2.xpose.msra.mxu0 0.0
    %5147 = vmatprep.mubr.f32.mxu0 0.0
    %v5148 = vand.u32 %v4776, 4294901760
    %5149 = vmatmul.mubr.f32.gmra.mxu0 %v5148
    %v5150 = vpop.f32.mrf.mxu0
    %v5151 = vadd.f32 %v5077, %v5150
    %v5152 = vpop.f32.mrf.mxu0
    %5153 = vdwg.mxu0
    %5154 = vmatprep.subr.mxu0 0.0
    %5155 = vmatpush1.xpose.msra.mxu0 0.0
    %5156 = vmatprep.subr.mxu0 0.0
    %5157 = vmatpush1.xpose.msra.mxu0 0.0
    %5158 = vmatprep.subr.mxu0 0.0
    %5159 = vmatpush1.xpose.msra.mxu0 0.0
    %5160 = vmatprep.subr.mxu0 0.0
    %5161 = vmatpush1.xpose.msra.mxu0 0.0
    %5162 = vmatprep.subr.mxu0 0.0
    %5163 = vmatpush1.xpose.msra.mxu0 0.0
    %5164 = vmatprep.subr.mxu0 0.0
    %5165 = vmatpush1.xpose.msra.mxu0 0.0
    %5166 = vmatprep.subr.mxu0 0.0
    %5167 = vmatpush1.xpose.msra.mxu0 0.0
    %5168 = vmatprep.subr.mxu0 0.0
    %5169 = vmatpush1.xpose.msra.mxu0 0.0
    %5170 = vmatprep.subr.mxu0 0.0
    %5171 = vmatpush1.xpose.msra.mxu0 0.0
    %5172 = vmatprep.subr.mxu0 0.0
    %5173 = vmatpush1.xpose.msra.mxu0 0.0
    %5174 = vmatprep.subr.mxu0 0.0
    %5175 = vmatpush1.xpose.msra.mxu0 0.0
    %5176 = vmatprep.subr.mxu0 0.0
    %5177 = vmatpush1.xpose.msra.mxu0 0.0
    %5178 = vmatprep.subr.mxu0 0.0
    %5179 = vmatpush1.xpose.msra.mxu0 0.0
    %5180 = vmatprep.subr.mxu0 0.0
    %5181 = vmatpush1.xpose.msra.mxu0 0.0
    %5182 = vmatprep.subr.mxu0 0.0
    %5183 = vmatpush1.xpose.msra.mxu0 0.0
    %5184 = vmatprep.subr.mxu0 0.0
    %v5185 = vand.u32 %v4778, 4294901760
    %5186 = vmatpush1.xpose.msra.mxu0 %v5185
    %5187 = vmatprep.subr.mxu0 0.0
    %5188 = vmatpush2.xpose.msra.mxu0 0.0
    %5189 = vmatprep.subr.mxu0 0.0
    %5190 = vmatpush2.xpose.msra.mxu0 0.0
    %5191 = vmatprep.subr.mxu0 0.0
    %5192 = vmatpush2.xpose.msra.mxu0 0.0
    %5193 = vmatprep.subr.mxu0 0.0
    %5194 = vmatpush2.xpose.msra.mxu0 0.0
    %5195 = vmatprep.subr.mxu0 0.0
    %5196 = vmatpush2.xpose.msra.mxu0 0.0
    %5197 = vmatprep.subr.mxu0 0.0
    %5198 = vmatpush2.xpose.msra.mxu0 0.0
    %5199 = vmatprep.subr.mxu0 0.0
    %5200 = vmatpush2.xpose.msra.mxu0 0.0
    %5201 = vmatprep.subr.mxu0 0.0
    %5202 = vmatpush2.xpose.msra.mxu0 0.0
    %5203 = vmatprep.subr.mxu0 0.0
    %5204 = vmatpush2.xpose.msra.mxu0 0.0
    %5205 = vmatprep.subr.mxu0 0.0
    %5206 = vmatpush2.xpose.msra.mxu0 0.0
    %5207 = vmatprep.subr.mxu0 0.0
    %5208 = vmatpush2.xpose.msra.mxu0 0.0
    %5209 = vmatprep.subr.mxu0 0.0
    %5210 = vmatpush2.xpose.msra.mxu0 0.0
    %5211 = vmatprep.subr.mxu0 0.0
    %5212 = vmatpush2.xpose.msra.mxu0 0.0
    %5213 = vmatprep.subr.mxu0 0.0
    %5214 = vmatpush2.xpose.msra.mxu0 0.0
    %5215 = vmatprep.subr.mxu0 0.0
    %5216 = vmatpush2.xpose.msra.mxu0 0.0
    %5217 = vmatprep.subr.mxu0 0.0
    %5218 = vmatpush2.xpose.msra.mxu0 0.0
    %5219 = vmatprep.mubr.f32.mxu0 0.0
    %v5220 = vand.u32 %v4776, 4294901760
    %5221 = vmatmul.mubr.f32.gmra.mxu0 %v5220
    %v5222 = vpop.f32.mrf.mxu0
    %v5223 = vadd.f32 %v5151, %v5222
    %v5224 = vpop.f32.mrf.mxu0
    %5225 = vdwg.mxu0
    %v5226 = vsel %vm641, %v4769, -inf
    %5227 = vmax.xlane.f32.xlu0 %v5226
    %v5228 = vpop.xlane.xlu0 %5227
    %v5229 = vsel %vm641, %v5223, -inf
    %5230 = vmax.xlane.f32.xlu0 %v5229
    %v5231 = vpop.xlane.xlu0 %5230
    %v5232 = vsub.f32 %v4769, %v5228
    %v5233 = vsub.f32 %v5223, %v5231
    %v5234 = vmul.f32 %v5232, 1.442695
    %v5235 = vpow.pop %v5234
    %v5236 = vmul.f32 %v5233, 1.442695
    %v5237 = vpow.pop %v5236
    %v5238 = vsel %vm641, %v5235, 0.0
    %5239 = vadd.xlane.f32.xlu0 %v5238
    %v5240 = vpop.xlane.xlu0 %5239
    %v5241 = vsel %vm641, %v5237, 0.0
    %5242 = vadd.xlane.f32.xlu0 %v5241
    %v5243 = vpop.xlane.xlu0 %5242
    %v5244 = vrcp.pop %v5240
    %v5245 = vrcp.pop %v5243
    %v5246 = vmul.f32 %v5235, %v5244
    %v5247 = vmul.f32 %v5237, %v5245
    %5248 = vrot.lane.b32.xlu0 %v629, 48
    %v5249 = vpop.permute.xlu0 %5248
    %v5252 = vsel %vm641, %v5246, 0
    %5254 = vmatprep.subr.mxu0 0.0
    %5255 = vmatpush1.msra.mxu0 0.0
    %5256 = vmatprep.subr.mxu0 0.0
    %5257 = vmatpush1.msra.mxu0 0.0
    %5258 = vmatprep.subr.mxu0 0.0
    %5259 = vmatpush1.msra.mxu0 0.0
    %5260 = vmatprep.subr.mxu0 0.0
    %5261 = vmatpush1.msra.mxu0 0.0
    %5262 = vmatprep.subr.mxu0 0.0
    %5263 = vmatpush1.msra.mxu0 0.0
    %5264 = vmatprep.subr.mxu0 0.0
    %5265 = vmatpush1.msra.mxu0 0.0
    %5266 = vmatprep.subr.mxu0 0.0
    %5267 = vmatpush1.msra.mxu0 0.0
    %5268 = vmatprep.subr.mxu0 0.0
    %5269 = vmatpush1.msra.mxu0 0.0
    %5270 = vmatprep.subr.mxu0 0.0
    %5271 = vmatpush1.msra.mxu0 0.0
    %5272 = vmatprep.subr.mxu0 0.0
    %5273 = vmatpush1.msra.mxu0 0.0
    %5274 = vmatprep.subr.mxu0 0.0
    %5275 = vmatpush1.msra.mxu0 0.0
    %5276 = vmatprep.subr.mxu0 0.0
    %5277 = vmatpush1.msra.mxu0 0.0
    %5278 = vmatprep.subr.mxu0 0.0
    %5279 = vmatpush1.msra.mxu0 0.0
    %5280 = vmatprep.subr.mxu0 0.0
    %5281 = vmatpush1.msra.mxu0 0.0
    %5282 = vmatprep.subr.mxu0 0.0
    %5283 = vmatpush1.msra.mxu0 0.0
    %5284 = vmatprep.subr.mxu0 0.0
    %v5285 = vand.u32 %v5249, 4294901760
    %5286 = vmatpush1.msra.mxu0 %v5285
    %5287 = vmatprep.subr.mxu0 0.0
    %5288 = vmatpush2.msra.mxu0 0.0
    %5289 = vmatprep.subr.mxu0 0.0
    %5290 = vmatpush2.msra.mxu0 0.0
    %5291 = vmatprep.subr.mxu0 0.0
    %5292 = vmatpush2.msra.mxu0 0.0
    %5293 = vmatprep.subr.mxu0 0.0
    %5294 = vmatpush2.msra.mxu0 0.0
    %5295 = vmatprep.subr.mxu0 0.0
    %5296 = vmatpush2.msra.mxu0 0.0
    %5297 = vmatprep.subr.mxu0 0.0
    %5298 = vmatpush2.msra.mxu0 0.0
    %5299 = vmatprep.subr.mxu0 0.0
    %5300 = vmatpush2.msra.mxu0 0.0
    %5301 = vmatprep.subr.mxu0 0.0
    %5302 = vmatpush2.msra.mxu0 0.0
    %5303 = vmatprep.subr.mxu0 0.0
    %5304 = vmatpush2.msra.mxu0 0.0
    %5305 = vmatprep.subr.mxu0 0.0
    %5306 = vmatpush2.msra.mxu0 0.0
    %5307 = vmatprep.subr.mxu0 0.0
    %5308 = vmatpush2.msra.mxu0 0.0
    %5309 = vmatprep.subr.mxu0 0.0
    %5310 = vmatpush2.msra.mxu0 0.0
    %5311 = vmatprep.subr.mxu0 0.0
    %5312 = vmatpush2.msra.mxu0 0.0
    %5313 = vmatprep.subr.mxu0 0.0
    %5314 = vmatpush2.msra.mxu0 0.0
    %5315 = vmatprep.subr.mxu0 0.0
    %5316 = vmatpush2.msra.mxu0 0.0
    %5317 = vmatprep.subr.mxu0 0.0
    %5318 = vmatpush2.msra.mxu0 0.0
    %5319 = vmatprep.mubr.f32.mxu0 0.0
    %v5320 = vand.u32 %v5252, 4294901760
    %v5321 = vsub.f32 %v5252, %v5320
    %v5322 = vand.u32 %v5321, 4294901760
    %v5323 = vsub.f32 %v5321, %v5322
    %v5324 = vand.u32 %v5323, 4294901760
    %5325 = vmatmul.mubr.f32.gmra.mxu0 %v5324
    %v5326 = vpop.f32.mrf.mxu0
    %v5327 = vadd.f32 0.0, %v5326
    %v5328 = vpop.f32.mrf.mxu0
    %5329 = vdwg.mxu0
    %5330 = vmatprep.subr.mxu0 0.0
    %5331 = vmatpush1.msra.mxu0 0.0
    %5332 = vmatprep.subr.mxu0 0.0
    %5333 = vmatpush1.msra.mxu0 0.0
    %5334 = vmatprep.subr.mxu0 0.0
    %5335 = vmatpush1.msra.mxu0 0.0
    %5336 = vmatprep.subr.mxu0 0.0
    %5337 = vmatpush1.msra.mxu0 0.0
    %5338 = vmatprep.subr.mxu0 0.0
    %5339 = vmatpush1.msra.mxu0 0.0
    %5340 = vmatprep.subr.mxu0 0.0
    %5341 = vmatpush1.msra.mxu0 0.0
    %5342 = vmatprep.subr.mxu0 0.0
    %5343 = vmatpush1.msra.mxu0 0.0
    %5344 = vmatprep.subr.mxu0 0.0
    %5345 = vmatpush1.msra.mxu0 0.0
    %5346 = vmatprep.subr.mxu0 0.0
    %5347 = vmatpush1.msra.mxu0 0.0
    %5348 = vmatprep.subr.mxu0 0.0
    %5349 = vmatpush1.msra.mxu0 0.0
    %5350 = vmatprep.subr.mxu0 0.0
    %5351 = vmatpush1.msra.mxu0 0.0
    %5352 = vmatprep.subr.mxu0 0.0
    %5353 = vmatpush1.msra.mxu0 0.0
    %5354 = vmatprep.subr.mxu0 0.0
    %5355 = vmatpush1.msra.mxu0 0.0
    %5356 = vmatprep.subr.mxu0 0.0
    %5357 = vmatpush1.msra.mxu0 0.0
    %5358 = vmatprep.subr.mxu0 0.0
    %5359 = vmatpush1.msra.mxu0 0.0
    %5360 = vmatprep.subr.mxu0 0.0
    %v5361 = vand.u32 %v5249, 4294901760
    %v5362 = vsub.f32 %v5249, %v5361
    %v5363 = vand.u32 %v5362, 4294901760
    %v5364 = vsub.f32 %v5362, %v5363
    %v5365 = vand.u32 %v5364, 4294901760
    %5366 = vmatpush1.msra.mxu0 %v5365
    %5367 = vmatprep.subr.mxu0 0.0
    %5368 = vmatpush2.msra.mxu0 0.0
    %5369 = vmatprep.subr.mxu0 0.0
    %5370 = vmatpush2.msra.mxu0 0.0
    %5371 = vmatprep.subr.mxu0 0.0
    %5372 = vmatpush2.msra.mxu0 0.0
    %5373 = vmatprep.subr.mxu0 0.0
    %5374 = vmatpush2.msra.mxu0 0.0
    %5375 = vmatprep.subr.mxu0 0.0
    %5376 = vmatpush2.msra.mxu0 0.0
    %5377 = vmatprep.subr.mxu0 0.0
    %5378 = vmatpush2.msra.mxu0 0.0
    %5379 = vmatprep.subr.mxu0 0.0
    %5380 = vmatpush2.msra.mxu0 0.0
    %5381 = vmatprep.subr.mxu0 0.0
    %5382 = vmatpush2.msra.mxu0 0.0
    %5383 = vmatprep.subr.mxu0 0.0
    %5384 = vmatpush2.msra.mxu0 0.0
    %5385 = vmatprep.subr.mxu0 0.0
    %5386 = vmatpush2.msra.mxu0 0.0
    %5387 = vmatprep.subr.mxu0 0.0
    %5388 = vmatpush2.msra.mxu0 0.0
    %5389 = vmatprep.subr.mxu0 0.0
    %5390 = vmatpush2.msra.mxu0 0.0
    %5391 = vmatprep.subr.mxu0 0.0
    %5392 = vmatpush2.msra.mxu0 0.0
    %5393 = vmatprep.subr.mxu0 0.0
    %5394 = vmatpush2.msra.mxu0 0.0
    %5395 = vmatprep.subr.mxu0 0.0
    %5396 = vmatpush2.msra.mxu0 0.0
    %5397 = vmatprep.subr.mxu0 0.0
    %5398 = vmatpush2.msra.mxu0 0.0
    %5399 = vmatprep.mubr.f32.mxu0 0.0
    %v5400 = vand.u32 %v5252, 4294901760
    %5401 = vmatmul.mubr.f32.gmra.mxu0 %v5400
    %v5402 = vpop.f32.mrf.mxu0
    %v5403 = vadd.f32 %v5327, %v5402
    %v5404 = vpop.f32.mrf.mxu0
    %5405 = vdwg.mxu0
    %5406 = vmatprep.subr.mxu0 0.0
    %5407 = vmatpush1.msra.mxu0 0.0
    %5408 = vmatprep.subr.mxu0 0.0
    %5409 = vmatpush1.msra.mxu0 0.0
    %5410 = vmatprep.subr.mxu0 0.0
    %5411 = vmatpush1.msra.mxu0 0.0
    %5412 = vmatprep.subr.mxu0 0.0
    %5413 = vmatpush1.msra.mxu0 0.0
    %5414 = vmatprep.subr.mxu0 0.0
    %5415 = vmatpush1.msra.mxu0 0.0
    %5416 = vmatprep.subr.mxu0 0.0
    %5417 = vmatpush1.msra.mxu0 0.0
    %5418 = vmatprep.subr.mxu0 0.0
    %5419 = vmatpush1.msra.mxu0 0.0
    %5420 = vmatprep.subr.mxu0 0.0
    %5421 = vmatpush1.msra.mxu0 0.0
    %5422 = vmatprep.subr.mxu0 0.0
    %5423 = vmatpush1.msra.mxu0 0.0
    %5424 = vmatprep.subr.mxu0 0.0
    %5425 = vmatpush1.msra.mxu0 0.0
    %5426 = vmatprep.subr.mxu0 0.0
    %5427 = vmatpush1.msra.mxu0 0.0
    %5428 = vmatprep.subr.mxu0 0.0
    %5429 = vmatpush1.msra.mxu0 0.0
    %5430 = vmatprep.subr.mxu0 0.0
    %5431 = vmatpush1.msra.mxu0 0.0
    %5432 = vmatprep.subr.mxu0 0.0
    %5433 = vmatpush1.msra.mxu0 0.0
    %5434 = vmatprep.subr.mxu0 0.0
    %5435 = vmatpush1.msra.mxu0 0.0
    %5436 = vmatprep.subr.mxu0 0.0
    %v5437 = vand.u32 %v5249, 4294901760
    %v5438 = vsub.f32 %v5249, %v5437
    %5439 = vmatpush1.msra.mxu0 %v5438
    %5440 = vmatprep.subr.mxu0 0.0
    %5441 = vmatpush2.msra.mxu0 0.0
    %5442 = vmatprep.subr.mxu0 0.0
    %5443 = vmatpush2.msra.mxu0 0.0
    %5444 = vmatprep.subr.mxu0 0.0
    %5445 = vmatpush2.msra.mxu0 0.0
    %5446 = vmatprep.subr.mxu0 0.0
    %5447 = vmatpush2.msra.mxu0 0.0
    %5448 = vmatprep.subr.mxu0 0.0
    %5449 = vmatpush2.msra.mxu0 0.0
    %5450 = vmatprep.subr.mxu0 0.0
    %5451 = vmatpush2.msra.mxu0 0.0
    %5452 = vmatprep.subr.mxu0 0.0
    %5453 = vmatpush2.msra.mxu0 0.0
    %5454 = vmatprep.subr.mxu0 0.0
    %5455 = vmatpush2.msra.mxu0 0.0
    %5456 = vmatprep.subr.mxu0 0.0
    %5457 = vmatpush2.msra.mxu0 0.0
    %5458 = vmatprep.subr.mxu0 0.0
    %5459 = vmatpush2.msra.mxu0 0.0
    %5460 = vmatprep.subr.mxu0 0.0
    %5461 = vmatpush2.msra.mxu0 0.0
    %5462 = vmatprep.subr.mxu0 0.0
    %5463 = vmatpush2.msra.mxu0 0.0
    %5464 = vmatprep.subr.mxu0 0.0
    %5465 = vmatpush2.msra.mxu0 0.0
    %5466 = vmatprep.subr.mxu0 0.0
    %5467 = vmatpush2.msra.mxu0 0.0
    %5468 = vmatprep.subr.mxu0 0.0
    %5469 = vmatpush2.msra.mxu0 0.0
    %5470 = vmatprep.subr.mxu0 0.0
    %5471 = vmatpush2.msra.mxu0 0.0
    %5472 = vmatprep.mubr.f32.mxu0 0.0
    %v5473 = vand.u32 %v5252, 4294901760
    %v5474 = vsub.f32 %v5252, %v5473
    %5475 = vmatmul.mubr.f32.gmra.mxu0 %v5474
    %v5476 = vpop.f32.mrf.mxu0
    %v5477 = vadd.f32 %v5403, %v5476
    %v5478 = vpop.f32.mrf.mxu0
    %5479 = vdwg.mxu0
    %5480 = vmatprep.subr.mxu0 0.0
    %5481 = vmatpush1.msra.mxu0 0.0
    %5482 = vmatprep.subr.mxu0 0.0
    %5483 = vmatpush1.msra.mxu0 0.0
    %5484 = vmatprep.subr.mxu0 0.0
    %5485 = vmatpush1.msra.mxu0 0.0
    %5486 = vmatprep.subr.mxu0 0.0
    %5487 = vmatpush1.msra.mxu0 0.0
    %5488 = vmatprep.subr.mxu0 0.0
    %5489 = vmatpush1.msra.mxu0 0.0
    %5490 = vmatprep.subr.mxu0 0.0
    %5491 = vmatpush1.msra.mxu0 0.0
    %5492 = vmatprep.subr.mxu0 0.0
    %5493 = vmatpush1.msra.mxu0 0.0
    %5494 = vmatprep.subr.mxu0 0.0
    %5495 = vmatpush1.msra.mxu0 0.0
    %5496 = vmatprep.subr.mxu0 0.0
    %5497 = vmatpush1.msra.mxu0 0.0
    %5498 = vmatprep.subr.mxu0 0.0
    %5499 = vmatpush1.msra.mxu0 0.0
    %5500 = vmatprep.subr.mxu0 0.0
    %5501 = vmatpush1.msra.mxu0 0.0
    %5502 = vmatprep.subr.mxu0 0.0
    %5503 = vmatpush1.msra.mxu0 0.0
    %5504 = vmatprep.subr.mxu0 0.0
    %5505 = vmatpush1.msra.mxu0 0.0
    %5506 = vmatprep.subr.mxu0 0.0
    %5507 = vmatpush1.msra.mxu0 0.0
    %5508 = vmatprep.subr.mxu0 0.0
    %5509 = vmatpush1.msra.mxu0 0.0
    %5510 = vmatprep.subr.mxu0 0.0
    %v5511 = vand.u32 %v5249, 4294901760
    %5512 = vmatpush1.msra.mxu0 %v5511
    %5513 = vmatprep.subr.mxu0 0.0
    %5514 = vmatpush2.msra.mxu0 0.0
    %5515 = vmatprep.subr.mxu0 0.0
    %5516 = vmatpush2.msra.mxu0 0.0
    %5517 = vmatprep.subr.mxu0 0.0
    %5518 = vmatpush2.msra.mxu0 0.0
    %5519 = vmatprep.subr.mxu0 0.0
    %5520 = vmatpush2.msra.mxu0 0.0
    %5521 = vmatprep.subr.mxu0 0.0
    %5522 = vmatpush2.msra.mxu0 0.0
    %5523 = vmatprep.subr.mxu0 0.0
    %5524 = vmatpush2.msra.mxu0 0.0
    %5525 = vmatprep.subr.mxu0 0.0
    %5526 = vmatpush2.msra.mxu0 0.0
    %5527 = vmatprep.subr.mxu0 0.0
    %5528 = vmatpush2.msra.mxu0 0.0
    %5529 = vmatprep.subr.mxu0 0.0
    %5530 = vmatpush2.msra.mxu0 0.0
    %5531 = vmatprep.subr.mxu0 0.0
    %5532 = vmatpush2.msra.mxu0 0.0
    %5533 = vmatprep.subr.mxu0 0.0
    %5534 = vmatpush2.msra.mxu0 0.0
    %5535 = vmatprep.subr.mxu0 0.0
    %5536 = vmatpush2.msra.mxu0 0.0
    %5537 = vmatprep.subr.mxu0 0.0
    %5538 = vmatpush2.msra.mxu0 0.0
    %5539 = vmatprep.subr.mxu0 0.0
    %5540 = vmatpush2.msra.mxu0 0.0
    %5541 = vmatprep.subr.mxu0 0.0
    %5542 = vmatpush2.msra.mxu0 0.0
    %5543 = vmatprep.subr.mxu0 0.0
    %5544 = vmatpush2.msra.mxu0 0.0
    %5545 = vmatprep.mubr.f32.mxu0 0.0
    %v5546 = vand.u32 %v5252, 4294901760
    %v5547 = vsub.f32 %v5252, %v5546
    %v5548 = vand.u32 %v5547, 4294901760
    %5549 = vmatmul.mubr.f32.gmra.mxu0 %v5548
    %v5550 = vpop.f32.mrf.mxu0
    %v5551 = vadd.f32 %v5477, %v5550
    %v5552 = vpop.f32.mrf.mxu0
    %5553 = vdwg.mxu0
    %5554 = vmatprep.subr.mxu0 0.0
    %5555 = vmatpush1.msra.mxu0 0.0
    %5556 = vmatprep.subr.mxu0 0.0
    %5557 = vmatpush1.msra.mxu0 0.0
    %5558 = vmatprep.subr.mxu0 0.0
    %5559 = vmatpush1.msra.mxu0 0.0
    %5560 = vmatprep.subr.mxu0 0.0
    %5561 = vmatpush1.msra.mxu0 0.0
    %5562 = vmatprep.subr.mxu0 0.0
    %5563 = vmatpush1.msra.mxu0 0.0
    %5564 = vmatprep.subr.mxu0 0.0
    %5565 = vmatpush1.msra.mxu0 0.0
    %5566 = vmatprep.subr.mxu0 0.0
    %5567 = vmatpush1.msra.mxu0 0.0
    %5568 = vmatprep.subr.mxu0 0.0
    %5569 = vmatpush1.msra.mxu0 0.0
    %5570 = vmatprep.subr.mxu0 0.0
    %5571 = vmatpush1.msra.mxu0 0.0
    %5572 = vmatprep.subr.mxu0 0.0
    %5573 = vmatpush1.msra.mxu0 0.0
    %5574 = vmatprep.subr.mxu0 0.0
    %5575 = vmatpush1.msra.mxu0 0.0
    %5576 = vmatprep.subr.mxu0 0.0
    %5577 = vmatpush1.msra.mxu0 0.0
    %5578 = vmatprep.subr.mxu0 0.0
    %5579 = vmatpush1.msra.mxu0 0.0
    %5580 = vmatprep.subr.mxu0 0.0
    %5581 = vmatpush1.msra.mxu0 0.0
    %5582 = vmatprep.subr.mxu0 0.0
    %5583 = vmatpush1.msra.mxu0 0.0
    %5584 = vmatprep.subr.mxu0 0.0
    %v5585 = vand.u32 %v5249, 4294901760
    %v5586 = vsub.f32 %v5249, %v5585
    %v5587 = vand.u32 %v5586, 4294901760
    %5588 = vmatpush1.msra.mxu0 %v5587
    %5589 = vmatprep.subr.mxu0 0.0
    %5590 = vmatpush2.msra.mxu0 0.0
    %5591 = vmatprep.subr.mxu0 0.0
    %5592 = vmatpush2.msra.mxu0 0.0
    %5593 = vmatprep.subr.mxu0 0.0
    %5594 = vmatpush2.msra.mxu0 0.0
    %5595 = vmatprep.subr.mxu0 0.0
    %5596 = vmatpush2.msra.mxu0 0.0
    %5597 = vmatprep.subr.mxu0 0.0
    %5598 = vmatpush2.msra.mxu0 0.0
    %5599 = vmatprep.subr.mxu0 0.0
    %5600 = vmatpush2.msra.mxu0 0.0
    %5601 = vmatprep.subr.mxu0 0.0
    %5602 = vmatpush2.msra.mxu0 0.0
    %5603 = vmatprep.subr.mxu0 0.0
    %5604 = vmatpush2.msra.mxu0 0.0
    %5605 = vmatprep.subr.mxu0 0.0
    %5606 = vmatpush2.msra.mxu0 0.0
    %5607 = vmatprep.subr.mxu0 0.0
    %5608 = vmatpush2.msra.mxu0 0.0
    %5609 = vmatprep.subr.mxu0 0.0
    %5610 = vmatpush2.msra.mxu0 0.0
    %5611 = vmatprep.subr.mxu0 0.0
    %5612 = vmatpush2.msra.mxu0 0.0
    %5613 = vmatprep.subr.mxu0 0.0
    %5614 = vmatpush2.msra.mxu0 0.0
    %5615 = vmatprep.subr.mxu0 0.0
    %5616 = vmatpush2.msra.mxu0 0.0
    %5617 = vmatprep.subr.mxu0 0.0
    %5618 = vmatpush2.msra.mxu0 0.0
    %5619 = vmatprep.subr.mxu0 0.0
    %5620 = vmatpush2.msra.mxu0 0.0
    %5621 = vmatprep.mubr.f32.mxu0 0.0
    %v5622 = vand.u32 %v5252, 4294901760
    %5623 = vmatmul.mubr.f32.gmra.mxu0 %v5622
    %v5624 = vpop.f32.mrf.mxu0
    %v5625 = vadd.f32 %v5551, %v5624
    %v5626 = vpop.f32.mrf.mxu0
    %5627 = vdwg.mxu0
    %5628 = vmatprep.subr.mxu0 0.0
    %5629 = vmatpush1.msra.mxu0 0.0
    %5630 = vmatprep.subr.mxu0 0.0
    %5631 = vmatpush1.msra.mxu0 0.0
    %5632 = vmatprep.subr.mxu0 0.0
    %5633 = vmatpush1.msra.mxu0 0.0
    %5634 = vmatprep.subr.mxu0 0.0
    %5635 = vmatpush1.msra.mxu0 0.0
    %5636 = vmatprep.subr.mxu0 0.0
    %5637 = vmatpush1.msra.mxu0 0.0
    %5638 = vmatprep.subr.mxu0 0.0
    %5639 = vmatpush1.msra.mxu0 0.0
    %5640 = vmatprep.subr.mxu0 0.0
    %5641 = vmatpush1.msra.mxu0 0.0
    %5642 = vmatprep.subr.mxu0 0.0
    %5643 = vmatpush1.msra.mxu0 0.0
    %5644 = vmatprep.subr.mxu0 0.0
    %5645 = vmatpush1.msra.mxu0 0.0
    %5646 = vmatprep.subr.mxu0 0.0
    %5647 = vmatpush1.msra.mxu0 0.0
    %5648 = vmatprep.subr.mxu0 0.0
    %5649 = vmatpush1.msra.mxu0 0.0
    %5650 = vmatprep.subr.mxu0 0.0
    %5651 = vmatpush1.msra.mxu0 0.0
    %5652 = vmatprep.subr.mxu0 0.0
    %5653 = vmatpush1.msra.mxu0 0.0
    %5654 = vmatprep.subr.mxu0 0.0
    %5655 = vmatpush1.msra.mxu0 0.0
    %5656 = vmatprep.subr.mxu0 0.0
    %5657 = vmatpush1.msra.mxu0 0.0
    %5658 = vmatprep.subr.mxu0 0.0
    %v5659 = vand.u32 %v5249, 4294901760
    %5660 = vmatpush1.msra.mxu0 %v5659
    %5661 = vmatprep.subr.mxu0 0.0
    %5662 = vmatpush2.msra.mxu0 0.0
    %5663 = vmatprep.subr.mxu0 0.0
    %5664 = vmatpush2.msra.mxu0 0.0
    %5665 = vmatprep.subr.mxu0 0.0
    %5666 = vmatpush2.msra.mxu0 0.0
    %5667 = vmatprep.subr.mxu0 0.0
    %5668 = vmatpush2.msra.mxu0 0.0
    %5669 = vmatprep.subr.mxu0 0.0
    %5670 = vmatpush2.msra.mxu0 0.0
    %5671 = vmatprep.subr.mxu0 0.0
    %5672 = vmatpush2.msra.mxu0 0.0
    %5673 = vmatprep.subr.mxu0 0.0
    %5674 = vmatpush2.msra.mxu0 0.0
    %5675 = vmatprep.subr.mxu0 0.0
    %5676 = vmatpush2.msra.mxu0 0.0
    %5677 = vmatprep.subr.mxu0 0.0
    %5678 = vmatpush2.msra.mxu0 0.0
    %5679 = vmatprep.subr.mxu0 0.0
    %5680 = vmatpush2.msra.mxu0 0.0
    %5681 = vmatprep.subr.mxu0 0.0
    %5682 = vmatpush2.msra.mxu0 0.0
    %5683 = vmatprep.subr.mxu0 0.0
    %5684 = vmatpush2.msra.mxu0 0.0
    %5685 = vmatprep.subr.mxu0 0.0
    %5686 = vmatpush2.msra.mxu0 0.0
    %5687 = vmatprep.subr.mxu0 0.0
    %5688 = vmatpush2.msra.mxu0 0.0
    %5689 = vmatprep.subr.mxu0 0.0
    %5690 = vmatpush2.msra.mxu0 0.0
    %5691 = vmatprep.subr.mxu0 0.0
    %5692 = vmatpush2.msra.mxu0 0.0
    %5693 = vmatprep.mubr.f32.mxu0 0.0
    %v5694 = vand.u32 %v5252, 4294901760
    %5695 = vmatmul.mubr.f32.gmra.mxu0 %v5694
    %v5696 = vpop.f32.mrf.mxu0
    %v5697 = vadd.f32 %v5625, %v5696
    %v5698 = vpop.f32.mrf.mxu0
    %5699 = vdwg.mxu0
    %5700 = vrot.lane.b32.xlu0 %v635, 48
    %v5701 = vpop.permute.xlu0 %5700
    %v5704 = vsel %vm641, %v5247, 0
    %5706 = vmatprep.subr.mxu0 0.0
    %5707 = vmatpush1.msra.mxu0 0.0
    %5708 = vmatprep.subr.mxu0 0.0
    %5709 = vmatpush1.msra.mxu0 0.0
    %5710 = vmatprep.subr.mxu0 0.0
    %5711 = vmatpush1.msra.mxu0 0.0
    %5712 = vmatprep.subr.mxu0 0.0
    %5713 = vmatpush1.msra.mxu0 0.0
    %5714 = vmatprep.subr.mxu0 0.0
    %5715 = vmatpush1.msra.mxu0 0.0
    %5716 = vmatprep.subr.mxu0 0.0
    %5717 = vmatpush1.msra.mxu0 0.0
    %5718 = vmatprep.subr.mxu0 0.0
    %5719 = vmatpush1.msra.mxu0 0.0
    %5720 = vmatprep.subr.mxu0 0.0
    %5721 = vmatpush1.msra.mxu0 0.0
    %5722 = vmatprep.subr.mxu0 0.0
    %5723 = vmatpush1.msra.mxu0 0.0
    %5724 = vmatprep.subr.mxu0 0.0
    %5725 = vmatpush1.msra.mxu0 0.0
    %5726 = vmatprep.subr.mxu0 0.0
    %5727 = vmatpush1.msra.mxu0 0.0
    %5728 = vmatprep.subr.mxu0 0.0
    %5729 = vmatpush1.msra.mxu0 0.0
    %5730 = vmatprep.subr.mxu0 0.0
    %5731 = vmatpush1.msra.mxu0 0.0
    %5732 = vmatprep.subr.mxu0 0.0
    %5733 = vmatpush1.msra.mxu0 0.0
    %5734 = vmatprep.subr.mxu0 0.0
    %5735 = vmatpush1.msra.mxu0 0.0
    %5736 = vmatprep.subr.mxu0 0.0
    %v5737 = vand.u32 %v5701, 4294901760
    %5738 = vmatpush1.msra.mxu0 %v5737
    %5739 = vmatprep.subr.mxu0 0.0
    %5740 = vmatpush2.msra.mxu0 0.0
    %5741 = vmatprep.subr.mxu0 0.0
    %5742 = vmatpush2.msra.mxu0 0.0
    %5743 = vmatprep.subr.mxu0 0.0
    %5744 = vmatpush2.msra.mxu0 0.0
    %5745 = vmatprep.subr.mxu0 0.0
    %5746 = vmatpush2.msra.mxu0 0.0
    %5747 = vmatprep.subr.mxu0 0.0
    %5748 = vmatpush2.msra.mxu0 0.0
    %5749 = vmatprep.subr.mxu0 0.0
    %5750 = vmatpush2.msra.mxu0 0.0
    %5751 = vmatprep.subr.mxu0 0.0
    %5752 = vmatpush2.msra.mxu0 0.0
    %5753 = vmatprep.subr.mxu0 0.0
    %5754 = vmatpush2.msra.mxu0 0.0
    %5755 = vmatprep.subr.mxu0 0.0
    %5756 = vmatpush2.msra.mxu0 0.0
    %5757 = vmatprep.subr.mxu0 0.0
    %5758 = vmatpush2.msra.mxu0 0.0
    %5759 = vmatprep.subr.mxu0 0.0
    %5760 = vmatpush2.msra.mxu0 0.0
    %5761 = vmatprep.subr.mxu0 0.0
    %5762 = vmatpush2.msra.mxu0 0.0
    %5763 = vmatprep.subr.mxu0 0.0
    %5764 = vmatpush2.msra.mxu0 0.0
    %5765 = vmatprep.subr.mxu0 0.0
    %5766 = vmatpush2.msra.mxu0 0.0
    %5767 = vmatprep.subr.mxu0 0.0
    %5768 = vmatpush2.msra.mxu0 0.0
    %5769 = vmatprep.subr.mxu0 0.0
    %5770 = vmatpush2.msra.mxu0 0.0
    %5771 = vmatprep.mubr.f32.mxu0 0.0
    %v5772 = vand.u32 %v5704, 4294901760
    %v5773 = vsub.f32 %v5704, %v5772
    %v5774 = vand.u32 %v5773, 4294901760
    %v5775 = vsub.f32 %v5773, %v5774
    %v5776 = vand.u32 %v5775, 4294901760
    %5777 = vmatmul.mubr.f32.gmra.mxu0 %v5776
    %v5778 = vpop.f32.mrf.mxu0
    %v5779 = vadd.f32 0.0, %v5778
    %v5780 = vpop.f32.mrf.mxu0
    %5781 = vdwg.mxu0
    %5782 = vmatprep.subr.mxu0 0.0
    %5783 = vmatpush1.msra.mxu0 0.0
    %5784 = vmatprep.subr.mxu0 0.0
    %5785 = vmatpush1.msra.mxu0 0.0
    %5786 = vmatprep.subr.mxu0 0.0
    %5787 = vmatpush1.msra.mxu0 0.0
    %5788 = vmatprep.subr.mxu0 0.0
    %5789 = vmatpush1.msra.mxu0 0.0
    %5790 = vmatprep.subr.mxu0 0.0
    %5791 = vmatpush1.msra.mxu0 0.0
    %5792 = vmatprep.subr.mxu0 0.0
    %5793 = vmatpush1.msra.mxu0 0.0
    %5794 = vmatprep.subr.mxu0 0.0
    %5795 = vmatpush1.msra.mxu0 0.0
    %5796 = vmatprep.subr.mxu0 0.0
    %5797 = vmatpush1.msra.mxu0 0.0
    %5798 = vmatprep.subr.mxu0 0.0
    %5799 = vmatpush1.msra.mxu0 0.0
    %5800 = vmatprep.subr.mxu0 0.0
    %5801 = vmatpush1.msra.mxu0 0.0
    %5802 = vmatprep.subr.mxu0 0.0
    %5803 = vmatpush1.msra.mxu0 0.0
    %5804 = vmatprep.subr.mxu0 0.0
    %5805 = vmatpush1.msra.mxu0 0.0
    %5806 = vmatprep.subr.mxu0 0.0
    %5807 = vmatpush1.msra.mxu0 0.0
    %5808 = vmatprep.subr.mxu0 0.0
    %5809 = vmatpush1.msra.mxu0 0.0
    %5810 = vmatprep.subr.mxu0 0.0
    %5811 = vmatpush1.msra.mxu0 0.0
    %5812 = vmatprep.subr.mxu0 0.0
    %v5813 = vand.u32 %v5701, 4294901760
    %v5814 = vsub.f32 %v5701, %v5813
    %v5815 = vand.u32 %v5814, 4294901760
    %v5816 = vsub.f32 %v5814, %v5815
    %v5817 = vand.u32 %v5816, 4294901760
    %5818 = vmatpush1.msra.mxu0 %v5817
    %5819 = vmatprep.subr.mxu0 0.0
    %5820 = vmatpush2.msra.mxu0 0.0
    %5821 = vmatprep.subr.mxu0 0.0
    %5822 = vmatpush2.msra.mxu0 0.0
    %5823 = vmatprep.subr.mxu0 0.0
    %5824 = vmatpush2.msra.mxu0 0.0
    %5825 = vmatprep.subr.mxu0 0.0
    %5826 = vmatpush2.msra.mxu0 0.0
    %5827 = vmatprep.subr.mxu0 0.0
    %5828 = vmatpush2.msra.mxu0 0.0
    %5829 = vmatprep.subr.mxu0 0.0
    %5830 = vmatpush2.msra.mxu0 0.0
    %5831 = vmatprep.subr.mxu0 0.0
    %5832 = vmatpush2.msra.mxu0 0.0
    %5833 = vmatprep.subr.mxu0 0.0
    %5834 = vmatpush2.msra.mxu0 0.0
    %5835 = vmatprep.subr.mxu0 0.0
    %5836 = vmatpush2.msra.mxu0 0.0
    %5837 = vmatprep.subr.mxu0 0.0
    %5838 = vmatpush2.msra.mxu0 0.0
    %5839 = vmatprep.subr.mxu0 0.0
    %5840 = vmatpush2.msra.mxu0 0.0
    %5841 = vmatprep.subr.mxu0 0.0
    %5842 = vmatpush2.msra.mxu0 0.0
    %5843 = vmatprep.subr.mxu0 0.0
    %5844 = vmatpush2.msra.mxu0 0.0
    %5845 = vmatprep.subr.mxu0 0.0
    %5846 = vmatpush2.msra.mxu0 0.0
    %5847 = vmatprep.subr.mxu0 0.0
    %5848 = vmatpush2.msra.mxu0 0.0
    %5849 = vmatprep.subr.mxu0 0.0
    %5850 = vmatpush2.msra.mxu0 0.0
    %5851 = vmatprep.mubr.f32.mxu0 0.0
    %v5852 = vand.u32 %v5704, 4294901760
    %5853 = vmatmul.mubr.f32.gmra.mxu0 %v5852
    %v5854 = vpop.f32.mrf.mxu0
    %v5855 = vadd.f32 %v5779, %v5854
    %v5856 = vpop.f32.mrf.mxu0
    %5857 = vdwg.mxu0
    %5858 = vmatprep.subr.mxu0 0.0
    %5859 = vmatpush1.msra.mxu0 0.0
    %5860 = vmatprep.subr.mxu0 0.0
    %5861 = vmatpush1.msra.mxu0 0.0
    %5862 = vmatprep.subr.mxu0 0.0
    %5863 = vmatpush1.msra.mxu0 0.0
    %5864 = vmatprep.subr.mxu0 0.0
    %5865 = vmatpush1.msra.mxu0 0.0
    %5866 = vmatprep.subr.mxu0 0.0
    %5867 = vmatpush1.msra.mxu0 0.0
    %5868 = vmatprep.subr.mxu0 0.0
    %5869 = vmatpush1.msra.mxu0 0.0
    %5870 = vmatprep.subr.mxu0 0.0
    %5871 = vmatpush1.msra.mxu0 0.0
    %5872 = vmatprep.subr.mxu0 0.0
    %5873 = vmatpush1.msra.mxu0 0.0
    %5874 = vmatprep.subr.mxu0 0.0
    %5875 = vmatpush1.msra.mxu0 0.0
    %5876 = vmatprep.subr.mxu0 0.0
    %5877 = vmatpush1.msra.mxu0 0.0
    %5878 = vmatprep.subr.mxu0 0.0
    %5879 = vmatpush1.msra.mxu0 0.0
    %5880 = vmatprep.subr.mxu0 0.0
    %5881 = vmatpush1.msra.mxu0 0.0
    %5882 = vmatprep.subr.mxu0 0.0
    %5883 = vmatpush1.msra.mxu0 0.0
    %5884 = vmatprep.subr.mxu0 0.0
    %5885 = vmatpush1.msra.mxu0 0.0
    %5886 = vmatprep.subr.mxu0 0.0
    %5887 = vmatpush1.msra.mxu0 0.0
    %5888 = vmatprep.subr.mxu0 0.0
    %v5889 = vand.u32 %v5701, 4294901760
    %v5890 = vsub.f32 %v5701, %v5889
    %5891 = vmatpush1.msra.mxu0 %v5890
    %5892 = vmatprep.subr.mxu0 0.0
    %5893 = vmatpush2.msra.mxu0 0.0
    %5894 = vmatprep.subr.mxu0 0.0
    %5895 = vmatpush2.msra.mxu0 0.0
    %5896 = vmatprep.subr.mxu0 0.0
    %5897 = vmatpush2.msra.mxu0 0.0
    %5898 = vmatprep.subr.mxu0 0.0
    %5899 = vmatpush2.msra.mxu0 0.0
    %5900 = vmatprep.subr.mxu0 0.0
    %5901 = vmatpush2.msra.mxu0 0.0
    %5902 = vmatprep.subr.mxu0 0.0
    %5903 = vmatpush2.msra.mxu0 0.0
    %5904 = vmatprep.subr.mxu0 0.0
    %5905 = vmatpush2.msra.mxu0 0.0
    %5906 = vmatprep.subr.mxu0 0.0
    %5907 = vmatpush2.msra.mxu0 0.0
    %5908 = vmatprep.subr.mxu0 0.0
    %5909 = vmatpush2.msra.mxu0 0.0
    %5910 = vmatprep.subr.mxu0 0.0
    %5911 = vmatpush2.msra.mxu0 0.0
    %5912 = vmatprep.subr.mxu0 0.0
    %5913 = vmatpush2.msra.mxu0 0.0
    %5914 = vmatprep.subr.mxu0 0.0
    %5915 = vmatpush2.msra.mxu0 0.0
    %5916 = vmatprep.subr.mxu0 0.0
    %5917 = vmatpush2.msra.mxu0 0.0
    %5918 = vmatprep.subr.mxu0 0.0
    %5919 = vmatpush2.msra.mxu0 0.0
    %5920 = vmatprep.subr.mxu0 0.0
    %5921 = vmatpush2.msra.mxu0 0.0
    %5922 = vmatprep.subr.mxu0 0.0
    %5923 = vmatpush2.msra.mxu0 0.0
    %5924 = vmatprep.mubr.f32.mxu0 0.0
    %v5925 = vand.u32 %v5704, 4294901760
    %v5926 = vsub.f32 %v5704, %v5925
    %5927 = vmatmul.mubr.f32.gmra.mxu0 %v5926
    %v5928 = vpop.f32.mrf.mxu0
    %v5929 = vadd.f32 %v5855, %v5928
    %v5930 = vpop.f32.mrf.mxu0
    %5931 = vdwg.mxu0
    %5932 = vmatprep.subr.mxu0 0.0
    %5933 = vmatpush1.msra.mxu0 0.0
    %5934 = vmatprep.subr.mxu0 0.0
    %5935 = vmatpush1.msra.mxu0 0.0
    %5936 = vmatprep.subr.mxu0 0.0
    %5937 = vmatpush1.msra.mxu0 0.0
    %5938 = vmatprep.subr.mxu0 0.0
    %5939 = vmatpush1.msra.mxu0 0.0
    %5940 = vmatprep.subr.mxu0 0.0
    %5941 = vmatpush1.msra.mxu0 0.0
    %5942 = vmatprep.subr.mxu0 0.0
    %5943 = vmatpush1.msra.mxu0 0.0
    %5944 = vmatprep.subr.mxu0 0.0
    %5945 = vmatpush1.msra.mxu0 0.0
    %5946 = vmatprep.subr.mxu0 0.0
    %5947 = vmatpush1.msra.mxu0 0.0
    %5948 = vmatprep.subr.mxu0 0.0
    %5949 = vmatpush1.msra.mxu0 0.0
    %5950 = vmatprep.subr.mxu0 0.0
    %5951 = vmatpush1.msra.mxu0 0.0
    %5952 = vmatprep.subr.mxu0 0.0
    %5953 = vmatpush1.msra.mxu0 0.0
    %5954 = vmatprep.subr.mxu0 0.0
    %5955 = vmatpush1.msra.mxu0 0.0
    %5956 = vmatprep.subr.mxu0 0.0
    %5957 = vmatpush1.msra.mxu0 0.0
    %5958 = vmatprep.subr.mxu0 0.0
    %5959 = vmatpush1.msra.mxu0 0.0
    %5960 = vmatprep.subr.mxu0 0.0
    %5961 = vmatpush1.msra.mxu0 0.0
    %5962 = vmatprep.subr.mxu0 0.0
    %v5963 = vand.u32 %v5701, 4294901760
    %5964 = vmatpush1.msra.mxu0 %v5963
    %5965 = vmatprep.subr.mxu0 0.0
    %5966 = vmatpush2.msra.mxu0 0.0
    %5967 = vmatprep.subr.mxu0 0.0
    %5968 = vmatpush2.msra.mxu0 0.0
    %5969 = vmatprep.subr.mxu0 0.0
    %5970 = vmatpush2.msra.mxu0 0.0
    %5971 = vmatprep.subr.mxu0 0.0
    %5972 = vmatpush2.msra.mxu0 0.0
    %5973 = vmatprep.subr.mxu0 0.0
    %5974 = vmatpush2.msra.mxu0 0.0
    %5975 = vmatprep.subr.mxu0 0.0
    %5976 = vmatpush2.msra.mxu0 0.0
    %5977 = vmatprep.subr.mxu0 0.0
    %5978 = vmatpush2.msra.mxu0 0.0
    %5979 = vmatprep.subr.mxu0 0.0
    %5980 = vmatpush2.msra.mxu0 0.0
    %5981 = vmatprep.subr.mxu0 0.0
    %5982 = vmatpush2.msra.mxu0 0.0
    %5983 = vmatprep.subr.mxu0 0.0
    %5984 = vmatpush2.msra.mxu0 0.0
    %5985 = vmatprep.subr.mxu0 0.0
    %5986 = vmatpush2.msra.mxu0 0.0
    %5987 = vmatprep.subr.mxu0 0.0
    %5988 = vmatpush2.msra.mxu0 0.0
    %5989 = vmatprep.subr.mxu0 0.0
    %5990 = vmatpush2.msra.mxu0 0.0
    %5991 = vmatprep.subr.mxu0 0.0
    %5992 = vmatpush2.msra.mxu0 0.0
    %5993 = vmatprep.subr.mxu0 0.0
    %5994 = vmatpush2.msra.mxu0 0.0
    %5995 = vmatprep.subr.mxu0 0.0
    %5996 = vmatpush2.msra.mxu0 0.0
    %5997 = vmatprep.mubr.f32.mxu0 0.0
    %v5998 = vand.u32 %v5704, 4294901760
    %v5999 = vsub.f32 %v5704, %v5998
    %v6000 = vand.u32 %v5999, 4294901760
    %6001 = vmatmul.mubr.f32.gmra.mxu0 %v6000
    %v6002 = vpop.f32.mrf.mxu0
    %v6003 = vadd.f32 %v5929, %v6002
    %v6004 = vpop.f32.mrf.mxu0
    %6005 = vdwg.mxu0
    %6006 = vmatprep.subr.mxu0 0.0
    %6007 = vmatpush1.msra.mxu0 0.0
    %6008 = vmatprep.subr.mxu0 0.0
    %6009 = vmatpush1.msra.mxu0 0.0
    %6010 = vmatprep.subr.mxu0 0.0
    %6011 = vmatpush1.msra.mxu0 0.0
    %6012 = vmatprep.subr.mxu0 0.0
    %6013 = vmatpush1.msra.mxu0 0.0
    %6014 = vmatprep.subr.mxu0 0.0
    %6015 = vmatpush1.msra.mxu0 0.0
    %6016 = vmatprep.subr.mxu0 0.0
    %6017 = vmatpush1.msra.mxu0 0.0
    %6018 = vmatprep.subr.mxu0 0.0
    %6019 = vmatpush1.msra.mxu0 0.0
    %6020 = vmatprep.subr.mxu0 0.0
    %6021 = vmatpush1.msra.mxu0 0.0
    %6022 = vmatprep.subr.mxu0 0.0
    %6023 = vmatpush1.msra.mxu0 0.0
    %6024 = vmatprep.subr.mxu0 0.0
    %6025 = vmatpush1.msra.mxu0 0.0
    %6026 = vmatprep.subr.mxu0 0.0
    %6027 = vmatpush1.msra.mxu0 0.0
    %6028 = vmatprep.subr.mxu0 0.0
    %6029 = vmatpush1.msra.mxu0 0.0
    %6030 = vmatprep.subr.mxu0 0.0
    %6031 = vmatpush1.msra.mxu0 0.0
    %6032 = vmatprep.subr.mxu0 0.0
    %6033 = vmatpush1.msra.mxu0 0.0
    %6034 = vmatprep.subr.mxu0 0.0
    %6035 = vmatpush1.msra.mxu0 0.0
    %6036 = vmatprep.subr.mxu0 0.0
    %v6037 = vand.u32 %v5701, 4294901760
    %v6038 = vsub.f32 %v5701, %v6037
    %v6039 = vand.u32 %v6038, 4294901760
    %6040 = vmatpush1.msra.mxu0 %v6039
    %6041 = vmatprep.subr.mxu0 0.0
    %6042 = vmatpush2.msra.mxu0 0.0
    %6043 = vmatprep.subr.mxu0 0.0
    %6044 = vmatpush2.msra.mxu0 0.0
    %6045 = vmatprep.subr.mxu0 0.0
    %6046 = vmatpush2.msra.mxu0 0.0
    %6047 = vmatprep.subr.mxu0 0.0
    %6048 = vmatpush2.msra.mxu0 0.0
    %6049 = vmatprep.subr.mxu0 0.0
    %6050 = vmatpush2.msra.mxu0 0.0
    %6051 = vmatprep.subr.mxu0 0.0
    %6052 = vmatpush2.msra.mxu0 0.0
    %6053 = vmatprep.subr.mxu0 0.0
    %6054 = vmatpush2.msra.mxu0 0.0
    %6055 = vmatprep.subr.mxu0 0.0
    %6056 = vmatpush2.msra.mxu0 0.0
    %6057 = vmatprep.subr.mxu0 0.0
    %6058 = vmatpush2.msra.mxu0 0.0
    %6059 = vmatprep.subr.mxu0 0.0
    %6060 = vmatpush2.msra.mxu0 0.0
    %6061 = vmatprep.subr.mxu0 0.0
    %6062 = vmatpush2.msra.mxu0 0.0
    %6063 = vmatprep.subr.mxu0 0.0
    %6064 = vmatpush2.msra.mxu0 0.0
    %6065 = vmatprep.subr.mxu0 0.0
    %6066 = vmatpush2.msra.mxu0 0.0
    %6067 = vmatprep.subr.mxu0 0.0
    %6068 = vmatpush2.msra.mxu0 0.0
    %6069 = vmatprep.subr.mxu0 0.0
    %6070 = vmatpush2.msra.mxu0 0.0
    %6071 = vmatprep.subr.mxu0 0.0
    %6072 = vmatpush2.msra.mxu0 0.0
    %6073 = vmatprep.mubr.f32.mxu0 0.0
    %v6074 = vand.u32 %v5704, 4294901760
    %6075 = vmatmul.mubr.f32.gmra.mxu0 %v6074
    %v6076 = vpop.f32.mrf.mxu0
    %v6077 = vadd.f32 %v6003, %v6076
    %v6078 = vpop.f32.mrf.mxu0
    %6079 = vdwg.mxu0
    %6080 = vmatprep.subr.mxu0 0.0
    %6081 = vmatpush1.msra.mxu0 0.0
    %6082 = vmatprep.subr.mxu0 0.0
    %6083 = vmatpush1.msra.mxu0 0.0
    %6084 = vmatprep.subr.mxu0 0.0
    %6085 = vmatpush1.msra.mxu0 0.0
    %6086 = vmatprep.subr.mxu0 0.0
    %6087 = vmatpush1.msra.mxu0 0.0
    %6088 = vmatprep.subr.mxu0 0.0
    %6089 = vmatpush1.msra.mxu0 0.0
    %6090 = vmatprep.subr.mxu0 0.0
    %6091 = vmatpush1.msra.mxu0 0.0
    %6092 = vmatprep.subr.mxu0 0.0
    %6093 = vmatpush1.msra.mxu0 0.0
    %6094 = vmatprep.subr.mxu0 0.0
    %6095 = vmatpush1.msra.mxu0 0.0
    %6096 = vmatprep.subr.mxu0 0.0
    %6097 = vmatpush1.msra.mxu0 0.0
    %6098 = vmatprep.subr.mxu0 0.0
    %6099 = vmatpush1.msra.mxu0 0.0
    %6100 = vmatprep.subr.mxu0 0.0
    %6101 = vmatpush1.msra.mxu0 0.0
    %6102 = vmatprep.subr.mxu0 0.0
    %6103 = vmatpush1.msra.mxu0 0.0
    %6104 = vmatprep.subr.mxu0 0.0
    %6105 = vmatpush1.msra.mxu0 0.0
    %6106 = vmatprep.subr.mxu0 0.0
    %6107 = vmatpush1.msra.mxu0 0.0
    %6108 = vmatprep.subr.mxu0 0.0
    %6109 = vmatpush1.msra.mxu0 0.0
    %6110 = vmatprep.subr.mxu0 0.0
    %v6111 = vand.u32 %v5701, 4294901760
    %6112 = vmatpush1.msra.mxu0 %v6111
    %6113 = vmatprep.subr.mxu0 0.0
    %6114 = vmatpush2.msra.mxu0 0.0
    %6115 = vmatprep.subr.mxu0 0.0
    %6116 = vmatpush2.msra.mxu0 0.0
    %6117 = vmatprep.subr.mxu0 0.0
    %6118 = vmatpush2.msra.mxu0 0.0
    %6119 = vmatprep.subr.mxu0 0.0
    %6120 = vmatpush2.msra.mxu0 0.0
    %6121 = vmatprep.subr.mxu0 0.0
    %6122 = vmatpush2.msra.mxu0 0.0
    %6123 = vmatprep.subr.mxu0 0.0
    %6124 = vmatpush2.msra.mxu0 0.0
    %6125 = vmatprep.subr.mxu0 0.0
    %6126 = vmatpush2.msra.mxu0 0.0
    %6127 = vmatprep.subr.mxu0 0.0
    %6128 = vmatpush2.msra.mxu0 0.0
    %6129 = vmatprep.subr.mxu0 0.0
    %6130 = vmatpush2.msra.mxu0 0.0
    %6131 = vmatprep.subr.mxu0 0.0
    %6132 = vmatpush2.msra.mxu0 0.0
    %6133 = vmatprep.subr.mxu0 0.0
    %6134 = vmatpush2.msra.mxu0 0.0
    %6135 = vmatprep.subr.mxu0 0.0
    %6136 = vmatpush2.msra.mxu0 0.0
    %6137 = vmatprep.subr.mxu0 0.0
    %6138 = vmatpush2.msra.mxu0 0.0
    %6139 = vmatprep.subr.mxu0 0.0
    %6140 = vmatpush2.msra.mxu0 0.0
    %6141 = vmatprep.subr.mxu0 0.0
    %6142 = vmatpush2.msra.mxu0 0.0
    %6143 = vmatprep.subr.mxu0 0.0
    %6144 = vmatpush2.msra.mxu0 0.0
    %6145 = vmatprep.mubr.f32.mxu0 0.0
    %v6146 = vand.u32 %v5704, 4294901760
    %6147 = vmatmul.mubr.f32.gmra.mxu0 %v6146
    %v6148 = vpop.f32.mrf.mxu0
    %v6149 = vadd.f32 %v6077, %v6148
    %v6150 = vpop.f32.mrf.mxu0
    %6151 = vdwg.mxu0
    %6154 = vrot.lane.b32.xlu0 %v5697, 16
    %v6155 = vpop.permute.xlu0 %6154
    %6156 = vrot.lane.b32.xlu0 %v6149, 16
    %v6157 = vpop.permute.xlu0 %6156
    %vm6160 = vcmask 195712
    %6161 = vst.msk [vmem:[#allocation2] sm:$0xff] %vm6160, %v6155
    %6162 = vst.msk [vmem:[#allocation2 + $0x8] sm:$0xff] %vm6160, %v6157
    %6163 = vrot.lane.b32.xlu0 %v629, 104
    %v6164 = vpop.permute.xlu0 %6163
    %6165 = vrot.lane.b32.xlu0 %v629, 72
    %v6166 = vpop.permute.xlu0 %6165
    %v6167 = vsel %vm641, %v6164, 0
    %v6169 = vsel %vm641, %v6166, 0
    %6171 = vmatprep.subr.mxu0 0.0
    %6172 = vmatpush1.xpose.msra.mxu0 0.0
    %6173 = vmatprep.subr.mxu0 0.0
    %6174 = vmatpush1.xpose.msra.mxu0 0.0
    %6175 = vmatprep.subr.mxu0 0.0
    %6176 = vmatpush1.xpose.msra.mxu0 0.0
    %6177 = vmatprep.subr.mxu0 0.0
    %6178 = vmatpush1.xpose.msra.mxu0 0.0
    %6179 = vmatprep.subr.mxu0 0.0
    %6180 = vmatpush1.xpose.msra.mxu0 0.0
    %6181 = vmatprep.subr.mxu0 0.0
    %6182 = vmatpush1.xpose.msra.mxu0 0.0
    %6183 = vmatprep.subr.mxu0 0.0
    %6184 = vmatpush1.xpose.msra.mxu0 0.0
    %6185 = vmatprep.subr.mxu0 0.0
    %6186 = vmatpush1.xpose.msra.mxu0 0.0
    %6187 = vmatprep.subr.mxu0 0.0
    %6188 = vmatpush1.xpose.msra.mxu0 0.0
    %6189 = vmatprep.subr.mxu0 0.0
    %6190 = vmatpush1.xpose.msra.mxu0 0.0
    %6191 = vmatprep.subr.mxu0 0.0
    %6192 = vmatpush1.xpose.msra.mxu0 0.0
    %6193 = vmatprep.subr.mxu0 0.0
    %6194 = vmatpush1.xpose.msra.mxu0 0.0
    %6195 = vmatprep.subr.mxu0 0.0
    %6196 = vmatpush1.xpose.msra.mxu0 0.0
    %6197 = vmatprep.subr.mxu0 0.0
    %6198 = vmatpush1.xpose.msra.mxu0 0.0
    %6199 = vmatprep.subr.mxu0 0.0
    %6200 = vmatpush1.xpose.msra.mxu0 0.0
    %6201 = vmatprep.subr.mxu0 0.0
    %v6202 = vand.u32 %v6169, 4294901760
    %6203 = vmatpush1.xpose.msra.mxu0 %v6202
    %6204 = vmatprep.subr.mxu0 0.0
    %6205 = vmatpush2.xpose.msra.mxu0 0.0
    %6206 = vmatprep.subr.mxu0 0.0
    %6207 = vmatpush2.xpose.msra.mxu0 0.0
    %6208 = vmatprep.subr.mxu0 0.0
    %6209 = vmatpush2.xpose.msra.mxu0 0.0
    %6210 = vmatprep.subr.mxu0 0.0
    %6211 = vmatpush2.xpose.msra.mxu0 0.0
    %6212 = vmatprep.subr.mxu0 0.0
    %6213 = vmatpush2.xpose.msra.mxu0 0.0
    %6214 = vmatprep.subr.mxu0 0.0
    %6215 = vmatpush2.xpose.msra.mxu0 0.0
    %6216 = vmatprep.subr.mxu0 0.0
    %6217 = vmatpush2.xpose.msra.mxu0 0.0
    %6218 = vmatprep.subr.mxu0 0.0
    %6219 = vmatpush2.xpose.msra.mxu0 0.0
    %6220 = vmatprep.subr.mxu0 0.0
    %6221 = vmatpush2.xpose.msra.mxu0 0.0
    %6222 = vmatprep.subr.mxu0 0.0
    %6223 = vmatpush2.xpose.msra.mxu0 0.0
    %6224 = vmatprep.subr.mxu0 0.0
    %6225 = vmatpush2.xpose.msra.mxu0 0.0
    %6226 = vmatprep.subr.mxu0 0.0
    %6227 = vmatpush2.xpose.msra.mxu0 0.0
    %6228 = vmatprep.subr.mxu0 0.0
    %6229 = vmatpush2.xpose.msra.mxu0 0.0
    %6230 = vmatprep.subr.mxu0 0.0
    %6231 = vmatpush2.xpose.msra.mxu0 0.0
    %6232 = vmatprep.subr.mxu0 0.0
    %6233 = vmatpush2.xpose.msra.mxu0 0.0
    %6234 = vmatprep.subr.mxu0 0.0
    %6235 = vmatpush2.xpose.msra.mxu0 0.0
    %6236 = vmatprep.mubr.f32.mxu0 0.0
    %v6237 = vand.u32 %v6167, 4294901760
    %v6238 = vsub.f32 %v6167, %v6237
    %v6239 = vand.u32 %v6238, 4294901760
    %v6240 = vsub.f32 %v6238, %v6239
    %v6241 = vand.u32 %v6240, 4294901760
    %6242 = vmatmul.mubr.f32.gmra.mxu0 %v6241
    %v6243 = vpop.f32.mrf.mxu0
    %v6244 = vadd.f32 0.0, %v6243
    %v6245 = vpop.f32.mrf.mxu0
    %6246 = vdwg.mxu0
    %6247 = vmatprep.subr.mxu0 0.0
    %6248 = vmatpush1.xpose.msra.mxu0 0.0
    %6249 = vmatprep.subr.mxu0 0.0
    %6250 = vmatpush1.xpose.msra.mxu0 0.0
    %6251 = vmatprep.subr.mxu0 0.0
    %6252 = vmatpush1.xpose.msra.mxu0 0.0
    %6253 = vmatprep.subr.mxu0 0.0
    %6254 = vmatpush1.xpose.msra.mxu0 0.0
    %6255 = vmatprep.subr.mxu0 0.0
    %6256 = vmatpush1.xpose.msra.mxu0 0.0
    %6257 = vmatprep.subr.mxu0 0.0
    %6258 = vmatpush1.xpose.msra.mxu0 0.0
    %6259 = vmatprep.subr.mxu0 0.0
    %6260 = vmatpush1.xpose.msra.mxu0 0.0
    %6261 = vmatprep.subr.mxu0 0.0
    %6262 = vmatpush1.xpose.msra.mxu0 0.0
    %6263 = vmatprep.subr.mxu0 0.0
    %6264 = vmatpush1.xpose.msra.mxu0 0.0
    %6265 = vmatprep.subr.mxu0 0.0
    %6266 = vmatpush1.xpose.msra.mxu0 0.0
    %6267 = vmatprep.subr.mxu0 0.0
    %6268 = vmatpush1.xpose.msra.mxu0 0.0
    %6269 = vmatprep.subr.mxu0 0.0
    %6270 = vmatpush1.xpose.msra.mxu0 0.0
    %6271 = vmatprep.subr.mxu0 0.0
    %6272 = vmatpush1.xpose.msra.mxu0 0.0
    %6273 = vmatprep.subr.mxu0 0.0
    %6274 = vmatpush1.xpose.msra.mxu0 0.0
    %6275 = vmatprep.subr.mxu0 0.0
    %6276 = vmatpush1.xpose.msra.mxu0 0.0
    %6277 = vmatprep.subr.mxu0 0.0
    %v6278 = vand.u32 %v6169, 4294901760
    %v6279 = vsub.f32 %v6169, %v6278
    %v6280 = vand.u32 %v6279, 4294901760
    %v6281 = vsub.f32 %v6279, %v6280
    %v6282 = vand.u32 %v6281, 4294901760
    %6283 = vmatpush1.xpose.msra.mxu0 %v6282
    %6284 = vmatprep.subr.mxu0 0.0
    %6285 = vmatpush2.xpose.msra.mxu0 0.0
    %6286 = vmatprep.subr.mxu0 0.0
    %6287 = vmatpush2.xpose.msra.mxu0 0.0
    %6288 = vmatprep.subr.mxu0 0.0
    %6289 = vmatpush2.xpose.msra.mxu0 0.0
    %6290 = vmatprep.subr.mxu0 0.0
    %6291 = vmatpush2.xpose.msra.mxu0 0.0
    %6292 = vmatprep.subr.mxu0 0.0
    %6293 = vmatpush2.xpose.msra.mxu0 0.0
    %6294 = vmatprep.subr.mxu0 0.0
    %6295 = vmatpush2.xpose.msra.mxu0 0.0
    %6296 = vmatprep.subr.mxu0 0.0
    %6297 = vmatpush2.xpose.msra.mxu0 0.0
    %6298 = vmatprep.subr.mxu0 0.0
    %6299 = vmatpush2.xpose.msra.mxu0 0.0
    %6300 = vmatprep.subr.mxu0 0.0
    %6301 = vmatpush2.xpose.msra.mxu0 0.0
    %6302 = vmatprep.subr.mxu0 0.0
    %6303 = vmatpush2.xpose.msra.mxu0 0.0
    %6304 = vmatprep.subr.mxu0 0.0
    %6305 = vmatpush2.xpose.msra.mxu0 0.0
    %6306 = vmatprep.subr.mxu0 0.0
    %6307 = vmatpush2.xpose.msra.mxu0 0.0
    %6308 = vmatprep.subr.mxu0 0.0
    %6309 = vmatpush2.xpose.msra.mxu0 0.0
    %6310 = vmatprep.subr.mxu0 0.0
    %6311 = vmatpush2.xpose.msra.mxu0 0.0
    %6312 = vmatprep.subr.mxu0 0.0
    %6313 = vmatpush2.xpose.msra.mxu0 0.0
    %6314 = vmatprep.subr.mxu0 0.0
    %6315 = vmatpush2.xpose.msra.mxu0 0.0
    %6316 = vmatprep.mubr.f32.mxu0 0.0
    %v6317 = vand.u32 %v6167, 4294901760
    %6318 = vmatmul.mubr.f32.gmra.mxu0 %v6317
    %v6319 = vpop.f32.mrf.mxu0
    %v6320 = vadd.f32 %v6244, %v6319
    %v6321 = vpop.f32.mrf.mxu0
    %6322 = vdwg.mxu0
    %6323 = vmatprep.subr.mxu0 0.0
    %6324 = vmatpush1.xpose.msra.mxu0 0.0
    %6325 = vmatprep.subr.mxu0 0.0
    %6326 = vmatpush1.xpose.msra.mxu0 0.0
    %6327 = vmatprep.subr.mxu0 0.0
    %6328 = vmatpush1.xpose.msra.mxu0 0.0
    %6329 = vmatprep.subr.mxu0 0.0
    %6330 = vmatpush1.xpose.msra.mxu0 0.0
    %6331 = vmatprep.subr.mxu0 0.0
    %6332 = vmatpush1.xpose.msra.mxu0 0.0
    %6333 = vmatprep.subr.mxu0 0.0
    %6334 = vmatpush1.xpose.msra.mxu0 0.0
    %6335 = vmatprep.subr.mxu0 0.0
    %6336 = vmatpush1.xpose.msra.mxu0 0.0
    %6337 = vmatprep.subr.mxu0 0.0
    %6338 = vmatpush1.xpose.msra.mxu0 0.0
    %6339 = vmatprep.subr.mxu0 0.0
    %6340 = vmatpush1.xpose.msra.mxu0 0.0
    %6341 = vmatprep.subr.mxu0 0.0
    %6342 = vmatpush1.xpose.msra.mxu0 0.0
    %6343 = vmatprep.subr.mxu0 0.0
    %6344 = vmatpush1.xpose.msra.mxu0 0.0
    %6345 = vmatprep.subr.mxu0 0.0
    %6346 = vmatpush1.xpose.msra.mxu0 0.0
    %6347 = vmatprep.subr.mxu0 0.0
    %6348 = vmatpush1.xpose.msra.mxu0 0.0
    %6349 = vmatprep.subr.mxu0 0.0
    %6350 = vmatpush1.xpose.msra.mxu0 0.0
    %6351 = vmatprep.subr.mxu0 0.0
    %6352 = vmatpush1.xpose.msra.mxu0 0.0
    %6353 = vmatprep.subr.mxu0 0.0
    %v6354 = vand.u32 %v6169, 4294901760
    %v6355 = vsub.f32 %v6169, %v6354
    %6356 = vmatpush1.xpose.msra.mxu0 %v6355
    %6357 = vmatprep.subr.mxu0 0.0
    %6358 = vmatpush2.xpose.msra.mxu0 0.0
    %6359 = vmatprep.subr.mxu0 0.0
    %6360 = vmatpush2.xpose.msra.mxu0 0.0
    %6361 = vmatprep.subr.mxu0 0.0
    %6362 = vmatpush2.xpose.msra.mxu0 0.0
    %6363 = vmatprep.subr.mxu0 0.0
    %6364 = vmatpush2.xpose.msra.mxu0 0.0
    %6365 = vmatprep.subr.mxu0 0.0
    %6366 = vmatpush2.xpose.msra.mxu0 0.0
    %6367 = vmatprep.subr.mxu0 0.0
    %6368 = vmatpush2.xpose.msra.mxu0 0.0
    %6369 = vmatprep.subr.mxu0 0.0
    %6370 = vmatpush2.xpose.msra.mxu0 0.0
    %6371 = vmatprep.subr.mxu0 0.0
    %6372 = vmatpush2.xpose.msra.mxu0 0.0
    %6373 = vmatprep.subr.mxu0 0.0
    %6374 = vmatpush2.xpose.msra.mxu0 0.0
    %6375 = vmatprep.subr.mxu0 0.0
    %6376 = vmatpush2.xpose.msra.mxu0 0.0
    %6377 = vmatprep.subr.mxu0 0.0
    %6378 = vmatpush2.xpose.msra.mxu0 0.0
    %6379 = vmatprep.subr.mxu0 0.0
    %6380 = vmatpush2.xpose.msra.mxu0 0.0
    %6381 = vmatprep.subr.mxu0 0.0
    %6382 = vmatpush2.xpose.msra.mxu0 0.0
    %6383 = vmatprep.subr.mxu0 0.0
    %6384 = vmatpush2.xpose.msra.mxu0 0.0
    %6385 = vmatprep.subr.mxu0 0.0
    %6386 = vmatpush2.xpose.msra.mxu0 0.0
    %6387 = vmatprep.subr.mxu0 0.0
    %6388 = vmatpush2.xpose.msra.mxu0 0.0
    %6389 = vmatprep.mubr.f32.mxu0 0.0
    %v6390 = vand.u32 %v6167, 4294901760
    %v6391 = vsub.f32 %v6167, %v6390
    %6392 = vmatmul.mubr.f32.gmra.mxu0 %v6391
    %v6393 = vpop.f32.mrf.mxu0
    %v6394 = vadd.f32 %v6320, %v6393
    %v6395 = vpop.f32.mrf.mxu0
    %6396 = vdwg.mxu0
    %6397 = vmatprep.subr.mxu0 0.0
    %6398 = vmatpush1.xpose.msra.mxu0 0.0
    %6399 = vmatprep.subr.mxu0 0.0
    %6400 = vmatpush1.xpose.msra.mxu0 0.0
    %6401 = vmatprep.subr.mxu0 0.0
    %6402 = vmatpush1.xpose.msra.mxu0 0.0
    %6403 = vmatprep.subr.mxu0 0.0
    %6404 = vmatpush1.xpose.msra.mxu0 0.0
    %6405 = vmatprep.subr.mxu0 0.0
    %6406 = vmatpush1.xpose.msra.mxu0 0.0
    %6407 = vmatprep.subr.mxu0 0.0
    %6408 = vmatpush1.xpose.msra.mxu0 0.0
    %6409 = vmatprep.subr.mxu0 0.0
    %6410 = vmatpush1.xpose.msra.mxu0 0.0
    %6411 = vmatprep.subr.mxu0 0.0
    %6412 = vmatpush1.xpose.msra.mxu0 0.0
    %6413 = vmatprep.subr.mxu0 0.0
    %6414 = vmatpush1.xpose.msra.mxu0 0.0
    %6415 = vmatprep.subr.mxu0 0.0
    %6416 = vmatpush1.xpose.msra.mxu0 0.0
    %6417 = vmatprep.subr.mxu0 0.0
    %6418 = vmatpush1.xpose.msra.mxu0 0.0
    %6419 = vmatprep.subr.mxu0 0.0
    %6420 = vmatpush1.xpose.msra.mxu0 0.0
    %6421 = vmatprep.subr.mxu0 0.0
    %6422 = vmatpush1.xpose.msra.mxu0 0.0
    %6423 = vmatprep.subr.mxu0 0.0
    %6424 = vmatpush1.xpose.msra.mxu0 0.0
    %6425 = vmatprep.subr.mxu0 0.0
    %6426 = vmatpush1.xpose.msra.mxu0 0.0
    %6427 = vmatprep.subr.mxu0 0.0
    %v6428 = vand.u32 %v6169, 4294901760
    %6429 = vmatpush1.xpose.msra.mxu0 %v6428
    %6430 = vmatprep.subr.mxu0 0.0
    %6431 = vmatpush2.xpose.msra.mxu0 0.0
    %6432 = vmatprep.subr.mxu0 0.0
    %6433 = vmatpush2.xpose.msra.mxu0 0.0
    %6434 = vmatprep.subr.mxu0 0.0
    %6435 = vmatpush2.xpose.msra.mxu0 0.0
    %6436 = vmatprep.subr.mxu0 0.0
    %6437 = vmatpush2.xpose.msra.mxu0 0.0
    %6438 = vmatprep.subr.mxu0 0.0
    %6439 = vmatpush2.xpose.msra.mxu0 0.0
    %6440 = vmatprep.subr.mxu0 0.0
    %6441 = vmatpush2.xpose.msra.mxu0 0.0
    %6442 = vmatprep.subr.mxu0 0.0
    %6443 = vmatpush2.xpose.msra.mxu0 0.0
    %6444 = vmatprep.subr.mxu0 0.0
    %6445 = vmatpush2.xpose.msra.mxu0 0.0
    %6446 = vmatprep.subr.mxu0 0.0
    %6447 = vmatpush2.xpose.msra.mxu0 0.0
    %6448 = vmatprep.subr.mxu0 0.0
    %6449 = vmatpush2.xpose.msra.mxu0 0.0
    %6450 = vmatprep.subr.mxu0 0.0
    %6451 = vmatpush2.xpose.msra.mxu0 0.0
    %6452 = vmatprep.subr.mxu0 0.0
    %6453 = vmatpush2.xpose.msra.mxu0 0.0
    %6454 = vmatprep.subr.mxu0 0.0
    %6455 = vmatpush2.xpose.msra.mxu0 0.0
    %6456 = vmatprep.subr.mxu0 0.0
    %6457 = vmatpush2.xpose.msra.mxu0 0.0
    %6458 = vmatprep.subr.mxu0 0.0
    %6459 = vmatpush2.xpose.msra.mxu0 0.0
    %6460 = vmatprep.subr.mxu0 0.0
    %6461 = vmatpush2.xpose.msra.mxu0 0.0
    %6462 = vmatprep.mubr.f32.mxu0 0.0
    %v6463 = vand.u32 %v6167, 4294901760
    %v6464 = vsub.f32 %v6167, %v6463
    %v6465 = vand.u32 %v6464, 4294901760
    %6466 = vmatmul.mubr.f32.gmra.mxu0 %v6465
    %v6467 = vpop.f32.mrf.mxu0
    %v6468 = vadd.f32 %v6394, %v6467
    %v6469 = vpop.f32.mrf.mxu0
    %6470 = vdwg.mxu0
    %6471 = vmatprep.subr.mxu0 0.0
    %6472 = vmatpush1.xpose.msra.mxu0 0.0
    %6473 = vmatprep.subr.mxu0 0.0
    %6474 = vmatpush1.xpose.msra.mxu0 0.0
    %6475 = vmatprep.subr.mxu0 0.0
    %6476 = vmatpush1.xpose.msra.mxu0 0.0
    %6477 = vmatprep.subr.mxu0 0.0
    %6478 = vmatpush1.xpose.msra.mxu0 0.0
    %6479 = vmatprep.subr.mxu0 0.0
    %6480 = vmatpush1.xpose.msra.mxu0 0.0
    %6481 = vmatprep.subr.mxu0 0.0
    %6482 = vmatpush1.xpose.msra.mxu0 0.0
    %6483 = vmatprep.subr.mxu0 0.0
    %6484 = vmatpush1.xpose.msra.mxu0 0.0
    %6485 = vmatprep.subr.mxu0 0.0
    %6486 = vmatpush1.xpose.msra.mxu0 0.0
    %6487 = vmatprep.subr.mxu0 0.0
    %6488 = vmatpush1.xpose.msra.mxu0 0.0
    %6489 = vmatprep.subr.mxu0 0.0
    %6490 = vmatpush1.xpose.msra.mxu0 0.0
    %6491 = vmatprep.subr.mxu0 0.0
    %6492 = vmatpush1.xpose.msra.mxu0 0.0
    %6493 = vmatprep.subr.mxu0 0.0
    %6494 = vmatpush1.xpose.msra.mxu0 0.0
    %6495 = vmatprep.subr.mxu0 0.0
    %6496 = vmatpush1.xpose.msra.mxu0 0.0
    %6497 = vmatprep.subr.mxu0 0.0
    %6498 = vmatpush1.xpose.msra.mxu0 0.0
    %6499 = vmatprep.subr.mxu0 0.0
    %6500 = vmatpush1.xpose.msra.mxu0 0.0
    %6501 = vmatprep.subr.mxu0 0.0
    %v6502 = vand.u32 %v6169, 4294901760
    %v6503 = vsub.f32 %v6169, %v6502
    %v6504 = vand.u32 %v6503, 4294901760
    %6505 = vmatpush1.xpose.msra.mxu0 %v6504
    %6506 = vmatprep.subr.mxu0 0.0
    %6507 = vmatpush2.xpose.msra.mxu0 0.0
    %6508 = vmatprep.subr.mxu0 0.0
    %6509 = vmatpush2.xpose.msra.mxu0 0.0
    %6510 = vmatprep.subr.mxu0 0.0
    %6511 = vmatpush2.xpose.msra.mxu0 0.0
    %6512 = vmatprep.subr.mxu0 0.0
    %6513 = vmatpush2.xpose.msra.mxu0 0.0
    %6514 = vmatprep.subr.mxu0 0.0
    %6515 = vmatpush2.xpose.msra.mxu0 0.0
    %6516 = vmatprep.subr.mxu0 0.0
    %6517 = vmatpush2.xpose.msra.mxu0 0.0
    %6518 = vmatprep.subr.mxu0 0.0
    %6519 = vmatpush2.xpose.msra.mxu0 0.0
    %6520 = vmatprep.subr.mxu0 0.0
    %6521 = vmatpush2.xpose.msra.mxu0 0.0
    %6522 = vmatprep.subr.mxu0 0.0
    %6523 = vmatpush2.xpose.msra.mxu0 0.0
    %6524 = vmatprep.subr.mxu0 0.0
    %6525 = vmatpush2.xpose.msra.mxu0 0.0
    %6526 = vmatprep.subr.mxu0 0.0
    %6527 = vmatpush2.xpose.msra.mxu0 0.0
    %6528 = vmatprep.subr.mxu0 0.0
    %6529 = vmatpush2.xpose.msra.mxu0 0.0
    %6530 = vmatprep.subr.mxu0 0.0
    %6531 = vmatpush2.xpose.msra.mxu0 0.0
    %6532 = vmatprep.subr.mxu0 0.0
    %6533 = vmatpush2.xpose.msra.mxu0 0.0
    %6534 = vmatprep.subr.mxu0 0.0
    %6535 = vmatpush2.xpose.msra.mxu0 0.0
    %6536 = vmatprep.subr.mxu0 0.0
    %6537 = vmatpush2.xpose.msra.mxu0 0.0
    %6538 = vmatprep.mubr.f32.mxu0 0.0
    %v6539 = vand.u32 %v6167, 4294901760
    %6540 = vmatmul.mubr.f32.gmra.mxu0 %v6539
    %v6541 = vpop.f32.mrf.mxu0
    %v6542 = vadd.f32 %v6468, %v6541
    %v6543 = vpop.f32.mrf.mxu0
    %6544 = vdwg.mxu0
    %6545 = vmatprep.subr.mxu0 0.0
    %6546 = vmatpush1.xpose.msra.mxu0 0.0
    %6547 = vmatprep.subr.mxu0 0.0
    %6548 = vmatpush1.xpose.msra.mxu0 0.0
    %6549 = vmatprep.subr.mxu0 0.0
    %6550 = vmatpush1.xpose.msra.mxu0 0.0
    %6551 = vmatprep.subr.mxu0 0.0
    %6552 = vmatpush1.xpose.msra.mxu0 0.0
    %6553 = vmatprep.subr.mxu0 0.0
    %6554 = vmatpush1.xpose.msra.mxu0 0.0
    %6555 = vmatprep.subr.mxu0 0.0
    %6556 = vmatpush1.xpose.msra.mxu0 0.0
    %6557 = vmatprep.subr.mxu0 0.0
    %6558 = vmatpush1.xpose.msra.mxu0 0.0
    %6559 = vmatprep.subr.mxu0 0.0
    %6560 = vmatpush1.xpose.msra.mxu0 0.0
    %6561 = vmatprep.subr.mxu0 0.0
    %6562 = vmatpush1.xpose.msra.mxu0 0.0
    %6563 = vmatprep.subr.mxu0 0.0
    %6564 = vmatpush1.xpose.msra.mxu0 0.0
    %6565 = vmatprep.subr.mxu0 0.0
    %6566 = vmatpush1.xpose.msra.mxu0 0.0
    %6567 = vmatprep.subr.mxu0 0.0
    %6568 = vmatpush1.xpose.msra.mxu0 0.0
    %6569 = vmatprep.subr.mxu0 0.0
    %6570 = vmatpush1.xpose.msra.mxu0 0.0
    %6571 = vmatprep.subr.mxu0 0.0
    %6572 = vmatpush1.xpose.msra.mxu0 0.0
    %6573 = vmatprep.subr.mxu0 0.0
    %6574 = vmatpush1.xpose.msra.mxu0 0.0
    %6575 = vmatprep.subr.mxu0 0.0
    %v6576 = vand.u32 %v6169, 4294901760
    %6577 = vmatpush1.xpose.msra.mxu0 %v6576
    %6578 = vmatprep.subr.mxu0 0.0
    %6579 = vmatpush2.xpose.msra.mxu0 0.0
    %6580 = vmatprep.subr.mxu0 0.0
    %6581 = vmatpush2.xpose.msra.mxu0 0.0
    %6582 = vmatprep.subr.mxu0 0.0
    %6583 = vmatpush2.xpose.msra.mxu0 0.0
    %6584 = vmatprep.subr.mxu0 0.0
    %6585 = vmatpush2.xpose.msra.mxu0 0.0
    %6586 = vmatprep.subr.mxu0 0.0
    %6587 = vmatpush2.xpose.msra.mxu0 0.0
    %6588 = vmatprep.subr.mxu0 0.0
    %6589 = vmatpush2.xpose.msra.mxu0 0.0
    %6590 = vmatprep.subr.mxu0 0.0
    %6591 = vmatpush2.xpose.msra.mxu0 0.0
    %6592 = vmatprep.subr.mxu0 0.0
    %6593 = vmatpush2.xpose.msra.mxu0 0.0
    %6594 = vmatprep.subr.mxu0 0.0
    %6595 = vmatpush2.xpose.msra.mxu0 0.0
    %6596 = vmatprep.subr.mxu0 0.0
    %6597 = vmatpush2.xpose.msra.mxu0 0.0
    %6598 = vmatprep.subr.mxu0 0.0
    %6599 = vmatpush2.xpose.msra.mxu0 0.0
    %6600 = vmatprep.subr.mxu0 0.0
    %6601 = vmatpush2.xpose.msra.mxu0 0.0
    %6602 = vmatprep.subr.mxu0 0.0
    %6603 = vmatpush2.xpose.msra.mxu0 0.0
    %6604 = vmatprep.subr.mxu0 0.0
    %6605 = vmatpush2.xpose.msra.mxu0 0.0
    %6606 = vmatprep.subr.mxu0 0.0
    %6607 = vmatpush2.xpose.msra.mxu0 0.0
    %6608 = vmatprep.subr.mxu0 0.0
    %6609 = vmatpush2.xpose.msra.mxu0 0.0
    %6610 = vmatprep.mubr.f32.mxu0 0.0
    %v6611 = vand.u32 %v6167, 4294901760
    %6612 = vmatmul.mubr.f32.gmra.mxu0 %v6611
    %v6613 = vpop.f32.mrf.mxu0
    %v6614 = vadd.f32 %v6542, %v6613
    %v6615 = vpop.f32.mrf.mxu0
    %6616 = vdwg.mxu0
    %6617 = vrot.lane.b32.xlu0 %v635, 104
    %v6618 = vpop.permute.xlu0 %6617
    %6619 = vrot.lane.b32.xlu0 %v635, 72
    %v6620 = vpop.permute.xlu0 %6619
    %v6621 = vsel %vm641, %v6618, 0
    %v6623 = vsel %vm641, %v6620, 0
    %6625 = vmatprep.subr.mxu0 0.0
    %6626 = vmatpush1.xpose.msra.mxu0 0.0
    %6627 = vmatprep.subr.mxu0 0.0
    %6628 = vmatpush1.xpose.msra.mxu0 0.0
    %6629 = vmatprep.subr.mxu0 0.0
    %6630 = vmatpush1.xpose.msra.mxu0 0.0
    %6631 = vmatprep.subr.mxu0 0.0
    %6632 = vmatpush1.xpose.msra.mxu0 0.0
    %6633 = vmatprep.subr.mxu0 0.0
    %6634 = vmatpush1.xpose.msra.mxu0 0.0
    %6635 = vmatprep.subr.mxu0 0.0
    %6636 = vmatpush1.xpose.msra.mxu0 0.0
    %6637 = vmatprep.subr.mxu0 0.0
    %6638 = vmatpush1.xpose.msra.mxu0 0.0
    %6639 = vmatprep.subr.mxu0 0.0
    %6640 = vmatpush1.xpose.msra.mxu0 0.0
    %6641 = vmatprep.subr.mxu0 0.0
    %6642 = vmatpush1.xpose.msra.mxu0 0.0
    %6643 = vmatprep.subr.mxu0 0.0
    %6644 = vmatpush1.xpose.msra.mxu0 0.0
    %6645 = vmatprep.subr.mxu0 0.0
    %6646 = vmatpush1.xpose.msra.mxu0 0.0
    %6647 = vmatprep.subr.mxu0 0.0
    %6648 = vmatpush1.xpose.msra.mxu0 0.0
    %6649 = vmatprep.subr.mxu0 0.0
    %6650 = vmatpush1.xpose.msra.mxu0 0.0
    %6651 = vmatprep.subr.mxu0 0.0
    %6652 = vmatpush1.xpose.msra.mxu0 0.0
    %6653 = vmatprep.subr.mxu0 0.0
    %6654 = vmatpush1.xpose.msra.mxu0 0.0
    %6655 = vmatprep.subr.mxu0 0.0
    %v6656 = vand.u32 %v6623, 4294901760
    %6657 = vmatpush1.xpose.msra.mxu0 %v6656
    %6658 = vmatprep.subr.mxu0 0.0
    %6659 = vmatpush2.xpose.msra.mxu0 0.0
    %6660 = vmatprep.subr.mxu0 0.0
    %6661 = vmatpush2.xpose.msra.mxu0 0.0
    %6662 = vmatprep.subr.mxu0 0.0
    %6663 = vmatpush2.xpose.msra.mxu0 0.0
    %6664 = vmatprep.subr.mxu0 0.0
    %6665 = vmatpush2.xpose.msra.mxu0 0.0
    %6666 = vmatprep.subr.mxu0 0.0
    %6667 = vmatpush2.xpose.msra.mxu0 0.0
    %6668 = vmatprep.subr.mxu0 0.0
    %6669 = vmatpush2.xpose.msra.mxu0 0.0
    %6670 = vmatprep.subr.mxu0 0.0
    %6671 = vmatpush2.xpose.msra.mxu0 0.0
    %6672 = vmatprep.subr.mxu0 0.0
    %6673 = vmatpush2.xpose.msra.mxu0 0.0
    %6674 = vmatprep.subr.mxu0 0.0
    %6675 = vmatpush2.xpose.msra.mxu0 0.0
    %6676 = vmatprep.subr.mxu0 0.0
    %6677 = vmatpush2.xpose.msra.mxu0 0.0
    %6678 = vmatprep.subr.mxu0 0.0
    %6679 = vmatpush2.xpose.msra.mxu0 0.0
    %6680 = vmatprep.subr.mxu0 0.0
    %6681 = vmatpush2.xpose.msra.mxu0 0.0
    %6682 = vmatprep.subr.mxu0 0.0
    %6683 = vmatpush2.xpose.msra.mxu0 0.0
    %6684 = vmatprep.subr.mxu0 0.0
    %6685 = vmatpush2.xpose.msra.mxu0 0.0
    %6686 = vmatprep.subr.mxu0 0.0
    %6687 = vmatpush2.xpose.msra.mxu0 0.0
    %6688 = vmatprep.subr.mxu0 0.0
    %6689 = vmatpush2.xpose.msra.mxu0 0.0
    %6690 = vmatprep.mubr.f32.mxu0 0.0
    %v6691 = vand.u32 %v6621, 4294901760
    %v6692 = vsub.f32 %v6621, %v6691
    %v6693 = vand.u32 %v6692, 4294901760
    %v6694 = vsub.f32 %v6692, %v6693
    %v6695 = vand.u32 %v6694, 4294901760
    %6696 = vmatmul.mubr.f32.gmra.mxu0 %v6695
    %v6697 = vpop.f32.mrf.mxu0
    %v6698 = vadd.f32 0.0, %v6697
    %v6699 = vpop.f32.mrf.mxu0
    %6700 = vdwg.mxu0
    %6701 = vmatprep.subr.mxu0 0.0
    %6702 = vmatpush1.xpose.msra.mxu0 0.0
    %6703 = vmatprep.subr.mxu0 0.0
    %6704 = vmatpush1.xpose.msra.mxu0 0.0
    %6705 = vmatprep.subr.mxu0 0.0
    %6706 = vmatpush1.xpose.msra.mxu0 0.0
    %6707 = vmatprep.subr.mxu0 0.0
    %6708 = vmatpush1.xpose.msra.mxu0 0.0
    %6709 = vmatprep.subr.mxu0 0.0
    %6710 = vmatpush1.xpose.msra.mxu0 0.0
    %6711 = vmatprep.subr.mxu0 0.0
    %6712 = vmatpush1.xpose.msra.mxu0 0.0
    %6713 = vmatprep.subr.mxu0 0.0
    %6714 = vmatpush1.xpose.msra.mxu0 0.0
    %6715 = vmatprep.subr.mxu0 0.0
    %6716 = vmatpush1.xpose.msra.mxu0 0.0
    %6717 = vmatprep.subr.mxu0 0.0
    %6718 = vmatpush1.xpose.msra.mxu0 0.0
    %6719 = vmatprep.subr.mxu0 0.0
    %6720 = vmatpush1.xpose.msra.mxu0 0.0
    %6721 = vmatprep.subr.mxu0 0.0
    %6722 = vmatpush1.xpose.msra.mxu0 0.0
    %6723 = vmatprep.subr.mxu0 0.0
    %6724 = vmatpush1.xpose.msra.mxu0 0.0
    %6725 = vmatprep.subr.mxu0 0.0
    %6726 = vmatpush1.xpose.msra.mxu0 0.0
    %6727 = vmatprep.subr.mxu0 0.0
    %6728 = vmatpush1.xpose.msra.mxu0 0.0
    %6729 = vmatprep.subr.mxu0 0.0
    %6730 = vmatpush1.xpose.msra.mxu0 0.0
    %6731 = vmatprep.subr.mxu0 0.0
    %v6732 = vand.u32 %v6623, 4294901760
    %v6733 = vsub.f32 %v6623, %v6732
    %v6734 = vand.u32 %v6733, 4294901760
    %v6735 = vsub.f32 %v6733, %v6734
    %v6736 = vand.u32 %v6735, 4294901760
    %6737 = vmatpush1.xpose.msra.mxu0 %v6736
    %6738 = vmatprep.subr.mxu0 0.0
    %6739 = vmatpush2.xpose.msra.mxu0 0.0
    %6740 = vmatprep.subr.mxu0 0.0
    %6741 = vmatpush2.xpose.msra.mxu0 0.0
    %6742 = vmatprep.subr.mxu0 0.0
    %6743 = vmatpush2.xpose.msra.mxu0 0.0
    %6744 = vmatprep.subr.mxu0 0.0
    %6745 = vmatpush2.xpose.msra.mxu0 0.0
    %6746 = vmatprep.subr.mxu0 0.0
    %6747 = vmatpush2.xpose.msra.mxu0 0.0
    %6748 = vmatprep.subr.mxu0 0.0
    %6749 = vmatpush2.xpose.msra.mxu0 0.0
    %6750 = vmatprep.subr.mxu0 0.0
    %6751 = vmatpush2.xpose.msra.mxu0 0.0
    %6752 = vmatprep.subr.mxu0 0.0
    %6753 = vmatpush2.xpose.msra.mxu0 0.0
    %6754 = vmatprep.subr.mxu0 0.0
    %6755 = vmatpush2.xpose.msra.mxu0 0.0
    %6756 = vmatprep.subr.mxu0 0.0
    %6757 = vmatpush2.xpose.msra.mxu0 0.0
    %6758 = vmatprep.subr.mxu0 0.0
    %6759 = vmatpush2.xpose.msra.mxu0 0.0
    %6760 = vmatprep.subr.mxu0 0.0
    %6761 = vmatpush2.xpose.msra.mxu0 0.0
    %6762 = vmatprep.subr.mxu0 0.0
    %6763 = vmatpush2.xpose.msra.mxu0 0.0
    %6764 = vmatprep.subr.mxu0 0.0
    %6765 = vmatpush2.xpose.msra.mxu0 0.0
    %6766 = vmatprep.subr.mxu0 0.0
    %6767 = vmatpush2.xpose.msra.mxu0 0.0
    %6768 = vmatprep.subr.mxu0 0.0
    %6769 = vmatpush2.xpose.msra.mxu0 0.0
    %6770 = vmatprep.mubr.f32.mxu0 0.0
    %v6771 = vand.u32 %v6621, 4294901760
    %6772 = vmatmul.mubr.f32.gmra.mxu0 %v6771
    %v6773 = vpop.f32.mrf.mxu0
    %v6774 = vadd.f32 %v6698, %v6773
    %v6775 = vpop.f32.mrf.mxu0
    %6776 = vdwg.mxu0
    %6777 = vmatprep.subr.mxu0 0.0
    %6778 = vmatpush1.xpose.msra.mxu0 0.0
    %6779 = vmatprep.subr.mxu0 0.0
    %6780 = vmatpush1.xpose.msra.mxu0 0.0
    %6781 = vmatprep.subr.mxu0 0.0
    %6782 = vmatpush1.xpose.msra.mxu0 0.0
    %6783 = vmatprep.subr.mxu0 0.0
    %6784 = vmatpush1.xpose.msra.mxu0 0.0
    %6785 = vmatprep.subr.mxu0 0.0
    %6786 = vmatpush1.xpose.msra.mxu0 0.0
    %6787 = vmatprep.subr.mxu0 0.0
    %6788 = vmatpush1.xpose.msra.mxu0 0.0
    %6789 = vmatprep.subr.mxu0 0.0
    %6790 = vmatpush1.xpose.msra.mxu0 0.0
    %6791 = vmatprep.subr.mxu0 0.0
    %6792 = vmatpush1.xpose.msra.mxu0 0.0
    %6793 = vmatprep.subr.mxu0 0.0
    %6794 = vmatpush1.xpose.msra.mxu0 0.0
    %6795 = vmatprep.subr.mxu0 0.0
    %6796 = vmatpush1.xpose.msra.mxu0 0.0
    %6797 = vmatprep.subr.mxu0 0.0
    %6798 = vmatpush1.xpose.msra.mxu0 0.0
    %6799 = vmatprep.subr.mxu0 0.0
    %6800 = vmatpush1.xpose.msra.mxu0 0.0
    %6801 = vmatprep.subr.mxu0 0.0
    %6802 = vmatpush1.xpose.msra.mxu0 0.0
    %6803 = vmatprep.subr.mxu0 0.0
    %6804 = vmatpush1.xpose.msra.mxu0 0.0
    %6805 = vmatprep.subr.mxu0 0.0
    %6806 = vmatpush1.xpose.msra.mxu0 0.0
    %6807 = vmatprep.subr.mxu0 0.0
    %v6808 = vand.u32 %v6623, 4294901760
    %v6809 = vsub.f32 %v6623, %v6808
    %6810 = vmatpush1.xpose.msra.mxu0 %v6809
    %6811 = vmatprep.subr.mxu0 0.0
    %6812 = vmatpush2.xpose.msra.mxu0 0.0
    %6813 = vmatprep.subr.mxu0 0.0
    %6814 = vmatpush2.xpose.msra.mxu0 0.0
    %6815 = vmatprep.subr.mxu0 0.0
    %6816 = vmatpush2.xpose.msra.mxu0 0.0
    %6817 = vmatprep.subr.mxu0 0.0
    %6818 = vmatpush2.xpose.msra.mxu0 0.0
    %6819 = vmatprep.subr.mxu0 0.0
    %6820 = vmatpush2.xpose.msra.mxu0 0.0
    %6821 = vmatprep.subr.mxu0 0.0
    %6822 = vmatpush2.xpose.msra.mxu0 0.0
    %6823 = vmatprep.subr.mxu0 0.0
    %6824 = vmatpush2.xpose.msra.mxu0 0.0
    %6825 = vmatprep.subr.mxu0 0.0
    %6826 = vmatpush2.xpose.msra.mxu0 0.0
    %6827 = vmatprep.subr.mxu0 0.0
    %6828 = vmatpush2.xpose.msra.mxu0 0.0
    %6829 = vmatprep.subr.mxu0 0.0
    %6830 = vmatpush2.xpose.msra.mxu0 0.0
    %6831 = vmatprep.subr.mxu0 0.0
    %6832 = vmatpush2.xpose.msra.mxu0 0.0
    %6833 = vmatprep.subr.mxu0 0.0
    %6834 = vmatpush2.xpose.msra.mxu0 0.0
    %6835 = vmatprep.subr.mxu0 0.0
    %6836 = vmatpush2.xpose.msra.mxu0 0.0
    %6837 = vmatprep.subr.mxu0 0.0
    %6838 = vmatpush2.xpose.msra.mxu0 0.0
    %6839 = vmatprep.subr.mxu0 0.0
    %6840 = vmatpush2.xpose.msra.mxu0 0.0
    %6841 = vmatprep.subr.mxu0 0.0
    %6842 = vmatpush2.xpose.msra.mxu0 0.0
    %6843 = vmatprep.mubr.f32.mxu0 0.0
    %v6844 = vand.u32 %v6621, 4294901760
    %v6845 = vsub.f32 %v6621, %v6844
    %6846 = vmatmul.mubr.f32.gmra.mxu0 %v6845
    %v6847 = vpop.f32.mrf.mxu0
    %v6848 = vadd.f32 %v6774, %v6847
    %v6849 = vpop.f32.mrf.mxu0
    %6850 = vdwg.mxu0
    %6851 = vmatprep.subr.mxu0 0.0
    %6852 = vmatpush1.xpose.msra.mxu0 0.0
    %6853 = vmatprep.subr.mxu0 0.0
    %6854 = vmatpush1.xpose.msra.mxu0 0.0
    %6855 = vmatprep.subr.mxu0 0.0
    %6856 = vmatpush1.xpose.msra.mxu0 0.0
    %6857 = vmatprep.subr.mxu0 0.0
    %6858 = vmatpush1.xpose.msra.mxu0 0.0
    %6859 = vmatprep.subr.mxu0 0.0
    %6860 = vmatpush1.xpose.msra.mxu0 0.0
    %6861 = vmatprep.subr.mxu0 0.0
    %6862 = vmatpush1.xpose.msra.mxu0 0.0
    %6863 = vmatprep.subr.mxu0 0.0
    %6864 = vmatpush1.xpose.msra.mxu0 0.0
    %6865 = vmatprep.subr.mxu0 0.0
    %6866 = vmatpush1.xpose.msra.mxu0 0.0
    %6867 = vmatprep.subr.mxu0 0.0
    %6868 = vmatpush1.xpose.msra.mxu0 0.0
    %6869 = vmatprep.subr.mxu0 0.0
    %6870 = vmatpush1.xpose.msra.mxu0 0.0
    %6871 = vmatprep.subr.mxu0 0.0
    %6872 = vmatpush1.xpose.msra.mxu0 0.0
    %6873 = vmatprep.subr.mxu0 0.0
    %6874 = vmatpush1.xpose.msra.mxu0 0.0
    %6875 = vmatprep.subr.mxu0 0.0
    %6876 = vmatpush1.xpose.msra.mxu0 0.0
    %6877 = vmatprep.subr.mxu0 0.0
    %6878 = vmatpush1.xpose.msra.mxu0 0.0
    %6879 = vmatprep.subr.mxu0 0.0
    %6880 = vmatpush1.xpose.msra.mxu0 0.0
    %6881 = vmatprep.subr.mxu0 0.0
    %v6882 = vand.u32 %v6623, 4294901760
    %6883 = vmatpush1.xpose.msra.mxu0 %v6882
    %6884 = vmatprep.subr.mxu0 0.0
    %6885 = vmatpush2.xpose.msra.mxu0 0.0
    %6886 = vmatprep.subr.mxu0 0.0
    %6887 = vmatpush2.xpose.msra.mxu0 0.0
    %6888 = vmatprep.subr.mxu0 0.0
    %6889 = vmatpush2.xpose.msra.mxu0 0.0
    %6890 = vmatprep.subr.mxu0 0.0
    %6891 = vmatpush2.xpose.msra.mxu0 0.0
    %6892 = vmatprep.subr.mxu0 0.0
    %6893 = vmatpush2.xpose.msra.mxu0 0.0
    %6894 = vmatprep.subr.mxu0 0.0
    %6895 = vmatpush2.xpose.msra.mxu0 0.0
    %6896 = vmatprep.subr.mxu0 0.0
    %6897 = vmatpush2.xpose.msra.mxu0 0.0
    %6898 = vmatprep.subr.mxu0 0.0
    %6899 = vmatpush2.xpose.msra.mxu0 0.0
    %6900 = vmatprep.subr.mxu0 0.0
    %6901 = vmatpush2.xpose.msra.mxu0 0.0
    %6902 = vmatprep.subr.mxu0 0.0
    %6903 = vmatpush2.xpose.msra.mxu0 0.0
    %6904 = vmatprep.subr.mxu0 0.0
    %6905 = vmatpush2.xpose.msra.mxu0 0.0
    %6906 = vmatprep.subr.mxu0 0.0
    %6907 = vmatpush2.xpose.msra.mxu0 0.0
    %6908 = vmatprep.subr.mxu0 0.0
    %6909 = vmatpush2.xpose.msra.mxu0 0.0
    %6910 = vmatprep.subr.mxu0 0.0
    %6911 = vmatpush2.xpose.msra.mxu0 0.0
    %6912 = vmatprep.subr.mxu0 0.0
    %6913 = vmatpush2.xpose.msra.mxu0 0.0
    %6914 = vmatprep.subr.mxu0 0.0
    %6915 = vmatpush2.xpose.msra.mxu0 0.0
    %6916 = vmatprep.mubr.f32.mxu0 0.0
    %v6917 = vand.u32 %v6621, 4294901760
    %v6918 = vsub.f32 %v6621, %v6917
    %v6919 = vand.u32 %v6918, 4294901760
    %6920 = vmatmul.mubr.f32.gmra.mxu0 %v6919
    %v6921 = vpop.f32.mrf.mxu0
    %v6922 = vadd.f32 %v6848, %v6921
    %v6923 = vpop.f32.mrf.mxu0
    %6924 = vdwg.mxu0
    %6925 = vmatprep.subr.mxu0 0.0
    %6926 = vmatpush1.xpose.msra.mxu0 0.0
    %6927 = vmatprep.subr.mxu0 0.0
    %6928 = vmatpush1.xpose.msra.mxu0 0.0
    %6929 = vmatprep.subr.mxu0 0.0
    %6930 = vmatpush1.xpose.msra.mxu0 0.0
    %6931 = vmatprep.subr.mxu0 0.0
    %6932 = vmatpush1.xpose.msra.mxu0 0.0
    %6933 = vmatprep.subr.mxu0 0.0
    %6934 = vmatpush1.xpose.msra.mxu0 0.0
    %6935 = vmatprep.subr.mxu0 0.0
    %6936 = vmatpush1.xpose.msra.mxu0 0.0
    %6937 = vmatprep.subr.mxu0 0.0
    %6938 = vmatpush1.xpose.msra.mxu0 0.0
    %6939 = vmatprep.subr.mxu0 0.0
    %6940 = vmatpush1.xpose.msra.mxu0 0.0
    %6941 = vmatprep.subr.mxu0 0.0
    %6942 = vmatpush1.xpose.msra.mxu0 0.0
    %6943 = vmatprep.subr.mxu0 0.0
    %6944 = vmatpush1.xpose.msra.mxu0 0.0
    %6945 = vmatprep.subr.mxu0 0.0
    %6946 = vmatpush1.xpose.msra.mxu0 0.0
    %6947 = vmatprep.subr.mxu0 0.0
    %6948 = vmatpush1.xpose.msra.mxu0 0.0
    %6949 = vmatprep.subr.mxu0 0.0
    %6950 = vmatpush1.xpose.msra.mxu0 0.0
    %6951 = vmatprep.subr.mxu0 0.0
    %6952 = vmatpush1.xpose.msra.mxu0 0.0
    %6953 = vmatprep.subr.mxu0 0.0
    %6954 = vmatpush1.xpose.msra.mxu0 0.0
    %6955 = vmatprep.subr.mxu0 0.0
    %v6956 = vand.u32 %v6623, 4294901760
    %v6957 = vsub.f32 %v6623, %v6956
    %v6958 = vand.u32 %v6957, 4294901760
    %6959 = vmatpush1.xpose.msra.mxu0 %v6958
    %6960 = vmatprep.subr.mxu0 0.0
    %6961 = vmatpush2.xpose.msra.mxu0 0.0
    %6962 = vmatprep.subr.mxu0 0.0
    %6963 = vmatpush2.xpose.msra.mxu0 0.0
    %6964 = vmatprep.subr.mxu0 0.0
    %6965 = vmatpush2.xpose.msra.mxu0 0.0
    %6966 = vmatprep.subr.mxu0 0.0
    %6967 = vmatpush2.xpose.msra.mxu0 0.0
    %6968 = vmatprep.subr.mxu0 0.0
    %6969 = vmatpush2.xpose.msra.mxu0 0.0
    %6970 = vmatprep.subr.mxu0 0.0
    %6971 = vmatpush2.xpose.msra.mxu0 0.0
    %6972 = vmatprep.subr.mxu0 0.0
    %6973 = vmatpush2.xpose.msra.mxu0 0.0
    %6974 = vmatprep.subr.mxu0 0.0
    %6975 = vmatpush2.xpose.msra.mxu0 0.0
    %6976 = vmatprep.subr.mxu0 0.0
    %6977 = vmatpush2.xpose.msra.mxu0 0.0
    %6978 = vmatprep.subr.mxu0 0.0
    %6979 = vmatpush2.xpose.msra.mxu0 0.0
    %6980 = vmatprep.subr.mxu0 0.0
    %6981 = vmatpush2.xpose.msra.mxu0 0.0
    %6982 = vmatprep.subr.mxu0 0.0
    %6983 = vmatpush2.xpose.msra.mxu0 0.0
    %6984 = vmatprep.subr.mxu0 0.0
    %6985 = vmatpush2.xpose.msra.mxu0 0.0
    %6986 = vmatprep.subr.mxu0 0.0
    %6987 = vmatpush2.xpose.msra.mxu0 0.0
    %6988 = vmatprep.subr.mxu0 0.0
    %6989 = vmatpush2.xpose.msra.mxu0 0.0
    %6990 = vmatprep.subr.mxu0 0.0
    %6991 = vmatpush2.xpose.msra.mxu0 0.0
    %6992 = vmatprep.mubr.f32.mxu0 0.0
    %v6993 = vand.u32 %v6621, 4294901760
    %6994 = vmatmul.mubr.f32.gmra.mxu0 %v6993
    %v6995 = vpop.f32.mrf.mxu0
    %v6996 = vadd.f32 %v6922, %v6995
    %v6997 = vpop.f32.mrf.mxu0
    %6998 = vdwg.mxu0
    %6999 = vmatprep.subr.mxu0 0.0
    %7000 = vmatpush1.xpose.msra.mxu0 0.0
    %7001 = vmatprep.subr.mxu0 0.0
    %7002 = vmatpush1.xpose.msra.mxu0 0.0
    %7003 = vmatprep.subr.mxu0 0.0
    %7004 = vmatpush1.xpose.msra.mxu0 0.0
    %7005 = vmatprep.subr.mxu0 0.0
    %7006 = vmatpush1.xpose.msra.mxu0 0.0
    %7007 = vmatprep.subr.mxu0 0.0
    %7008 = vmatpush1.xpose.msra.mxu0 0.0
    %7009 = vmatprep.subr.mxu0 0.0
    %7010 = vmatpush1.xpose.msra.mxu0 0.0
    %7011 = vmatprep.subr.mxu0 0.0
    %7012 = vmatpush1.xpose.msra.mxu0 0.0
    %7013 = vmatprep.subr.mxu0 0.0
    %7014 = vmatpush1.xpose.msra.mxu0 0.0
    %7015 = vmatprep.subr.mxu0 0.0
    %7016 = vmatpush1.xpose.msra.mxu0 0.0
    %7017 = vmatprep.subr.mxu0 0.0
    %7018 = vmatpush1.xpose.msra.mxu0 0.0
    %7019 = vmatprep.subr.mxu0 0.0
    %7020 = vmatpush1.xpose.msra.mxu0 0.0
    %7021 = vmatprep.subr.mxu0 0.0
    %7022 = vmatpush1.xpose.msra.mxu0 0.0
    %7023 = vmatprep.subr.mxu0 0.0
    %7024 = vmatpush1.xpose.msra.mxu0 0.0
    %7025 = vmatprep.subr.mxu0 0.0
    %7026 = vmatpush1.xpose.msra.mxu0 0.0
    %7027 = vmatprep.subr.mxu0 0.0
    %7028 = vmatpush1.xpose.msra.mxu0 0.0
    %7029 = vmatprep.subr.mxu0 0.0
    %v7030 = vand.u32 %v6623, 4294901760
    %7031 = vmatpush1.xpose.msra.mxu0 %v7030
    %7032 = vmatprep.subr.mxu0 0.0
    %7033 = vmatpush2.xpose.msra.mxu0 0.0
    %7034 = vmatprep.subr.mxu0 0.0
    %7035 = vmatpush2.xpose.msra.mxu0 0.0
    %7036 = vmatprep.subr.mxu0 0.0
    %7037 = vmatpush2.xpose.msra.mxu0 0.0
    %7038 = vmatprep.subr.mxu0 0.0
    %7039 = vmatpush2.xpose.msra.mxu0 0.0
    %7040 = vmatprep.subr.mxu0 0.0
    %7041 = vmatpush2.xpose.msra.mxu0 0.0
    %7042 = vmatprep.subr.mxu0 0.0
    %7043 = vmatpush2.xpose.msra.mxu0 0.0
    %7044 = vmatprep.subr.mxu0 0.0
    %7045 = vmatpush2.xpose.msra.mxu0 0.0
    %7046 = vmatprep.subr.mxu0 0.0
    %7047 = vmatpush2.xpose.msra.mxu0 0.0
    %7048 = vmatprep.subr.mxu0 0.0
    %7049 = vmatpush2.xpose.msra.mxu0 0.0
    %7050 = vmatprep.subr.mxu0 0.0
    %7051 = vmatpush2.xpose.msra.mxu0 0.0
    %7052 = vmatprep.subr.mxu0 0.0
    %7053 = vmatpush2.xpose.msra.mxu0 0.0
    %7054 = vmatprep.subr.mxu0 0.0
    %7055 = vmatpush2.xpose.msra.mxu0 0.0
    %7056 = vmatprep.subr.mxu0 0.0
    %7057 = vmatpush2.xpose.msra.mxu0 0.0
    %7058 = vmatprep.subr.mxu0 0.0
    %7059 = vmatpush2.xpose.msra.mxu0 0.0
    %7060 = vmatprep.subr.mxu0 0.0
    %7061 = vmatpush2.xpose.msra.mxu0 0.0
    %7062 = vmatprep.subr.mxu0 0.0
    %7063 = vmatpush2.xpose.msra.mxu0 0.0
    %7064 = vmatprep.mubr.f32.mxu0 0.0
    %v7065 = vand.u32 %v6621, 4294901760
    %7066 = vmatmul.mubr.f32.gmra.mxu0 %v7065
    %v7067 = vpop.f32.mrf.mxu0
    %v7068 = vadd.f32 %v6996, %v7067
    %v7069 = vpop.f32.mrf.mxu0
    %7070 = vdwg.mxu0
    %v7071 = vsel %vm641, %v6614, -inf
    %7072 = vmax.xlane.f32.xlu0 %v7071
    %v7073 = vpop.xlane.xlu0 %7072
    %v7074 = vsel %vm641, %v7068, -inf
    %7075 = vmax.xlane.f32.xlu0 %v7074
    %v7076 = vpop.xlane.xlu0 %7075
    %v7077 = vsub.f32 %v6614, %v7073
    %v7078 = vsub.f32 %v7068, %v7076
    %v7079 = vmul.f32 %v7077, 1.442695
    %v7080 = vpow.pop %v7079
    %v7081 = vmul.f32 %v7078, 1.442695
    %v7082 = vpow.pop %v7081
    %v7083 = vsel %vm641, %v7080, 0.0
    %7084 = vadd.xlane.f32.xlu0 %v7083
    %v7085 = vpop.xlane.xlu0 %7084
    %v7086 = vsel %vm641, %v7082, 0.0
    %7087 = vadd.xlane.f32.xlu0 %v7086
    %v7088 = vpop.xlane.xlu0 %7087
    %v7089 = vrcp.pop %v7085
    %v7090 = vrcp.pop %v7088
    %v7091 = vmul.f32 %v7080, %v7089
    %v7092 = vmul.f32 %v7082, %v7090
    %7093 = vrot.lane.b32.xlu0 %v629, 40
    %v7094 = vpop.permute.xlu0 %7093
    %v7097 = vsel %vm641, %v7091, 0
    %7099 = vmatprep.subr.mxu0 0.0
    %7100 = vmatpush1.msra.mxu0 0.0
    %7101 = vmatprep.subr.mxu0 0.0
    %7102 = vmatpush1.msra.mxu0 0.0
    %7103 = vmatprep.subr.mxu0 0.0
    %7104 = vmatpush1.msra.mxu0 0.0
    %7105 = vmatprep.subr.mxu0 0.0
    %7106 = vmatpush1.msra.mxu0 0.0
    %7107 = vmatprep.subr.mxu0 0.0
    %7108 = vmatpush1.msra.mxu0 0.0
    %7109 = vmatprep.subr.mxu0 0.0
    %7110 = vmatpush1.msra.mxu0 0.0
    %7111 = vmatprep.subr.mxu0 0.0
    %7112 = vmatpush1.msra.mxu0 0.0
    %7113 = vmatprep.subr.mxu0 0.0
    %7114 = vmatpush1.msra.mxu0 0.0
    %7115 = vmatprep.subr.mxu0 0.0
    %7116 = vmatpush1.msra.mxu0 0.0
    %7117 = vmatprep.subr.mxu0 0.0
    %7118 = vmatpush1.msra.mxu0 0.0
    %7119 = vmatprep.subr.mxu0 0.0
    %7120 = vmatpush1.msra.mxu0 0.0
    %7121 = vmatprep.subr.mxu0 0.0
    %7122 = vmatpush1.msra.mxu0 0.0
    %7123 = vmatprep.subr.mxu0 0.0
    %7124 = vmatpush1.msra.mxu0 0.0
    %7125 = vmatprep.subr.mxu0 0.0
    %7126 = vmatpush1.msra.mxu0 0.0
    %7127 = vmatprep.subr.mxu0 0.0
    %7128 = vmatpush1.msra.mxu0 0.0
    %7129 = vmatprep.subr.mxu0 0.0
    %v7130 = vand.u32 %v7094, 4294901760
    %7131 = vmatpush1.msra.mxu0 %v7130
    %7132 = vmatprep.subr.mxu0 0.0
    %7133 = vmatpush2.msra.mxu0 0.0
    %7134 = vmatprep.subr.mxu0 0.0
    %7135 = vmatpush2.msra.mxu0 0.0
    %7136 = vmatprep.subr.mxu0 0.0
    %7137 = vmatpush2.msra.mxu0 0.0
    %7138 = vmatprep.subr.mxu0 0.0
    %7139 = vmatpush2.msra.mxu0 0.0
    %7140 = vmatprep.subr.mxu0 0.0
    %7141 = vmatpush2.msra.mxu0 0.0
    %7142 = vmatprep.subr.mxu0 0.0
    %7143 = vmatpush2.msra.mxu0 0.0
    %7144 = vmatprep.subr.mxu0 0.0
    %7145 = vmatpush2.msra.mxu0 0.0
    %7146 = vmatprep.subr.mxu0 0.0
    %7147 = vmatpush2.msra.mxu0 0.0
    %7148 = vmatprep.subr.mxu0 0.0
    %7149 = vmatpush2.msra.mxu0 0.0
    %7150 = vmatprep.subr.mxu0 0.0
    %7151 = vmatpush2.msra.mxu0 0.0
    %7152 = vmatprep.subr.mxu0 0.0
    %7153 = vmatpush2.msra.mxu0 0.0
    %7154 = vmatprep.subr.mxu0 0.0
    %7155 = vmatpush2.msra.mxu0 0.0
    %7156 = vmatprep.subr.mxu0 0.0
    %7157 = vmatpush2.msra.mxu0 0.0
    %7158 = vmatprep.subr.mxu0 0.0
    %7159 = vmatpush2.msra.mxu0 0.0
    %7160 = vmatprep.subr.mxu0 0.0
    %7161 = vmatpush2.msra.mxu0 0.0
    %7162 = vmatprep.subr.mxu0 0.0
    %7163 = vmatpush2.msra.mxu0 0.0
    %7164 = vmatprep.mubr.f32.mxu0 0.0
    %v7165 = vand.u32 %v7097, 4294901760
    %v7166 = vsub.f32 %v7097, %v7165
    %v7167 = vand.u32 %v7166, 4294901760
    %v7168 = vsub.f32 %v7166, %v7167
    %v7169 = vand.u32 %v7168, 4294901760
    %7170 = vmatmul.mubr.f32.gmra.mxu0 %v7169
    %v7171 = vpop.f32.mrf.mxu0
    %v7172 = vadd.f32 0.0, %v7171
    %v7173 = vpop.f32.mrf.mxu0
    %7174 = vdwg.mxu0
    %7175 = vmatprep.subr.mxu0 0.0
    %7176 = vmatpush1.msra.mxu0 0.0
    %7177 = vmatprep.subr.mxu0 0.0
    %7178 = vmatpush1.msra.mxu0 0.0
    %7179 = vmatprep.subr.mxu0 0.0
    %7180 = vmatpush1.msra.mxu0 0.0
    %7181 = vmatprep.subr.mxu0 0.0
    %7182 = vmatpush1.msra.mxu0 0.0
    %7183 = vmatprep.subr.mxu0 0.0
    %7184 = vmatpush1.msra.mxu0 0.0
    %7185 = vmatprep.subr.mxu0 0.0
    %7186 = vmatpush1.msra.mxu0 0.0
    %7187 = vmatprep.subr.mxu0 0.0
    %7188 = vmatpush1.msra.mxu0 0.0
    %7189 = vmatprep.subr.mxu0 0.0
    %7190 = vmatpush1.msra.mxu0 0.0
    %7191 = vmatprep.subr.mxu0 0.0
    %7192 = vmatpush1.msra.mxu0 0.0
    %7193 = vmatprep.subr.mxu0 0.0
    %7194 = vmatpush1.msra.mxu0 0.0
    %7195 = vmatprep.subr.mxu0 0.0
    %7196 = vmatpush1.msra.mxu0 0.0
    %7197 = vmatprep.subr.mxu0 0.0
    %7198 = vmatpush1.msra.mxu0 0.0
    %7199 = vmatprep.subr.mxu0 0.0
    %7200 = vmatpush1.msra.mxu0 0.0
    %7201 = vmatprep.subr.mxu0 0.0
    %7202 = vmatpush1.msra.mxu0 0.0
    %7203 = vmatprep.subr.mxu0 0.0
    %7204 = vmatpush1.msra.mxu0 0.0
    %7205 = vmatprep.subr.mxu0 0.0
    %v7206 = vand.u32 %v7094, 4294901760
    %v7207 = vsub.f32 %v7094, %v7206
    %v7208 = vand.u32 %v7207, 4294901760
    %v7209 = vsub.f32 %v7207, %v7208
    %v7210 = vand.u32 %v7209, 4294901760
    %7211 = vmatpush1.msra.mxu0 %v7210
    %7212 = vmatprep.subr.mxu0 0.0
    %7213 = vmatpush2.msra.mxu0 0.0
    %7214 = vmatprep.subr.mxu0 0.0
    %7215 = vmatpush2.msra.mxu0 0.0
    %7216 = vmatprep.subr.mxu0 0.0
    %7217 = vmatpush2.msra.mxu0 0.0
    %7218 = vmatprep.subr.mxu0 0.0
    %7219 = vmatpush2.msra.mxu0 0.0
    %7220 = vmatprep.subr.mxu0 0.0
    %7221 = vmatpush2.msra.mxu0 0.0
    %7222 = vmatprep.subr.mxu0 0.0
    %7223 = vmatpush2.msra.mxu0 0.0
    %7224 = vmatprep.subr.mxu0 0.0
    %7225 = vmatpush2.msra.mxu0 0.0
    %7226 = vmatprep.subr.mxu0 0.0
    %7227 = vmatpush2.msra.mxu0 0.0
    %7228 = vmatprep.subr.mxu0 0.0
    %7229 = vmatpush2.msra.mxu0 0.0
    %7230 = vmatprep.subr.mxu0 0.0
    %7231 = vmatpush2.msra.mxu0 0.0
    %7232 = vmatprep.subr.mxu0 0.0
    %7233 = vmatpush2.msra.mxu0 0.0
    %7234 = vmatprep.subr.mxu0 0.0
    %7235 = vmatpush2.msra.mxu0 0.0
    %7236 = vmatprep.subr.mxu0 0.0
    %7237 = vmatpush2.msra.mxu0 0.0
    %7238 = vmatprep.subr.mxu0 0.0
    %7239 = vmatpush2.msra.mxu0 0.0
    %7240 = vmatprep.subr.mxu0 0.0
    %7241 = vmatpush2.msra.mxu0 0.0
    %7242 = vmatprep.subr.mxu0 0.0
    %7243 = vmatpush2.msra.mxu0 0.0
    %7244 = vmatprep.mubr.f32.mxu0 0.0
    %v7245 = vand.u32 %v7097, 4294901760
    %7246 = vmatmul.mubr.f32.gmra.mxu0 %v7245
    %v7247 = vpop.f32.mrf.mxu0
    %v7248 = vadd.f32 %v7172, %v7247
    %v7249 = vpop.f32.mrf.mxu0
    %7250 = vdwg.mxu0
    %7251 = vmatprep.subr.mxu0 0.0
    %7252 = vmatpush1.msra.mxu0 0.0
    %7253 = vmatprep.subr.mxu0 0.0
    %7254 = vmatpush1.msra.mxu0 0.0
    %7255 = vmatprep.subr.mxu0 0.0
    %7256 = vmatpush1.msra.mxu0 0.0
    %7257 = vmatprep.subr.mxu0 0.0
    %7258 = vmatpush1.msra.mxu0 0.0
    %7259 = vmatprep.subr.mxu0 0.0
    %7260 = vmatpush1.msra.mxu0 0.0
    %7261 = vmatprep.subr.mxu0 0.0
    %7262 = vmatpush1.msra.mxu0 0.0
    %7263 = vmatprep.subr.mxu0 0.0
    %7264 = vmatpush1.msra.mxu0 0.0
    %7265 = vmatprep.subr.mxu0 0.0
    %7266 = vmatpush1.msra.mxu0 0.0
    %7267 = vmatprep.subr.mxu0 0.0
    %7268 = vmatpush1.msra.mxu0 0.0
    %7269 = vmatprep.subr.mxu0 0.0
    %7270 = vmatpush1.msra.mxu0 0.0
    %7271 = vmatprep.subr.mxu0 0.0
    %7272 = vmatpush1.msra.mxu0 0.0
    %7273 = vmatprep.subr.mxu0 0.0
    %7274 = vmatpush1.msra.mxu0 0.0
    %7275 = vmatprep.subr.mxu0 0.0
    %7276 = vmatpush1.msra.mxu0 0.0
    %7277 = vmatprep.subr.mxu0 0.0
    %7278 = vmatpush1.msra.mxu0 0.0
    %7279 = vmatprep.subr.mxu0 0.0
    %7280 = vmatpush1.msra.mxu0 0.0
    %7281 = vmatprep.subr.mxu0 0.0
    %v7282 = vand.u32 %v7094, 4294901760
    %v7283 = vsub.f32 %v7094, %v7282
    %7284 = vmatpush1.msra.mxu0 %v7283
    %7285 = vmatprep.subr.mxu0 0.0
    %7286 = vmatpush2.msra.mxu0 0.0
    %7287 = vmatprep.subr.mxu0 0.0
    %7288 = vmatpush2.msra.mxu0 0.0
    %7289 = vmatprep.subr.mxu0 0.0
    %7290 = vmatpush2.msra.mxu0 0.0
    %7291 = vmatprep.subr.mxu0 0.0
    %7292 = vmatpush2.msra.mxu0 0.0
    %7293 = vmatprep.subr.mxu0 0.0
    %7294 = vmatpush2.msra.mxu0 0.0
    %7295 = vmatprep.subr.mxu0 0.0
    %7296 = vmatpush2.msra.mxu0 0.0
    %7297 = vmatprep.subr.mxu0 0.0
    %7298 = vmatpush2.msra.mxu0 0.0
    %7299 = vmatprep.subr.mxu0 0.0
    %7300 = vmatpush2.msra.mxu0 0.0
    %7301 = vmatprep.subr.mxu0 0.0
    %7302 = vmatpush2.msra.mxu0 0.0
    %7303 = vmatprep.subr.mxu0 0.0
    %7304 = vmatpush2.msra.mxu0 0.0
    %7305 = vmatprep.subr.mxu0 0.0
    %7306 = vmatpush2.msra.mxu0 0.0
    %7307 = vmatprep.subr.mxu0 0.0
    %7308 = vmatpush2.msra.mxu0 0.0
    %7309 = vmatprep.subr.mxu0 0.0
    %7310 = vmatpush2.msra.mxu0 0.0
    %7311 = vmatprep.subr.mxu0 0.0
    %7312 = vmatpush2.msra.mxu0 0.0
    %7313 = vmatprep.subr.mxu0 0.0
    %7314 = vmatpush2.msra.mxu0 0.0
    %7315 = vmatprep.subr.mxu0 0.0
    %7316 = vmatpush2.msra.mxu0 0.0
    %7317 = vmatprep.mubr.f32.mxu0 0.0
    %v7318 = vand.u32 %v7097, 4294901760
    %v7319 = vsub.f32 %v7097, %v7318
    %7320 = vmatmul.mubr.f32.gmra.mxu0 %v7319
    %v7321 = vpop.f32.mrf.mxu0
    %v7322 = vadd.f32 %v7248, %v7321
    %v7323 = vpop.f32.mrf.mxu0
    %7324 = vdwg.mxu0
    %7325 = vmatprep.subr.mxu0 0.0
    %7326 = vmatpush1.msra.mxu0 0.0
    %7327 = vmatprep.subr.mxu0 0.0
    %7328 = vmatpush1.msra.mxu0 0.0
    %7329 = vmatprep.subr.mxu0 0.0
    %7330 = vmatpush1.msra.mxu0 0.0
    %7331 = vmatprep.subr.mxu0 0.0
    %7332 = vmatpush1.msra.mxu0 0.0
    %7333 = vmatprep.subr.mxu0 0.0
    %7334 = vmatpush1.msra.mxu0 0.0
    %7335 = vmatprep.subr.mxu0 0.0
    %7336 = vmatpush1.msra.mxu0 0.0
    %7337 = vmatprep.subr.mxu0 0.0
    %7338 = vmatpush1.msra.mxu0 0.0
    %7339 = vmatprep.subr.mxu0 0.0
    %7340 = vmatpush1.msra.mxu0 0.0
    %7341 = vmatprep.subr.mxu0 0.0
    %7342 = vmatpush1.msra.mxu0 0.0
    %7343 = vmatprep.subr.mxu0 0.0
    %7344 = vmatpush1.msra.mxu0 0.0
    %7345 = vmatprep.subr.mxu0 0.0
    %7346 = vmatpush1.msra.mxu0 0.0
    %7347 = vmatprep.subr.mxu0 0.0
    %7348 = vmatpush1.msra.mxu0 0.0
    %7349 = vmatprep.subr.mxu0 0.0
    %7350 = vmatpush1.msra.mxu0 0.0
    %7351 = vmatprep.subr.mxu0 0.0
    %7352 = vmatpush1.msra.mxu0 0.0
    %7353 = vmatprep.subr.mxu0 0.0
    %7354 = vmatpush1.msra.mxu0 0.0
    %7355 = vmatprep.subr.mxu0 0.0
    %v7356 = vand.u32 %v7094, 4294901760
    %7357 = vmatpush1.msra.mxu0 %v7356
    %7358 = vmatprep.subr.mxu0 0.0
    %7359 = vmatpush2.msra.mxu0 0.0
    %7360 = vmatprep.subr.mxu0 0.0
    %7361 = vmatpush2.msra.mxu0 0.0
    %7362 = vmatprep.subr.mxu0 0.0
    %7363 = vmatpush2.msra.mxu0 0.0
    %7364 = vmatprep.subr.mxu0 0.0
    %7365 = vmatpush2.msra.mxu0 0.0
    %7366 = vmatprep.subr.mxu0 0.0
    %7367 = vmatpush2.msra.mxu0 0.0
    %7368 = vmatprep.subr.mxu0 0.0
    %7369 = vmatpush2.msra.mxu0 0.0
    %7370 = vmatprep.subr.mxu0 0.0
    %7371 = vmatpush2.msra.mxu0 0.0
    %7372 = vmatprep.subr.mxu0 0.0
    %7373 = vmatpush2.msra.mxu0 0.0
    %7374 = vmatprep.subr.mxu0 0.0
    %7375 = vmatpush2.msra.mxu0 0.0
    %7376 = vmatprep.subr.mxu0 0.0
    %7377 = vmatpush2.msra.mxu0 0.0
    %7378 = vmatprep.subr.mxu0 0.0
    %7379 = vmatpush2.msra.mxu0 0.0
    %7380 = vmatprep.subr.mxu0 0.0
    %7381 = vmatpush2.msra.mxu0 0.0
    %7382 = vmatprep.subr.mxu0 0.0
    %7383 = vmatpush2.msra.mxu0 0.0
    %7384 = vmatprep.subr.mxu0 0.0
    %7385 = vmatpush2.msra.mxu0 0.0
    %7386 = vmatprep.subr.mxu0 0.0
    %7387 = vmatpush2.msra.mxu0 0.0
    %7388 = vmatprep.subr.mxu0 0.0
    %7389 = vmatpush2.msra.mxu0 0.0
    %7390 = vmatprep.mubr.f32.mxu0 0.0
    %v7391 = vand.u32 %v7097, 4294901760
    %v7392 = vsub.f32 %v7097, %v7391
    %v7393 = vand.u32 %v7392, 4294901760
    %7394 = vmatmul.mubr.f32.gmra.mxu0 %v7393
    %v7395 = vpop.f32.mrf.mxu0
    %v7396 = vadd.f32 %v7322, %v7395
    %v7397 = vpop.f32.mrf.mxu0
    %7398 = vdwg.mxu0
    %7399 = vmatprep.subr.mxu0 0.0
    %7400 = vmatpush1.msra.mxu0 0.0
    %7401 = vmatprep.subr.mxu0 0.0
    %7402 = vmatpush1.msra.mxu0 0.0
    %7403 = vmatprep.subr.mxu0 0.0
    %7404 = vmatpush1.msra.mxu0 0.0
    %7405 = vmatprep.subr.mxu0 0.0
    %7406 = vmatpush1.msra.mxu0 0.0
    %7407 = vmatprep.subr.mxu0 0.0
    %7408 = vmatpush1.msra.mxu0 0.0
    %7409 = vmatprep.subr.mxu0 0.0
    %7410 = vmatpush1.msra.mxu0 0.0
    %7411 = vmatprep.subr.mxu0 0.0
    %7412 = vmatpush1.msra.mxu0 0.0
    %7413 = vmatprep.subr.mxu0 0.0
    %7414 = vmatpush1.msra.mxu0 0.0
    %7415 = vmatprep.subr.mxu0 0.0
    %7416 = vmatpush1.msra.mxu0 0.0
    %7417 = vmatprep.subr.mxu0 0.0
    %7418 = vmatpush1.msra.mxu0 0.0
    %7419 = vmatprep.subr.mxu0 0.0
    %7420 = vmatpush1.msra.mxu0 0.0
    %7421 = vmatprep.subr.mxu0 0.0
    %7422 = vmatpush1.msra.mxu0 0.0
    %7423 = vmatprep.subr.mxu0 0.0
    %7424 = vmatpush1.msra.mxu0 0.0
    %7425 = vmatprep.subr.mxu0 0.0
    %7426 = vmatpush1.msra.mxu0 0.0
    %7427 = vmatprep.subr.mxu0 0.0
    %7428 = vmatpush1.msra.mxu0 0.0
    %7429 = vmatprep.subr.mxu0 0.0
    %v7430 = vand.u32 %v7094, 4294901760
    %v7431 = vsub.f32 %v7094, %v7430
    %v7432 = vand.u32 %v7431, 4294901760
    %7433 = vmatpush1.msra.mxu0 %v7432
    %7434 = vmatprep.subr.mxu0 0.0
    %7435 = vmatpush2.msra.mxu0 0.0
    %7436 = vmatprep.subr.mxu0 0.0
    %7437 = vmatpush2.msra.mxu0 0.0
    %7438 = vmatprep.subr.mxu0 0.0
    %7439 = vmatpush2.msra.mxu0 0.0
    %7440 = vmatprep.subr.mxu0 0.0
    %7441 = vmatpush2.msra.mxu0 0.0
    %7442 = vmatprep.subr.mxu0 0.0
    %7443 = vmatpush2.msra.mxu0 0.0
    %7444 = vmatprep.subr.mxu0 0.0
    %7445 = vmatpush2.msra.mxu0 0.0
    %7446 = vmatprep.subr.mxu0 0.0
    %7447 = vmatpush2.msra.mxu0 0.0
    %7448 = vmatprep.subr.mxu0 0.0
    %7449 = vmatpush2.msra.mxu0 0.0
    %7450 = vmatprep.subr.mxu0 0.0
    %7451 = vmatpush2.msra.mxu0 0.0
    %7452 = vmatprep.subr.mxu0 0.0
    %7453 = vmatpush2.msra.mxu0 0.0
    %7454 = vmatprep.subr.mxu0 0.0
    %7455 = vmatpush2.msra.mxu0 0.0
    %7456 = vmatprep.subr.mxu0 0.0
    %7457 = vmatpush2.msra.mxu0 0.0
    %7458 = vmatprep.subr.mxu0 0.0
    %7459 = vmatpush2.msra.mxu0 0.0
    %7460 = vmatprep.subr.mxu0 0.0
    %7461 = vmatpush2.msra.mxu0 0.0
    %7462 = vmatprep.subr.mxu0 0.0
    %7463 = vmatpush2.msra.mxu0 0.0
    %7464 = vmatprep.subr.mxu0 0.0
    %7465 = vmatpush2.msra.mxu0 0.0
    %7466 = vmatprep.mubr.f32.mxu0 0.0
    %v7467 = vand.u32 %v7097, 4294901760
    %7468 = vmatmul.mubr.f32.gmra.mxu0 %v7467
    %v7469 = vpop.f32.mrf.mxu0
    %v7470 = vadd.f32 %v7396, %v7469
    %v7471 = vpop.f32.mrf.mxu0
    %7472 = vdwg.mxu0
    %7473 = vmatprep.subr.mxu0 0.0
    %7474 = vmatpush1.msra.mxu0 0.0
    %7475 = vmatprep.subr.mxu0 0.0
    %7476 = vmatpush1.msra.mxu0 0.0
    %7477 = vmatprep.subr.mxu0 0.0
    %7478 = vmatpush1.msra.mxu0 0.0
    %7479 = vmatprep.subr.mxu0 0.0
    %7480 = vmatpush1.msra.mxu0 0.0
    %7481 = vmatprep.subr.mxu0 0.0
    %7482 = vmatpush1.msra.mxu0 0.0
    %7483 = vmatprep.subr.mxu0 0.0
    %7484 = vmatpush1.msra.mxu0 0.0
    %7485 = vmatprep.subr.mxu0 0.0
    %7486 = vmatpush1.msra.mxu0 0.0
    %7487 = vmatprep.subr.mxu0 0.0
    %7488 = vmatpush1.msra.mxu0 0.0
    %7489 = vmatprep.subr.mxu0 0.0
    %7490 = vmatpush1.msra.mxu0 0.0
    %7491 = vmatprep.subr.mxu0 0.0
    %7492 = vmatpush1.msra.mxu0 0.0
    %7493 = vmatprep.subr.mxu0 0.0
    %7494 = vmatpush1.msra.mxu0 0.0
    %7495 = vmatprep.subr.mxu0 0.0
    %7496 = vmatpush1.msra.mxu0 0.0
    %7497 = vmatprep.subr.mxu0 0.0
    %7498 = vmatpush1.msra.mxu0 0.0
    %7499 = vmatprep.subr.mxu0 0.0
    %7500 = vmatpush1.msra.mxu0 0.0
    %7501 = vmatprep.subr.mxu0 0.0
    %7502 = vmatpush1.msra.mxu0 0.0
    %7503 = vmatprep.subr.mxu0 0.0
    %v7504 = vand.u32 %v7094, 4294901760
    %7505 = vmatpush1.msra.mxu0 %v7504
    %7506 = vmatprep.subr.mxu0 0.0
    %7507 = vmatpush2.msra.mxu0 0.0
    %7508 = vmatprep.subr.mxu0 0.0
    %7509 = vmatpush2.msra.mxu0 0.0
    %7510 = vmatprep.subr.mxu0 0.0
    %7511 = vmatpush2.msra.mxu0 0.0
    %7512 = vmatprep.subr.mxu0 0.0
    %7513 = vmatpush2.msra.mxu0 0.0
    %7514 = vmatprep.subr.mxu0 0.0
    %7515 = vmatpush2.msra.mxu0 0.0
    %7516 = vmatprep.subr.mxu0 0.0
    %7517 = vmatpush2.msra.mxu0 0.0
    %7518 = vmatprep.subr.mxu0 0.0
    %7519 = vmatpush2.msra.mxu0 0.0
    %7520 = vmatprep.subr.mxu0 0.0
    %7521 = vmatpush2.msra.mxu0 0.0
    %7522 = vmatprep.subr.mxu0 0.0
    %7523 = vmatpush2.msra.mxu0 0.0
    %7524 = vmatprep.subr.mxu0 0.0
    %7525 = vmatpush2.msra.mxu0 0.0
    %7526 = vmatprep.subr.mxu0 0.0
    %7527 = vmatpush2.msra.mxu0 0.0
    %7528 = vmatprep.subr.mxu0 0.0
    %7529 = vmatpush2.msra.mxu0 0.0
    %7530 = vmatprep.subr.mxu0 0.0
    %7531 = vmatpush2.msra.mxu0 0.0
    %7532 = vmatprep.subr.mxu0 0.0
    %7533 = vmatpush2.msra.mxu0 0.0
    %7534 = vmatprep.subr.mxu0 0.0
    %7535 = vmatpush2.msra.mxu0 0.0
    %7536 = vmatprep.subr.mxu0 0.0
    %7537 = vmatpush2.msra.mxu0 0.0
    %7538 = vmatprep.mubr.f32.mxu0 0.0
    %v7539 = vand.u32 %v7097, 4294901760
    %7540 = vmatmul.mubr.f32.gmra.mxu0 %v7539
    %v7541 = vpop.f32.mrf.mxu0
    %v7542 = vadd.f32 %v7470, %v7541
    %v7543 = vpop.f32.mrf.mxu0
    %7544 = vdwg.mxu0
    %7545 = vrot.lane.b32.xlu0 %v635, 40
    %v7546 = vpop.permute.xlu0 %7545
    %v7549 = vsel %vm641, %v7092, 0
    %7551 = vmatprep.subr.mxu0 0.0
    %7552 = vmatpush1.msra.mxu0 0.0
    %7553 = vmatprep.subr.mxu0 0.0
    %7554 = vmatpush1.msra.mxu0 0.0
    %7555 = vmatprep.subr.mxu0 0.0
    %7556 = vmatpush1.msra.mxu0 0.0
    %7557 = vmatprep.subr.mxu0 0.0
    %7558 = vmatpush1.msra.mxu0 0.0
    %7559 = vmatprep.subr.mxu0 0.0
    %7560 = vmatpush1.msra.mxu0 0.0
    %7561 = vmatprep.subr.mxu0 0.0
    %7562 = vmatpush1.msra.mxu0 0.0
    %7563 = vmatprep.subr.mxu0 0.0
    %7564 = vmatpush1.msra.mxu0 0.0
    %7565 = vmatprep.subr.mxu0 0.0
    %7566 = vmatpush1.msra.mxu0 0.0
    %7567 = vmatprep.subr.mxu0 0.0
    %7568 = vmatpush1.msra.mxu0 0.0
    %7569 = vmatprep.subr.mxu0 0.0
    %7570 = vmatpush1.msra.mxu0 0.0
    %7571 = vmatprep.subr.mxu0 0.0
    %7572 = vmatpush1.msra.mxu0 0.0
    %7573 = vmatprep.subr.mxu0 0.0
    %7574 = vmatpush1.msra.mxu0 0.0
    %7575 = vmatprep.subr.mxu0 0.0
    %7576 = vmatpush1.msra.mxu0 0.0
    %7577 = vmatprep.subr.mxu0 0.0
    %7578 = vmatpush1.msra.mxu0 0.0
    %7579 = vmatprep.subr.mxu0 0.0
    %7580 = vmatpush1.msra.mxu0 0.0
    %7581 = vmatprep.subr.mxu0 0.0
    %v7582 = vand.u32 %v7546, 4294901760
    %7583 = vmatpush1.msra.mxu0 %v7582
    %7584 = vmatprep.subr.mxu0 0.0
    %7585 = vmatpush2.msra.mxu0 0.0
    %7586 = vmatprep.subr.mxu0 0.0
    %7587 = vmatpush2.msra.mxu0 0.0
    %7588 = vmatprep.subr.mxu0 0.0
    %7589 = vmatpush2.msra.mxu0 0.0
    %7590 = vmatprep.subr.mxu0 0.0
    %7591 = vmatpush2.msra.mxu0 0.0
    %7592 = vmatprep.subr.mxu0 0.0
    %7593 = vmatpush2.msra.mxu0 0.0
    %7594 = vmatprep.subr.mxu0 0.0
    %7595 = vmatpush2.msra.mxu0 0.0
    %7596 = vmatprep.subr.mxu0 0.0
    %7597 = vmatpush2.msra.mxu0 0.0
    %7598 = vmatprep.subr.mxu0 0.0
    %7599 = vmatpush2.msra.mxu0 0.0
    %7600 = vmatprep.subr.mxu0 0.0
    %7601 = vmatpush2.msra.mxu0 0.0
    %7602 = vmatprep.subr.mxu0 0.0
    %7603 = vmatpush2.msra.mxu0 0.0
    %7604 = vmatprep.subr.mxu0 0.0
    %7605 = vmatpush2.msra.mxu0 0.0
    %7606 = vmatprep.subr.mxu0 0.0
    %7607 = vmatpush2.msra.mxu0 0.0
    %7608 = vmatprep.subr.mxu0 0.0
    %7609 = vmatpush2.msra.mxu0 0.0
    %7610 = vmatprep.subr.mxu0 0.0
    %7611 = vmatpush2.msra.mxu0 0.0
    %7612 = vmatprep.subr.mxu0 0.0
    %7613 = vmatpush2.msra.mxu0 0.0
    %7614 = vmatprep.subr.mxu0 0.0
    %7615 = vmatpush2.msra.mxu0 0.0
    %7616 = vmatprep.mubr.f32.mxu0 0.0
    %v7617 = vand.u32 %v7549, 4294901760
    %v7618 = vsub.f32 %v7549, %v7617
    %v7619 = vand.u32 %v7618, 4294901760
    %v7620 = vsub.f32 %v7618, %v7619
    %v7621 = vand.u32 %v7620, 4294901760
    %7622 = vmatmul.mubr.f32.gmra.mxu0 %v7621
    %v7623 = vpop.f32.mrf.mxu0
    %v7624 = vadd.f32 0.0, %v7623
    %v7625 = vpop.f32.mrf.mxu0
    %7626 = vdwg.mxu0
    %7627 = vmatprep.subr.mxu0 0.0
    %7628 = vmatpush1.msra.mxu0 0.0
    %7629 = vmatprep.subr.mxu0 0.0
    %7630 = vmatpush1.msra.mxu0 0.0
    %7631 = vmatprep.subr.mxu0 0.0
    %7632 = vmatpush1.msra.mxu0 0.0
    %7633 = vmatprep.subr.mxu0 0.0
    %7634 = vmatpush1.msra.mxu0 0.0
    %7635 = vmatprep.subr.mxu0 0.0
    %7636 = vmatpush1.msra.mxu0 0.0
    %7637 = vmatprep.subr.mxu0 0.0
    %7638 = vmatpush1.msra.mxu0 0.0
    %7639 = vmatprep.subr.mxu0 0.0
    %7640 = vmatpush1.msra.mxu0 0.0
    %7641 = vmatprep.subr.mxu0 0.0
    %7642 = vmatpush1.msra.mxu0 0.0
    %7643 = vmatprep.subr.mxu0 0.0
    %7644 = vmatpush1.msra.mxu0 0.0
    %7645 = vmatprep.subr.mxu0 0.0
    %7646 = vmatpush1.msra.mxu0 0.0
    %7647 = vmatprep.subr.mxu0 0.0
    %7648 = vmatpush1.msra.mxu0 0.0
    %7649 = vmatprep.subr.mxu0 0.0
    %7650 = vmatpush1.msra.mxu0 0.0
    %7651 = vmatprep.subr.mxu0 0.0
    %7652 = vmatpush1.msra.mxu0 0.0
    %7653 = vmatprep.subr.mxu0 0.0
    %7654 = vmatpush1.msra.mxu0 0.0
    %7655 = vmatprep.subr.mxu0 0.0
    %7656 = vmatpush1.msra.mxu0 0.0
    %7657 = vmatprep.subr.mxu0 0.0
    %v7658 = vand.u32 %v7546, 4294901760
    %v7659 = vsub.f32 %v7546, %v7658
    %v7660 = vand.u32 %v7659, 4294901760
    %v7661 = vsub.f32 %v7659, %v7660
    %v7662 = vand.u32 %v7661, 4294901760
    %7663 = vmatpush1.msra.mxu0 %v7662
    %7664 = vmatprep.subr.mxu0 0.0
    %7665 = vmatpush2.msra.mxu0 0.0
    %7666 = vmatprep.subr.mxu0 0.0
    %7667 = vmatpush2.msra.mxu0 0.0
    %7668 = vmatprep.subr.mxu0 0.0
    %7669 = vmatpush2.msra.mxu0 0.0
    %7670 = vmatprep.subr.mxu0 0.0
    %7671 = vmatpush2.msra.mxu0 0.0
    %7672 = vmatprep.subr.mxu0 0.0
    %7673 = vmatpush2.msra.mxu0 0.0
    %7674 = vmatprep.subr.mxu0 0.0
    %7675 = vmatpush2.msra.mxu0 0.0
    %7676 = vmatprep.subr.mxu0 0.0
    %7677 = vmatpush2.msra.mxu0 0.0
    %7678 = vmatprep.subr.mxu0 0.0
    %7679 = vmatpush2.msra.mxu0 0.0
    %7680 = vmatprep.subr.mxu0 0.0
    %7681 = vmatpush2.msra.mxu0 0.0
    %7682 = vmatprep.subr.mxu0 0.0
    %7683 = vmatpush2.msra.mxu0 0.0
    %7684 = vmatprep.subr.mxu0 0.0
    %7685 = vmatpush2.msra.mxu0 0.0
    %7686 = vmatprep.subr.mxu0 0.0
    %7687 = vmatpush2.msra.mxu0 0.0
    %7688 = vmatprep.subr.mxu0 0.0
    %7689 = vmatpush2.msra.mxu0 0.0
    %7690 = vmatprep.subr.mxu0 0.0
    %7691 = vmatpush2.msra.mxu0 0.0
    %7692 = vmatprep.subr.mxu0 0.0
    %7693 = vmatpush2.msra.mxu0 0.0
    %7694 = vmatprep.subr.mxu0 0.0
    %7695 = vmatpush2.msra.mxu0 0.0
    %7696 = vmatprep.mubr.f32.mxu0 0.0
    %v7697 = vand.u32 %v7549, 4294901760
    %7698 = vmatmul.mubr.f32.gmra.mxu0 %v7697
    %v7699 = vpop.f32.mrf.mxu0
    %v7700 = vadd.f32 %v7624, %v7699
    %v7701 = vpop.f32.mrf.mxu0
    %7702 = vdwg.mxu0
    %7703 = vmatprep.subr.mxu0 0.0
    %7704 = vmatpush1.msra.mxu0 0.0
    %7705 = vmatprep.subr.mxu0 0.0
    %7706 = vmatpush1.msra.mxu0 0.0
    %7707 = vmatprep.subr.mxu0 0.0
    %7708 = vmatpush1.msra.mxu0 0.0
    %7709 = vmatprep.subr.mxu0 0.0
    %7710 = vmatpush1.msra.mxu0 0.0
    %7711 = vmatprep.subr.mxu0 0.0
    %7712 = vmatpush1.msra.mxu0 0.0
    %7713 = vmatprep.subr.mxu0 0.0
    %7714 = vmatpush1.msra.mxu0 0.0
    %7715 = vmatprep.subr.mxu0 0.0
    %7716 = vmatpush1.msra.mxu0 0.0
    %7717 = vmatprep.subr.mxu0 0.0
    %7718 = vmatpush1.msra.mxu0 0.0
    %7719 = vmatprep.subr.mxu0 0.0
    %7720 = vmatpush1.msra.mxu0 0.0
    %7721 = vmatprep.subr.mxu0 0.0
    %7722 = vmatpush1.msra.mxu0 0.0
    %7723 = vmatprep.subr.mxu0 0.0
    %7724 = vmatpush1.msra.mxu0 0.0
    %7725 = vmatprep.subr.mxu0 0.0
    %7726 = vmatpush1.msra.mxu0 0.0
    %7727 = vmatprep.subr.mxu0 0.0
    %7728 = vmatpush1.msra.mxu0 0.0
    %7729 = vmatprep.subr.mxu0 0.0
    %7730 = vmatpush1.msra.mxu0 0.0
    %7731 = vmatprep.subr.mxu0 0.0
    %7732 = vmatpush1.msra.mxu0 0.0
    %7733 = vmatprep.subr.mxu0 0.0
    %v7734 = vand.u32 %v7546, 4294901760
    %v7735 = vsub.f32 %v7546, %v7734
    %7736 = vmatpush1.msra.mxu0 %v7735
    %7737 = vmatprep.subr.mxu0 0.0
    %7738 = vmatpush2.msra.mxu0 0.0
    %7739 = vmatprep.subr.mxu0 0.0
    %7740 = vmatpush2.msra.mxu0 0.0
    %7741 = vmatprep.subr.mxu0 0.0
    %7742 = vmatpush2.msra.mxu0 0.0
    %7743 = vmatprep.subr.mxu0 0.0
    %7744 = vmatpush2.msra.mxu0 0.0
    %7745 = vmatprep.subr.mxu0 0.0
    %7746 = vmatpush2.msra.mxu0 0.0
    %7747 = vmatprep.subr.mxu0 0.0
    %7748 = vmatpush2.msra.mxu0 0.0
    %7749 = vmatprep.subr.mxu0 0.0
    %7750 = vmatpush2.msra.mxu0 0.0
    %7751 = vmatprep.subr.mxu0 0.0
    %7752 = vmatpush2.msra.mxu0 0.0
    %7753 = vmatprep.subr.mxu0 0.0
    %7754 = vmatpush2.msra.mxu0 0.0
    %7755 = vmatprep.subr.mxu0 0.0
    %7756 = vmatpush2.msra.mxu0 0.0
    %7757 = vmatprep.subr.mxu0 0.0
    %7758 = vmatpush2.msra.mxu0 0.0
    %7759 = vmatprep.subr.mxu0 0.0
    %7760 = vmatpush2.msra.mxu0 0.0
    %7761 = vmatprep.subr.mxu0 0.0
    %7762 = vmatpush2.msra.mxu0 0.0
    %7763 = vmatprep.subr.mxu0 0.0
    %7764 = vmatpush2.msra.mxu0 0.0
    %7765 = vmatprep.subr.mxu0 0.0
    %7766 = vmatpush2.msra.mxu0 0.0
    %7767 = vmatprep.subr.mxu0 0.0
    %7768 = vmatpush2.msra.mxu0 0.0
    %7769 = vmatprep.mubr.f32.mxu0 0.0
    %v7770 = vand.u32 %v7549, 4294901760
    %v7771 = vsub.f32 %v7549, %v7770
    %7772 = vmatmul.mubr.f32.gmra.mxu0 %v7771
    %v7773 = vpop.f32.mrf.mxu0
    %v7774 = vadd.f32 %v7700, %v7773
    %v7775 = vpop.f32.mrf.mxu0
    %7776 = vdwg.mxu0
    %7777 = vmatprep.subr.mxu0 0.0
    %7778 = vmatpush1.msra.mxu0 0.0
    %7779 = vmatprep.subr.mxu0 0.0
    %7780 = vmatpush1.msra.mxu0 0.0
    %7781 = vmatprep.subr.mxu0 0.0
    %7782 = vmatpush1.msra.mxu0 0.0
    %7783 = vmatprep.subr.mxu0 0.0
    %7784 = vmatpush1.msra.mxu0 0.0
    %7785 = vmatprep.subr.mxu0 0.0
    %7786 = vmatpush1.msra.mxu0 0.0
    %7787 = vmatprep.subr.mxu0 0.0
    %7788 = vmatpush1.msra.mxu0 0.0
    %7789 = vmatprep.subr.mxu0 0.0
    %7790 = vmatpush1.msra.mxu0 0.0
    %7791 = vmatprep.subr.mxu0 0.0
    %7792 = vmatpush1.msra.mxu0 0.0
    %7793 = vmatprep.subr.mxu0 0.0
    %7794 = vmatpush1.msra.mxu0 0.0
    %7795 = vmatprep.subr.mxu0 0.0
    %7796 = vmatpush1.msra.mxu0 0.0
    %7797 = vmatprep.subr.mxu0 0.0
    %7798 = vmatpush1.msra.mxu0 0.0
    %7799 = vmatprep.subr.mxu0 0.0
    %7800 = vmatpush1.msra.mxu0 0.0
    %7801 = vmatprep.subr.mxu0 0.0
    %7802 = vmatpush1.msra.mxu0 0.0
    %7803 = vmatprep.subr.mxu0 0.0
    %7804 = vmatpush1.msra.mxu0 0.0
    %7805 = vmatprep.subr.mxu0 0.0
    %7806 = vmatpush1.msra.mxu0 0.0
    %7807 = vmatprep.subr.mxu0 0.0
    %v7808 = vand.u32 %v7546, 4294901760
    %7809 = vmatpush1.msra.mxu0 %v7808
    %7810 = vmatprep.subr.mxu0 0.0
    %7811 = vmatpush2.msra.mxu0 0.0
    %7812 = vmatprep.subr.mxu0 0.0
    %7813 = vmatpush2.msra.mxu0 0.0
    %7814 = vmatprep.subr.mxu0 0.0
    %7815 = vmatpush2.msra.mxu0 0.0
    %7816 = vmatprep.subr.mxu0 0.0
    %7817 = vmatpush2.msra.mxu0 0.0
    %7818 = vmatprep.subr.mxu0 0.0
    %7819 = vmatpush2.msra.mxu0 0.0
    %7820 = vmatprep.subr.mxu0 0.0
    %7821 = vmatpush2.msra.mxu0 0.0
    %7822 = vmatprep.subr.mxu0 0.0
    %7823 = vmatpush2.msra.mxu0 0.0
    %7824 = vmatprep.subr.mxu0 0.0
    %7825 = vmatpush2.msra.mxu0 0.0
    %7826 = vmatprep.subr.mxu0 0.0
    %7827 = vmatpush2.msra.mxu0 0.0
    %7828 = vmatprep.subr.mxu0 0.0
    %7829 = vmatpush2.msra.mxu0 0.0
    %7830 = vmatprep.subr.mxu0 0.0
    %7831 = vmatpush2.msra.mxu0 0.0
    %7832 = vmatprep.subr.mxu0 0.0
    %7833 = vmatpush2.msra.mxu0 0.0
    %7834 = vmatprep.subr.mxu0 0.0
    %7835 = vmatpush2.msra.mxu0 0.0
    %7836 = vmatprep.subr.mxu0 0.0
    %7837 = vmatpush2.msra.mxu0 0.0
    %7838 = vmatprep.subr.mxu0 0.0
    %7839 = vmatpush2.msra.mxu0 0.0
    %7840 = vmatprep.subr.mxu0 0.0
    %7841 = vmatpush2.msra.mxu0 0.0
    %7842 = vmatprep.mubr.f32.mxu0 0.0
    %v7843 = vand.u32 %v7549, 4294901760
    %v7844 = vsub.f32 %v7549, %v7843
    %v7845 = vand.u32 %v7844, 4294901760
    %7846 = vmatmul.mubr.f32.gmra.mxu0 %v7845
    %v7847 = vpop.f32.mrf.mxu0
    %v7848 = vadd.f32 %v7774, %v7847
    %v7849 = vpop.f32.mrf.mxu0
    %7850 = vdwg.mxu0
    %7851 = vmatprep.subr.mxu0 0.0
    %7852 = vmatpush1.msra.mxu0 0.0
    %7853 = vmatprep.subr.mxu0 0.0
    %7854 = vmatpush1.msra.mxu0 0.0
    %7855 = vmatprep.subr.mxu0 0.0
    %7856 = vmatpush1.msra.mxu0 0.0
    %7857 = vmatprep.subr.mxu0 0.0
    %7858 = vmatpush1.msra.mxu0 0.0
    %7859 = vmatprep.subr.mxu0 0.0
    %7860 = vmatpush1.msra.mxu0 0.0
    %7861 = vmatprep.subr.mxu0 0.0
    %7862 = vmatpush1.msra.mxu0 0.0
    %7863 = vmatprep.subr.mxu0 0.0
    %7864 = vmatpush1.msra.mxu0 0.0
    %7865 = vmatprep.subr.mxu0 0.0
    %7866 = vmatpush1.msra.mxu0 0.0
    %7867 = vmatprep.subr.mxu0 0.0
    %7868 = vmatpush1.msra.mxu0 0.0
    %7869 = vmatprep.subr.mxu0 0.0
    %7870 = vmatpush1.msra.mxu0 0.0
    %7871 = vmatprep.subr.mxu0 0.0
    %7872 = vmatpush1.msra.mxu0 0.0
    %7873 = vmatprep.subr.mxu0 0.0
    %7874 = vmatpush1.msra.mxu0 0.0
    %7875 = vmatprep.subr.mxu0 0.0
    %7876 = vmatpush1.msra.mxu0 0.0
    %7877 = vmatprep.subr.mxu0 0.0
    %7878 = vmatpush1.msra.mxu0 0.0
    %7879 = vmatprep.subr.mxu0 0.0
    %7880 = vmatpush1.msra.mxu0 0.0
    %7881 = vmatprep.subr.mxu0 0.0
    %v7882 = vand.u32 %v7546, 4294901760
    %v7883 = vsub.f32 %v7546, %v7882
    %v7884 = vand.u32 %v7883, 4294901760
    %7885 = vmatpush1.msra.mxu0 %v7884
    %7886 = vmatprep.subr.mxu0 0.0
    %7887 = vmatpush2.msra.mxu0 0.0
    %7888 = vmatprep.subr.mxu0 0.0
    %7889 = vmatpush2.msra.mxu0 0.0
    %7890 = vmatprep.subr.mxu0 0.0
    %7891 = vmatpush2.msra.mxu0 0.0
    %7892 = vmatprep.subr.mxu0 0.0
    %7893 = vmatpush2.msra.mxu0 0.0
    %7894 = vmatprep.subr.mxu0 0.0
    %7895 = vmatpush2.msra.mxu0 0.0
    %7896 = vmatprep.subr.mxu0 0.0
    %7897 = vmatpush2.msra.mxu0 0.0
    %7898 = vmatprep.subr.mxu0 0.0
    %7899 = vmatpush2.msra.mxu0 0.0
    %7900 = vmatprep.subr.mxu0 0.0
    %7901 = vmatpush2.msra.mxu0 0.0
    %7902 = vmatprep.subr.mxu0 0.0
    %7903 = vmatpush2.msra.mxu0 0.0
    %7904 = vmatprep.subr.mxu0 0.0
    %7905 = vmatpush2.msra.mxu0 0.0
    %7906 = vmatprep.subr.mxu0 0.0
    %7907 = vmatpush2.msra.mxu0 0.0
    %7908 = vmatprep.subr.mxu0 0.0
    %7909 = vmatpush2.msra.mxu0 0.0
    %7910 = vmatprep.subr.mxu0 0.0
    %7911 = vmatpush2.msra.mxu0 0.0
    %7912 = vmatprep.subr.mxu0 0.0
    %7913 = vmatpush2.msra.mxu0 0.0
    %7914 = vmatprep.subr.mxu0 0.0
    %7915 = vmatpush2.msra.mxu0 0.0
    %7916 = vmatprep.subr.mxu0 0.0
    %7917 = vmatpush2.msra.mxu0 0.0
    %7918 = vmatprep.mubr.f32.mxu0 0.0
    %v7919 = vand.u32 %v7549, 4294901760
    %7920 = vmatmul.mubr.f32.gmra.mxu0 %v7919
    %v7921 = vpop.f32.mrf.mxu0
    %v7922 = vadd.f32 %v7848, %v7921
    %v7923 = vpop.f32.mrf.mxu0
    %7924 = vdwg.mxu0
    %7925 = vmatprep.subr.mxu0 0.0
    %7926 = vmatpush1.msra.mxu0 0.0
    %7927 = vmatprep.subr.mxu0 0.0
    %7928 = vmatpush1.msra.mxu0 0.0
    %7929 = vmatprep.subr.mxu0 0.0
    %7930 = vmatpush1.msra.mxu0 0.0
    %7931 = vmatprep.subr.mxu0 0.0
    %7932 = vmatpush1.msra.mxu0 0.0
    %7933 = vmatprep.subr.mxu0 0.0
    %7934 = vmatpush1.msra.mxu0 0.0
    %7935 = vmatprep.subr.mxu0 0.0
    %7936 = vmatpush1.msra.mxu0 0.0
    %7937 = vmatprep.subr.mxu0 0.0
    %7938 = vmatpush1.msra.mxu0 0.0
    %7939 = vmatprep.subr.mxu0 0.0
    %7940 = vmatpush1.msra.mxu0 0.0
    %7941 = vmatprep.subr.mxu0 0.0
    %7942 = vmatpush1.msra.mxu0 0.0
    %7943 = vmatprep.subr.mxu0 0.0
    %7944 = vmatpush1.msra.mxu0 0.0
    %7945 = vmatprep.subr.mxu0 0.0
    %7946 = vmatpush1.msra.mxu0 0.0
    %7947 = vmatprep.subr.mxu0 0.0
    %7948 = vmatpush1.msra.mxu0 0.0
    %7949 = vmatprep.subr.mxu0 0.0
    %7950 = vmatpush1.msra.mxu0 0.0
    %7951 = vmatprep.subr.mxu0 0.0
    %7952 = vmatpush1.msra.mxu0 0.0
    %7953 = vmatprep.subr.mxu0 0.0
    %7954 = vmatpush1.msra.mxu0 0.0
    %7955 = vmatprep.subr.mxu0 0.0
    %v7956 = vand.u32 %v7546, 4294901760
    %7957 = vmatpush1.msra.mxu0 %v7956
    %7958 = vmatprep.subr.mxu0 0.0
    %7959 = vmatpush2.msra.mxu0 0.0
    %7960 = vmatprep.subr.mxu0 0.0
    %7961 = vmatpush2.msra.mxu0 0.0
    %7962 = vmatprep.subr.mxu0 0.0
    %7963 = vmatpush2.msra.mxu0 0.0
    %7964 = vmatprep.subr.mxu0 0.0
    %7965 = vmatpush2.msra.mxu0 0.0
    %7966 = vmatprep.subr.mxu0 0.0
    %7967 = vmatpush2.msra.mxu0 0.0
    %7968 = vmatprep.subr.mxu0 0.0
    %7969 = vmatpush2.msra.mxu0 0.0
    %7970 = vmatprep.subr.mxu0 0.0
    %7971 = vmatpush2.msra.mxu0 0.0
    %7972 = vmatprep.subr.mxu0 0.0
    %7973 = vmatpush2.msra.mxu0 0.0
    %7974 = vmatprep.subr.mxu0 0.0
    %7975 = vmatpush2.msra.mxu0 0.0
    %7976 = vmatprep.subr.mxu0 0.0
    %7977 = vmatpush2.msra.mxu0 0.0
    %7978 = vmatprep.subr.mxu0 0.0
    %7979 = vmatpush2.msra.mxu0 0.0
    %7980 = vmatprep.subr.mxu0 0.0
    %7981 = vmatpush2.msra.mxu0 0.0
    %7982 = vmatprep.subr.mxu0 0.0
    %7983 = vmatpush2.msra.mxu0 0.0
    %7984 = vmatprep.subr.mxu0 0.0
    %7985 = vmatpush2.msra.mxu0 0.0
    %7986 = vmatprep.subr.mxu0 0.0
    %7987 = vmatpush2.msra.mxu0 0.0
    %7988 = vmatprep.subr.mxu0 0.0
    %7989 = vmatpush2.msra.mxu0 0.0
    %7990 = vmatprep.mubr.f32.mxu0 0.0
    %v7991 = vand.u32 %v7549, 4294901760
    %7992 = vmatmul.mubr.f32.gmra.mxu0 %v7991
    %v7993 = vpop.f32.mrf.mxu0
    %v7994 = vadd.f32 %v7922, %v7993
    %v7995 = vpop.f32.mrf.mxu0
    %7996 = vdwg.mxu0
    %7999 = vrot.lane.b32.xlu0 %v7542, 24
    %v8000 = vpop.permute.xlu0 %7999
    %8001 = vrot.lane.b32.xlu0 %v7994, 24
    %v8002 = vpop.permute.xlu0 %8001
    %vm8005 = vcmask 261312
    %8006 = vst.msk [vmem:[#allocation2] sm:$0xff] %vm8005, %v8000
    %8007 = vst.msk [vmem:[#allocation2 + $0x8] sm:$0xff] %vm8005, %v8002
    %v8008 = vld [vmem:[#allocation2] sm:$0xff]
    %v8009 = vld [vmem:[#allocation2 + $0x8] sm:$0xff]
    %v8010 = vld [vmem:[%s5] sm:$0xff]
    %v8011 = vld [vmem:[%s5 + $0x8] sm:$0xff]
    %v8012 = vld [vmem:[%s5 + $0x10] sm:$0xff]
    %v8013 = vld [vmem:[%s5 + $0x18] sm:$0xff]
    %v8014 = vld [vmem:[%s6] sm:$0x1]
    %v8016 = vlaneseq
    %v8017 = vshrl.u32 %v8016, 7
    %v8018 = vsub.s32 0, %v8017
    %v8019 = vrot.slane %v8014, %v8018
    %v8022 = vsel %vm49, %v8008, 0
    %v8025 = vsel %vm49, %v8009, 0
    %8027 = vmatprep.subr.mxu0 0.0
    %8028 = vmatpush1.msra.mxu0 0.0
    %8029 = vmatprep.subr.mxu0 0.0
    %8030 = vmatpush1.msra.mxu0 0.0
    %8031 = vmatprep.subr.mxu0 0.0
    %8032 = vmatpush1.msra.mxu0 0.0
    %8033 = vmatprep.subr.mxu0 0.0
    %8034 = vmatpush1.msra.mxu0 0.0
    %8035 = vmatprep.subr.mxu0 0.0
    %8036 = vmatpush1.msra.mxu0 0.0
    %8037 = vmatprep.subr.mxu0 0.0
    %8038 = vmatpush1.msra.mxu0 0.0
    %8039 = vmatprep.subr.mxu0 0.0
    %8040 = vmatpush1.msra.mxu0 0.0
    %8041 = vmatprep.subr.mxu0 0.0
    %8042 = vmatpush1.msra.mxu0 0.0
    %8043 = vmatprep.subr.mxu0 0.0
    %8044 = vmatpush1.msra.mxu0 0.0
    %8045 = vmatprep.subr.mxu0 0.0
    %8046 = vmatpush1.msra.mxu0 0.0
    %8047 = vmatprep.subr.mxu0 0.0
    %8048 = vmatpush1.msra.mxu0 0.0
    %8049 = vmatprep.subr.mxu0 0.0
    %8050 = vmatpush1.msra.mxu0 0.0
    %8051 = vmatprep.subr.mxu0 0.0
    %v8052 = vand.u32 %v8013, 4294901760
    %8053 = vmatpush1.msra.mxu0 %v8052
    %8054 = vmatprep.subr.mxu0 0.0
    %v8055 = vand.u32 %v8012, 4294901760
    %8056 = vmatpush1.msra.mxu0 %v8055
    %8057 = vmatprep.subr.mxu0 0.0
    %v8058 = vand.u32 %v8011, 4294901760
    %8059 = vmatpush1.msra.mxu0 %v8058
    %8060 = vmatprep.subr.mxu0 0.0
    %v8061 = vand.u32 %v8010, 4294901760
    %8062 = vmatpush1.msra.mxu0 %v8061
    %8063 = vmatprep.subr.mxu0 0.0
    %8064 = vmatpush2.msra.mxu0 0.0
    %8065 = vmatprep.subr.mxu0 0.0
    %8066 = vmatpush2.msra.mxu0 0.0
    %8067 = vmatprep.subr.mxu0 0.0
    %8068 = vmatpush2.msra.mxu0 0.0
    %8069 = vmatprep.subr.mxu0 0.0
    %8070 = vmatpush2.msra.mxu0 0.0
    %8071 = vmatprep.subr.mxu0 0.0
    %8072 = vmatpush2.msra.mxu0 0.0
    %8073 = vmatprep.subr.mxu0 0.0
    %8074 = vmatpush2.msra.mxu0 0.0
    %8075 = vmatprep.subr.mxu0 0.0
    %8076 = vmatpush2.msra.mxu0 0.0
    %8077 = vmatprep.subr.mxu0 0.0
    %8078 = vmatpush2.msra.mxu0 0.0
    %8079 = vmatprep.subr.mxu0 0.0
    %8080 = vmatpush2.msra.mxu0 0.0
    %8081 = vmatprep.subr.mxu0 0.0
    %8082 = vmatpush2.msra.mxu0 0.0
    %8083 = vmatprep.subr.mxu0 0.0
    %8084 = vmatpush2.msra.mxu0 0.0
    %8085 = vmatprep.subr.mxu0 0.0
    %8086 = vmatpush2.msra.mxu0 0.0
    %8087 = vmatprep.subr.mxu0 0.0
    %8088 = vmatpush2.msra.mxu0 0.0
    %8089 = vmatprep.subr.mxu0 0.0
    %8090 = vmatpush2.msra.mxu0 0.0
    %8091 = vmatprep.subr.mxu0 0.0
    %8092 = vmatpush2.msra.mxu0 0.0
    %8093 = vmatprep.subr.mxu0 0.0
    %8094 = vmatpush2.msra.mxu0 0.0
    %8095 = vmatprep.mubr.f32.mxu0 0.0
    %v8096 = vand.u32 %v8022, 4294901760
    %v8097 = vsub.f32 %v8022, %v8096
    %v8098 = vand.u32 %v8097, 4294901760
    %v8099 = vsub.f32 %v8097, %v8098
    %v8100 = vand.u32 %v8099, 4294901760
    %8101 = vmatmul.mubr.f32.gmra.mxu0 %v8100
    %v8102 = vpop.f32.mrf.mxu0
    %v8103 = vadd.f32 %v8019, %v8102
    %v8104 = vpop.f32.mrf.mxu0
    %8105 = vmatprep.mubr.f32.mxu0 0.0
    %v8106 = vand.u32 %v8025, 4294901760
    %v8107 = vsub.f32 %v8025, %v8106
    %v8108 = vand.u32 %v8107, 4294901760
    %v8109 = vsub.f32 %v8107, %v8108
    %v8110 = vand.u32 %v8109, 4294901760
    %8111 = vmatmul.mubr.f32.gmra.mxu0 %v8110
    %v8112 = vpop.f32.mrf.mxu0
    %v8113 = vadd.f32 %v8019, %v8112
    %v8114 = vpop.f32.mrf.mxu0
    %8115 = vdwg.mxu0
    %8116 = vmatprep.subr.mxu0 0.0
    %8117 = vmatpush1.msra.mxu0 0.0
    %8118 = vmatprep.subr.mxu0 0.0
    %8119 = vmatpush1.msra.mxu0 0.0
    %8120 = vmatprep.subr.mxu0 0.0
    %8121 = vmatpush1.msra.mxu0 0.0
    %8122 = vmatprep.subr.mxu0 0.0
    %8123 = vmatpush1.msra.mxu0 0.0
    %8124 = vmatprep.subr.mxu0 0.0
    %8125 = vmatpush1.msra.mxu0 0.0
    %8126 = vmatprep.subr.mxu0 0.0
    %8127 = vmatpush1.msra.mxu0 0.0
    %8128 = vmatprep.subr.mxu0 0.0
    %8129 = vmatpush1.msra.mxu0 0.0
    %8130 = vmatprep.subr.mxu0 0.0
    %8131 = vmatpush1.msra.mxu0 0.0
    %8132 = vmatprep.subr.mxu0 0.0
    %8133 = vmatpush1.msra.mxu0 0.0
    %8134 = vmatprep.subr.mxu0 0.0
    %8135 = vmatpush1.msra.mxu0 0.0
    %8136 = vmatprep.subr.mxu0 0.0
    %8137 = vmatpush1.msra.mxu0 0.0
    %8138 = vmatprep.subr.mxu0 0.0
    %8139 = vmatpush1.msra.mxu0 0.0
    %8140 = vmatprep.subr.mxu0 0.0
    %v8141 = vand.u32 %v8013, 4294901760
    %v8142 = vsub.f32 %v8013, %v8141
    %v8143 = vand.u32 %v8142, 4294901760
    %v8144 = vsub.f32 %v8142, %v8143
    %v8145 = vand.u32 %v8144, 4294901760
    %8146 = vmatpush1.msra.mxu0 %v8145
    %8147 = vmatprep.subr.mxu0 0.0
    %v8148 = vand.u32 %v8012, 4294901760
    %v8149 = vsub.f32 %v8012, %v8148
    %v8150 = vand.u32 %v8149, 4294901760
    %v8151 = vsub.f32 %v8149, %v8150
    %v8152 = vand.u32 %v8151, 4294901760
    %8153 = vmatpush1.msra.mxu0 %v8152
    %8154 = vmatprep.subr.mxu0 0.0
    %v8155 = vand.u32 %v8011, 4294901760
    %v8156 = vsub.f32 %v8011, %v8155
    %v8157 = vand.u32 %v8156, 4294901760
    %v8158 = vsub.f32 %v8156, %v8157
    %v8159 = vand.u32 %v8158, 4294901760
    %8160 = vmatpush1.msra.mxu0 %v8159
    %8161 = vmatprep.subr.mxu0 0.0
    %v8162 = vand.u32 %v8010, 4294901760
    %v8163 = vsub.f32 %v8010, %v8162
    %v8164 = vand.u32 %v8163, 4294901760
    %v8165 = vsub.f32 %v8163, %v8164
    %v8166 = vand.u32 %v8165, 4294901760
    %8167 = vmatpush1.msra.mxu0 %v8166
    %8168 = vmatprep.subr.mxu0 0.0
    %8169 = vmatpush2.msra.mxu0 0.0
    %8170 = vmatprep.subr.mxu0 0.0
    %8171 = vmatpush2.msra.mxu0 0.0
    %8172 = vmatprep.subr.mxu0 0.0
    %8173 = vmatpush2.msra.mxu0 0.0
    %8174 = vmatprep.subr.mxu0 0.0
    %8175 = vmatpush2.msra.mxu0 0.0
    %8176 = vmatprep.subr.mxu0 0.0
    %8177 = vmatpush2.msra.mxu0 0.0
    %8178 = vmatprep.subr.mxu0 0.0
    %8179 = vmatpush2.msra.mxu0 0.0
    %8180 = vmatprep.subr.mxu0 0.0
    %8181 = vmatpush2.msra.mxu0 0.0
    %8182 = vmatprep.subr.mxu0 0.0
    %8183 = vmatpush2.msra.mxu0 0.0
    %8184 = vmatprep.subr.mxu0 0.0
    %8185 = vmatpush2.msra.mxu0 0.0
    %8186 = vmatprep.subr.mxu0 0.0
    %8187 = vmatpush2.msra.mxu0 0.0
    %8188 = vmatprep.subr.mxu0 0.0
    %8189 = vmatpush2.msra.mxu0 0.0
    %8190 = vmatprep.subr.mxu0 0.0
    %8191 = vmatpush2.msra.mxu0 0.0
    %8192 = vmatprep.subr.mxu0 0.0
    %8193 = vmatpush2.msra.mxu0 0.0
    %8194 = vmatprep.subr.mxu0 0.0
    %8195 = vmatpush2.msra.mxu0 0.0
    %8196 = vmatprep.subr.mxu0 0.0
    %8197 = vmatpush2.msra.mxu0 0.0
    %8198 = vmatprep.subr.mxu0 0.0
    %8199 = vmatpush2.msra.mxu0 0.0
    %8200 = vmatprep.mubr.f32.mxu0 0.0
    %v8201 = vand.u32 %v8022, 4294901760
    %8202 = vmatmul.mubr.f32.gmra.mxu0 %v8201
    %v8203 = vpop.f32.mrf.mxu0
    %v8204 = vadd.f32 %v8103, %v8203
    %v8205 = vpop.f32.mrf.mxu0
    %8206 = vmatprep.mubr.f32.mxu0 0.0
    %v8207 = vand.u32 %v8025, 4294901760
    %8208 = vmatmul.mubr.f32.gmra.mxu0 %v8207
    %v8209 = vpop.f32.mrf.mxu0
    %v8210 = vadd.f32 %v8113, %v8209
    %v8211 = vpop.f32.mrf.mxu0
    %8212 = vdwg.mxu0
    %8213 = vmatprep.subr.mxu0 0.0
    %8214 = vmatpush1.msra.mxu0 0.0
    %8215 = vmatprep.subr.mxu0 0.0
    %8216 = vmatpush1.msra.mxu0 0.0
    %8217 = vmatprep.subr.mxu0 0.0
    %8218 = vmatpush1.msra.mxu0 0.0
    %8219 = vmatprep.subr.mxu0 0.0
    %8220 = vmatpush1.msra.mxu0 0.0
    %8221 = vmatprep.subr.mxu0 0.0
    %8222 = vmatpush1.msra.mxu0 0.0
    %8223 = vmatprep.subr.mxu0 0.0
    %8224 = vmatpush1.msra.mxu0 0.0
    %8225 = vmatprep.subr.mxu0 0.0
    %8226 = vmatpush1.msra.mxu0 0.0
    %8227 = vmatprep.subr.mxu0 0.0
    %8228 = vmatpush1.msra.mxu0 0.0
    %8229 = vmatprep.subr.mxu0 0.0
    %8230 = vmatpush1.msra.mxu0 0.0
    %8231 = vmatprep.subr.mxu0 0.0
    %8232 = vmatpush1.msra.mxu0 0.0
    %8233 = vmatprep.subr.mxu0 0.0
    %8234 = vmatpush1.msra.mxu0 0.0
    %8235 = vmatprep.subr.mxu0 0.0
    %8236 = vmatpush1.msra.mxu0 0.0
    %8237 = vmatprep.subr.mxu0 0.0
    %v8238 = vand.u32 %v8013, 4294901760
    %v8239 = vsub.f32 %v8013, %v8238
    %8240 = vmatpush1.msra.mxu0 %v8239
    %8241 = vmatprep.subr.mxu0 0.0
    %v8242 = vand.u32 %v8012, 4294901760
    %v8243 = vsub.f32 %v8012, %v8242
    %8244 = vmatpush1.msra.mxu0 %v8243
    %8245 = vmatprep.subr.mxu0 0.0
    %v8246 = vand.u32 %v8011, 4294901760
    %v8247 = vsub.f32 %v8011, %v8246
    %8248 = vmatpush1.msra.mxu0 %v8247
    %8249 = vmatprep.subr.mxu0 0.0
    %v8250 = vand.u32 %v8010, 4294901760
    %v8251 = vsub.f32 %v8010, %v8250
    %8252 = vmatpush1.msra.mxu0 %v8251
    %8253 = vmatprep.subr.mxu0 0.0
    %8254 = vmatpush2.msra.mxu0 0.0
    %8255 = vmatprep.subr.mxu0 0.0
    %8256 = vmatpush2.msra.mxu0 0.0
    %8257 = vmatprep.subr.mxu0 0.0
    %8258 = vmatpush2.msra.mxu0 0.0
    %8259 = vmatprep.subr.mxu0 0.0
    %8260 = vmatpush2.msra.mxu0 0.0
    %8261 = vmatprep.subr.mxu0 0.0
    %8262 = vmatpush2.msra.mxu0 0.0
    %8263 = vmatprep.subr.mxu0 0.0
    %8264 = vmatpush2.msra.mxu0 0.0
    %8265 = vmatprep.subr.mxu0 0.0
    %8266 = vmatpush2.msra.mxu0 0.0
    %8267 = vmatprep.subr.mxu0 0.0
    %8268 = vmatpush2.msra.mxu0 0.0
    %8269 = vmatprep.subr.mxu0 0.0
    %8270 = vmatpush2.msra.mxu0 0.0
    %8271 = vmatprep.subr.mxu0 0.0
    %8272 = vmatpush2.msra.mxu0 0.0
    %8273 = vmatprep.subr.mxu0 0.0
    %8274 = vmatpush2.msra.mxu0 0.0
    %8275 = vmatprep.subr.mxu0 0.0
    %8276 = vmatpush2.msra.mxu0 0.0
    %8277 = vmatprep.subr.mxu0 0.0
    %8278 = vmatpush2.msra.mxu0 0.0
    %8279 = vmatprep.subr.mxu0 0.0
    %8280 = vmatpush2.msra.mxu0 0.0
    %8281 = vmatprep.subr.mxu0 0.0
    %8282 = vmatpush2.msra.mxu0 0.0
    %8283 = vmatprep.subr.mxu0 0.0
    %8284 = vmatpush2.msra.mxu0 0.0
    %8285 = vmatprep.mubr.f32.mxu0 0.0
    %v8286 = vand.u32 %v8022, 4294901760
    %v8287 = vsub.f32 %v8022, %v8286
    %8288 = vmatmul.mubr.f32.gmra.mxu0 %v8287
    %v8289 = vpop.f32.mrf.mxu0
    %v8290 = vadd.f32 %v8204, %v8289
    %v8291 = vpop.f32.mrf.mxu0
    %8292 = vmatprep.mubr.f32.mxu0 0.0
    %v8293 = vand.u32 %v8025, 4294901760
    %v8294 = vsub.f32 %v8025, %v8293
    %8295 = vmatmul.mubr.f32.gmra.mxu0 %v8294
    %v8296 = vpop.f32.mrf.mxu0
    %v8297 = vadd.f32 %v8210, %v8296
    %v8298 = vpop.f32.mrf.mxu0
    %8299 = vdwg.mxu0
    %8300 = vmatprep.subr.mxu0 0.0
    %8301 = vmatpush1.msra.mxu0 0.0
    %8302 = vmatprep.subr.mxu0 0.0
    %8303 = vmatpush1.msra.mxu0 0.0
    %8304 = vmatprep.subr.mxu0 0.0
    %8305 = vmatpush1.msra.mxu0 0.0
    %8306 = vmatprep.subr.mxu0 0.0
    %8307 = vmatpush1.msra.mxu0 0.0
    %8308 = vmatprep.subr.mxu0 0.0
    %8309 = vmatpush1.msra.mxu0 0.0
    %8310 = vmatprep.subr.mxu0 0.0
    %8311 = vmatpush1.msra.mxu0 0.0
    %8312 = vmatprep.subr.mxu0 0.0
    %8313 = vmatpush1.msra.mxu0 0.0
    %8314 = vmatprep.subr.mxu0 0.0
    %8315 = vmatpush1.msra.mxu0 0.0
    %8316 = vmatprep.subr.mxu0 0.0
    %8317 = vmatpush1.msra.mxu0 0.0
    %8318 = vmatprep.subr.mxu0 0.0
    %8319 = vmatpush1.msra.mxu0 0.0
    %8320 = vmatprep.subr.mxu0 0.0
    %8321 = vmatpush1.msra.mxu0 0.0
    %8322 = vmatprep.subr.mxu0 0.0
    %8323 = vmatpush1.msra.mxu0 0.0
    %8324 = vmatprep.subr.mxu0 0.0
    %v8325 = vand.u32 %v8013, 4294901760
    %8326 = vmatpush1.msra.mxu0 %v8325
    %8327 = vmatprep.subr.mxu0 0.0
    %v8328 = vand.u32 %v8012, 4294901760
    %8329 = vmatpush1.msra.mxu0 %v8328
    %8330 = vmatprep.subr.mxu0 0.0
    %v8331 = vand.u32 %v8011, 4294901760
    %8332 = vmatpush1.msra.mxu0 %v8331
    %8333 = vmatprep.subr.mxu0 0.0
    %v8334 = vand.u32 %v8010, 4294901760
    %8335 = vmatpush1.msra.mxu0 %v8334
    %8336 = vmatprep.subr.mxu0 0.0
    %8337 = vmatpush2.msra.mxu0 0.0
    %8338 = vmatprep.subr.mxu0 0.0
    %8339 = vmatpush2.msra.mxu0 0.0
    %8340 = vmatprep.subr.mxu0 0.0
    %8341 = vmatpush2.msra.mxu0 0.0
    %8342 = vmatprep.subr.mxu0 0.0
    %8343 = vmatpush2.msra.mxu0 0.0
    %8344 = vmatprep.subr.mxu0 0.0
    %8345 = vmatpush2.msra.mxu0 0.0
    %8346 = vmatprep.subr.mxu0 0.0
    %8347 = vmatpush2.msra.mxu0 0.0
    %8348 = vmatprep.subr.mxu0 0.0
    %8349 = vmatpush2.msra.mxu0 0.0
    %8350 = vmatprep.subr.mxu0 0.0
    %8351 = vmatpush2.msra.mxu0 0.0
    %8352 = vmatprep.subr.mxu0 0.0
    %8353 = vmatpush2.msra.mxu0 0.0
    %8354 = vmatprep.subr.mxu0 0.0
    %8355 = vmatpush2.msra.mxu0 0.0
    %8356 = vmatprep.subr.mxu0 0.0
    %8357 = vmatpush2.msra.mxu0 0.0
    %8358 = vmatprep.subr.mxu0 0.0
    %8359 = vmatpush2.msra.mxu0 0.0
    %8360 = vmatprep.subr.mxu0 0.0
    %8361 = vmatpush2.msra.mxu0 0.0
    %8362 = vmatprep.subr.mxu0 0.0
    %8363 = vmatpush2.msra.mxu0 0.0
    %8364 = vmatprep.subr.mxu0 0.0
    %8365 = vmatpush2.msra.mxu0 0.0
    %8366 = vmatprep.subr.mxu0 0.0
    %8367 = vmatpush2.msra.mxu0 0.0
    %8368 = vmatprep.mubr.f32.mxu0 0.0
    %v8369 = vand.u32 %v8022, 4294901760
    %v8370 = vsub.f32 %v8022, %v8369
    %v8371 = vand.u32 %v8370, 4294901760
    %8372 = vmatmul.mubr.f32.gmra.mxu0 %v8371
    %v8373 = vpop.f32.mrf.mxu0
    %v8374 = vadd.f32 %v8290, %v8373
    %v8375 = vpop.f32.mrf.mxu0
    %8376 = vmatprep.mubr.f32.mxu0 0.0
    %v8377 = vand.u32 %v8025, 4294901760
    %v8378 = vsub.f32 %v8025, %v8377
    %v8379 = vand.u32 %v8378, 4294901760
    %8380 = vmatmul.mubr.f32.gmra.mxu0 %v8379
    %v8381 = vpop.f32.mrf.mxu0
    %v8382 = vadd.f32 %v8297, %v8381
    %v8383 = vpop.f32.mrf.mxu0
    %8384 = vdwg.mxu0
    %8385 = vmatprep.subr.mxu0 0.0
    %8386 = vmatpush1.msra.mxu0 0.0
    %8387 = vmatprep.subr.mxu0 0.0
    %8388 = vmatpush1.msra.mxu0 0.0
    %8389 = vmatprep.subr.mxu0 0.0
    %8390 = vmatpush1.msra.mxu0 0.0
    %8391 = vmatprep.subr.mxu0 0.0
    %8392 = vmatpush1.msra.mxu0 0.0
    %8393 = vmatprep.subr.mxu0 0.0
    %8394 = vmatpush1.msra.mxu0 0.0
    %8395 = vmatprep.subr.mxu0 0.0
    %8396 = vmatpush1.msra.mxu0 0.0
    %8397 = vmatprep.subr.mxu0 0.0
    %8398 = vmatpush1.msra.mxu0 0.0
    %8399 = vmatprep.subr.mxu0 0.0
    %8400 = vmatpush1.msra.mxu0 0.0
    %8401 = vmatprep.subr.mxu0 0.0
    %8402 = vmatpush1.msra.mxu0 0.0
    %8403 = vmatprep.subr.mxu0 0.0
    %8404 = vmatpush1.msra.mxu0 0.0
    %8405 = vmatprep.subr.mxu0 0.0
    %8406 = vmatpush1.msra.mxu0 0.0
    %8407 = vmatprep.subr.mxu0 0.0
    %8408 = vmatpush1.msra.mxu0 0.0
    %8409 = vmatprep.subr.mxu0 0.0
    %v8410 = vand.u32 %v8013, 4294901760
    %v8411 = vsub.f32 %v8013, %v8410
    %v8412 = vand.u32 %v8411, 4294901760
    %8413 = vmatpush1.msra.mxu0 %v8412
    %8414 = vmatprep.subr.mxu0 0.0
    %v8415 = vand.u32 %v8012, 4294901760
    %v8416 = vsub.f32 %v8012, %v8415
    %v8417 = vand.u32 %v8416, 4294901760
    %8418 = vmatpush1.msra.mxu0 %v8417
    %8419 = vmatprep.subr.mxu0 0.0
    %v8420 = vand.u32 %v8011, 4294901760
    %v8421 = vsub.f32 %v8011, %v8420
    %v8422 = vand.u32 %v8421, 4294901760
    %8423 = vmatpush1.msra.mxu0 %v8422
    %8424 = vmatprep.subr.mxu0 0.0
    %v8425 = vand.u32 %v8010, 4294901760
    %v8426 = vsub.f32 %v8010, %v8425
    %v8427 = vand.u32 %v8426, 4294901760
    %8428 = vmatpush1.msra.mxu0 %v8427
    %8429 = vmatprep.subr.mxu0 0.0
    %8430 = vmatpush2.msra.mxu0 0.0
    %8431 = vmatprep.subr.mxu0 0.0
    %8432 = vmatpush2.msra.mxu0 0.0
    %8433 = vmatprep.subr.mxu0 0.0
    %8434 = vmatpush2.msra.mxu0 0.0
    %8435 = vmatprep.subr.mxu0 0.0
    %8436 = vmatpush2.msra.mxu0 0.0
    %8437 = vmatprep.subr.mxu0 0.0
    %8438 = vmatpush2.msra.mxu0 0.0
    %8439 = vmatprep.subr.mxu0 0.0
    %8440 = vmatpush2.msra.mxu0 0.0
    %8441 = vmatprep.subr.mxu0 0.0
    %8442 = vmatpush2.msra.mxu0 0.0
    %8443 = vmatprep.subr.mxu0 0.0
    %8444 = vmatpush2.msra.mxu0 0.0
    %8445 = vmatprep.subr.mxu0 0.0
    %8446 = vmatpush2.msra.mxu0 0.0
    %8447 = vmatprep.subr.mxu0 0.0
    %8448 = vmatpush2.msra.mxu0 0.0
    %8449 = vmatprep.subr.mxu0 0.0
    %8450 = vmatpush2.msra.mxu0 0.0
    %8451 = vmatprep.subr.mxu0 0.0
    %8452 = vmatpush2.msra.mxu0 0.0
    %8453 = vmatprep.subr.mxu0 0.0
    %8454 = vmatpush2.msra.mxu0 0.0
    %8455 = vmatprep.subr.mxu0 0.0
    %8456 = vmatpush2.msra.mxu0 0.0
    %8457 = vmatprep.subr.mxu0 0.0
    %8458 = vmatpush2.msra.mxu0 0.0
    %8459 = vmatprep.subr.mxu0 0.0
    %8460 = vmatpush2.msra.mxu0 0.0
    %8461 = vmatprep.mubr.f32.mxu0 0.0
    %v8462 = vand.u32 %v8022, 4294901760
    %8463 = vmatmul.mubr.f32.gmra.mxu0 %v8462
    %v8464 = vpop.f32.mrf.mxu0
    %v8465 = vadd.f32 %v8374, %v8464
    %v8466 = vpop.f32.mrf.mxu0
    %8467 = vmatprep.mubr.f32.mxu0 0.0
    %v8468 = vand.u32 %v8025, 4294901760
    %8469 = vmatmul.mubr.f32.gmra.mxu0 %v8468
    %v8470 = vpop.f32.mrf.mxu0
    %v8471 = vadd.f32 %v8382, %v8470
    %v8472 = vpop.f32.mrf.mxu0
    %8473 = vdwg.mxu0
    %8474 = vmatprep.subr.mxu0 0.0
    %8475 = vmatpush1.msra.mxu0 0.0
    %8476 = vmatprep.subr.mxu0 0.0
    %8477 = vmatpush1.msra.mxu0 0.0
    %8478 = vmatprep.subr.mxu0 0.0
    %8479 = vmatpush1.msra.mxu0 0.0
    %8480 = vmatprep.subr.mxu0 0.0
    %8481 = vmatpush1.msra.mxu0 0.0
    %8482 = vmatprep.subr.mxu0 0.0
    %8483 = vmatpush1.msra.mxu0 0.0
    %8484 = vmatprep.subr.mxu0 0.0
    %8485 = vmatpush1.msra.mxu0 0.0
    %8486 = vmatprep.subr.mxu0 0.0
    %8487 = vmatpush1.msra.mxu0 0.0
    %8488 = vmatprep.subr.mxu0 0.0
    %8489 = vmatpush1.msra.mxu0 0.0
    %8490 = vmatprep.subr.mxu0 0.0
    %8491 = vmatpush1.msra.mxu0 0.0
    %8492 = vmatprep.subr.mxu0 0.0
    %8493 = vmatpush1.msra.mxu0 0.0
    %8494 = vmatprep.subr.mxu0 0.0
    %8495 = vmatpush1.msra.mxu0 0.0
    %8496 = vmatprep.subr.mxu0 0.0
    %8497 = vmatpush1.msra.mxu0 0.0
    %8498 = vmatprep.subr.mxu0 0.0
    %v8499 = vand.u32 %v8013, 4294901760
    %8500 = vmatpush1.msra.mxu0 %v8499
    %8501 = vmatprep.subr.mxu0 0.0
    %v8502 = vand.u32 %v8012, 4294901760
    %8503 = vmatpush1.msra.mxu0 %v8502
    %8504 = vmatprep.subr.mxu0 0.0
    %v8505 = vand.u32 %v8011, 4294901760
    %8506 = vmatpush1.msra.mxu0 %v8505
    %8507 = vmatprep.subr.mxu0 0.0
    %v8508 = vand.u32 %v8010, 4294901760
    %8509 = vmatpush1.msra.mxu0 %v8508
    %8510 = vmatprep.subr.mxu0 0.0
    %8511 = vmatpush2.msra.mxu0 0.0
    %8512 = vmatprep.subr.mxu0 0.0
    %8513 = vmatpush2.msra.mxu0 0.0
    %8514 = vmatprep.subr.mxu0 0.0
    %8515 = vmatpush2.msra.mxu0 0.0
    %8516 = vmatprep.subr.mxu0 0.0
    %8517 = vmatpush2.msra.mxu0 0.0
    %8518 = vmatprep.subr.mxu0 0.0
    %8519 = vmatpush2.msra.mxu0 0.0
    %8520 = vmatprep.subr.mxu0 0.0
    %8521 = vmatpush2.msra.mxu0 0.0
    %8522 = vmatprep.subr.mxu0 0.0
    %8523 = vmatpush2.msra.mxu0 0.0
    %8524 = vmatprep.subr.mxu0 0.0
    %8525 = vmatpush2.msra.mxu0 0.0
    %8526 = vmatprep.subr.mxu0 0.0
    %8527 = vmatpush2.msra.mxu0 0.0
    %8528 = vmatprep.subr.mxu0 0.0
    %8529 = vmatpush2.msra.mxu0 0.0
    %8530 = vmatprep.subr.mxu0 0.0
    %8531 = vmatpush2.msra.mxu0 0.0
    %8532 = vmatprep.subr.mxu0 0.0
    %8533 = vmatpush2.msra.mxu0 0.0
    %8534 = vmatprep.subr.mxu0 0.0
    %8535 = vmatpush2.msra.mxu0 0.0
    %8536 = vmatprep.subr.mxu0 0.0
    %8537 = vmatpush2.msra.mxu0 0.0
    %8538 = vmatprep.subr.mxu0 0.0
    %8539 = vmatpush2.msra.mxu0 0.0
    %8540 = vmatprep.subr.mxu0 0.0
    %8541 = vmatpush2.msra.mxu0 0.0
    %8542 = vmatprep.mubr.f32.mxu0 0.0
    %v8543 = vand.u32 %v8022, 4294901760
    %8544 = vmatmul.mubr.f32.gmra.mxu0 %v8543
    %v8545 = vpop.f32.mrf.mxu0
    %v8546 = vadd.f32 %v8465, %v8545
    %v8547 = vpop.f32.mrf.mxu0
    %8548 = vmatprep.mubr.f32.mxu0 0.0
    %v8549 = vand.u32 %v8025, 4294901760
    %8550 = vmatmul.mubr.f32.gmra.mxu0 %v8549
    %v8551 = vpop.f32.mrf.mxu0
    %v8552 = vadd.f32 %v8471, %v8551
    %v8553 = vpop.f32.mrf.mxu0
    %8554 = vdwg.mxu0
    %v8555 = vadd.f32 %v45, %v8546
    %v8556 = vadd.f32 %v46, %v8552
    %v8557 = vld [vmem:[%s7] sm:$0x1]
    %v8558 = vld [vmem:[%s8] sm:$0x1]
    %v8559 = vsel %vm49, %v8555, 0.0
    %8560 = vadd.xlane.f32.xlu0 %v8559
    %v8561 = vpop.xlane.xlu0 %8560
    %v8562 = vsel %vm49, %v8556, 0.0
    %8563 = vadd.xlane.f32.xlu0 %v8562
    %v8564 = vpop.xlane.xlu0 %8563
    %v8565 = vmul.f32 %v8561, %v56
    %v8566 = vmul.f32 %v8564, %v56
    %v8567 = vsub.f32 %v8555, %v8565
    %v8568 = vsub.f32 %v8556, %v8566
    %v8569 = vmul.f32 %v8567, %v8567
    %v8570 = vmul.f32 %v8568, %v8568
    %v8571 = vsel %vm49, %v8569, 0.0
    %8572 = vadd.xlane.f32.xlu0 %v8571
    %v8573 = vpop.xlane.xlu0 %8572
    %v8574 = vsel %vm49, %v8570, 0.0
    %8575 = vadd.xlane.f32.xlu0 %v8574
    %v8576 = vpop.xlane.xlu0 %8575
    %v8577 = vmul.f32 %v8573, %v56
    %v8578 = vmul.f32 %v8576, %v56
    %v8579 = vadd.f32 %v8577, 1e-05
    %v8580 = vadd.f32 %v8578, 1e-05
    %v8581 = vrsqrt.pop %v8579
    %v8582 = vrsqrt.pop %v8580
    %v8583 = vmul.f32 %v8567, %v8581
    %v8584 = vmul.f32 %v8568, %v8582
    %v8586 = vlaneseq
    %v8587 = vshrl.u32 %v8586, 7
    %v8588 = vsub.s32 0, %v8587
    %v8589 = vrot.slane %v8557, %v8588
    %v8591 = vmul.f32 %v8583, %v8589
    %v8592 = vmul.f32 %v8584, %v8589
    %v8594 = vlaneseq
    %v8595 = vshrl.u32 %v8594, 7
    %v8596 = vsub.s32 0, %v8595
    %v8597 = vrot.slane %v8558, %v8596
    %v8599 = vadd.f32 %v8591, %v8597
    %v8600 = vadd.f32 %v8592, %v8597
    %v8601 = vld [vmem:[%s9] sm:$0xff]
    %v8602 = vld [vmem:[%s9 + $0x8] sm:$0xff]
    %v8603 = vld [vmem:[%s9 + $0x10] sm:$0xff]
    %v8604 = vld [vmem:[%s9 + $0x18] sm:$0xff]
    %v8605 = vld [vmem:[%s10] sm:$0x1]
    %v8607 = vlaneseq
    %v8608 = vshrl.u32 %v8607, 7
    %v8609 = vsub.s32 0, %v8608
    %v8610 = vrot.slane %v8605, %v8609
    %v8613 = vsel %vm49, %v8599, 0
    %v8616 = vsel %vm49, %v8600, 0
    %8618 = vmatprep.subr.mxu0 0.0
    %8619 = vmatpush1.msra.mxu0 0.0
    %8620 = vmatprep.subr.mxu0 0.0
    %8621 = vmatpush1.msra.mxu0 0.0
    %8622 = vmatprep.subr.mxu0 0.0
    %8623 = vmatpush1.msra.mxu0 0.0
    %8624 = vmatprep.subr.mxu0 0.0
    %8625 = vmatpush1.msra.mxu0 0.0
    %8626 = vmatprep.subr.mxu0 0.0
    %8627 = vmatpush1.msra.mxu0 0.0
    %8628 = vmatprep.subr.mxu0 0.0
    %8629 = vmatpush1.msra.mxu0 0.0
    %8630 = vmatprep.subr.mxu0 0.0
    %8631 = vmatpush1.msra.mxu0 0.0
    %8632 = vmatprep.subr.mxu0 0.0
    %8633 = vmatpush1.msra.mxu0 0.0
    %8634 = vmatprep.subr.mxu0 0.0
    %8635 = vmatpush1.msra.mxu0 0.0
    %8636 = vmatprep.subr.mxu0 0.0
    %8637 = vmatpush1.msra.mxu0 0.0
    %8638 = vmatprep.subr.mxu0 0.0
    %8639 = vmatpush1.msra.mxu0 0.0
    %8640 = vmatprep.subr.mxu0 0.0
    %8641 = vmatpush1.msra.mxu0 0.0
    %8642 = vmatprep.subr.mxu0 0.0
    %v8643 = vand.u32 %v8604, 4294901760
    %8644 = vmatpush1.msra.mxu0 %v8643
    %8645 = vmatprep.subr.mxu0 0.0
    %v8646 = vand.u32 %v8603, 4294901760
    %8647 = vmatpush1.msra.mxu0 %v8646
    %8648 = vmatprep.subr.mxu0 0.0
    %v8649 = vand.u32 %v8602, 4294901760
    %8650 = vmatpush1.msra.mxu0 %v8649
    %8651 = vmatprep.subr.mxu0 0.0
    %v8652 = vand.u32 %v8601, 4294901760
    %8653 = vmatpush1.msra.mxu0 %v8652
    %8654 = vmatprep.subr.mxu0 0.0
    %8655 = vmatpush2.msra.mxu0 0.0
    %8656 = vmatprep.subr.mxu0 0.0
    %8657 = vmatpush2.msra.mxu0 0.0
    %8658 = vmatprep.subr.mxu0 0.0
    %8659 = vmatpush2.msra.mxu0 0.0
    %8660 = vmatprep.subr.mxu0 0.0
    %8661 = vmatpush2.msra.mxu0 0.0
    %8662 = vmatprep.subr.mxu0 0.0
    %8663 = vmatpush2.msra.mxu0 0.0
    %8664 = vmatprep.subr.mxu0 0.0
    %8665 = vmatpush2.msra.mxu0 0.0
    %8666 = vmatprep.subr.mxu0 0.0
    %8667 = vmatpush2.msra.mxu0 0.0
    %8668 = vmatprep.subr.mxu0 0.0
    %8669 = vmatpush2.msra.mxu0 0.0
    %8670 = vmatprep.subr.mxu0 0.0
    %8671 = vmatpush2.msra.mxu0 0.0
    %8672 = vmatprep.subr.mxu0 0.0
    %8673 = vmatpush2.msra.mxu0 0.0
    %8674 = vmatprep.subr.mxu0 0.0
    %8675 = vmatpush2.msra.mxu0 0.0
    %8676 = vmatprep.subr.mxu0 0.0
    %8677 = vmatpush2.msra.mxu0 0.0
    %8678 = vmatprep.subr.mxu0 0.0
    %8679 = vmatpush2.msra.mxu0 0.0
    %8680 = vmatprep.subr.mxu0 0.0
    %8681 = vmatpush2.msra.mxu0 0.0
    %8682 = vmatprep.subr.mxu0 0.0
    %8683 = vmatpush2.msra.mxu0 0.0
    %8684 = vmatprep.subr.mxu0 0.0
    %8685 = vmatpush2.msra.mxu0 0.0
    %8686 = vmatprep.mubr.f32.mxu0 0.0
    %v8687 = vand.u32 %v8613, 4294901760
    %v8688 = vsub.f32 %v8613, %v8687
    %v8689 = vand.u32 %v8688, 4294901760
    %v8690 = vsub.f32 %v8688, %v8689
    %v8691 = vand.u32 %v8690, 4294901760
    %8692 = vmatmul.mubr.f32.gmra.mxu0 %v8691
    %v8693 = vpop.f32.mrf.mxu0
    %v8694 = vadd.f32 %v8610, %v8693
    %v8695 = vpop.f32.mrf.mxu0
    %8696 = vmatprep.mubr.f32.mxu0 0.0
    %v8697 = vand.u32 %v8616, 4294901760
    %v8698 = vsub.f32 %v8616, %v8697
    %v8699 = vand.u32 %v8698, 4294901760
    %v8700 = vsub.f32 %v8698, %v8699
    %v8701 = vand.u32 %v8700, 4294901760
    %8702 = vmatmul.mubr.f32.gmra.mxu0 %v8701
    %v8703 = vpop.f32.mrf.mxu0
    %v8704 = vadd.f32 %v8610, %v8703
    %v8705 = vpop.f32.mrf.mxu0
    %8706 = vdwg.mxu0
    %8707 = vmatprep.subr.mxu0 0.0
    %8708 = vmatpush1.msra.mxu0 0.0
    %8709 = vmatprep.subr.mxu0 0.0
    %8710 = vmatpush1.msra.mxu0 0.0
    %8711 = vmatprep.subr.mxu0 0.0
    %8712 = vmatpush1.msra.mxu0 0.0
    %8713 = vmatprep.subr.mxu0 0.0
    %8714 = vmatpush1.msra.mxu0 0.0
    %8715 = vmatprep.subr.mxu0 0.0
    %8716 = vmatpush1.msra.mxu0 0.0
    %8717 = vmatprep.subr.mxu0 0.0
    %8718 = vmatpush1.msra.mxu0 0.0
    %8719 = vmatprep.subr.mxu0 0.0
    %8720 = vmatpush1.msra.mxu0 0.0
    %8721 = vmatprep.subr.mxu0 0.0
    %8722 = vmatpush1.msra.mxu0 0.0
    %8723 = vmatprep.subr.mxu0 0.0
    %8724 = vmatpush1.msra.mxu0 0.0
    %8725 = vmatprep.subr.mxu0 0.0
    %8726 = vmatpush1.msra.mxu0 0.0
    %8727 = vmatprep.subr.mxu0 0.0
    %8728 = vmatpush1.msra.mxu0 0.0
    %8729 = vmatprep.subr.mxu0 0.0
    %8730 = vmatpush1.msra.mxu0 0.0
    %8731 = vmatprep.subr.mxu0 0.0
    %v8732 = vand.u32 %v8604, 4294901760
    %v8733 = vsub.f32 %v8604, %v8732
    %v8734 = vand.u32 %v8733, 4294901760
    %v8735 = vsub.f32 %v8733, %v8734
    %v8736 = vand.u32 %v8735, 4294901760
    %8737 = vmatpush1.msra.mxu0 %v8736
    %8738 = vmatprep.subr.mxu0 0.0
    %v8739 = vand.u32 %v8603, 4294901760
    %v8740 = vsub.f32 %v8603, %v8739
    %v8741 = vand.u32 %v8740, 4294901760
    %v8742 = vsub.f32 %v8740, %v8741
    %v8743 = vand.u32 %v8742, 4294901760
    %8744 = vmatpush1.msra.mxu0 %v8743
    %8745 = vmatprep.subr.mxu0 0.0
    %v8746 = vand.u32 %v8602, 4294901760
    %v8747 = vsub.f32 %v8602, %v8746
    %v8748 = vand.u32 %v8747, 4294901760
    %v8749 = vsub.f32 %v8747, %v8748
    %v8750 = vand.u32 %v8749, 4294901760
    %8751 = vmatpush1.msra.mxu0 %v8750
    %8752 = vmatprep.subr.mxu0 0.0
    %v8753 = vand.u32 %v8601, 4294901760
    %v8754 = vsub.f32 %v8601, %v8753
    %v8755 = vand.u32 %v8754, 4294901760
    %v8756 = vsub.f32 %v8754, %v8755
    %v8757 = vand.u32 %v8756, 4294901760
    %8758 = vmatpush1.msra.mxu0 %v8757
    %8759 = vmatprep.subr.mxu0 0.0
    %8760 = vmatpush2.msra.mxu0 0.0
    %8761 = vmatprep.subr.mxu0 0.0
    %8762 = vmatpush2.msra.mxu0 0.0
    %8763 = vmatprep.subr.mxu0 0.0
    %8764 = vmatpush2.msra.mxu0 0.0
    %8765 = vmatprep.subr.mxu0 0.0
    %8766 = vmatpush2.msra.mxu0 0.0
    %8767 = vmatprep.subr.mxu0 0.0
    %8768 = vmatpush2.msra.mxu0 0.0
    %8769 = vmatprep.subr.mxu0 0.0
    %8770 = vmatpush2.msra.mxu0 0.0
    %8771 = vmatprep.subr.mxu0 0.0
    %8772 = vmatpush2.msra.mxu0 0.0
    %8773 = vmatprep.subr.mxu0 0.0
    %8774 = vmatpush2.msra.mxu0 0.0
    %8775 = vmatprep.subr.mxu0 0.0
    %8776 = vmatpush2.msra.mxu0 0.0
    %8777 = vmatprep.subr.mxu0 0.0
    %8778 = vmatpush2.msra.mxu0 0.0
    %8779 = vmatprep.subr.mxu0 0.0
    %8780 = vmatpush2.msra.mxu0 0.0
    %8781 = vmatprep.subr.mxu0 0.0
    %8782 = vmatpush2.msra.mxu0 0.0
    %8783 = vmatprep.subr.mxu0 0.0
    %8784 = vmatpush2.msra.mxu0 0.0
    %8785 = vmatprep.subr.mxu0 0.0
    %8786 = vmatpush2.msra.mxu0 0.0
    %8787 = vmatprep.subr.mxu0 0.0
    %8788 = vmatpush2.msra.mxu0 0.0
    %8789 = vmatprep.subr.mxu0 0.0
    %8790 = vmatpush2.msra.mxu0 0.0
    %8791 = vmatprep.mubr.f32.mxu0 0.0
    %v8792 = vand.u32 %v8613, 4294901760
    %8793 = vmatmul.mubr.f32.gmra.mxu0 %v8792
    %v8794 = vpop.f32.mrf.mxu0
    %v8795 = vadd.f32 %v8694, %v8794
    %v8796 = vpop.f32.mrf.mxu0
    %8797 = vmatprep.mubr.f32.mxu0 0.0
    %v8798 = vand.u32 %v8616, 4294901760
    %8799 = vmatmul.mubr.f32.gmra.mxu0 %v8798
    %v8800 = vpop.f32.mrf.mxu0
    %v8801 = vadd.f32 %v8704, %v8800
    %v8802 = vpop.f32.mrf.mxu0
    %8803 = vdwg.mxu0
    %8804 = vmatprep.subr.mxu0 0.0
    %8805 = vmatpush1.msra.mxu0 0.0
    %8806 = vmatprep.subr.mxu0 0.0
    %8807 = vmatpush1.msra.mxu0 0.0
    %8808 = vmatprep.subr.mxu0 0.0
    %8809 = vmatpush1.msra.mxu0 0.0
    %8810 = vmatprep.subr.mxu0 0.0
    %8811 = vmatpush1.msra.mxu0 0.0
    %8812 = vmatprep.subr.mxu0 0.0
    %8813 = vmatpush1.msra.mxu0 0.0
    %8814 = vmatprep.subr.mxu0 0.0
    %8815 = vmatpush1.msra.mxu0 0.0
    %8816 = vmatprep.subr.mxu0 0.0
    %8817 = vmatpush1.msra.mxu0 0.0
    %8818 = vmatprep.subr.mxu0 0.0
    %8819 = vmatpush1.msra.mxu0 0.0
    %8820 = vmatprep.subr.mxu0 0.0
    %8821 = vmatpush1.msra.mxu0 0.0
    %8822 = vmatprep.subr.mxu0 0.0
    %8823 = vmatpush1.msra.mxu0 0.0
    %8824 = vmatprep.subr.mxu0 0.0
    %8825 = vmatpush1.msra.mxu0 0.0
    %8826 = vmatprep.subr.mxu0 0.0
    %8827 = vmatpush1.msra.mxu0 0.0
    %8828 = vmatprep.subr.mxu0 0.0
    %v8829 = vand.u32 %v8604, 4294901760
    %v8830 = vsub.f32 %v8604, %v8829
    %8831 = vmatpush1.msra.mxu0 %v8830
    %8832 = vmatprep.subr.mxu0 0.0
    %v8833 = vand.u32 %v8603, 4294901760
    %v8834 = vsub.f32 %v8603, %v8833
    %8835 = vmatpush1.msra.mxu0 %v8834
    %8836 = vmatprep.subr.mxu0 0.0
    %v8837 = vand.u32 %v8602, 4294901760
    %v8838 = vsub.f32 %v8602, %v8837
    %8839 = vmatpush1.msra.mxu0 %v8838
    %8840 = vmatprep.subr.mxu0 0.0
    %v8841 = vand.u32 %v8601, 4294901760
    %v8842 = vsub.f32 %v8601, %v8841
    %8843 = vmatpush1.msra.mxu0 %v8842
    %8844 = vmatprep.subr.mxu0 0.0
    %8845 = vmatpush2.msra.mxu0 0.0
    %8846 = vmatprep.subr.mxu0 0.0
    %8847 = vmatpush2.msra.mxu0 0.0
    %8848 = vmatprep.subr.mxu0 0.0
    %8849 = vmatpush2.msra.mxu0 0.0
    %8850 = vmatprep.subr.mxu0 0.0
    %8851 = vmatpush2.msra.mxu0 0.0
    %8852 = vmatprep.subr.mxu0 0.0
    %8853 = vmatpush2.msra.mxu0 0.0
    %8854 = vmatprep.subr.mxu0 0.0
    %8855 = vmatpush2.msra.mxu0 0.0
    %8856 = vmatprep.subr.mxu0 0.0
    %8857 = vmatpush2.msra.mxu0 0.0
    %8858 = vmatprep.subr.mxu0 0.0
    %8859 = vmatpush2.msra.mxu0 0.0
    %8860 = vmatprep.subr.mxu0 0.0
    %8861 = vmatpush2.msra.mxu0 0.0
    %8862 = vmatprep.subr.mxu0 0.0
    %8863 = vmatpush2.msra.mxu0 0.0
    %8864 = vmatprep.subr.mxu0 0.0
    %8865 = vmatpush2.msra.mxu0 0.0
    %8866 = vmatprep.subr.mxu0 0.0
    %8867 = vmatpush2.msra.mxu0 0.0
    %8868 = vmatprep.subr.mxu0 0.0
    %8869 = vmatpush2.msra.mxu0 0.0
    %8870 = vmatprep.subr.mxu0 0.0
    %8871 = vmatpush2.msra.mxu0 0.0
    %8872 = vmatprep.subr.mxu0 0.0
    %8873 = vmatpush2.msra.mxu0 0.0
    %8874 = vmatprep.subr.mxu0 0.0
    %8875 = vmatpush2.msra.mxu0 0.0
    %8876 = vmatprep.mubr.f32.mxu0 0.0
    %v8877 = vand.u32 %v8613, 4294901760
    %v8878 = vsub.f32 %v8613, %v8877
    %8879 = vmatmul.mubr.f32.gmra.mxu0 %v8878
    %v8880 = vpop.f32.mrf.mxu0
    %v8881 = vadd.f32 %v8795, %v8880
    %v8882 = vpop.f32.mrf.mxu0
    %8883 = vmatprep.mubr.f32.mxu0 0.0
    %v8884 = vand.u32 %v8616, 4294901760
    %v8885 = vsub.f32 %v8616, %v8884
    %8886 = vmatmul.mubr.f32.gmra.mxu0 %v8885
    %v8887 = vpop.f32.mrf.mxu0
    %v8888 = vadd.f32 %v8801, %v8887
    %v8889 = vpop.f32.mrf.mxu0
    %8890 = vdwg.mxu0
    %8891 = vmatprep.subr.mxu0 0.0
    %8892 = vmatpush1.msra.mxu0 0.0
    %8893 = vmatprep.subr.mxu0 0.0
    %8894 = vmatpush1.msra.mxu0 0.0
    %8895 = vmatprep.subr.mxu0 0.0
    %8896 = vmatpush1.msra.mxu0 0.0
    %8897 = vmatprep.subr.mxu0 0.0
    %8898 = vmatpush1.msra.mxu0 0.0
    %8899 = vmatprep.subr.mxu0 0.0
    %8900 = vmatpush1.msra.mxu0 0.0
    %8901 = vmatprep.subr.mxu0 0.0
    %8902 = vmatpush1.msra.mxu0 0.0
    %8903 = vmatprep.subr.mxu0 0.0
    %8904 = vmatpush1.msra.mxu0 0.0
    %8905 = vmatprep.subr.mxu0 0.0
    %8906 = vmatpush1.msra.mxu0 0.0
    %8907 = vmatprep.subr.mxu0 0.0
    %8908 = vmatpush1.msra.mxu0 0.0
    %8909 = vmatprep.subr.mxu0 0.0
    %8910 = vmatpush1.msra.mxu0 0.0
    %8911 = vmatprep.subr.mxu0 0.0
    %8912 = vmatpush1.msra.mxu0 0.0
    %8913 = vmatprep.subr.mxu0 0.0
    %8914 = vmatpush1.msra.mxu0 0.0
    %8915 = vmatprep.subr.mxu0 0.0
    %v8916 = vand.u32 %v8604, 4294901760
    %8917 = vmatpush1.msra.mxu0 %v8916
    %8918 = vmatprep.subr.mxu0 0.0
    %v8919 = vand.u32 %v8603, 4294901760
    %8920 = vmatpush1.msra.mxu0 %v8919
    %8921 = vmatprep.subr.mxu0 0.0
    %v8922 = vand.u32 %v8602, 4294901760
    %8923 = vmatpush1.msra.mxu0 %v8922
    %8924 = vmatprep.subr.mxu0 0.0
    %v8925 = vand.u32 %v8601, 4294901760
    %8926 = vmatpush1.msra.mxu0 %v8925
    %8927 = vmatprep.subr.mxu0 0.0
    %8928 = vmatpush2.msra.mxu0 0.0
    %8929 = vmatprep.subr.mxu0 0.0
    %8930 = vmatpush2.msra.mxu0 0.0
    %8931 = vmatprep.subr.mxu0 0.0
    %8932 = vmatpush2.msra.mxu0 0.0
    %8933 = vmatprep.subr.mxu0 0.0
    %8934 = vmatpush2.msra.mxu0 0.0
    %8935 = vmatprep.subr.mxu0 0.0
    %8936 = vmatpush2.msra.mxu0 0.0
    %8937 = vmatprep.subr.mxu0 0.0
    %8938 = vmatpush2.msra.mxu0 0.0
    %8939 = vmatprep.subr.mxu0 0.0
    %8940 = vmatpush2.msra.mxu0 0.0
    %8941 = vmatprep.subr.mxu0 0.0
    %8942 = vmatpush2.msra.mxu0 0.0
    %8943 = vmatprep.subr.mxu0 0.0
    %8944 = vmatpush2.msra.mxu0 0.0
    %8945 = vmatprep.subr.mxu0 0.0
    %8946 = vmatpush2.msra.mxu0 0.0
    %8947 = vmatprep.subr.mxu0 0.0
    %8948 = vmatpush2.msra.mxu0 0.0
    %8949 = vmatprep.subr.mxu0 0.0
    %8950 = vmatpush2.msra.mxu0 0.0
    %8951 = vmatprep.subr.mxu0 0.0
    %8952 = vmatpush2.msra.mxu0 0.0
    %8953 = vmatprep.subr.mxu0 0.0
    %8954 = vmatpush2.msra.mxu0 0.0
    %8955 = vmatprep.subr.mxu0 0.0
    %8956 = vmatpush2.msra.mxu0 0.0
    %8957 = vmatprep.subr.mxu0 0.0
    %8958 = vmatpush2.msra.mxu0 0.0
    %8959 = vmatprep.mubr.f32.mxu0 0.0
    %v8960 = vand.u32 %v8613, 4294901760
    %v8961 = vsub.f32 %v8613, %v8960
    %v8962 = vand.u32 %v8961, 4294901760
    %8963 = vmatmul.mubr.f32.gmra.mxu0 %v8962
    %v8964 = vpop.f32.mrf.mxu0
    %v8965 = vadd.f32 %v8881, %v8964
    %v8966 = vpop.f32.mrf.mxu0
    %8967 = vmatprep.mubr.f32.mxu0 0.0
    %v8968 = vand.u32 %v8616, 4294901760
    %v8969 = vsub.f32 %v8616, %v8968
    %v8970 = vand.u32 %v8969, 4294901760
    %8971 = vmatmul.mubr.f32.gmra.mxu0 %v8970
    %v8972 = vpop.f32.mrf.mxu0
    %v8973 = vadd.f32 %v8888, %v8972
    %v8974 = vpop.f32.mrf.mxu0
    %8975 = vdwg.mxu0
    %8976 = vmatprep.subr.mxu0 0.0
    %8977 = vmatpush1.msra.mxu0 0.0
    %8978 = vmatprep.subr.mxu0 0.0
    %8979 = vmatpush1.msra.mxu0 0.0
    %8980 = vmatprep.subr.mxu0 0.0
    %8981 = vmatpush1.msra.mxu0 0.0
    %8982 = vmatprep.subr.mxu0 0.0
    %8983 = vmatpush1.msra.mxu0 0.0
    %8984 = vmatprep.subr.mxu0 0.0
    %8985 = vmatpush1.msra.mxu0 0.0
    %8986 = vmatprep.subr.mxu0 0.0
    %8987 = vmatpush1.msra.mxu0 0.0
    %8988 = vmatprep.subr.mxu0 0.0
    %8989 = vmatpush1.msra.mxu0 0.0
    %8990 = vmatprep.subr.mxu0 0.0
    %8991 = vmatpush1.msra.mxu0 0.0
    %8992 = vmatprep.subr.mxu0 0.0
    %8993 = vmatpush1.msra.mxu0 0.0
    %8994 = vmatprep.subr.mxu0 0.0
    %8995 = vmatpush1.msra.mxu0 0.0
    %8996 = vmatprep.subr.mxu0 0.0
    %8997 = vmatpush1.msra.mxu0 0.0
    %8998 = vmatprep.subr.mxu0 0.0
    %8999 = vmatpush1.msra.mxu0 0.0
    %9000 = vmatprep.subr.mxu0 0.0
    %v9001 = vand.u32 %v8604, 4294901760
    %v9002 = vsub.f32 %v8604, %v9001
    %v9003 = vand.u32 %v9002, 4294901760
    %9004 = vmatpush1.msra.mxu0 %v9003
    %9005 = vmatprep.subr.mxu0 0.0
    %v9006 = vand.u32 %v8603, 4294901760
    %v9007 = vsub.f32 %v8603, %v9006
    %v9008 = vand.u32 %v9007, 4294901760
    %9009 = vmatpush1.msra.mxu0 %v9008
    %9010 = vmatprep.subr.mxu0 0.0
    %v9011 = vand.u32 %v8602, 4294901760
    %v9012 = vsub.f32 %v8602, %v9011
    %v9013 = vand.u32 %v9012, 4294901760
    %9014 = vmatpush1.msra.mxu0 %v9013
    %9015 = vmatprep.subr.mxu0 0.0
    %v9016 = vand.u32 %v8601, 4294901760
    %v9017 = vsub.f32 %v8601, %v9016
    %v9018 = vand.u32 %v9017, 4294901760
    %9019 = vmatpush1.msra.mxu0 %v9018
    %9020 = vmatprep.subr.mxu0 0.0
    %9021 = vmatpush2.msra.mxu0 0.0
    %9022 = vmatprep.subr.mxu0 0.0
    %9023 = vmatpush2.msra.mxu0 0.0
    %9024 = vmatprep.subr.mxu0 0.0
    %9025 = vmatpush2.msra.mxu0 0.0
    %9026 = vmatprep.subr.mxu0 0.0
    %9027 = vmatpush2.msra.mxu0 0.0
    %9028 = vmatprep.subr.mxu0 0.0
    %9029 = vmatpush2.msra.mxu0 0.0
    %9030 = vmatprep.subr.mxu0 0.0
    %9031 = vmatpush2.msra.mxu0 0.0
    %9032 = vmatprep.subr.mxu0 0.0
    %9033 = vmatpush2.msra.mxu0 0.0
    %9034 = vmatprep.subr.mxu0 0.0
    %9035 = vmatpush2.msra.mxu0 0.0
    %9036 = vmatprep.subr.mxu0 0.0
    %9037 = vmatpush2.msra.mxu0 0.0
    %9038 = vmatprep.subr.mxu0 0.0
    %9039 = vmatpush2.msra.mxu0 0.0
    %9040 = vmatprep.subr.mxu0 0.0
    %9041 = vmatpush2.msra.mxu0 0.0
    %9042 = vmatprep.subr.mxu0 0.0
    %9043 = vmatpush2.msra.mxu0 0.0
    %9044 = vmatprep.subr.mxu0 0.0
    %9045 = vmatpush2.msra.mxu0 0.0
    %9046 = vmatprep.subr.mxu0 0.0
    %9047 = vmatpush2.msra.mxu0 0.0
    %9048 = vmatprep.subr.mxu0 0.0
    %9049 = vmatpush2.msra.mxu0 0.0
    %9050 = vmatprep.subr.mxu0 0.0
    %9051 = vmatpush2.msra.mxu0 0.0
    %9052 = vmatprep.mubr.f32.mxu0 0.0
    %v9053 = vand.u32 %v8613, 4294901760
    %9054 = vmatmul.mubr.f32.gmra.mxu0 %v9053
    %v9055 = vpop.f32.mrf.mxu0
    %v9056 = vadd.f32 %v8965, %v9055
    %v9057 = vpop.f32.mrf.mxu0
    %9058 = vmatprep.mubr.f32.mxu0 0.0
    %v9059 = vand.u32 %v8616, 4294901760
    %9060 = vmatmul.mubr.f32.gmra.mxu0 %v9059
    %v9061 = vpop.f32.mrf.mxu0
    %v9062 = vadd.f32 %v8973, %v9061
    %v9063 = vpop.f32.mrf.mxu0
    %9064 = vdwg.mxu0
    %9065 = vmatprep.subr.mxu0 0.0
    %9066 = vmatpush1.msra.mxu0 0.0
    %9067 = vmatprep.subr.mxu0 0.0
    %9068 = vmatpush1.msra.mxu0 0.0
    %9069 = vmatprep.subr.mxu0 0.0
    %9070 = vmatpush1.msra.mxu0 0.0
    %9071 = vmatprep.subr.mxu0 0.0
    %9072 = vmatpush1.msra.mxu0 0.0
    %9073 = vmatprep.subr.mxu0 0.0
    %9074 = vmatpush1.msra.mxu0 0.0
    %9075 = vmatprep.subr.mxu0 0.0
    %9076 = vmatpush1.msra.mxu0 0.0
    %9077 = vmatprep.subr.mxu0 0.0
    %9078 = vmatpush1.msra.mxu0 0.0
    %9079 = vmatprep.subr.mxu0 0.0
    %9080 = vmatpush1.msra.mxu0 0.0
    %9081 = vmatprep.subr.mxu0 0.0
    %9082 = vmatpush1.msra.mxu0 0.0
    %9083 = vmatprep.subr.mxu0 0.0
    %9084 = vmatpush1.msra.mxu0 0.0
    %9085 = vmatprep.subr.mxu0 0.0
    %9086 = vmatpush1.msra.mxu0 0.0
    %9087 = vmatprep.subr.mxu0 0.0
    %9088 = vmatpush1.msra.mxu0 0.0
    %9089 = vmatprep.subr.mxu0 0.0
    %v9090 = vand.u32 %v8604, 4294901760
    %9091 = vmatpush1.msra.mxu0 %v9090
    %9092 = vmatprep.subr.mxu0 0.0
    %v9093 = vand.u32 %v8603, 4294901760
    %9094 = vmatpush1.msra.mxu0 %v9093
    %9095 = vmatprep.subr.mxu0 0.0
    %v9096 = vand.u32 %v8602, 4294901760
    %9097 = vmatpush1.msra.mxu0 %v9096
    %9098 = vmatprep.subr.mxu0 0.0
    %v9099 = vand.u32 %v8601, 4294901760
    %9100 = vmatpush1.msra.mxu0 %v9099
    %9101 = vmatprep.subr.mxu0 0.0
    %9102 = vmatpush2.msra.mxu0 0.0
    %9103 = vmatprep.subr.mxu0 0.0
    %9104 = vmatpush2.msra.mxu0 0.0
    %9105 = vmatprep.subr.mxu0 0.0
    %9106 = vmatpush2.msra.mxu0 0.0
    %9107 = vmatprep.subr.mxu0 0.0
    %9108 = vmatpush2.msra.mxu0 0.0
    %9109 = vmatprep.subr.mxu0 0.0
    %9110 = vmatpush2.msra.mxu0 0.0
    %9111 = vmatprep.subr.mxu0 0.0
    %9112 = vmatpush2.msra.mxu0 0.0
    %9113 = vmatprep.subr.mxu0 0.0
    %9114 = vmatpush2.msra.mxu0 0.0
    %9115 = vmatprep.subr.mxu0 0.0
    %9116 = vmatpush2.msra.mxu0 0.0
    %9117 = vmatprep.subr.mxu0 0.0
    %9118 = vmatpush2.msra.mxu0 0.0
    %9119 = vmatprep.subr.mxu0 0.0
    %9120 = vmatpush2.msra.mxu0 0.0
    %9121 = vmatprep.subr.mxu0 0.0
    %9122 = vmatpush2.msra.mxu0 0.0
    %9123 = vmatprep.subr.mxu0 0.0
    %9124 = vmatpush2.msra.mxu0 0.0
    %9125 = vmatprep.subr.mxu0 0.0
    %9126 = vmatpush2.msra.mxu0 0.0
    %9127 = vmatprep.subr.mxu0 0.0
    %9128 = vmatpush2.msra.mxu0 0.0
    %9129 = vmatprep.subr.mxu0 0.0
    %9130 = vmatpush2.msra.mxu0 0.0
    %9131 = vmatprep.subr.mxu0 0.0
    %9132 = vmatpush2.msra.mxu0 0.0
    %9133 = vmatprep.mubr.f32.mxu0 0.0
    %v9134 = vand.u32 %v8613, 4294901760
    %9135 = vmatmul.mubr.f32.gmra.mxu0 %v9134
    %v9136 = vpop.f32.mrf.mxu0
    %v9137 = vadd.f32 %v9056, %v9136
    %v9138 = vpop.f32.mrf.mxu0
    %9139 = vmatprep.mubr.f32.mxu0 0.0
    %v9140 = vand.u32 %v8616, 4294901760
    %9141 = vmatmul.mubr.f32.gmra.mxu0 %v9140
    %v9142 = vpop.f32.mrf.mxu0
    %v9143 = vadd.f32 %v9062, %v9142
    %v9144 = vpop.f32.mrf.mxu0
    %9145 = vdwg.mxu0
    %v9146 = vmul.f32 %v9137, 0.5
    %v9147 = vmul.f32 %v9143, 0.5
    %v9148 = vmul.f32 %v9137, 0.70710677
    %v9149 = vmul.f32 %v9143, 0.70710677
    %v9150 = vand.u32 2147483647, %v9148
    %v9151 = vand.u32 2147483647, %v9149
    %v9152 = vmul.f32 %v9150, 0.3275911
    %v9153 = vmul.f32 %v9151, 0.3275911
    %v9154 = vadd.f32 %v9152, 1.0
    %v9155 = vadd.f32 %v9153, 1.0
    %v9156 = vrcp.pop %v9154
    %v9157 = vmul.f32 1.0, %v9156
    %v9158 = vrcp.pop %v9155
    %v9159 = vmul.f32 1.0, %v9158
    %v9160 = vmul.f32 %v9157, 1.0614054
    %v9161 = vmul.f32 %v9159, 1.0614054
    %v9162 = vadd.f32 %v9160, -1.4531521
    %v9163 = vadd.f32 %v9161, -1.4531521
    %v9164 = vmul.f32 %v9157, %v9162
    %v9165 = vmul.f32 %v9159, %v9163
    %v9166 = vadd.f32 %v9164, 1.4214138
    %v9167 = vadd.f32 %v9165, 1.4214138
    %v9168 = vmul.f32 %v9157, %v9166
    %v9169 = vmul.f32 %v9159, %v9167
    %v9170 = vadd.f32 %v9168, -0.28449672
    %v9171 = vadd.f32 %v9169, -0.28449672
    %v9172 = vmul.f32 %v9157, %v9170
    %v9173 = vmul.f32 %v9159, %v9171
    %v9174 = vadd.f32 %v9172, 0.2548296
    %v9175 = vadd.f32 %v9173, 0.2548296
    %v9176 = vmul.f32 %v9157, %v9174
    %v9177 = vmul.f32 %v9159, %v9175
    %v9178 = vsub.f32 0.0, %v9150
    %v9179 = vsub.f32 0.0, %v9151
    %v9180 = vmul.f32 %v9178, %v9150
    %v9181 = vmul.f32 %v9179, %v9151
    %v9182 = vmul.f32 %v9180, 1.442695
    %v9183 = vpow.pop %v9182
    %v9184 = vmul.f32 %v9181, 1.442695
    %v9185 = vpow.pop %v9184
    %v9186 = vmul.f32 %v9176, %v9183
    %v9187 = vmul.f32 %v9177, %v9185
    %v9188 = vsub.f32 1.0, %v9186
    %v9189 = vsub.f32 1.0, %v9187
    %vm9190 = vcmp.lt.f32.partialorder %v9148, 0.0
    %vm9191 = vcmp.lt.f32.partialorder %v9149, 0.0
    %v9192 = vsub.f32 0.0, %v9188
    %v9193 = vsub.f32 0.0, %v9189
    %v9194 = vsel %vm9190, %v9192, %v9188
    %v9195 = vsel %vm9191, %v9193, %v9189
    %v9196 = vadd.f32 %v9194, 1.0
    %v9197 = vadd.f32 %v9195, 1.0
    %v9198 = vmul.f32 %v9146, %v9196
    %v9199 = vmul.f32 %v9147, %v9197
    %v9200 = vld [vmem:[%s11] sm:$0xff]
    %v9201 = vld [vmem:[%s11 + $0x8] sm:$0xff]
    %v9202 = vld [vmem:[%s11 + $0x10] sm:$0xff]
    %v9203 = vld [vmem:[%s11 + $0x18] sm:$0xff]
    %v9204 = vld [vmem:[%s11 + $0x20] sm:$0xff]
    %v9205 = vld [vmem:[%s11 + $0x28] sm:$0xff]
    %v9206 = vld [vmem:[%s11 + $0x30] sm:$0xff]
    %v9207 = vld [vmem:[%s11 + $0x38] sm:$0xff]
    %v9208 = vld [vmem:[%s11 + $0x40] sm:$0xff]
    %v9209 = vld [vmem:[%s11 + $0x48] sm:$0xff]
    %v9210 = vld [vmem:[%s11 + $0x50] sm:$0xff]
    %v9211 = vld [vmem:[%s11 + $0x58] sm:$0xff]
    %v9212 = vld [vmem:[%s11 + $0x60] sm:$0xff]
    %v9213 = vld [vmem:[%s11 + $0x68] sm:$0xff]
    %v9214 = vld [vmem:[%s11 + $0x70] sm:$0xff]
    %v9215 = vld [vmem:[%s11 + $0x78] sm:$0xff]
    %v9216 = vld [vmem:[%s12] sm:$0x1]
    %v9218 = vlaneseq
    %v9219 = vshrl.u32 %v9218, 7
    %v9220 = vsub.s32 0, %v9219
    %v9221 = vrot.slane %v9216, %v9220
    %9223 = vmatprep.subr.mxu0 0.0
    %v9224 = vand.u32 %v9215, 4294901760
    %9225 = vmatpush1.msra.mxu0 %v9224
    %9226 = vmatprep.subr.mxu0 0.0
    %v9227 = vand.u32 %v9214, 4294901760
    %9228 = vmatpush1.msra.mxu0 %v9227
    %9229 = vmatprep.subr.mxu0 0.0
    %v9230 = vand.u32 %v9213, 4294901760
    %9231 = vmatpush1.msra.mxu0 %v9230
    %9232 = vmatprep.subr.mxu0 0.0
    %v9233 = vand.u32 %v9212, 4294901760
    %9234 = vmatpush1.msra.mxu0 %v9233
    %9235 = vmatprep.subr.mxu0 0.0
    %v9236 = vand.u32 %v9211, 4294901760
    %9237 = vmatpush1.msra.mxu0 %v9236
    %9238 = vmatprep.subr.mxu0 0.0
    %v9239 = vand.u32 %v9210, 4294901760
    %9240 = vmatpush1.msra.mxu0 %v9239
    %9241 = vmatprep.subr.mxu0 0.0
    %v9242 = vand.u32 %v9209, 4294901760
    %9243 = vmatpush1.msra.mxu0 %v9242
    %9244 = vmatprep.subr.mxu0 0.0
    %v9245 = vand.u32 %v9208, 4294901760
    %9246 = vmatpush1.msra.mxu0 %v9245
    %9247 = vmatprep.subr.mxu0 0.0
    %v9248 = vand.u32 %v9207, 4294901760
    %9249 = vmatpush1.msra.mxu0 %v9248
    %9250 = vmatprep.subr.mxu0 0.0
    %v9251 = vand.u32 %v9206, 4294901760
    %9252 = vmatpush1.msra.mxu0 %v9251
    %9253 = vmatprep.subr.mxu0 0.0
    %v9254 = vand.u32 %v9205, 4294901760
    %9255 = vmatpush1.msra.mxu0 %v9254
    %9256 = vmatprep.subr.mxu0 0.0
    %v9257 = vand.u32 %v9204, 4294901760
    %9258 = vmatpush1.msra.mxu0 %v9257
    %9259 = vmatprep.subr.mxu0 0.0
    %v9260 = vand.u32 %v9203, 4294901760
    %9261 = vmatpush1.msra.mxu0 %v9260
    %9262 = vmatprep.subr.mxu0 0.0
    %v9263 = vand.u32 %v9202, 4294901760
    %9264 = vmatpush1.msra.mxu0 %v9263
    %9265 = vmatprep.subr.mxu0 0.0
    %v9266 = vand.u32 %v9201, 4294901760
    %9267 = vmatpush1.msra.mxu0 %v9266
    %9268 = vmatprep.subr.mxu0 0.0
    %v9269 = vand.u32 %v9200, 4294901760
    %9270 = vmatpush1.msra.mxu0 %v9269
    %9271 = vmatprep.subr.mxu0 0.0
    %9272 = vmatpush2.msra.mxu0 0.0
    %9273 = vmatprep.subr.mxu0 0.0
    %9274 = vmatpush2.msra.mxu0 0.0
    %9275 = vmatprep.subr.mxu0 0.0
    %9276 = vmatpush2.msra.mxu0 0.0
    %9277 = vmatprep.subr.mxu0 0.0
    %9278 = vmatpush2.msra.mxu0 0.0
    %9279 = vmatprep.subr.mxu0 0.0
    %9280 = vmatpush2.msra.mxu0 0.0
    %9281 = vmatprep.subr.mxu0 0.0
    %9282 = vmatpush2.msra.mxu0 0.0
    %9283 = vmatprep.subr.mxu0 0.0
    %9284 = vmatpush2.msra.mxu0 0.0
    %9285 = vmatprep.subr.mxu0 0.0
    %9286 = vmatpush2.msra.mxu0 0.0
    %9287 = vmatprep.subr.mxu0 0.0
    %9288 = vmatpush2.msra.mxu0 0.0
    %9289 = vmatprep.subr.mxu0 0.0
    %9290 = vmatpush2.msra.mxu0 0.0
    %9291 = vmatprep.subr.mxu0 0.0
    %9292 = vmatpush2.msra.mxu0 0.0
    %9293 = vmatprep.subr.mxu0 0.0
    %9294 = vmatpush2.msra.mxu0 0.0
    %9295 = vmatprep.subr.mxu0 0.0
    %9296 = vmatpush2.msra.mxu0 0.0
    %9297 = vmatprep.subr.mxu0 0.0
    %9298 = vmatpush2.msra.mxu0 0.0
    %9299 = vmatprep.subr.mxu0 0.0
    %9300 = vmatpush2.msra.mxu0 0.0
    %9301 = vmatprep.subr.mxu0 0.0
    %9302 = vmatpush2.msra.mxu0 0.0
    %9303 = vmatprep.mubr.f32.mxu0 0.0
    %v9304 = vand.u32 %v9198, 4294901760
    %v9305 = vsub.f32 %v9198, %v9304
    %v9306 = vand.u32 %v9305, 4294901760
    %v9307 = vsub.f32 %v9305, %v9306
    %v9308 = vand.u32 %v9307, 4294901760
    %9309 = vmatmul.mubr.f32.gmra.mxu0 %v9308
    %v9310 = vpop.f32.mrf.mxu0
    %v9311 = vadd.f32 %v9221, %v9310
    %v9312 = vpop.f32.mrf.mxu0
    %9313 = vmatprep.mubr.f32.mxu0 0.0
    %v9314 = vand.u32 %v9199, 4294901760
    %v9315 = vsub.f32 %v9199, %v9314
    %v9316 = vand.u32 %v9315, 4294901760
    %v9317 = vsub.f32 %v9315, %v9316
    %v9318 = vand.u32 %v9317, 4294901760
    %9319 = vmatmul.mubr.f32.gmra.mxu0 %v9318
    %v9320 = vpop.f32.mrf.mxu0
    %v9321 = vadd.f32 %v9221, %v9320
    %v9322 = vpop.f32.mrf.mxu0
    %9323 = vdwg.mxu0
    %9324 = vmatprep.subr.mxu0 0.0
    %v9325 = vand.u32 %v9215, 4294901760
    %v9326 = vsub.f32 %v9215, %v9325
    %v9327 = vand.u32 %v9326, 4294901760
    %v9328 = vsub.f32 %v9326, %v9327
    %v9329 = vand.u32 %v9328, 4294901760
    %9330 = vmatpush1.msra.mxu0 %v9329
    %9331 = vmatprep.subr.mxu0 0.0
    %v9332 = vand.u32 %v9214, 4294901760
    %v9333 = vsub.f32 %v9214, %v9332
    %v9334 = vand.u32 %v9333, 4294901760
    %v9335 = vsub.f32 %v9333, %v9334
    %v9336 = vand.u32 %v9335, 4294901760
    %9337 = vmatpush1.msra.mxu0 %v9336
    %9338 = vmatprep.subr.mxu0 0.0
    %v9339 = vand.u32 %v9213, 4294901760
    %v9340 = vsub.f32 %v9213, %v9339
    %v9341 = vand.u32 %v9340, 4294901760
    %v9342 = vsub.f32 %v9340, %v9341
    %v9343 = vand.u32 %v9342, 4294901760
    %9344 = vmatpush1.msra.mxu0 %v9343
    %9345 = vmatprep.subr.mxu0 0.0
    %v9346 = vand.u32 %v9212, 4294901760
    %v9347 = vsub.f32 %v9212, %v9346
    %v9348 = vand.u32 %v9347, 4294901760
    %v9349 = vsub.f32 %v9347, %v9348
    %v9350 = vand.u32 %v9349, 4294901760
    %9351 = vmatpush1.msra.mxu0 %v9350
    %9352 = vmatprep.subr.mxu0 0.0
    %v9353 = vand.u32 %v9211, 4294901760
    %v9354 = vsub.f32 %v9211, %v9353
    %v9355 = vand.u32 %v9354, 4294901760
    %v9356 = vsub.f32 %v9354, %v9355
    %v9357 = vand.u32 %v9356, 4294901760
    %9358 = vmatpush1.msra.mxu0 %v9357
    %9359 = vmatprep.subr.mxu0 0.0
    %v9360 = vand.u32 %v9210, 4294901760
    %v9361 = vsub.f32 %v9210, %v9360
    %v9362 = vand.u32 %v9361, 4294901760
    %v9363 = vsub.f32 %v9361, %v9362
    %v9364 = vand.u32 %v9363, 4294901760
    %9365 = vmatpush1.msra.mxu0 %v9364
    %9366 = vmatprep.subr.mxu0 0.0
    %v9367 = vand.u32 %v9209, 4294901760
    %v9368 = vsub.f32 %v9209, %v9367
    %v9369 = vand.u32 %v9368, 4294901760
    %v9370 = vsub.f32 %v9368, %v9369
    %v9371 = vand.u32 %v9370, 4294901760
    %9372 = vmatpush1.msra.mxu0 %v9371
    %9373 = vmatprep.subr.mxu0 0.0
    %v9374 = vand.u32 %v9208, 4294901760
    %v9375 = vsub.f32 %v9208, %v9374
    %v9376 = vand.u32 %v9375, 4294901760
    %v9377 = vsub.f32 %v9375, %v9376
    %v9378 = vand.u32 %v9377, 4294901760
    %9379 = vmatpush1.msra.mxu0 %v9378
    %9380 = vmatprep.subr.mxu0 0.0
    %v9381 = vand.u32 %v9207, 4294901760
    %v9382 = vsub.f32 %v9207, %v9381
    %v9383 = vand.u32 %v9382, 4294901760
    %v9384 = vsub.f32 %v9382, %v9383
    %v9385 = vand.u32 %v9384, 4294901760
    %9386 = vmatpush1.msra.mxu0 %v9385
    %9387 = vmatprep.subr.mxu0 0.0
    %v9388 = vand.u32 %v9206, 4294901760
    %v9389 = vsub.f32 %v9206, %v9388
    %v9390 = vand.u32 %v9389, 4294901760
    %v9391 = vsub.f32 %v9389, %v9390
    %v9392 = vand.u32 %v9391, 4294901760
    %9393 = vmatpush1.msra.mxu0 %v9392
    %9394 = vmatprep.subr.mxu0 0.0
    %v9395 = vand.u32 %v9205, 4294901760
    %v9396 = vsub.f32 %v9205, %v9395
    %v9397 = vand.u32 %v9396, 4294901760
    %v9398 = vsub.f32 %v9396, %v9397
    %v9399 = vand.u32 %v9398, 4294901760
    %9400 = vmatpush1.msra.mxu0 %v9399
    %9401 = vmatprep.subr.mxu0 0.0
    %v9402 = vand.u32 %v9204, 4294901760
    %v9403 = vsub.f32 %v9204, %v9402
    %v9404 = vand.u32 %v9403, 4294901760
    %v9405 = vsub.f32 %v9403, %v9404
    %v9406 = vand.u32 %v9405, 4294901760
    %9407 = vmatpush1.msra.mxu0 %v9406
    %9408 = vmatprep.subr.mxu0 0.0
    %v9409 = vand.u32 %v9203, 4294901760
    %v9410 = vsub.f32 %v9203, %v9409
    %v9411 = vand.u32 %v9410, 4294901760
    %v9412 = vsub.f32 %v9410, %v9411
    %v9413 = vand.u32 %v9412, 4294901760
    %9414 = vmatpush1.msra.mxu0 %v9413
    %9415 = vmatprep.subr.mxu0 0.0
    %v9416 = vand.u32 %v9202, 4294901760
    %v9417 = vsub.f32 %v9202, %v9416
    %v9418 = vand.u32 %v9417, 4294901760
    %v9419 = vsub.f32 %v9417, %v9418
    %v9420 = vand.u32 %v9419, 4294901760
    %9421 = vmatpush1.msra.mxu0 %v9420
    %9422 = vmatprep.subr.mxu0 0.0
    %v9423 = vand.u32 %v9201, 4294901760
    %v9424 = vsub.f32 %v9201, %v9423
    %v9425 = vand.u32 %v9424, 4294901760
    %v9426 = vsub.f32 %v9424, %v9425
    %v9427 = vand.u32 %v9426, 4294901760
    %9428 = vmatpush1.msra.mxu0 %v9427
    %9429 = vmatprep.subr.mxu0 0.0
    %v9430 = vand.u32 %v9200, 4294901760
    %v9431 = vsub.f32 %v9200, %v9430
    %v9432 = vand.u32 %v9431, 4294901760
    %v9433 = vsub.f32 %v9431, %v9432
    %v9434 = vand.u32 %v9433, 4294901760
    %9435 = vmatpush1.msra.mxu0 %v9434
    %9436 = vmatprep.subr.mxu0 0.0
    %9437 = vmatpush2.msra.mxu0 0.0
    %9438 = vmatprep.subr.mxu0 0.0
    %9439 = vmatpush2.msra.mxu0 0.0
    %9440 = vmatprep.subr.mxu0 0.0
    %9441 = vmatpush2.msra.mxu0 0.0
    %9442 = vmatprep.subr.mxu0 0.0
    %9443 = vmatpush2.msra.mxu0 0.0
    %9444 = vmatprep.subr.mxu0 0.0
    %9445 = vmatpush2.msra.mxu0 0.0
    %9446 = vmatprep.subr.mxu0 0.0
    %9447 = vmatpush2.msra.mxu0 0.0
    %9448 = vmatprep.subr.mxu0 0.0
    %9449 = vmatpush2.msra.mxu0 0.0
    %9450 = vmatprep.subr.mxu0 0.0
    %9451 = vmatpush2.msra.mxu0 0.0
    %9452 = vmatprep.subr.mxu0 0.0
    %9453 = vmatpush2.msra.mxu0 0.0
    %9454 = vmatprep.subr.mxu0 0.0
    %9455 = vmatpush2.msra.mxu0 0.0
    %9456 = vmatprep.subr.mxu0 0.0
    %9457 = vmatpush2.msra.mxu0 0.0
    %9458 = vmatprep.subr.mxu0 0.0
    %9459 = vmatpush2.msra.mxu0 0.0
    %9460 = vmatprep.subr.mxu0 0.0
    %9461 = vmatpush2.msra.mxu0 0.0
    %9462 = vmatprep.subr.mxu0 0.0
    %9463 = vmatpush2.msra.mxu0 0.0
    %9464 = vmatprep.subr.mxu0 0.0
    %9465 = vmatpush2.msra.mxu0 0.0
    %9466 = vmatprep.subr.mxu0 0.0
    %9467 = vmatpush2.msra.mxu0 0.0
    %9468 = vmatprep.mubr.f32.mxu0 0.0
    %v9469 = vand.u32 %v9198, 4294901760
    %9470 = vmatmul.mubr.f32.gmra.mxu0 %v9469
    %v9471 = vpop.f32.mrf.mxu0
    %v9472 = vadd.f32 %v9311, %v9471
    %v9473 = vpop.f32.mrf.mxu0
    %9474 = vmatprep.mubr.f32.mxu0 0.0
    %v9475 = vand.u32 %v9199, 4294901760
    %9476 = vmatmul.mubr.f32.gmra.mxu0 %v9475
    %v9477 = vpop.f32.mrf.mxu0
    %v9478 = vadd.f32 %v9321, %v9477
    %v9479 = vpop.f32.mrf.mxu0
    %9480 = vdwg.mxu0
    %9481 = vmatprep.subr.mxu0 0.0
    %v9482 = vand.u32 %v9215, 4294901760
    %v9483 = vsub.f32 %v9215, %v9482
    %9484 = vmatpush1.msra.mxu0 %v9483
    %9485 = vmatprep.subr.mxu0 0.0
    %v9486 = vand.u32 %v9214, 4294901760
    %v9487 = vsub.f32 %v9214, %v9486
    %9488 = vmatpush1.msra.mxu0 %v9487
    %9489 = vmatprep.subr.mxu0 0.0
    %v9490 = vand.u32 %v9213, 4294901760
    %v9491 = vsub.f32 %v9213, %v9490
    %9492 = vmatpush1.msra.mxu0 %v9491
    %9493 = vmatprep.subr.mxu0 0.0
    %v9494 = vand.u32 %v9212, 4294901760
    %v9495 = vsub.f32 %v9212, %v9494
    %9496 = vmatpush1.msra.mxu0 %v9495
    %9497 = vmatprep.subr.mxu0 0.0
    %v9498 = vand.u32 %v9211, 4294901760
    %v9499 = vsub.f32 %v9211, %v9498
    %9500 = vmatpush1.msra.mxu0 %v9499
    %9501 = vmatprep.subr.mxu0 0.0
    %v9502 = vand.u32 %v9210, 4294901760
    %v9503 = vsub.f32 %v9210, %v9502
    %9504 = vmatpush1.msra.mxu0 %v9503
    %9505 = vmatprep.subr.mxu0 0.0
    %v9506 = vand.u32 %v9209, 4294901760
    %v9507 = vsub.f32 %v9209, %v9506
    %9508 = vmatpush1.msra.mxu0 %v9507
    %9509 = vmatprep.subr.mxu0 0.0
    %v9510 = vand.u32 %v9208, 4294901760
    %v9511 = vsub.f32 %v9208, %v9510
    %9512 = vmatpush1.msra.mxu0 %v9511
    %9513 = vmatprep.subr.mxu0 0.0
    %v9514 = vand.u32 %v9207, 4294901760
    %v9515 = vsub.f32 %v9207, %v9514
    %9516 = vmatpush1.msra.mxu0 %v9515
    %9517 = vmatprep.subr.mxu0 0.0
    %v9518 = vand.u32 %v9206, 4294901760
    %v9519 = vsub.f32 %v9206, %v9518
    %9520 = vmatpush1.msra.mxu0 %v9519
    %9521 = vmatprep.subr.mxu0 0.0
    %v9522 = vand.u32 %v9205, 4294901760
    %v9523 = vsub.f32 %v9205, %v9522
    %9524 = vmatpush1.msra.mxu0 %v9523
    %9525 = vmatprep.subr.mxu0 0.0
    %v9526 = vand.u32 %v9204, 4294901760
    %v9527 = vsub.f32 %v9204, %v9526
    %9528 = vmatpush1.msra.mxu0 %v9527
    %9529 = vmatprep.subr.mxu0 0.0
    %v9530 = vand.u32 %v9203, 4294901760
    %v9531 = vsub.f32 %v9203, %v9530
    %9532 = vmatpush1.msra.mxu0 %v9531
    %9533 = vmatprep.subr.mxu0 0.0
    %v9534 = vand.u32 %v9202, 4294901760
    %v9535 = vsub.f32 %v9202, %v9534
    %9536 = vmatpush1.msra.mxu0 %v9535
    %9537 = vmatprep.subr.mxu0 0.0
    %v9538 = vand.u32 %v9201, 4294901760
    %v9539 = vsub.f32 %v9201, %v9538
    %9540 = vmatpush1.msra.mxu0 %v9539
    %9541 = vmatprep.subr.mxu0 0.0
    %v9542 = vand.u32 %v9200, 4294901760
    %v9543 = vsub.f32 %v9200, %v9542
    %9544 = vmatpush1.msra.mxu0 %v9543
    %9545 = vmatprep.subr.mxu0 0.0
    %9546 = vmatpush2.msra.mxu0 0.0
    %9547 = vmatprep.subr.mxu0 0.0
    %9548 = vmatpush2.msra.mxu0 0.0
    %9549 = vmatprep.subr.mxu0 0.0
    %9550 = vmatpush2.msra.mxu0 0.0
    %9551 = vmatprep.subr.mxu0 0.0
    %9552 = vmatpush2.msra.mxu0 0.0
    %9553 = vmatprep.subr.mxu0 0.0
    %9554 = vmatpush2.msra.mxu0 0.0
    %9555 = vmatprep.subr.mxu0 0.0
    %9556 = vmatpush2.msra.mxu0 0.0
    %9557 = vmatprep.subr.mxu0 0.0
    %9558 = vmatpush2.msra.mxu0 0.0
    %9559 = vmatprep.subr.mxu0 0.0
    %9560 = vmatpush2.msra.mxu0 0.0
    %9561 = vmatprep.subr.mxu0 0.0
    %9562 = vmatpush2.msra.mxu0 0.0
    %9563 = vmatprep.subr.mxu0 0.0
    %9564 = vmatpush2.msra.mxu0 0.0
    %9565 = vmatprep.subr.mxu0 0.0
    %9566 = vmatpush2.msra.mxu0 0.0
    %9567 = vmatprep.subr.mxu0 0.0
    %9568 = vmatpush2.msra.mxu0 0.0
    %9569 = vmatprep.subr.mxu0 0.0
    %9570 = vmatpush2.msra.mxu0 0.0
    %9571 = vmatprep.subr.mxu0 0.0
    %9572 = vmatpush2.msra.mxu0 0.0
    %9573 = vmatprep.subr.mxu0 0.0
    %9574 = vmatpush2.msra.mxu0 0.0
    %9575 = vmatprep.subr.mxu0 0.0
    %9576 = vmatpush2.msra.mxu0 0.0
    %9577 = vmatprep.mubr.f32.mxu0 0.0
    %v9578 = vand.u32 %v9198, 4294901760
    %v9579 = vsub.f32 %v9198, %v9578
    %9580 = vmatmul.mubr.f32.gmra.mxu0 %v9579
    %v9581 = vpop.f32.mrf.mxu0
    %v9582 = vadd.f32 %v9472, %v9581
    %v9583 = vpop.f32.mrf.mxu0
    %9584 = vmatprep.mubr.f32.mxu0 0.0
    %v9585 = vand.u32 %v9199, 4294901760
    %v9586 = vsub.f32 %v9199, %v9585
    %9587 = vmatmul.mubr.f32.gmra.mxu0 %v9586
    %v9588 = vpop.f32.mrf.mxu0
    %v9589 = vadd.f32 %v9478, %v9588
    %v9590 = vpop.f32.mrf.mxu0
    %9591 = vdwg.mxu0
    %9592 = vmatprep.subr.mxu0 0.0
    %v9593 = vand.u32 %v9215, 4294901760
    %9594 = vmatpush1.msra.mxu0 %v9593
    %9595 = vmatprep.subr.mxu0 0.0
    %v9596 = vand.u32 %v9214, 4294901760
    %9597 = vmatpush1.msra.mxu0 %v9596
    %9598 = vmatprep.subr.mxu0 0.0
    %v9599 = vand.u32 %v9213, 4294901760
    %9600 = vmatpush1.msra.mxu0 %v9599
    %9601 = vmatprep.subr.mxu0 0.0
    %v9602 = vand.u32 %v9212, 4294901760
    %9603 = vmatpush1.msra.mxu0 %v9602
    %9604 = vmatprep.subr.mxu0 0.0
    %v9605 = vand.u32 %v9211, 4294901760
    %9606 = vmatpush1.msra.mxu0 %v9605
    %9607 = vmatprep.subr.mxu0 0.0
    %v9608 = vand.u32 %v9210, 4294901760
    %9609 = vmatpush1.msra.mxu0 %v9608
    %9610 = vmatprep.subr.mxu0 0.0
    %v9611 = vand.u32 %v9209, 4294901760
    %9612 = vmatpush1.msra.mxu0 %v9611
    %9613 = vmatprep.subr.mxu0 0.0
    %v9614 = vand.u32 %v9208, 4294901760
    %9615 = vmatpush1.msra.mxu0 %v9614
    %9616 = vmatprep.subr.mxu0 0.0
    %v9617 = vand.u32 %v9207, 4294901760
    %9618 = vmatpush1.msra.mxu0 %v9617
    %9619 = vmatprep.subr.mxu0 0.0
    %v9620 = vand.u32 %v9206, 4294901760
    %9621 = vmatpush1.msra.mxu0 %v9620
    %9622 = vmatprep.subr.mxu0 0.0
    %v9623 = vand.u32 %v9205, 4294901760
    %9624 = vmatpush1.msra.mxu0 %v9623
    %9625 = vmatprep.subr.mxu0 0.0
    %v9626 = vand.u32 %v9204, 4294901760
    %9627 = vmatpush1.msra.mxu0 %v9626
    %9628 = vmatprep.subr.mxu0 0.0
    %v9629 = vand.u32 %v9203, 4294901760
    %9630 = vmatpush1.msra.mxu0 %v9629
    %9631 = vmatprep.subr.mxu0 0.0
    %v9632 = vand.u32 %v9202, 4294901760
    %9633 = vmatpush1.msra.mxu0 %v9632
    %9634 = vmatprep.subr.mxu0 0.0
    %v9635 = vand.u32 %v9201, 4294901760
    %9636 = vmatpush1.msra.mxu0 %v9635
    %9637 = vmatprep.subr.mxu0 0.0
    %v9638 = vand.u32 %v9200, 4294901760
    %9639 = vmatpush1.msra.mxu0 %v9638
    %9640 = vmatprep.subr.mxu0 0.0
    %9641 = vmatpush2.msra.mxu0 0.0
    %9642 = vmatprep.subr.mxu0 0.0
    %9643 = vmatpush2.msra.mxu0 0.0
    %9644 = vmatprep.subr.mxu0 0.0
    %9645 = vmatpush2.msra.mxu0 0.0
    %9646 = vmatprep.subr.mxu0 0.0
    %9647 = vmatpush2.msra.mxu0 0.0
    %9648 = vmatprep.subr.mxu0 0.0
    %9649 = vmatpush2.msra.mxu0 0.0
    %9650 = vmatprep.subr.mxu0 0.0
    %9651 = vmatpush2.msra.mxu0 0.0
    %9652 = vmatprep.subr.mxu0 0.0
    %9653 = vmatpush2.msra.mxu0 0.0
    %9654 = vmatprep.subr.mxu0 0.0
    %9655 = vmatpush2.msra.mxu0 0.0
    %9656 = vmatprep.subr.mxu0 0.0
    %9657 = vmatpush2.msra.mxu0 0.0
    %9658 = vmatprep.subr.mxu0 0.0
    %9659 = vmatpush2.msra.mxu0 0.0
    %9660 = vmatprep.subr.mxu0 0.0
    %9661 = vmatpush2.msra.mxu0 0.0
    %9662 = vmatprep.subr.mxu0 0.0
    %9663 = vmatpush2.msra.mxu0 0.0
    %9664 = vmatprep.subr.mxu0 0.0
    %9665 = vmatpush2.msra.mxu0 0.0
    %9666 = vmatprep.subr.mxu0 0.0
    %9667 = vmatpush2.msra.mxu0 0.0
    %9668 = vmatprep.subr.mxu0 0.0
    %9669 = vmatpush2.msra.mxu0 0.0
    %9670 = vmatprep.subr.mxu0 0.0
    %9671 = vmatpush2.msra.mxu0 0.0
    %9672 = vmatprep.mubr.f32.mxu0 0.0
    %v9673 = vand.u32 %v9198, 4294901760
    %v9674 = vsub.f32 %v9198, %v9673
    %v9675 = vand.u32 %v9674, 4294901760
    %9676 = vmatmul.mubr.f32.gmra.mxu0 %v9675
    %v9677 = vpop.f32.mrf.mxu0
    %v9678 = vadd.f32 %v9582, %v9677
    %v9679 = vpop.f32.mrf.mxu0
    %9680 = vmatprep.mubr.f32.mxu0 0.0
    %v9681 = vand.u32 %v9199, 4294901760
    %v9682 = vsub.f32 %v9199, %v9681
    %v9683 = vand.u32 %v9682, 4294901760
    %9684 = vmatmul.mubr.f32.gmra.mxu0 %v9683
    %v9685 = vpop.f32.mrf.mxu0
    %v9686 = vadd.f32 %v9589, %v9685
    %v9687 = vpop.f32.mrf.mxu0
    %9688 = vdwg.mxu0
    %9689 = vmatprep.subr.mxu0 0.0
    %v9690 = vand.u32 %v9215, 4294901760
    %v9691 = vsub.f32 %v9215, %v9690
    %v9692 = vand.u32 %v9691, 4294901760
    %9693 = vmatpush1.msra.mxu0 %v9692
    %9694 = vmatprep.subr.mxu0 0.0
    %v9695 = vand.u32 %v9214, 4294901760
    %v9696 = vsub.f32 %v9214, %v9695
    %v9697 = vand.u32 %v9696, 4294901760
    %9698 = vmatpush1.msra.mxu0 %v9697
    %9699 = vmatprep.subr.mxu0 0.0
    %v9700 = vand.u32 %v9213, 4294901760
    %v9701 = vsub.f32 %v9213, %v9700
    %v9702 = vand.u32 %v9701, 4294901760
    %9703 = vmatpush1.msra.mxu0 %v9702
    %9704 = vmatprep.subr.mxu0 0.0
    %v9705 = vand.u32 %v9212, 4294901760
    %v9706 = vsub.f32 %v9212, %v9705
    %v9707 = vand.u32 %v9706, 4294901760
    %9708 = vmatpush1.msra.mxu0 %v9707
    %9709 = vmatprep.subr.mxu0 0.0
    %v9710 = vand.u32 %v9211, 4294901760
    %v9711 = vsub.f32 %v9211, %v9710
    %v9712 = vand.u32 %v9711, 4294901760
    %9713 = vmatpush1.msra.mxu0 %v9712
    %9714 = vmatprep.subr.mxu0 0.0
    %v9715 = vand.u32 %v9210, 4294901760
    %v9716 = vsub.f32 %v9210, %v9715
    %v9717 = vand.u32 %v9716, 4294901760
    %9718 = vmatpush1.msra.mxu0 %v9717
    %9719 = vmatprep.subr.mxu0 0.0
    %v9720 = vand.u32 %v9209, 4294901760
    %v9721 = vsub.f32 %v9209, %v9720
    %v9722 = vand.u32 %v9721, 4294901760
    %9723 = vmatpush1.msra.mxu0 %v9722
    %9724 = vmatprep.subr.mxu0 0.0
    %v9725 = vand.u32 %v9208, 4294901760
    %v9726 = vsub.f32 %v9208, %v9725
    %v9727 = vand.u32 %v9726, 4294901760
    %9728 = vmatpush1.msra.mxu0 %v9727
    %9729 = vmatprep.subr.mxu0 0.0
    %v9730 = vand.u32 %v9207, 4294901760
    %v9731 = vsub.f32 %v9207, %v9730
    %v9732 = vand.u32 %v9731, 4294901760
    %9733 = vmatpush1.msra.mxu0 %v9732
    %9734 = vmatprep.subr.mxu0 0.0
    %v9735 = vand.u32 %v9206, 4294901760
    %v9736 = vsub.f32 %v9206, %v9735
    %v9737 = vand.u32 %v9736, 4294901760
    %9738 = vmatpush1.msra.mxu0 %v9737
    %9739 = vmatprep.subr.mxu0 0.0
    %v9740 = vand.u32 %v9205, 4294901760
    %v9741 = vsub.f32 %v9205, %v9740
    %v9742 = vand.u32 %v9741, 4294901760
    %9743 = vmatpush1.msra.mxu0 %v9742
    %9744 = vmatprep.subr.mxu0 0.0
    %v9745 = vand.u32 %v9204, 4294901760
    %v9746 = vsub.f32 %v9204, %v9745
    %v9747 = vand.u32 %v9746, 4294901760
    %9748 = vmatpush1.msra.mxu0 %v9747
    %9749 = vmatprep.subr.mxu0 0.0
    %v9750 = vand.u32 %v9203, 4294901760
    %v9751 = vsub.f32 %v9203, %v9750
    %v9752 = vand.u32 %v9751, 4294901760
    %9753 = vmatpush1.msra.mxu0 %v9752
    %9754 = vmatprep.subr.mxu0 0.0
    %v9755 = vand.u32 %v9202, 4294901760
    %v9756 = vsub.f32 %v9202, %v9755
    %v9757 = vand.u32 %v9756, 4294901760
    %9758 = vmatpush1.msra.mxu0 %v9757
    %9759 = vmatprep.subr.mxu0 0.0
    %v9760 = vand.u32 %v9201, 4294901760
    %v9761 = vsub.f32 %v9201, %v9760
    %v9762 = vand.u32 %v9761, 4294901760
    %9763 = vmatpush1.msra.mxu0 %v9762
    %9764 = vmatprep.subr.mxu0 0.0
    %v9765 = vand.u32 %v9200, 4294901760
    %v9766 = vsub.f32 %v9200, %v9765
    %v9767 = vand.u32 %v9766, 4294901760
    %9768 = vmatpush1.msra.mxu0 %v9767
    %9769 = vmatprep.subr.mxu0 0.0
    %9770 = vmatpush2.msra.mxu0 0.0
    %9771 = vmatprep.subr.mxu0 0.0
    %9772 = vmatpush2.msra.mxu0 0.0
    %9773 = vmatprep.subr.mxu0 0.0
    %9774 = vmatpush2.msra.mxu0 0.0
    %9775 = vmatprep.subr.mxu0 0.0
    %9776 = vmatpush2.msra.mxu0 0.0
    %9777 = vmatprep.subr.mxu0 0.0
    %9778 = vmatpush2.msra.mxu0 0.0
    %9779 = vmatprep.subr.mxu0 0.0
    %9780 = vmatpush2.msra.mxu0 0.0
    %9781 = vmatprep.subr.mxu0 0.0
    %9782 = vmatpush2.msra.mxu0 0.0
    %9783 = vmatprep.subr.mxu0 0.0
    %9784 = vmatpush2.msra.mxu0 0.0
    %9785 = vmatprep.subr.mxu0 0.0
    %9786 = vmatpush2.msra.mxu0 0.0
    %9787 = vmatprep.subr.mxu0 0.0
    %9788 = vmatpush2.msra.mxu0 0.0
    %9789 = vmatprep.subr.mxu0 0.0
    %9790 = vmatpush2.msra.mxu0 0.0
    %9791 = vmatprep.subr.mxu0 0.0
    %9792 = vmatpush2.msra.mxu0 0.0
    %9793 = vmatprep.subr.mxu0 0.0
    %9794 = vmatpush2.msra.mxu0 0.0
    %9795 = vmatprep.subr.mxu0 0.0
    %9796 = vmatpush2.msra.mxu0 0.0
    %9797 = vmatprep.subr.mxu0 0.0
    %9798 = vmatpush2.msra.mxu0 0.0
    %9799 = vmatprep.subr.mxu0 0.0
    %9800 = vmatpush2.msra.mxu0 0.0
    %9801 = vmatprep.mubr.f32.mxu0 0.0
    %v9802 = vand.u32 %v9198, 4294901760
    %9803 = vmatmul.mubr.f32.gmra.mxu0 %v9802
    %v9804 = vpop.f32.mrf.mxu0
    %v9805 = vadd.f32 %v9678, %v9804
    %v9806 = vpop.f32.mrf.mxu0
    %9807 = vmatprep.mubr.f32.mxu0 0.0
    %v9808 = vand.u32 %v9199, 4294901760
    %9809 = vmatmul.mubr.f32.gmra.mxu0 %v9808
    %v9810 = vpop.f32.mrf.mxu0
    %v9811 = vadd.f32 %v9686, %v9810
    %v9812 = vpop.f32.mrf.mxu0
    %9813 = vdwg.mxu0
    %9814 = vmatprep.subr.mxu0 0.0
    %v9815 = vand.u32 %v9215, 4294901760
    %9816 = vmatpush1.msra.mxu0 %v9815
    %9817 = vmatprep.subr.mxu0 0.0
    %v9818 = vand.u32 %v9214, 4294901760
    %9819 = vmatpush1.msra.mxu0 %v9818
    %9820 = vmatprep.subr.mxu0 0.0
    %v9821 = vand.u32 %v9213, 4294901760
    %9822 = vmatpush1.msra.mxu0 %v9821
    %9823 = vmatprep.subr.mxu0 0.0
    %v9824 = vand.u32 %v9212, 4294901760
    %9825 = vmatpush1.msra.mxu0 %v9824
    %9826 = vmatprep.subr.mxu0 0.0
    %v9827 = vand.u32 %v9211, 4294901760
    %9828 = vmatpush1.msra.mxu0 %v9827
    %9829 = vmatprep.subr.mxu0 0.0
    %v9830 = vand.u32 %v9210, 4294901760
    %9831 = vmatpush1.msra.mxu0 %v9830
    %9832 = vmatprep.subr.mxu0 0.0
    %v9833 = vand.u32 %v9209, 4294901760
    %9834 = vmatpush1.msra.mxu0 %v9833
    %9835 = vmatprep.subr.mxu0 0.0
    %v9836 = vand.u32 %v9208, 4294901760
    %9837 = vmatpush1.msra.mxu0 %v9836
    %9838 = vmatprep.subr.mxu0 0.0
    %v9839 = vand.u32 %v9207, 4294901760
    %9840 = vmatpush1.msra.mxu0 %v9839
    %9841 = vmatprep.subr.mxu0 0.0
    %v9842 = vand.u32 %v9206, 4294901760
    %9843 = vmatpush1.msra.mxu0 %v9842
    %9844 = vmatprep.subr.mxu0 0.0
    %v9845 = vand.u32 %v9205, 4294901760
    %9846 = vmatpush1.msra.mxu0 %v9845
    %9847 = vmatprep.subr.mxu0 0.0
    %v9848 = vand.u32 %v9204, 4294901760
    %9849 = vmatpush1.msra.mxu0 %v9848
    %9850 = vmatprep.subr.mxu0 0.0
    %v9851 = vand.u32 %v9203, 4294901760
    %9852 = vmatpush1.msra.mxu0 %v9851
    %9853 = vmatprep.subr.mxu0 0.0
    %v9854 = vand.u32 %v9202, 4294901760
    %9855 = vmatpush1.msra.mxu0 %v9854
    %9856 = vmatprep.subr.mxu0 0.0
    %v9857 = vand.u32 %v9201, 4294901760
    %9858 = vmatpush1.msra.mxu0 %v9857
    %9859 = vmatprep.subr.mxu0 0.0
    %v9860 = vand.u32 %v9200, 4294901760
    %9861 = vmatpush1.msra.mxu0 %v9860
    %9862 = vmatprep.subr.mxu0 0.0
    %9863 = vmatpush2.msra.mxu0 0.0
    %9864 = vmatprep.subr.mxu0 0.0
    %9865 = vmatpush2.msra.mxu0 0.0
    %9866 = vmatprep.subr.mxu0 0.0
    %9867 = vmatpush2.msra.mxu0 0.0
    %9868 = vmatprep.subr.mxu0 0.0
    %9869 = vmatpush2.msra.mxu0 0.0
    %9870 = vmatprep.subr.mxu0 0.0
    %9871 = vmatpush2.msra.mxu0 0.0
    %9872 = vmatprep.subr.mxu0 0.0
    %9873 = vmatpush2.msra.mxu0 0.0
    %9874 = vmatprep.subr.mxu0 0.0
    %9875 = vmatpush2.msra.mxu0 0.0
    %9876 = vmatprep.subr.mxu0 0.0
    %9877 = vmatpush2.msra.mxu0 0.0
    %9878 = vmatprep.subr.mxu0 0.0
    %9879 = vmatpush2.msra.mxu0 0.0
    %9880 = vmatprep.subr.mxu0 0.0
    %9881 = vmatpush2.msra.mxu0 0.0
    %9882 = vmatprep.subr.mxu0 0.0
    %9883 = vmatpush2.msra.mxu0 0.0
    %9884 = vmatprep.subr.mxu0 0.0
    %9885 = vmatpush2.msra.mxu0 0.0
    %9886 = vmatprep.subr.mxu0 0.0
    %9887 = vmatpush2.msra.mxu0 0.0
    %9888 = vmatprep.subr.mxu0 0.0
    %9889 = vmatpush2.msra.mxu0 0.0
    %9890 = vmatprep.subr.mxu0 0.0
    %9891 = vmatpush2.msra.mxu0 0.0
    %9892 = vmatprep.subr.mxu0 0.0
    %9893 = vmatpush2.msra.mxu0 0.0
    %9894 = vmatprep.mubr.f32.mxu0 0.0
    %v9895 = vand.u32 %v9198, 4294901760
    %9896 = vmatmul.mubr.f32.gmra.mxu0 %v9895
    %v9897 = vpop.f32.mrf.mxu0
    %v9898 = vadd.f32 %v9805, %v9897
    %v9899 = vpop.f32.mrf.mxu0
    %9900 = vmatprep.mubr.f32.mxu0 0.0
    %v9901 = vand.u32 %v9199, 4294901760
    %9902 = vmatmul.mubr.f32.gmra.mxu0 %v9901
    %v9903 = vpop.f32.mrf.mxu0
    %v9904 = vadd.f32 %v9811, %v9903
    %v9905 = vpop.f32.mrf.mxu0
    %9906 = vdwg.mxu0
    %v9907 = vadd.f32 %v8555, %v9898
    %v9908 = vadd.f32 %v8556, %v9904
    %9909 = vst.msk [vmem:[#allocation3] sm:$0xff] %vm49, %v9907
    %9910 = vst.msk [vmem:[#allocation3 + $0x8] sm:$0xff] %vm49, %v9908
    // Predicated region
    $region54: #{tpu_custom_call.1} parent=1 // pred_check
      _
    $region55: #{tpu_custom_call.1} parent=1 // pred_check_branch
      %9912 = sbr.rel (0) target = $region57
    $region56: #{tpu_custom_call.1} parent=1 // pred_region
      %s9914 = ssub.s32 256, 256
      %9915 = vsyncadd [#allocation4], %s9914
      %s9916 = sshll.u32 [#allocation3], 4
      %s9917 = int_to_ptr.vmem [resolvable:$true] %s9916
      %9922 = dma.vmem_to_hbm [thread:$0]  %s9917, 256, %s13, [#allocation4], 128, 128, 8
    $region57: #{tpu_custom_call.1} parent=1 // pred_fallthru
      _
    // Predicated region
    $region58: #{tpu_custom_call.1} parent=1 // pred_check
      _
    $region59: #{tpu_custom_call.1} parent=1 // pred_check_branch
      %9924 = sbr.rel (0) target = $region61
    $region60: #{tpu_custom_call.1} parent=1 // pred_region
      %9925 = dma.done [#allocation4], 256
    $region61: #{tpu_custom_call.1} parent=1 // pred_fallthru
      _
    %9926 = vsyncpa [#allocation4], 1

</llo_original>
